<compile_context>
chip_gen: v7x
topology: tpu7x:2x2x1
jax: 0.10.0
libtpu: 0.0.40
codegen_flags: <defaults>
</compile_context>

<pallas_src>
import functools
import math

import jax
import jax.numpy as jnp
from jax.experimental import pallas as pl
from jax.experimental.pallas import tpu as pltpu


# --------------------------------------------------------------------------
# small helpers
# --------------------------------------------------------------------------

def _round_up(x, m):
    return (x + m - 1) // m * m


def _pick_tile(padded_dim, cap=512):
    """Largest multiple of 128 (<= cap) dividing padded_dim (which is 128-aligned)."""
    assert padded_dim % 128 == 0
    best = 128
    t = 256
    while t <= cap:
        if padded_dim % t == 0:
            best = t
        t += 128
    return best


# --------------------------------------------------------------------------
# Gridded matmul + bias + ReLU kernel (the conv workhorse)
# --------------------------------------------------------------------------

def _matmul_kernel(a_ref, b_ref, bias_ref, o_ref, acc_ref, *, apply_relu):
    """One (tm, tn) output tile; K is reduced across grid axis 2."""
    k = pl.program_id(2)

    @pl.when(k == 0)
    def _init():
        acc_ref[...] = jnp.zeros_like(acc_ref)

    acc_ref[...] += jnp.dot(a_ref[...], b_ref[...],
                            preferred_element_type=jnp.float32)

    @pl.when(k == pl.num_programs(2) - 1)
    def _finalize():
        r = acc_ref[...] + bias_ref[...]
        if apply_relu:
            r = jnp.maximum(r, 0.0)
        o_ref[...] = r.astype(o_ref.dtype)


def matmul_bias_act(a, wmat, bias, *, apply_relu):
    """a:(M,K) bf16/f32, wmat:(Kp,Np) bf16 (pre-padded), bias:(1,Np) f32 -> (M,Np) bf16."""
    M, K = a.shape
    Kp, Np = wmat.shape
    assert K <= Kp and Kp % 128 == 0 and Np % 128 == 0

    if M >= 256:
        tm = 256
        Mp = _round_up(M, tm)
    else:
        Mp = _round_up(M, 16)
        tm = Mp
    tk = _pick_tile(Kp)
    tn = _pick_tile(Np)

    a = a.astype(jnp.bfloat16)
    if Mp > M or Kp > K:
        a = jnp.pad(a, ((0, Mp - M), (0, Kp - K)))

    out = pl.pallas_call(
        functools.partial(_matmul_kernel, apply_relu=apply_relu),
        out_shape=jax.ShapeDtypeStruct((Mp, Np), jnp.bfloat16),
        grid_spec=pltpu.PrefetchScalarGridSpec(
            num_scalar_prefetch=0,
            grid=(Mp // tm, Np // tn, Kp // tk),
            in_specs=[
                pl.BlockSpec((tm, tk), lambda i, j, k: (i, k)),
                pl.BlockSpec((tk, tn), lambda i, j, k: (k, j)),
                pl.BlockSpec((1, tn), lambda i, j, k: (0, j)),
            ],
            out_specs=pl.BlockSpec((tm, tn), lambda i, j, k: (i, j)),
            scratch_shapes=[pltpu.VMEM((tm, tn), jnp.float32)],
        ),
        compiler_params=pltpu.CompilerParams(
            dimension_semantics=("parallel", "parallel", "arbitrary"),
            vmem_limit_bytes=48 * 1024 * 1024,
        ),
    )(a, wmat, bias)
    return out[:M]


# --------------------------------------------------------------------------
# MaxPool2d(kernel=3, stride=2) kernel on (H, W, N, C) layout
#   - reads the feature map once (no 9x window duplication in HBM)
#   - grid over channel tiles of 128 (lane-dense), pooling only touches leading dims
# --------------------------------------------------------------------------

def _maxpool3x3s2_kernel(x_ref, o_ref, *, oh, ow):
    x = x_ref[...]                                     # (H, W, Nt, 128)
    # pool along H (leading dim): max(x[i], x[i+1]) pairs, then pair-of-pairs
    y = jnp.maximum(x[:-1], x[1:])                     # (H-1, W, Nt, 128)
    y = y[: 2 * oh].reshape(oh, 2, *x.shape[1:])
    y = jnp.max(y, axis=1)                             # (oh, W, Nt, 128)
    # pool along W (still a leading dim)
    z = jnp.maximum(y[:, :-1], y[:, 1:])               # (oh, W-1, Nt, 128)
    z = z[:, : 2 * ow].reshape(oh, ow, 2, *x.shape[2:])
    o_ref[...] = jnp.max(z, axis=2)                    # (oh, ow, Nt, 128)


def maxpool3x3s2(x):
    """x: (H, W, N, C) with C % 128 == 0 -> (OH, OW, N, C)."""
    H, W, N, C = x.shape
    assert C % 128 == 0
    oh = (H - 3) // 2 + 1
    ow = (W - 3) // 2 + 1
    # TODO(synk): for very large feature maps / slice counts also tile over N and H.
    return pl.pallas_call(
        functools.partial(_maxpool3x3s2_kernel, oh=oh, ow=ow),
        out_shape=jax.ShapeDtypeStruct((oh, ow, N, C), x.dtype),
        grid=(C // 128,),
        in_specs=[pl.BlockSpec((H, W, N, 128), lambda c: (0, 0, 0, c))],
        out_specs=pl.BlockSpec((oh, ow, N, 128), lambda c: (0, 0, 0, c)),
        compiler_params=pltpu.CompilerParams(
            dimension_semantics=("parallel",)),
    )(x)


# --------------------------------------------------------------------------
# Fused head: per-view [max over slices+spatial -> Linear -> BN(eval) -> Linear],
# then sigmoid + mean over the 3 views.  One kernel for everything.
# --------------------------------------------------------------------------

def _head_ensemble_kernel(f_ref, w1_ref, b1_ref, scale_ref, shift_ref,
                          w2_ref, b2_ref, o_ref):
    total = jnp.zeros(o_ref.shape, jnp.float32)
    for v in range(3):                                  # static unroll over views
        # AdaptiveMaxPool2d(1) + torch.max over slices, fused as one max reduction.
        f = jnp.max(f_ref[v], axis=1)                   # (B, 256)
        # TODO(synk): nn.Dropout(p=0.15) is identity at inference; not modeled.
        h = jnp.dot(f, w1_ref[v], preferred_element_type=jnp.float32) + b1_ref[v]
        h = h * scale_ref[v] + shift_ref[v]             # BatchNorm1d (running stats)
        logit = jnp.sum(h * w2_ref[v], axis=1, keepdims=True) + b2_ref[v]
        total = total + 0.5 * (jnp.tanh(0.5 * logit) + 1.0)   # stable sigmoid
    o_ref[...] = total * (1.0 / 3.0)


def head_ensemble(feats, hp):
    """feats: (3, B, n_red, 256) -> majority probability (B, 1)."""
    _, B, _, _ = feats.shape
    # TODO(synk): for very long series (n_red in the hundreds) tile the max over n_red.
    return pl.pallas_call(
        _head_ensemble_kernel,
        out_shape=jax.ShapeDtypeStruct((B, 1), jnp.float32),
        in_specs=[pl.BlockSpec(memory_space=pltpu.MemorySpace.VMEM)] * 7,
        out_specs=pl.BlockSpec(memory_space=pltpu.MemorySpace.VMEM),
    )(feats.astype(jnp.bfloat16), hp['w1'], hp['b1'], hp['scale'], hp['shift'],
      hp['w2'], hp['b2'])


# --------------------------------------------------------------------------
# Glue: im2col conv on (H, W, N, C) activations (compute lives in the kernels)
# --------------------------------------------------------------------------

def conv2d_hwnc(x, layer):
    """x: (H, W, N, Cin_pad) bf16 -> (OH, OW, N, Cout_pad) bf16 (ReLU fused)."""
    kh, kw, stride, padding = layer['kh'], layer['kw'], layer['stride'], layer['padding']
    H, W, N, C = x.shape
    xp = jnp.pad(x, ((padding, padding), (padding, padding), (0, 0), (0, 0)))
    Hp, Wp = H + 2 * padding, W + 2 * padding
    oh = (Hp - kh) // stride + 1
    ow = (Wp - kw) // stride + 1
    # TODO(synk): patch formation could move inside the matmul kernel (DMA a row tile
    # of the padded input and build the (tm, tk) slab in VMEM) to cut HBM traffic further.
    cols = []
    for i in range(kh):
        for j in range(kw):
            cols.append(xp[i:i + stride * (oh - 1) + 1:stride,
                           j:j + stride * (ow - 1) + 1:stride])     # (oh, ow, N, C)
    patches = jnp.stack(cols, axis=-1).reshape(oh * ow * N, C * kh * kw)
    out = matmul_bias_act(patches, layer['wmat'], layer['bias'], apply_relu=True)
    return out.reshape(oh, ow, N, -1)


def alexnet_features_hwnc(x, layers):
    x = conv2d_hwnc(x, layers[0])
    x = maxpool3x3s2(x)
    x = conv2d_hwnc(x, layers[1])
    x = maxpool3x3s2(x)
    x = conv2d_hwnc(x, layers[2])
    x = conv2d_hwnc(x, layers[3])
    x = conv2d_hwnc(x, layers[4])
    x = maxpool3x3s2(x)
    return x                                             # (fh, fw, N, 256)


# --------------------------------------------------------------------------
# MRNet3 forward
# --------------------------------------------------------------------------

def mrnet3_forward(x, prepped):
    """x: (B, 3, S, C, H, W) — B samples, 3 views, S slices per view -> (B, 1)."""
    feats = []
    for v in range(3):
        views = x[:, v]                                  # (B, S, C, H, W)
        B, S, C, H, W = views.shape
        a = views.reshape(B * S, C, H, W).transpose(2, 3, 0, 1)   # (H, W, N, C)
        a = a.astype(jnp.bfloat16)
        a = alexnet_features_hwnc(a, prepped['features'][v])      # (fh, fw, N, 256)
        fh, fw, n, cf = a.shape
        feat = a.transpose(2, 0, 1, 3).reshape(B, S * fh * fw, cf)
        feats.append(feat)
    feats = jnp.stack(feats, axis=0)                     # (3, B, n_red, 256)
    return head_ensemble(feats, prepped['head'])         # mean(sigmoid(logits), views)


# --------------------------------------------------------------------------
# Parameters: raw PyTorch-shaped init + one-time layout/pad/cast preparation
# --------------------------------------------------------------------------

CONV_CFG = [  # (kh, kw, stride, padding) of AlexNet.features convs
    (11, 11, 4, 2), (5, 5, 1, 2), (3, 3, 1, 1), (3, 3, 1, 1), (3, 3, 1, 1)
]


def init_params(key):
    conv_shapes = [(64, 3, 11, 11), (192, 64, 5, 5), (384, 192, 3, 3),
                   (256, 384, 3, 3), (256, 256, 3, 3)]
    params = {'features': [], 'heads': []}
    for _ in range(3):                                   # one AlexNet + head per view
        fp = {}
        for li, shp in enumerate(conv_shapes, start=1):
            key, k1, k2 = jax.random.split(key, 3)
            fan_in = shp[1] * shp[2] * shp[3]
            fp[f'w{li}'] = jax.random.normal(k1, shp, jnp.float32) / math.sqrt(fan_in)
            fp[f'b{li}'] = 0.01 * jax.random.normal(k2, (shp[0],), jnp.float32)
        params['features'].append(fp)
        key, *ks = jax.random.split(key, 9)
        params['heads'].append({
            'w1': jax.random.normal(ks[0], (256, 256), jnp.float32) / 16.0,
            'b1': 0.01 * jax.random.normal(ks[1], (256,), jnp.float32),
            'gamma': 1.0 + 0.1 * jax.random.normal(ks[2], (256,), jnp.float32),
            'beta': 0.1 * jax.random.normal(ks[3], (256,), jnp.float32),
            'mean': 0.1 * jax.random.normal(ks[4], (256,), jnp.float32),
            'var': 0.9 + 0.1 * jnp.abs(jax.random.normal(ks[5], (256,), jnp.float32)),
            'w2': jax.random.normal(ks[6], (1, 256), jnp.float32) / 16.0,
            'b2': 0.01 * jax.random.normal(ks[7], (1,), jnp.float32),
        })
    return params


def prepare_params(params):
    """One-time layout prep: (Kp, Np) bf16 conv weight mats with lane-padded channels
    (pad carried layer to layer), f32 (1, Np) biases, head weights stacked per view,
    BatchNorm running stats reduced to scale/shift."""
    prepped = {'features': []}
    for v in range(3):
        fp = params['features'][v]
        layers = []
        cin_pad = 3                                      # conv1 sees raw RGB channels
        for li, (kh, kw, stride, padding) in enumerate(CONV_CFG, start=1):
            w = fp[f'w{li}']                             # (Cout, Cin, kh, kw)
            b = fp[f'b{li}']
            cout, cin = w.shape[0], w.shape[1]
            w = jnp.pad(w, ((0, 0), (0, cin_pad - cin), (0, 0), (0, 0)))
            K = cin_pad * kh * kw
            Kp = _round_up(K, 128)
            Np = _round_up(cout, 128)                    # lane-dense output channels
            wmat = w.reshape(cout, K).T                  # (K, Cout), matches torch flatten
            wmat = jnp.pad(wmat, ((0, Kp - K), (0, Np - cout))).astype(jnp.bfloat16)
            bias = jnp.pad(b, (0, Np - cout)).reshape(1, Np).astype(jnp.float32)
            layers.append(dict(wmat=wmat, bias=bias, kh=kh, kw=kw,
                               stride=stride, padding=padding))
            cin_pad = Np                                 # carry the channel pad forward
        prepped['features'].append(layers)

    hs = params['heads']
    w1 = jnp.stack([hs[v]['w1'].T for v in range(3)]).astype(jnp.bfloat16)      # (3,256,256)
    b1 = jnp.stack([hs[v]['b1'] for v in range(3)]).reshape(3, 1, 256).astype(jnp.float32)
    gamma = jnp.stack([hs[v]['gamma'] for v in range(3)])
    beta = jnp.stack([hs[v]['beta'] for v in range(3)])
    mean = jnp.stack([hs[v]['mean'] for v in range(3)])
    var = jnp.stack([hs[v]['var'] for v in range(3)])
    scale = (gamma * jax.lax.rsqrt(var + 1e-5)).reshape(3, 1, 256).astype(jnp.float32)
    shift = (beta - mean * gamma * jax.lax.rsqrt(var + 1e-5)).reshape(3, 1, 256).astype(jnp.float32)
    w2 = jnp.stack([hs[v]['w2'] for v in range(3)]).reshape(3, 1, 256).astype(jnp.float32)
    b2 = jnp.stack([hs[v]['b2'] for v in range(3)]).reshape(3, 1, 1).astype(jnp.float32)
    prepped['head'] = dict(w1=w1, b1=b1, scale=scale, shift=shift, w2=w2, b2=b2)
    return prepped


if __name__ == "__main__":
    key = jax.random.PRNGKey(0)
    kp, kx = jax.random.split(key)
    params = init_params(kp)
    prepped = prepare_params(params)                     # one-time weight layout prep

    # Small shapes: 2 samples, 3 views each, 2 slices per view, 3x63x63 images
    # (63x63 is the smallest spatial size that survives the AlexNet feature stack).
    B, S, C, H, W = 2, 2, 3, 63, 63
    x = jax.random.normal(kx, (B, 3, S, C, H, W), jnp.float32)

    fwd = jax.jit(lambda inp: mrnet3_forward(inp, prepped))
    out = jax.block_until_ready(fwd(x))

    assert out.shape == (B, 1), out.shape
    assert bool(jnp.all(jnp.isfinite(out)))
    assert bool(jnp.all((out >= 0.0) & (out <= 1.0)))
    print("KERNEL_OK")
</pallas_src>

<mosaic_0001>
module attributes {stable_mosaic.version = 11 : i64} {
  func.func @_matmul_kernel(%arg0: i32, %arg1: i32, %arg2: i32, %arg3: memref<256x384xbf16, #tpu.memory_space<vmem>>, %arg4: memref<384x128xbf16, #tpu.memory_space<vmem>>, %arg5: memref<1x128xf32, #tpu.memory_space<vmem>>, %arg6: memref<256x128xbf16, #tpu.memory_space<vmem>>, %arg7: memref<256x128xf32, #tpu.memory_space<vmem>>) attributes {dimension_semantics = [#tpu.dimension_semantics<parallel>, #tpu.dimension_semantics<parallel>, #tpu.dimension_semantics<arbitrary>], iteration_bounds = array<i64: 4, 1, 1>, scalar_prefetch = 0 : i64, scratch_operands = 1 : i64, tpu.core_type = #tpu.core_type<tc>, window_params = [{transform_indices = @transform_0, window_bounds = array<i64: 256, 384>}, {transform_indices = @transform_1, window_bounds = array<i64: 384, 128>}, {transform_indices = @transform_2, window_bounds = array<i64: 1, 128>}, {transform_indices = @transform_3, window_bounds = array<i64: 256, 128>}]} {
    %c0_i32 = arith.constant 0 : i32
    %0 = arith.cmpi eq, %arg2, %c0_i32 : i32
    %1 = arith.extui %0 : i1 to i32
    %c0_i32_0 = arith.constant 0 : i32
    %2 = arith.cmpi ne, %1, %c0_i32_0 : i32
    scf.if %2 {
      %cst_10 = arith.constant 0.000000e+00 : f32
      %12 = vector.broadcast %cst_10 : f32 to vector<256x128xf32>
      %c0_11 = arith.constant 0 : index
      %c0_12 = arith.constant 0 : index
      %13 = vector.load %arg7[%c0_11, %c0_12] : memref<256x128xf32, #tpu.memory_space<vmem>>, vector<256x128xf32>
      tpu.vector_store %arg7[%c0_11, %c0_12], %12 {strides = array<i32>} : memref<256x128xf32, #tpu.memory_space<vmem>>, vector<256x128xf32>,
    } else {
    }
    %c0 = arith.constant 0 : index
    %c0_1 = arith.constant 0 : index
    %3 = vector.load %arg7[%c0, %c0_1] : memref<256x128xf32, #tpu.memory_space<vmem>>, vector<256x128xf32>
    %c0_2 = arith.constant 0 : index
    %c0_3 = arith.constant 0 : index
    %4 = vector.load %arg3[%c0_2, %c0_3] : memref<256x384xbf16, #tpu.memory_space<vmem>>, vector<256x384xbf16>
    %c0_4 = arith.constant 0 : index
    %c0_5 = arith.constant 0 : index
    %5 = vector.load %arg4[%c0_4, %c0_5] : memref<384x128xbf16, #tpu.memory_space<vmem>>, vector<384x128xbf16>
    %cst = arith.constant dense<0.000000e+00> : vector<256x128xf32>
    %6 = tpu.matmul %4, %5, %cst {dimension_numbers = #tpu.dot_dimension_numbers<[1], [0], [0], [1], [0, 0, 1, 1], [], []>} : vector<256x384xbf16>, vector<384x128xbf16>, vector<256x128xf32> -> vector<256x128xf32>
    %7 = arith.addf %3, %6 : vector<256x128xf32>
    %c0_6 = arith.constant 0 : index
    %c0_7 = arith.constant 0 : index
    %8 = vector.load %arg7[%c0_6, %c0_7] : memref<256x128xf32, #tpu.memory_space<vmem>>, vector<256x128xf32>
    tpu.vector_store %arg7[%c0_6, %c0_7], %7 {strides = array<i32>} : memref<256x128xf32, #tpu.memory_space<vmem>>, vector<256x128xf32>,
    %c0_i32_8 = arith.constant 0 : i32
    %9 = arith.cmpi eq, %arg2, %c0_i32_8 : i32
    %10 = arith.extui %9 : i1 to i32
    %c0_i32_9 = arith.constant 0 : i32
    %11 = arith.cmpi ne, %10, %c0_i32_9 : i32
    scf.if %11 {
      %c0_10 = arith.constant 0 : index
      %c0_11 = arith.constant 0 : index
      %12 = vector.load %arg7[%c0_10, %c0_11] : memref<256x128xf32, #tpu.memory_space<vmem>>, vector<256x128xf32>
      %c0_12 = arith.constant 0 : index
      %c0_13 = arith.constant 0 : index
      %13 = vector.load %arg5[%c0_12, %c0_13] : memref<1x128xf32, #tpu.memory_space<vmem>>, vector<1x128xf32>
      %14 = vector.broadcast %13 : vector<1x128xf32> to vector<256x128xf32>
      %15 = arith.addf %12, %14 : vector<256x128xf32>
      %cst_14 = arith.constant 0.000000e+00 : f32
      %16 = vector.broadcast %cst_14 : f32 to vector<256x128xf32>
      %17 = arith.maximumf %15, %16 : vector<256x128xf32>
      %18 = arith.truncf %17 : vector<256x128xf32> to vector<256x128xbf16>
      %c0_15 = arith.constant 0 : index
      %c0_16 = arith.constant 0 : index
      %19 = vector.load %arg6[%c0_15, %c0_16] : memref<256x128xbf16, #tpu.memory_space<vmem>>, vector<256x128xbf16>
      tpu.vector_store %arg6[%c0_15, %c0_16], %18 {strides = array<i32>} : memref<256x128xbf16, #tpu.memory_space<vmem>>, vector<256x128xbf16>,
    } else {
    }
    return
  }
  func.func @transform_0(%arg0: i32, %arg1: i32, %arg2: i32) -> (i32, i32) {
    %c0_i32 = arith.constant 0 : i32
    return %arg0, %arg2 : i32, i32
  }
  func.func @transform_1(%arg0: i32, %arg1: i32, %arg2: i32) -> (i32, i32) {
    %c0_i32 = arith.constant 0 : i32
    return %arg2, %arg1 : i32, i32
  }
  func.func @transform_2(%arg0: i32, %arg1: i32, %arg2: i32) -> (i32, i32) {
    %c0_i32 = arith.constant 0 : i32
    %c0_i32_0 = arith.constant 0 : i32
    return %c0_i32, %arg1 : i32, i32
  }
  func.func @transform_3(%arg0: i32, %arg1: i32, %arg2: i32) -> (i32, i32) {
    %c0_i32 = arith.constant 0 : i32
    return %arg0, %arg1 : i32, i32
  }
}

module attributes {stable_mosaic.version = 11 : i64} {
  func.func @_maxpool3x3s2_kernel(%arg0: i32, %arg1: memref<15x15x4x128xbf16, #tpu.memory_space<vmem>>, %arg2: memref<7x7x4x128xbf16, #tpu.memory_space<vmem>>) attributes {dimension_semantics = [#tpu.dimension_semantics<parallel>], iteration_bounds = array<i64: 1>, scalar_prefetch = 0 : i64, scratch_operands = 0 : i64, tpu.core_type = #tpu.core_type<tc>, window_params = [{transform_indices = @transform_0, window_bounds = array<i64: 15, 15, 4, 128>}, {transform_indices = @transform_1, window_bounds = array<i64: 7, 7, 4, 128>}]} {
    %c0 = arith.constant 0 : index
    %c0_0 = arith.constant 0 : index
    %c0_1 = arith.constant 0 : index
    %c0_2 = arith.constant 0 : index
    %0 = vector.load %arg1[%c0, %c0_0, %c0_1, %c0_2] : memref<15x15x4x128xbf16, #tpu.memory_space<vmem>>, vector<15x15x4x128xbf16>
    %1 = vector.extract_strided_slice %0 {offsets = [0, 0, 0, 0], sizes = [14, 15, 4, 128], strides = [1, 1, 1, 1]} : vector<15x15x4x128xbf16> to vector<14x15x4x128xbf16>
    %2 = vector.extract_strided_slice %0 {offsets = [1, 0, 0, 0], sizes = [14, 15, 4, 128], strides = [1, 1, 1, 1]} : vector<15x15x4x128xbf16> to vector<14x15x4x128xbf16>
    %3 = arith.maximumf %1, %2 : vector<14x15x4x128xbf16>
    %4 = vector.shape_cast %3 : vector<14x15x4x128xbf16> to vector<7x2x15x4x128xbf16>
    %cst = arith.constant dense<0xFF80> : vector<7x15x4x128xbf16>
    %5 = vector.multi_reduction <maximumf>, %4, %cst [1] : vector<7x2x15x4x128xbf16> to vector<7x15x4x128xbf16>
    %6 = vector.extract_strided_slice %5 {offsets = [0, 0, 0, 0], sizes = [7, 14, 4, 128], strides = [1, 1, 1, 1]} : vector<7x15x4x128xbf16> to vector<7x14x4x128xbf16>
    %7 = vector.extract_strided_slice %5 {offsets = [0, 1, 0, 0], sizes = [7, 14, 4, 128], strides = [1, 1, 1, 1]} : vector<7x15x4x128xbf16> to vector<7x14x4x128xbf16>
    %8 = arith.maximumf %6, %7 : vector<7x14x4x128xbf16>
    %9 = vector.shape_cast %8 : vector<7x14x4x128xbf16> to vector<7x7x2x4x128xbf16>
    %cst_3 = arith.constant dense<0xFF80> : vector<7x7x4x128xbf16>
    %10 = vector.multi_reduction <maximumf>, %9, %cst_3 [2] : vector<7x7x2x4x128xbf16> to vector<7x7x4x128xbf16>
    %c0_4 = arith.constant 0 : index
    %c0_5 = arith.constant 0 : index
    %c0_6 = arith.constant 0 : index
    %c0_7 = arith.constant 0 : index
    %11 = vector.load %arg2[%c0_4, %c0_5, %c0_6, %c0_7] : memref<7x7x4x128xbf16, #tpu.memory_space<vmem>>, vector<7x7x4x128xbf16>
    tpu.vector_store %arg2[%c0_4, %c0_5, %c0_6, %c0_7], %10 {strides = array<i32>} : memref<7x7x4x128xbf16, #tpu.memory_space<vmem>>, vector<7x7x4x128xbf16>,
    return
  }
  func.func @transform_0(%arg0: i32) -> (i32, i32, i32, i32) {
    %c0_i32 = arith.constant 0 : i32
    %c0_i32_0 = arith.constant 0 : i32
    %c0_i32_1 = arith.constant 0 : i32
    %c0_i32_2 = arith.constant 0 : i32
    return %c0_i32, %c0_i32_0, %c0_i32_1, %arg0 : i32, i32, i32, i32
  }
  func.func @transform_1(%arg0: i32) -> (i32, i32, i32, i32) {
    %c0_i32 = arith.constant 0 : i32
    %c0_i32_0 = arith.constant 0 : i32
    %c0_i32_1 = arith.constant 0 : i32
    %c0_i32_2 = arith.constant 0 : i32
    return %c0_i32, %c0_i32_0, %c0_i32_1, %arg0 : i32, i32, i32, i32
  }
}

module attributes {stable_mosaic.version = 11 : i64} {
  func.func @_matmul_kernel(%arg0: i32, %arg1: i32, %arg2: i32, %arg3: memref<208x128xbf16, #tpu.memory_space<vmem>>, %arg4: memref<128x256xbf16, #tpu.memory_space<vmem>>, %arg5: memref<1x256xf32, #tpu.memory_space<vmem>>, %arg6: memref<208x256xbf16, #tpu.memory_space<vmem>>, %arg7: memref<208x256xf32, #tpu.memory_space<vmem>>) attributes {dimension_semantics = [#tpu.dimension_semantics<parallel>, #tpu.dimension_semantics<parallel>, #tpu.dimension_semantics<arbitrary>], iteration_bounds = array<i64: 1, 1, 25>, scalar_prefetch = 0 : i64, scratch_operands = 1 : i64, tpu.core_type = #tpu.core_type<tc>, window_params = [{transform_indices = @transform_0, window_bounds = array<i64: 208, 128>}, {transform_indices = @transform_1, window_bounds = array<i64: 128, 256>}, {transform_indices = @transform_2, window_bounds = array<i64: 1, 256>}, {transform_indices = @transform_3, window_bounds = array<i64: 208, 256>}]} {
    %c0_i32 = arith.constant 0 : i32
    %0 = arith.cmpi eq, %arg2, %c0_i32 : i32
    %1 = arith.extui %0 : i1 to i32
    %c0_i32_0 = arith.constant 0 : i32
    %2 = arith.cmpi ne, %1, %c0_i32_0 : i32
    scf.if %2 {
      %cst_9 = arith.constant 0.000000e+00 : f32
      %12 = vector.broadcast %cst_9 : f32 to vector<208x256xf32>
      %c0_10 = arith.constant 0 : index
      %c0_11 = arith.constant 0 : index
      %13 = vector.load %arg7[%c0_10, %c0_11] : memref<208x256xf32, #tpu.memory_space<vmem>>, vector<208x256xf32>
      tpu.vector_store %arg7[%c0_10, %c0_11], %12 {strides = array<i32>} : memref<208x256xf32, #tpu.memory_space<vmem>>, vector<208x256xf32>,
    } else {
    }
    %c0 = arith.constant 0 : index
    %c0_1 = arith.constant 0 : index
    %3 = vector.load %arg7[%c0, %c0_1] : memref<208x256xf32, #tpu.memory_space<vmem>>, vector<208x256xf32>
    %c0_2 = arith.constant 0 : index
    %c0_3 = arith.constant 0 : index
    %4 = vector.load %arg3[%c0_2, %c0_3] : memref<208x128xbf16, #tpu.memory_space<vmem>>, vector<208x128xbf16>
    %c0_4 = arith.constant 0 : index
    %c0_5 = arith.constant 0 : index
    %5 = vector.load %arg4[%c0_4, %c0_5] : memref<128x256xbf16, #tpu.memory_space<vmem>>, vector<128x256xbf16>
    %cst = arith.constant dense<0.000000e+00> : vector<208x256xf32>
    %6 = tpu.matmul %4, %5, %cst {dimension_numbers = #tpu.dot_dimension_numbers<[1], [0], [0], [1], [0, 0, 1, 1], [], []>} : vector<208x128xbf16>, vector<128x256xbf16>, vector<208x256xf32> -> vector<208x256xf32>
    %7 = arith.addf %3, %6 : vector<208x256xf32>
    %c0_6 = arith.constant 0 : index
    %c0_7 = arith.constant 0 : index
    %8 = vector.load %arg7[%c0_6, %c0_7] : memref<208x256xf32, #tpu.memory_space<vmem>>, vector<208x256xf32>
    tpu.vector_store %arg7[%c0_6, %c0_7], %7 {strides = array<i32>} : memref<208x256xf32, #tpu.memory_space<vmem>>, vector<208x256xf32>,
    %c24_i32 = arith.constant 24 : i32
    %9 = arith.cmpi eq, %arg2, %c24_i32 : i32
    %10 = arith.extui %9 : i1 to i32
    %c0_i32_8 = arith.constant 0 : i32
    %11 = arith.cmpi ne, %10, %c0_i32_8 : i32
    scf.if %11 {
      %c0_9 = arith.constant 0 : index
      %c0_10 = arith.constant 0 : index
      %12 = vector.load %arg7[%c0_9, %c0_10] : memref<208x256xf32, #tpu.memory_space<vmem>>, vector<208x256xf32>
      %c0_11 = arith.constant 0 : index
      %c0_12 = arith.constant 0 : index
      %13 = vector.load %arg5[%c0_11, %c0_12] : memref<1x256xf32, #tpu.memory_space<vmem>>, vector<1x256xf32>
      %14 = vector.broadcast %13 : vector<1x256xf32> to vector<208x256xf32>
      %15 = arith.addf %12, %14 : vector<208x256xf32>
      %cst_13 = arith.constant 0.000000e+00 : f32
      %16 = vector.broadcast %cst_13 : f32 to vector<208x256xf32>
      %17 = arith.maximumf %15, %16 : vector<208x256xf32>
      %18 = arith.truncf %17 : vector<208x256xf32> to vector<208x256xbf16>
      %c0_14 = arith.constant 0 : index
      %c0_15 = arith.constant 0 : index
      %19 = vector.load %arg6[%c0_14, %c0_15] : memref<208x256xbf16, #tpu.memory_space<vmem>>, vector<208x256xbf16>
      tpu.vector_store %arg6[%c0_14, %c0_15], %18 {strides = array<i32>} : memref<208x256xbf16, #tpu.memory_space<vmem>>, vector<208x256xbf16>,
    } else {
    }
    return
  }
  func.func @transform_0(%arg0: i32, %arg1: i32, %arg2: i32) -> (i32, i32) {
    %c0_i32 = arith.constant 0 : i32
    return %arg0, %arg2 : i32, i32
  }
  func.func @transform_1(%arg0: i32, %arg1: i32, %arg2: i32) -> (i32, i32) {
    %c0_i32 = arith.constant 0 : i32
    return %arg2, %arg1 : i32, i32
  }
  func.func @transform_2(%arg0: i32, %arg1: i32, %arg2: i32) -> (i32, i32) {
    %c0_i32 = arith.constant 0 : i32
    %c0_i32_0 = arith.constant 0 : i32
    return %c0_i32, %arg1 : i32, i32
  }
  func.func @transform_3(%arg0: i32, %arg1: i32, %arg2: i32) -> (i32, i32) {
    %c0_i32 = arith.constant 0 : i32
    return %arg0, %arg1 : i32, i32
  }
}

module attributes {stable_mosaic.version = 11 : i64} {
  func.func @_maxpool3x3s2_kernel(%arg0: i32, %arg1: memref<7x7x4x128xbf16, #tpu.memory_space<vmem>>, %arg2: memref<3x3x4x128xbf16, #tpu.memory_space<vmem>>) attributes {dimension_semantics = [#tpu.dimension_semantics<parallel>], iteration_bounds = array<i64: 2>, scalar_prefetch = 0 : i64, scratch_operands = 0 : i64, tpu.core_type = #tpu.core_type<tc>, window_params = [{transform_indices = @transform_0, window_bounds = array<i64: 7, 7, 4, 128>}, {transform_indices = @transform_1, window_bounds = array<i64: 3, 3, 4, 128>}]} {
    %c0 = arith.constant 0 : index
    %c0_0 = arith.constant 0 : index
    %c0_1 = arith.constant 0 : index
    %c0_2 = arith.constant 0 : index
    %0 = vector.load %arg1[%c0, %c0_0, %c0_1, %c0_2] : memref<7x7x4x128xbf16, #tpu.memory_space<vmem>>, vector<7x7x4x128xbf16>
    %1 = vector.extract_strided_slice %0 {offsets = [0, 0, 0, 0], sizes = [6, 7, 4, 128], strides = [1, 1, 1, 1]} : vector<7x7x4x128xbf16> to vector<6x7x4x128xbf16>
    %2 = vector.extract_strided_slice %0 {offsets = [1, 0, 0, 0], sizes = [6, 7, 4, 128], strides = [1, 1, 1, 1]} : vector<7x7x4x128xbf16> to vector<6x7x4x128xbf16>
    %3 = arith.maximumf %1, %2 : vector<6x7x4x128xbf16>
    %4 = vector.shape_cast %3 : vector<6x7x4x128xbf16> to vector<3x2x7x4x128xbf16>
    %cst = arith.constant dense<0xFF80> : vector<3x7x4x128xbf16>
    %5 = vector.multi_reduction <maximumf>, %4, %cst [1] : vector<3x2x7x4x128xbf16> to vector<3x7x4x128xbf16>
    %6 = vector.extract_strided_slice %5 {offsets = [0, 0, 0, 0], sizes = [3, 6, 4, 128], strides = [1, 1, 1, 1]} : vector<3x7x4x128xbf16> to vector<3x6x4x128xbf16>
    %7 = vector.extract_strided_slice %5 {offsets = [0, 1, 0, 0], sizes = [3, 6, 4, 128], strides = [1, 1, 1, 1]} : vector<3x7x4x128xbf16> to vector<3x6x4x128xbf16>
    %8 = arith.maximumf %6, %7 : vector<3x6x4x128xbf16>
    %9 = vector.shape_cast %8 : vector<3x6x4x128xbf16> to vector<3x3x2x4x128xbf16>
    %cst_3 = arith.constant dense<0xFF80> : vector<3x3x4x128xbf16>
    %10 = vector.multi_reduction <maximumf>, %9, %cst_3 [2] : vector<3x3x2x4x128xbf16> to vector<3x3x4x128xbf16>
    %c0_4 = arith.constant 0 : index
    %c0_5 = arith.constant 0 : index
    %c0_6 = arith.constant 0 : index
    %c0_7 = arith.constant 0 : index
    %11 = vector.load %arg2[%c0_4, %c0_5, %c0_6, %c0_7] : memref<3x3x4x128xbf16, #tpu.memory_space<vmem>>, vector<3x3x4x128xbf16>
    tpu.vector_store %arg2[%c0_4, %c0_5, %c0_6, %c0_7], %10 {strides = array<i32>} : memref<3x3x4x128xbf16, #tpu.memory_space<vmem>>, vector<3x3x4x128xbf16>,
    return
  }
  func.func @transform_0(%arg0: i32) -> (i32, i32, i32, i32) {
    %c0_i32 = arith.constant 0 : i32
    %c0_i32_0 = arith.constant 0 : i32
    %c0_i32_1 = arith.constant 0 : i32
    %c0_i32_2 = arith.constant 0 : i32
    return %c0_i32, %c0_i32_0, %c0_i32_1, %arg0 : i32, i32, i32, i32
  }
  func.func @transform_1(%arg0: i32) -> (i32, i32, i32, i32) {
    %c0_i32 = arith.constant 0 : i32
    %c0_i32_0 = arith.constant 0 : i32
    %c0_i32_1 = arith.constant 0 : i32
    %c0_i32_2 = arith.constant 0 : i32
    return %c0_i32, %c0_i32_0, %c0_i32_1, %arg0 : i32, i32, i32, i32
  }
}

module attributes {stable_mosaic.version = 11 : i64} {
  func.func @_matmul_kernel(%arg0: i32, %arg1: i32, %arg2: i32, %arg3: memref<48x384xbf16, #tpu.memory_space<vmem>>, %arg4: memref<384x384xbf16, #tpu.memory_space<vmem>>, %arg5: memref<1x384xf32, #tpu.memory_space<vmem>>, %arg6: memref<48x384xbf16, #tpu.memory_space<vmem>>, %arg7: memref<48x384xf32, #tpu.memory_space<vmem>>) attributes {dimension_semantics = [#tpu.dimension_semantics<parallel>, #tpu.dimension_semantics<parallel>, #tpu.dimension_semantics<arbitrary>], iteration_bounds = array<i64: 1, 1, 6>, scalar_prefetch = 0 : i64, scratch_operands = 1 : i64, tpu.core_type = #tpu.core_type<tc>, window_params = [{transform_indices = @transform_0, window_bounds = array<i64: 48, 384>}, {transform_indices = @transform_1, window_bounds = array<i64: 384, 384>}, {transform_indices = @transform_2, window_bounds = array<i64: 1, 384>}, {transform_indices = @transform_3, window_bounds = array<i64: 48, 384>}]} {
    %c0_i32 = arith.constant 0 : i32
    %0 = arith.cmpi eq, %arg2, %c0_i32 : i32
    %1 = arith.extui %0 : i1 to i32
    %c0_i32_0 = arith.constant 0 : i32
    %2 = arith.cmpi ne, %1, %c0_i32_0 : i32
    scf.if %2 {
      %cst_9 = arith.constant 0.000000e+00 : f32
      %12 = vector.broadcast %cst_9 : f32 to vector<48x384xf32>
      %c0_10 = arith.constant 0 : index
      %c0_11 = arith.constant 0 : index
      %13 = vector.load %arg7[%c0_10, %c0_11] : memref<48x384xf32, #tpu.memory_space<vmem>>, vector<48x384xf32>
      tpu.vector_store %arg7[%c0_10, %c0_11], %12 {strides = array<i32>} : memref<48x384xf32, #tpu.memory_space<vmem>>, vector<48x384xf32>,
    } else {
    }
    %c0 = arith.constant 0 : index
    %c0_1 = arith.constant 0 : index
    %3 = vector.load %arg7[%c0, %c0_1] : memref<48x384xf32, #tpu.memory_space<vmem>>, vector<48x384xf32>
    %c0_2 = arith.constant 0 : index
    %c0_3 = arith.constant 0 : index
    %4 = vector.load %arg3[%c0_2, %c0_3] : memref<48x384xbf16, #tpu.memory_space<vmem>>, vector<48x384xbf16>
    %c0_4 = arith.constant 0 : index
    %c0_5 = arith.constant 0 : index
    %5 = vector.load %arg4[%c0_4, %c0_5] : memref<384x384xbf16, #tpu.memory_space<vmem>>, vector<384x384xbf16>
    %cst = arith.constant dense<0.000000e+00> : vector<48x384xf32>
    %6 = tpu.matmul %4, %5, %cst {dimension_numbers = #tpu.dot_dimension_numbers<[1], [0], [0], [1], [0, 0, 1, 1], [], []>} : vector<48x384xbf16>, vector<384x384xbf16>, vector<48x384xf32> -> vector<48x384xf32>
    %7 = arith.addf %3, %6 : vector<48x384xf32>
    %c0_6 = arith.constant 0 : index
    %c0_7 = arith.constant 0 : index
    %8 = vector.load %arg7[%c0_6, %c0_7] : memref<48x384xf32, #tpu.memory_space<vmem>>, vector<48x384xf32>
    tpu.vector_store %arg7[%c0_6, %c0_7], %7 {strides = array<i32>} : memref<48x384xf32, #tpu.memory_space<vmem>>, vector<48x384xf32>,
    %c5_i32 = arith.constant 5 : i32
    %9 = arith.cmpi eq, %arg2, %c5_i32 : i32
    %10 = arith.extui %9 : i1 to i32
    %c0_i32_8 = arith.constant 0 : i32
    %11 = arith.cmpi ne, %10, %c0_i32_8 : i32
    scf.if %11 {
      %c0_9 = arith.constant 0 : index
      %c0_10 = arith.constant 0 : index
      %12 = vector.load %arg7[%c0_9, %c0_10] : memref<48x384xf32, #tpu.memory_space<vmem>>, vector<48x384xf32>
      %c0_11 = arith.constant 0 : index
      %c0_12 = arith.constant 0 : index
      %13 = vector.load %arg5[%c0_11, %c0_12] : memref<1x384xf32, #tpu.memory_space<vmem>>, vector<1x384xf32>
      %14 = vector.broadcast %13 : vector<1x384xf32> to vector<48x384xf32>
      %15 = arith.addf %12, %14 : vector<48x384xf32>
      %cst_13 = arith.constant 0.000000e+00 : f32
      %16 = vector.broadcast %cst_13 : f32 to vector<48x384xf32>
      %17 = arith.maximumf %15, %16 : vector<48x384xf32>
      %18 = arith.truncf %17 : vector<48x384xf32> to vector<48x384xbf16>
      %c0_14 = arith.constant 0 : index
      %c0_15 = arith.constant 0 : index
      %19 = vector.load %arg6[%c0_14, %c0_15] : memref<48x384xbf16, #tpu.memory_space<vmem>>, vector<48x384xbf16>
      tpu.vector_store %arg6[%c0_14, %c0_15], %18 {strides = array<i32>} : memref<48x384xbf16, #tpu.memory_space<vmem>>, vector<48x384xbf16>,
    } else {
    }
    return
  }
  func.func @transform_0(%arg0: i32, %arg1: i32, %arg2: i32) -> (i32, i32) {
    %c0_i32 = arith.constant 0 : i32
    return %arg0, %arg2 : i32, i32
  }
  func.func @transform_1(%arg0: i32, %arg1: i32, %arg2: i32) -> (i32, i32) {
    %c0_i32 = arith.constant 0 : i32
    return %arg2, %arg1 : i32, i32
  }
  func.func @transform_2(%arg0: i32, %arg1: i32, %arg2: i32) -> (i32, i32) {
    %c0_i32 = arith.constant 0 : i32
    %c0_i32_0 = arith.constant 0 : i32
    return %c0_i32, %arg1 : i32, i32
  }
  func.func @transform_3(%arg0: i32, %arg1: i32, %arg2: i32) -> (i32, i32) {
    %c0_i32 = arith.constant 0 : i32
    return %arg0, %arg1 : i32, i32
  }
}

module attributes {stable_mosaic.version = 11 : i64} {
  func.func @_matmul_kernel(%arg0: i32, %arg1: i32, %arg2: i32, %arg3: memref<48x384xbf16, #tpu.memory_space<vmem>>, %arg4: memref<384x256xbf16, #tpu.memory_space<vmem>>, %arg5: memref<1x256xf32, #tpu.memory_space<vmem>>, %arg6: memref<48x256xbf16, #tpu.memory_space<vmem>>, %arg7: memref<48x256xf32, #tpu.memory_space<vmem>>) attributes {dimension_semantics = [#tpu.dimension_semantics<parallel>, #tpu.dimension_semantics<parallel>, #tpu.dimension_semantics<arbitrary>], iteration_bounds = array<i64: 1, 1, 9>, scalar_prefetch = 0 : i64, scratch_operands = 1 : i64, tpu.core_type = #tpu.core_type<tc>, window_params = [{transform_indices = @transform_0, window_bounds = array<i64: 48, 384>}, {transform_indices = @transform_1, window_bounds = array<i64: 384, 256>}, {transform_indices = @transform_2, window_bounds = array<i64: 1, 256>}, {transform_indices = @transform_3, window_bounds = array<i64: 48, 256>}]} {
    %c0_i32 = arith.constant 0 : i32
    %0 = arith.cmpi eq, %arg2, %c0_i32 : i32
    %1 = arith.extui %0 : i1 to i32
    %c0_i32_0 = arith.constant 0 : i32
    %2 = arith.cmpi ne, %1, %c0_i32_0 : i32
    scf.if %2 {
      %cst_9 = arith.constant 0.000000e+00 : f32
      %12 = vector.broadcast %cst_9 : f32 to vector<48x256xf32>
      %c0_10 = arith.constant 0 : index
      %c0_11 = arith.constant 0 : index
      %13 = vector.load %arg7[%c0_10, %c0_11] : memref<48x256xf32, #tpu.memory_space<vmem>>, vector<48x256xf32>
      tpu.vector_store %arg7[%c0_10, %c0_11], %12 {strides = array<i32>} : memref<48x256xf32, #tpu.memory_space<vmem>>, vector<48x256xf32>,
    } else {
    }
    %c0 = arith.constant 0 : index
    %c0_1 = arith.constant 0 : index
    %3 = vector.load %arg7[%c0, %c0_1] : memref<48x256xf32, #tpu.memory_space<vmem>>, vector<48x256xf32>
    %c0_2 = arith.constant 0 : index
    %c0_3 = arith.constant 0 : index
    %4 = vector.load %arg3[%c0_2, %c0_3] : memref<48x384xbf16, #tpu.memory_space<vmem>>, vector<48x384xbf16>
    %c0_4 = arith.constant 0 : index
    %c0_5 = arith.constant 0 : index
    %5 = vector.load %arg4[%c0_4, %c0_5] : memref<384x256xbf16, #tpu.memory_space<vmem>>, vector<384x256xbf16>
    %cst = arith.constant dense<0.000000e+00> : vector<48x256xf32>
    %6 = tpu.matmul %4, %5, %cst {dimension_numbers = #tpu.dot_dimension_numbers<[1], [0], [0], [1], [0, 0, 1, 1], [], []>} : vector<48x384xbf16>, vector<384x256xbf16>, vector<48x256xf32> -> vector<48x256xf32>
    %7 = arith.addf %3, %6 : vector<48x256xf32>
    %c0_6 = arith.constant 0 : index
    %c0_7 = arith.constant 0 : index
    %8 = vector.load %arg7[%c0_6, %c0_7] : memref<48x256xf32, #tpu.memory_space<vmem>>, vector<48x256xf32>
    tpu.vector_store %arg7[%c0_6, %c0_7], %7 {strides = array<i32>} : memref<48x256xf32, #tpu.memory_space<vmem>>, vector<48x256xf32>,
    %c8_i32 = arith.constant 8 : i32
    %9 = arith.cmpi eq, %arg2, %c8_i32 : i32
    %10 = arith.extui %9 : i1 to i32
    %c0_i32_8 = arith.constant 0 : i32
    %11 = arith.cmpi ne, %10, %c0_i32_8 : i32
    scf.if %11 {
      %c0_9 = arith.constant 0 : index
      %c0_10 = arith.constant 0 : index
      %12 = vector.load %arg7[%c0_9, %c0_10] : memref<48x256xf32, #tpu.memory_space<vmem>>, vector<48x256xf32>
      %c0_11 = arith.constant 0 : index
      %c0_12 = arith.constant 0 : index
      %13 = vector.load %arg5[%c0_11, %c0_12] : memref<1x256xf32, #tpu.memory_space<vmem>>, vector<1x256xf32>
      %14 = vector.broadcast %13 : vector<1x256xf32> to vector<48x256xf32>
      %15 = arith.addf %12, %14 : vector<48x256xf32>
      %cst_13 = arith.constant 0.000000e+00 : f32
      %16 = vector.broadcast %cst_13 : f32 to vector<48x256xf32>
      %17 = arith.maximumf %15, %16 : vector<48x256xf32>
      %18 = arith.truncf %17 : vector<48x256xf32> to vector<48x256xbf16>
      %c0_14 = arith.constant 0 : index
      %c0_15 = arith.constant 0 : index
      %19 = vector.load %arg6[%c0_14, %c0_15] : memref<48x256xbf16, #tpu.memory_space<vmem>>, vector<48x256xbf16>
      tpu.vector_store %arg6[%c0_14, %c0_15], %18 {strides = array<i32>} : memref<48x256xbf16, #tpu.memory_space<vmem>>, vector<48x256xbf16>,
    } else {
    }
    return
  }
  func.func @transform_0(%arg0: i32, %arg1: i32, %arg2: i32) -> (i32, i32) {
    %c0_i32 = arith.constant 0 : i32
    return %arg0, %arg2 : i32, i32
  }
  func.func @transform_1(%arg0: i32, %arg1: i32, %arg2: i32) -> (i32, i32) {
    %c0_i32 = arith.constant 0 : i32
    return %arg2, %arg1 : i32, i32
  }
  func.func @transform_2(%arg0: i32, %arg1: i32, %arg2: i32) -> (i32, i32) {
    %c0_i32 = arith.constant 0 : i32
    %c0_i32_0 = arith.constant 0 : i32
    return %c0_i32, %arg1 : i32, i32
  }
  func.func @transform_3(%arg0: i32, %arg1: i32, %arg2: i32) -> (i32, i32) {
    %c0_i32 = arith.constant 0 : i32
    return %arg0, %arg1 : i32, i32
  }
}

module attributes {stable_mosaic.version = 11 : i64} {
  func.func @_matmul_kernel(%arg0: i32, %arg1: i32, %arg2: i32, %arg3: memref<48x384xbf16, #tpu.memory_space<vmem>>, %arg4: memref<384x256xbf16, #tpu.memory_space<vmem>>, %arg5: memref<1x256xf32, #tpu.memory_space<vmem>>, %arg6: memref<48x256xbf16, #tpu.memory_space<vmem>>, %arg7: memref<48x256xf32, #tpu.memory_space<vmem>>) attributes {dimension_semantics = [#tpu.dimension_semantics<parallel>, #tpu.dimension_semantics<parallel>, #tpu.dimension_semantics<arbitrary>], iteration_bounds = array<i64: 1, 1, 6>, scalar_prefetch = 0 : i64, scratch_operands = 1 : i64, tpu.core_type = #tpu.core_type<tc>, window_params = [{transform_indices = @transform_0, window_bounds = array<i64: 48, 384>}, {transform_indices = @transform_1, window_bounds = array<i64: 384, 256>}, {transform_indices = @transform_2, window_bounds = array<i64: 1, 256>}, {transform_indices = @transform_3, window_bounds = array<i64: 48, 256>}]} {
    %c0_i32 = arith.constant 0 : i32
    %0 = arith.cmpi eq, %arg2, %c0_i32 : i32
    %1 = arith.extui %0 : i1 to i32
    %c0_i32_0 = arith.constant 0 : i32
    %2 = arith.cmpi ne, %1, %c0_i32_0 : i32
    scf.if %2 {
      %cst_9 = arith.constant 0.000000e+00 : f32
      %12 = vector.broadcast %cst_9 : f32 to vector<48x256xf32>
      %c0_10 = arith.constant 0 : index
      %c0_11 = arith.constant 0 : index
      %13 = vector.load %arg7[%c0_10, %c0_11] : memref<48x256xf32, #tpu.memory_space<vmem>>, vector<48x256xf32>
      tpu.vector_store %arg7[%c0_10, %c0_11], %12 {strides = array<i32>} : memref<48x256xf32, #tpu.memory_space<vmem>>, vector<48x256xf32>,
    } else {
    }
    %c0 = arith.constant 0 : index
    %c0_1 = arith.constant 0 : index
    %3 = vector.load %arg7[%c0, %c0_1] : memref<48x256xf32, #tpu.memory_space<vmem>>, vector<48x256xf32>
    %c0_2 = arith.constant 0 : index
    %c0_3 = arith.constant 0 : index
    %4 = vector.load %arg3[%c0_2, %c0_3] : memref<48x384xbf16, #tpu.memory_space<vmem>>, vector<48x384xbf16>
    %c0_4 = arith.constant 0 : index
    %c0_5 = arith.constant 0 : index
    %5 = vector.load %arg4[%c0_4, %c0_5] : memref<384x256xbf16, #tpu.memory_space<vmem>>, vector<384x256xbf16>
    %cst = arith.constant dense<0.000000e+00> : vector<48x256xf32>
    %6 = tpu.matmul %4, %5, %cst {dimension_numbers = #tpu.dot_dimension_numbers<[1], [0], [0], [1], [0, 0, 1, 1], [], []>} : vector<48x384xbf16>, vector<384x256xbf16>, vector<48x256xf32> -> vector<48x256xf32>
    %7 = arith.addf %3, %6 : vector<48x256xf32>
    %c0_6 = arith.constant 0 : index
    %c0_7 = arith.constant 0 : index
    %8 = vector.load %arg7[%c0_6, %c0_7] : memref<48x256xf32, #tpu.memory_space<vmem>>, vector<48x256xf32>
    tpu.vector_store %arg7[%c0_6, %c0_7], %7 {strides = array<i32>} : memref<48x256xf32, #tpu.memory_space<vmem>>, vector<48x256xf32>,
    %c5_i32 = arith.constant 5 : i32
    %9 = arith.cmpi eq, %arg2, %c5_i32 : i32
    %10 = arith.extui %9 : i1 to i32
    %c0_i32_8 = arith.constant 0 : i32
    %11 = arith.cmpi ne, %10, %c0_i32_8 : i32
    scf.if %11 {
      %c0_9 = arith.constant 0 : index
      %c0_10 = arith.constant 0 : index
      %12 = vector.load %arg7[%c0_9, %c0_10] : memref<48x256xf32, #tpu.memory_space<vmem>>, vector<48x256xf32>
      %c0_11 = arith.constant 0 : index
      %c0_12 = arith.constant 0 : index
      %13 = vector.load %arg5[%c0_11, %c0_12] : memref<1x256xf32, #tpu.memory_space<vmem>>, vector<1x256xf32>
      %14 = vector.broadcast %13 : vector<1x256xf32> to vector<48x256xf32>
      %15 = arith.addf %12, %14 : vector<48x256xf32>
      %cst_13 = arith.constant 0.000000e+00 : f32
      %16 = vector.broadcast %cst_13 : f32 to vector<48x256xf32>
      %17 = arith.maximumf %15, %16 : vector<48x256xf32>
      %18 = arith.truncf %17 : vector<48x256xf32> to vector<48x256xbf16>
      %c0_14 = arith.constant 0 : index
      %c0_15 = arith.constant 0 : index
      %19 = vector.load %arg6[%c0_14, %c0_15] : memref<48x256xbf16, #tpu.memory_space<vmem>>, vector<48x256xbf16>
      tpu.vector_store %arg6[%c0_14, %c0_15], %18 {strides = array<i32>} : memref<48x256xbf16, #tpu.memory_space<vmem>>, vector<48x256xbf16>,
    } else {
    }
    return
  }
  func.func @transform_0(%arg0: i32, %arg1: i32, %arg2: i32) -> (i32, i32) {
    %c0_i32 = arith.constant 0 : i32
    return %arg0, %arg2 : i32, i32
  }
  func.func @transform_1(%arg0: i32, %arg1: i32, %arg2: i32) -> (i32, i32) {
    %c0_i32 = arith.constant 0 : i32
    return %arg2, %arg1 : i32, i32
  }
  func.func @transform_2(%arg0: i32, %arg1: i32, %arg2: i32) -> (i32, i32) {
    %c0_i32 = arith.constant 0 : i32
    %c0_i32_0 = arith.constant 0 : i32
    return %c0_i32, %arg1 : i32, i32
  }
  func.func @transform_3(%arg0: i32, %arg1: i32, %arg2: i32) -> (i32, i32) {
    %c0_i32 = arith.constant 0 : i32
    return %arg0, %arg1 : i32, i32
  }
}

module attributes {stable_mosaic.version = 11 : i64} {
  func.func @_maxpool3x3s2_kernel(%arg0: i32, %arg1: memref<3x3x4x128xbf16, #tpu.memory_space<vmem>>, %arg2: memref<1x1x4x128xbf16, #tpu.memory_space<vmem>>) attributes {dimension_semantics = [#tpu.dimension_semantics<parallel>], iteration_bounds = array<i64: 2>, scalar_prefetch = 0 : i64, scratch_operands = 0 : i64, tpu.core_type = #tpu.core_type<tc>, window_params = [{transform_indices = @transform_0, window_bounds = array<i64: 3, 3, 4, 128>}, {transform_indices = @transform_1, window_bounds = array<i64: 1, 1, 4, 128>}]} {
    %c0 = arith.constant 0 : index
    %c0_0 = arith.constant 0 : index
    %c0_1 = arith.constant 0 : index
    %c0_2 = arith.constant 0 : index
    %0 = vector.load %arg1[%c0, %c0_0, %c0_1, %c0_2] : memref<3x3x4x128xbf16, #tpu.memory_space<vmem>>, vector<3x3x4x128xbf16>
    %1 = vector.extract_strided_slice %0 {offsets = [0, 0, 0, 0], sizes = [2, 3, 4, 128], strides = [1, 1, 1, 1]} : vector<3x3x4x128xbf16> to vector<2x3x4x128xbf16>
    %2 = vector.extract_strided_slice %0 {offsets = [1, 0, 0, 0], sizes = [2, 3, 4, 128], strides = [1, 1, 1, 1]} : vector<3x3x4x128xbf16> to vector<2x3x4x128xbf16>
    %3 = arith.maximumf %1, %2 : vector<2x3x4x128xbf16>
    %4 = vector.shape_cast %3 : vector<2x3x4x128xbf16> to vector<1x2x3x4x128xbf16>
    %cst = arith.constant dense<0xFF80> : vector<1x3x4x128xbf16>
    %5 = vector.multi_reduction <maximumf>, %4, %cst [1] : vector<1x2x3x4x128xbf16> to vector<1x3x4x128xbf16>
    %6 = vector.extract_strided_slice %5 {offsets = [0, 0, 0, 0], sizes = [1, 2, 4, 128], strides = [1, 1, 1, 1]} : vector<1x3x4x128xbf16> to vector<1x2x4x128xbf16>
    %7 = vector.extract_strided_slice %5 {offsets = [0, 1, 0, 0], sizes = [1, 2, 4, 128], strides = [1, 1, 1, 1]} : vector<1x3x4x128xbf16> to vector<1x2x4x128xbf16>
    %8 = arith.maximumf %6, %7 : vector<1x2x4x128xbf16>
    %9 = vector.shape_cast %8 : vector<1x2x4x128xbf16> to vector<1x1x2x4x128xbf16>
    %cst_3 = arith.constant dense<0xFF80> : vector<1x1x4x128xbf16>
    %10 = vector.multi_reduction <maximumf>, %9, %cst_3 [2] : vector<1x1x2x4x128xbf16> to vector<1x1x4x128xbf16>
    %c0_4 = arith.constant 0 : index
    %c0_5 = arith.constant 0 : index
    %c0_6 = arith.constant 0 : index
    %c0_7 = arith.constant 0 : index
    %11 = vector.load %arg2[%c0_4, %c0_5, %c0_6, %c0_7] : memref<1x1x4x128xbf16, #tpu.memory_space<vmem>>, vector<1x1x4x128xbf16>
    tpu.vector_store %arg2[%c0_4, %c0_5, %c0_6, %c0_7], %10 {strides = array<i32>} : memref<1x1x4x128xbf16, #tpu.memory_space<vmem>>, vector<1x1x4x128xbf16>,
    return
  }
  func.func @transform_0(%arg0: i32) -> (i32, i32, i32, i32) {
    %c0_i32 = arith.constant 0 : i32
    %c0_i32_0 = arith.constant 0 : i32
    %c0_i32_1 = arith.constant 0 : i32
    %c0_i32_2 = arith.constant 0 : i32
    return %c0_i32, %c0_i32_0, %c0_i32_1, %arg0 : i32, i32, i32, i32
  }
  func.func @transform_1(%arg0: i32) -> (i32, i32, i32, i32) {
    %c0_i32 = arith.constant 0 : i32
    %c0_i32_0 = arith.constant 0 : i32
    %c0_i32_1 = arith.constant 0 : i32
    %c0_i32_2 = arith.constant 0 : i32
    return %c0_i32, %c0_i32_0, %c0_i32_1, %arg0 : i32, i32, i32, i32
  }
}

module attributes {stable_mosaic.version = 11 : i64} {
  func.func @_head_ensemble_kernel(%arg0: memref<3x2x2x256xbf16, #tpu.memory_space<vmem>>, %arg1: memref<3x256x256xbf16, #tpu.memory_space<vmem>>, %arg2: memref<3x1x256xf32, #tpu.memory_space<vmem>>, %arg3: memref<3x1x256xf32, #tpu.memory_space<vmem>>, %arg4: memref<3x1x256xf32, #tpu.memory_space<vmem>>, %arg5: memref<3x1x256xf32, #tpu.memory_space<vmem>>, %arg6: memref<3x1x1xf32, #tpu.memory_space<vmem>>, %arg7: memref<2x1xf32, #tpu.memory_space<vmem>>) attributes {dimension_semantics = [], scalar_prefetch = 0 : i64, scratch_operands = 0 : i64, tpu.core_type = #tpu.core_type<tc>} {
    %cst = arith.constant 0.000000e+00 : f32
    %0 = vector.broadcast %cst : f32 to vector<2x1xf32>
    %c0 = arith.constant 0 : index
    %c0_0 = arith.constant 0 : index
    %c0_1 = arith.constant 0 : index
    %c0_2 = arith.constant 0 : index
    %1 = vector.load %arg0[%c0, %c0_0, %c0_1, %c0_2] : memref<3x2x2x256xbf16, #tpu.memory_space<vmem>>, vector<1x2x2x256xbf16>
    %2 = vector.shape_cast %1 : vector<1x2x2x256xbf16> to vector<2x2x256xbf16>
    %cst_3 = arith.constant dense<0xFF80> : vector<2x256xbf16>
    %3 = vector.multi_reduction <maximumf>, %2, %cst_3 [1] : vector<2x2x256xbf16> to vector<2x256xbf16>
    %c0_4 = arith.constant 0 : index
    %c0_5 = arith.constant 0 : index
    %c0_6 = arith.constant 0 : index
    %4 = vector.load %arg1[%c0_4, %c0_5, %c0_6] : memref<3x256x256xbf16, #tpu.memory_space<vmem>>, vector<1x256x256xbf16>
    %5 = vector.shape_cast %4 : vector<1x256x256xbf16> to vector<256x256xbf16>
    %cst_7 = arith.constant dense<0.000000e+00> : vector<2x256xf32>
    %6 = tpu.matmul %3, %5, %cst_7 {dimension_numbers = #tpu.dot_dimension_numbers<[1], [0], [0], [1], [0, 0, 1, 1], [], []>} : vector<2x256xbf16>, vector<256x256xbf16>, vector<2x256xf32> -> vector<2x256xf32>
    %c0_8 = arith.constant 0 : index
    %c0_9 = arith.constant 0 : index
    %c0_10 = arith.constant 0 : index
    %7 = vector.load %arg2[%c0_8, %c0_9, %c0_10] : memref<3x1x256xf32, #tpu.memory_space<vmem>>, vector<1x1x256xf32>
    %8 = vector.shape_cast %7 : vector<1x1x256xf32> to vector<1x256xf32>
    %9 = vector.broadcast %8 : vector<1x256xf32> to vector<2x256xf32>
    %10 = arith.addf %6, %9 : vector<2x256xf32>
    %c0_11 = arith.constant 0 : index
    %c0_12 = arith.constant 0 : index
    %c0_13 = arith.constant 0 : index
    %11 = vector.load %arg3[%c0_11, %c0_12, %c0_13] : memref<3x1x256xf32, #tpu.memory_space<vmem>>, vector<1x1x256xf32>
    %12 = vector.shape_cast %11 : vector<1x1x256xf32> to vector<1x256xf32>
    %13 = vector.broadcast %12 : vector<1x256xf32> to vector<2x256xf32>
    %14 = arith.mulf %10, %13 : vector<2x256xf32>
    %c0_14 = arith.constant 0 : index
    %c0_15 = arith.constant 0 : index
    %c0_16 = arith.constant 0 : index
    %15 = vector.load %arg4[%c0_14, %c0_15, %c0_16] : memref<3x1x256xf32, #tpu.memory_space<vmem>>, vector<1x1x256xf32>
    %16 = vector.shape_cast %15 : vector<1x1x256xf32> to vector<1x256xf32>
    %17 = vector.broadcast %16 : vector<1x256xf32> to vector<2x256xf32>
    %18 = arith.addf %14, %17 : vector<2x256xf32>
    %c0_17 = arith.constant 0 : index
    %c0_18 = arith.constant 0 : index
    %c0_19 = arith.constant 0 : index
    %19 = vector.load %arg5[%c0_17, %c0_18, %c0_19] : memref<3x1x256xf32, #tpu.memory_space<vmem>>, vector<1x1x256xf32>
    %20 = vector.shape_cast %19 : vector<1x1x256xf32> to vector<1x256xf32>
    %21 = vector.broadcast %20 : vector<1x256xf32> to vector<2x256xf32>
    %22 = arith.mulf %18, %21 : vector<2x256xf32>
    %cst_20 = arith.constant dense<0.000000e+00> : vector<2xf32>
    %23 = vector.multi_reduction <add>, %22, %cst_20 [1] : vector<2x256xf32> to vector<2xf32>
    %24 = vector.shape_cast %23 : vector<2xf32> to vector<2x1xf32>
    %c0_21 = arith.constant 0 : index
    %c0_22 = arith.constant 0 : index
    %c0_23 = arith.constant 0 : index
    %25 = vector.load %arg6[%c0_21, %c0_22, %c0_23] : memref<3x1x1xf32, #tpu.memory_space<vmem>>, vector<1x1x1xf32>
    %26 = vector.shape_cast %25 : vector<1x1x1xf32> to vector<1x1xf32>
    %27 = vector.broadcast %26 : vector<1x1xf32> to vector<2x1xf32>
    %28 = arith.addf %24, %27 : vector<2x1xf32>
    %cst_24 = arith.constant 5.000000e-01 : f32
    %29 = vector.broadcast %cst_24 : f32 to vector<2x1xf32>
    %30 = arith.mulf %29, %28 : vector<2x1xf32>
    %31 = math.tanh %30 : vector<2x1xf32>
    %cst_25 = arith.constant 1.000000e+00 : f32
    %32 = vector.broadcast %cst_25 : f32 to vector<2x1xf32>
    %33 = arith.addf %31, %32 : vector<2x1xf32>
    %cst_26 = arith.constant 5.000000e-01 : f32
    %34 = vector.broadcast %cst_26 : f32 to vector<2x1xf32>
    %35 = arith.mulf %34, %33 : vector<2x1xf32>
    %36 = arith.addf %0, %35 : vector<2x1xf32>
    %c1 = arith.constant 1 : index
    %c0_27 = arith.constant 0 : index
    %c0_28 = arith.constant 0 : index
    %c0_29 = arith.constant 0 : index
    %37 = vector.load %arg0[%c1, %c0_27, %c0_28, %c0_29] : memref<3x2x2x256xbf16, #tpu.memory_space<vmem>>, vector<1x2x2x256xbf16>
    %38 = vector.shape_cast %37 : vector<1x2x2x256xbf16> to vector<2x2x256xbf16>
    %cst_30 = arith.constant dense<0xFF80> : vector<2x256xbf16>
    %39 = vector.multi_reduction <maximumf>, %38, %cst_30 [1] : vector<2x2x256xbf16> to vector<2x256xbf16>
    %c1_31 = arith.constant 1 : index
    %c0_32 = arith.constant 0 : index
    %c0_33 = arith.constant 0 : index
    %40 = vector.load %arg1[%c1_31, %c0_32, %c0_33] : memref<3x256x256xbf16, #tpu.memory_space<vmem>>, vector<1x256x256xbf16>
    %41 = vector.shape_cast %40 : vector<1x256x256xbf16> to vector<256x256xbf16>
    %cst_34 = arith.constant dense<0.000000e+00> : vector<2x256xf32>
    %42 = tpu.matmul %39, %41, %cst_34 {dimension_numbers = #tpu.dot_dimension_numbers<[1], [0], [0], [1], [0, 0, 1, 1], [], []>} : vector<2x256xbf16>, vector<256x256xbf16>, vector<2x256xf32> -> vector<2x256xf32>
    %c1_35 = arith.constant 1 : index
    %c0_36 = arith.constant 0 : index
    %c0_37 = arith.constant 0 : index
    %43 = vector.load %arg2[%c1_35, %c0_36, %c0_37] : memref<3x1x256xf32, #tpu.memory_space<vmem>>, vector<1x1x256xf32>
    %44 = vector.shape_cast %43 : vector<1x1x256xf32> to vector<1x256xf32>
    %45 = vector.broadcast %44 : vector<1x256xf32> to vector<2x256xf32>
    %46 = arith.addf %42, %45 : vector<2x256xf32>
    %c1_38 = arith.constant 1 : index
    %c0_39 = arith.constant 0 : index
    %c0_40 = arith.constant 0 : index
    %47 = vector.load %arg3[%c1_38, %c0_39, %c0_40] : memref<3x1x256xf32, #tpu.memory_space<vmem>>, vector<1x1x256xf32>
    %48 = vector.shape_cast %47 : vector<1x1x256xf32> to vector<1x256xf32>
    %49 = vector.broadcast %48 : vector<1x256xf32> to vector<2x256xf32>
    %50 = arith.mulf %46, %49 : vector<2x256xf32>
    %c1_41 = arith.constant 1 : index
    %c0_42 = arith.constant 0 : index
    %c0_43 = arith.constant 0 : index
    %51 = vector.load %arg4[%c1_41, %c0_42, %c0_43] : memref<3x1x256xf32, #tpu.memory_space<vmem>>, vector<1x1x256xf32>
    %52 = vector.shape_cast %51 : vector<1x1x256xf32> to vector<1x256xf32>
    %53 = vector.broadcast %52 : vector<1x256xf32> to vector<2x256xf32>
    %54 = arith.addf %50, %53 : vector<2x256xf32>
    %c1_44 = arith.constant 1 : index
    %c0_45 = arith.constant 0 : index
    %c0_46 = arith.constant 0 : index
    %55 = vector.load %arg5[%c1_44, %c0_45, %c0_46] : memref<3x1x256xf32, #tpu.memory_space<vmem>>, vector<1x1x256xf32>
    %56 = vector.shape_cast %55 : vector<1x1x256xf32> to vector<1x256xf32>
    %57 = vector.broadcast %56 : vector<1x256xf32> to vector<2x256xf32>
    %58 = arith.mulf %54, %57 : vector<2x256xf32>
    %cst_47 = arith.constant dense<0.000000e+00> : vector<2xf32>
    %59 = vector.multi_reduction <add>, %58, %cst_47 [1] : vector<2x256xf32> to vector<2xf32>
    %60 = vector.shape_cast %59 : vector<2xf32> to vector<2x1xf32>
    %c1_48 = arith.constant 1 : index
    %c0_49 = arith.constant 0 : index
    %c0_50 = arith.constant 0 : index
    %61 = vector.load %arg6[%c1_48, %c0_49, %c0_50] : memref<3x1x1xf32, #tpu.memory_space<vmem>>, vector<1x1x1xf32>
    %62 = vector.shape_cast %61 : vector<1x1x1xf32> to vector<1x1xf32>
    %63 = vector.broadcast %62 : vector<1x1xf32> to vector<2x1xf32>
    %64 = arith.addf %60, %63 : vector<2x1xf32>
    %cst_51 = arith.constant 5.000000e-01 : f32
    %65 = vector.broadcast %cst_51 : f32 to vector<2x1xf32>
    %66 = arith.mulf %65, %64 : vector<2x1xf32>
    %67 = math.tanh %66 : vector<2x1xf32>
    %cst_52 = arith.constant 1.000000e+00 : f32
    %68 = vector.broadcast %cst_52 : f32 to vector<2x1xf32>
    %69 = arith.addf %67, %68 : vector<2x1xf32>
    %cst_53 = arith.constant 5.000000e-01 : f32
    %70 = vector.broadcast %cst_53 : f32 to vector<2x1xf32>
    %71 = arith.mulf %70, %69 : vector<2x1xf32>
    %72 = arith.addf %36, %71 : vector<2x1xf32>
    %c2 = arith.constant 2 : index
    %c0_54 = arith.constant 0 : index
    %c0_55 = arith.constant 0 : index
    %c0_56 = arith.constant 0 : index
    %73 = vector.load %arg0[%c2, %c0_54, %c0_55, %c0_56] : memref<3x2x2x256xbf16, #tpu.memory_space<vmem>>, vector<1x2x2x256xbf16>
    %74 = vector.shape_cast %73 : vector<1x2x2x256xbf16> to vector<2x2x256xbf16>
    %cst_57 = arith.constant dense<0xFF80> : vector<2x256xbf16>
    %75 = vector.multi_reduction <maximumf>, %74, %cst_57 [1] : vector<2x2x256xbf16> to vector<2x256xbf16>
    %c2_58 = arith.constant 2 : index
    %c0_59 = arith.constant 0 : index
    %c0_60 = arith.constant 0 : index
    %76 = vector.load %arg1[%c2_58, %c0_59, %c0_60] : memref<3x256x256xbf16, #tpu.memory_space<vmem>>, vector<1x256x256xbf16>
    %77 = vector.shape_cast %76 : vector<1x256x256xbf16> to vector<256x256xbf16>
    %cst_61 = arith.constant dense<0.000000e+00> : vector<2x256xf32>
    %78 = tpu.matmul %75, %77, %cst_61 {dimension_numbers = #tpu.dot_dimension_numbers<[1], [0], [0], [1], [0, 0, 1, 1], [], []>} : vector<2x256xbf16>, vector<256x256xbf16>, vector<2x256xf32> -> vector<2x256xf32>
    %c2_62 = arith.constant 2 : index
    %c0_63 = arith.constant 0 : index
    %c0_64 = arith.constant 0 : index
    %79 = vector.load %arg2[%c2_62, %c0_63, %c0_64] : memref<3x1x256xf32, #tpu.memory_space<vmem>>, vector<1x1x256xf32>
    %80 = vector.shape_cast %79 : vector<1x1x256xf32> to vector<1x256xf32>
    %81 = vector.broadcast %80 : vector<1x256xf32> to vector<2x256xf32>
    %82 = arith.addf %78, %81 : vector<2x256xf32>
    %c2_65 = arith.constant 2 : index
    %c0_66 = arith.constant 0 : index
    %c0_67 = arith.constant 0 : index
    %83 = vector.load %arg3[%c2_65, %c0_66, %c0_67] : memref<3x1x256xf32, #tpu.memory_space<vmem>>, vector<1x1x256xf32>
    %84 = vector.shape_cast %83 : vector<1x1x256xf32> to vector<1x256xf32>
    %85 = vector.broadcast %84 : vector<1x256xf32> to vector<2x256xf32>
    %86 = arith.mulf %82, %85 : vector<2x256xf32>
    %c2_68 = arith.constant 2 : index
    %c0_69 = arith.constant 0 : index
    %c0_70 = arith.constant 0 : index
    %87 = vector.load %arg4[%c2_68, %c0_69, %c0_70] : memref<3x1x256xf32, #tpu.memory_space<vmem>>, vector<1x1x256xf32>
    %88 = vector.shape_cast %87 : vector<1x1x256xf32> to vector<1x256xf32>
    %89 = vector.broadcast %88 : vector<1x256xf32> to vector<2x256xf32>
    %90 = arith.addf %86, %89 : vector<2x256xf32>
    %c2_71 = arith.constant 2 : index
    %c0_72 = arith.constant 0 : index
    %c0_73 = arith.constant 0 : index
    %91 = vector.load %arg5[%c2_71, %c0_72, %c0_73] : memref<3x1x256xf32, #tpu.memory_space<vmem>>, vector<1x1x256xf32>
    %92 = vector.shape_cast %91 : vector<1x1x256xf32> to vector<1x256xf32>
    %93 = vector.broadcast %92 : vector<1x256xf32> to vector<2x256xf32>
    %94 = arith.mulf %90, %93 : vector<2x256xf32>
    %cst_74 = arith.constant dense<0.000000e+00> : vector<2xf32>
    %95 = vector.multi_reduction <add>, %94, %cst_74 [1] : vector<2x256xf32> to vector<2xf32>
    %96 = vector.shape_cast %95 : vector<2xf32> to vector<2x1xf32>
    %c2_75 = arith.constant 2 : index
    %c0_76 = arith.constant 0 : index
    %c0_77 = arith.constant 0 : index
    %97 = vector.load %arg6[%c2_75, %c0_76, %c0_77] : memref<3x1x1xf32, #tpu.memory_space<vmem>>, vector<1x1x1xf32>
    %98 = vector.shape_cast %97 : vector<1x1x1xf32> to vector<1x1xf32>
    %99 = vector.broadcast %98 : vector<1x1xf32> to vector<2x1xf32>
    %100 = arith.addf %96, %99 : vector<2x1xf32>
    %cst_78 = arith.constant 5.000000e-01 : f32
    %101 = vector.broadcast %cst_78 : f32 to vector<2x1xf32>
    %102 = arith.mulf %101, %100 : vector<2x1xf32>
    %103 = math.tanh %102 : vector<2x1xf32>
    %cst_79 = arith.constant 1.000000e+00 : f32
    %104 = vector.broadcast %cst_79 : f32 to vector<2x1xf32>
    %105 = arith.addf %103, %104 : vector<2x1xf32>
    %cst_80 = arith.constant 5.000000e-01 : f32
    %106 = vector.broadcast %cst_80 : f32 to vector<2x1xf32>
    %107 = arith.mulf %106, %105 : vector<2x1xf32>
    %108 = arith.addf %72, %107 : vector<2x1xf32>
    %cst_81 = arith.constant 0.333333343 : f32
    %109 = vector.broadcast %cst_81 : f32 to vector<2x1xf32>
    %110 = arith.mulf %108, %109 : vector<2x1xf32>
    %c0_82 = arith.constant 0 : index
    %c0_83 = arith.constant 0 : index
    %111 = vector.load %arg7[%c0_82, %c0_83] : memref<2x1xf32, #tpu.memory_space<vmem>>, vector<2x1xf32>
    tpu.vector_store %arg7[%c0_82, %c0_83], %110 {strides = array<i32>} : memref<2x1xf32, #tpu.memory_space<vmem>>, vector<2x1xf32>,
    return
  }
}

</mosaic_0001>

<llo_original>
// kernel: _lambda_.25
$region0: #{_lambda_.25}
  #allocation0 [shape = 'u32[]', space=smem, size = 0x4, offset = 0x4, fixed_abs, tag = 'smem constant byte address 0x4 - core index']
  #allocation1 [shape = 'u32[144,128]{1,0:T(1,128)}', space=vmem, size = 0x12000, scoped, tag = 'internal scratch']
  #allocation2 [shape = 'f32[256,128]{1,0:T(8,128)}', space=vmem, size = 0x20000, scoped, tag = 'scratch operand']
  %s0 = inlined_call_operand.vmem [shape: bf16[1024,384], index: 0, kind: input, shape index: {}]
  %s1 = inlined_call_operand.vmem [shape: bf16[384,128], index: 1, kind: input, shape index: {}]
  %s2 = inlined_call_operand.vmem [shape: f32[1,128], index: 2, kind: input, shape index: {}]
  %s3 = inlined_call_operand.vmem [shape: bf16[1024,128], index: 3, kind: output, shape index: {}]
  %s4 = sld [smem:[#allocation0]]
  $region53: #{_lambda_.25} parent=0
    _
  %s6 = ssub.s32 1, %s4
  %s7 = scalar_select 0, %s6, %s4
  loop: start=0, step=1, limit=6
  $region2: #{_lambda_.25} parent=0 // loop_pre_header
    _
  $region3: #{_lambda_.25} parent=0 // loop_header
    %s9 = sphi 0, %s13
    %p10 = scmp.ge.s32.totalorder %s9, 6
    %s16 = sphi 0, %s35
    %s17 = sphi 0, %s31
    %s18 = sphi 0, %s27
    %s19 = sphi 0, %s16
    %s20 = sphi 0, %s17
    %s21 = sphi 0, %s18
    %s22 = sphi 0, %s19
    %s23 = sphi 0, %s20
    %s24 = sphi 0, %s21
    %s40 = sphi 0, %s42
    %s43 = sphi 0, %s40
    %s44 = sphi 0, %s43
    %s60 = sphi 0, %s44
    %s68 = sphi 0, %s70
    %s71 = sphi 0, %s68
    %s72 = sphi 0, %s71
    %s88 = sphi 0, %s72
    %s94 = sphi 0, %s96
    %s97 = sphi 0, %s94
    %s98 = sphi 0, %s97
    %s114 = sphi 0, %s98
    %s122 = sphi 0, %s124
    %s125 = sphi 0, %s122
    %s126 = sphi 0, %s125
    %s142 = sphi 0, %s126
  $region4: #{_lambda_.25} parent=0 // loop_header_branch
    %12 = sbr.rel (%p10) target = $region8
  $region5: #{_lambda_.25} parent=0 // loop_body
    %s14 = ssub.s32 %s9, 1
    %s15 = ssub.s32 %s9, 2
    %s25 = sadd.s32 1, %s18
    %p26 = scmp.ge.s32.totalorder %s25, 1
    %s27 = scalar_select %p26, 0, %s25
    %s28 = sadd.s32 1, %s17
    %s29 = scalar_select %p26, %s28, %s17
    %p30 = scmp.ge.s32.totalorder %s29, 1
    %s31 = scalar_select %p30, 0, %s29
    %s32 = sadd.s32 1, %s16
    %s33 = scalar_select %p30, %s32, %s16
    %p34 = scmp.ge.s32.totalorder %s33, 4
    %s35 = scalar_select %p34, 0, %s33
    %s36 = ssub.s32 %s16, %s35
    %s37 = ssub.s32 %s18, %s27
    %s38 = sor.u32 %s36, %s37
    %p39 = scmp.eq.s32.totalorder %s38, 0
    %s41 = sadd.s32 %s40, 1
    %s42 = scalar_select %p39, %s40, %s41
    %p45 = pneg %p39
    %p46 = scmp.eq.s32.totalorder %s9, 3
    %p47 = por %p45, %p46
    %p48 = scmp.ne.s32.totalorder %s40, %s43
    %p49 = scmp.eq.s32.totalorder %s9, 0
    %p50 = por %p48, %p49
    %p51 = scmp.ne.s32.totalorder %s40, %s43
    %p52 = scmp.eq.s32.totalorder %s14, 3
    %p53 = por %p51, %p52
    %p54 = scmp.ne.s32.totalorder %s43, %s44
    %p55 = scmp.eq.s32.totalorder %s14, 0
    %p56 = por %p54, %p55
    %p57 = scmp.ne.s32.totalorder %s43, %s44
    %p58 = scmp.eq.s32.totalorder %s15, 3
    %p59 = por %p57, %p58
    %p61 = scmp.ne.s32.totalorder %s44, %s60
    %p62 = scmp.eq.s32.totalorder %s15, 0
    %p63 = por %p61, %p62
    %s64 = ssub.s32 %s18, %s27
    %s65 = ssub.s32 %s17, %s31
    %s66 = sor.u32 %s64, %s65
    %p67 = scmp.eq.s32.totalorder %s66, 0
    %s69 = sadd.s32 %s68, 1
    %s70 = scalar_select %p67, %s68, %s69
    %p73 = pneg %p67
    %p74 = scmp.eq.s32.totalorder %s9, 3
    %p75 = por %p73, %p74
    %p76 = scmp.ne.s32.totalorder %s68, %s71
    %p77 = scmp.eq.s32.totalorder %s9, 0
    %p78 = por %p76, %p77
    %p79 = scmp.ne.s32.totalorder %s68, %s71
    %p80 = scmp.eq.s32.totalorder %s14, 3
    %p81 = por %p79, %p80
    %p82 = scmp.ne.s32.totalorder %s71, %s72
    %p83 = scmp.eq.s32.totalorder %s14, 0
    %p84 = por %p82, %p83
    %p85 = scmp.ne.s32.totalorder %s71, %s72
    %p86 = scmp.eq.s32.totalorder %s15, 3
    %p87 = por %p85, %p86
    %p89 = scmp.ne.s32.totalorder %s72, %s88
    %p90 = scmp.eq.s32.totalorder %s15, 0
    %p91 = por %p89, %p90
    %s92 = ssub.s32 %s17, %s31
    %p93 = scmp.eq.s32.totalorder %s92, 0
    %s95 = sadd.s32 %s94, 1
    %s96 = scalar_select %p93, %s94, %s95
    %p99 = pneg %p93
    %p100 = scmp.eq.s32.totalorder %s9, 3
    %p101 = por %p99, %p100
    %p102 = scmp.ne.s32.totalorder %s94, %s97
    %p103 = scmp.eq.s32.totalorder %s9, 0
    %p104 = por %p102, %p103
    %p105 = scmp.ne.s32.totalorder %s94, %s97
    %p106 = scmp.eq.s32.totalorder %s14, 3
    %p107 = por %p105, %p106
    %p108 = scmp.ne.s32.totalorder %s97, %s98
    %p109 = scmp.eq.s32.totalorder %s14, 0
    %p110 = por %p108, %p109
    %p111 = scmp.ne.s32.totalorder %s97, %s98
    %p112 = scmp.eq.s32.totalorder %s15, 3
    %p113 = por %p111, %p112
    %p115 = scmp.ne.s32.totalorder %s98, %s114
    %p116 = scmp.eq.s32.totalorder %s15, 0
    %p117 = por %p115, %p116
    %s118 = ssub.s32 %s16, %s35
    %s119 = ssub.s32 %s17, %s31
    %s120 = sor.u32 %s118, %s119
    %p121 = scmp.eq.s32.totalorder %s120, 0
    %s123 = sadd.s32 %s122, 1
    %s124 = scalar_select %p121, %s122, %s123
    %p127 = pneg %p121
    %p128 = scmp.eq.s32.totalorder %s9, 3
    %p129 = por %p127, %p128
    %p130 = scmp.ne.s32.totalorder %s122, %s125
    %p131 = scmp.eq.s32.totalorder %s9, 0
    %p132 = por %p130, %p131
    %p133 = scmp.ne.s32.totalorder %s122, %s125
    %p134 = scmp.eq.s32.totalorder %s14, 3
    %p135 = por %p133, %p134
    %p136 = scmp.ne.s32.totalorder %s125, %s126
    %p137 = scmp.eq.s32.totalorder %s14, 0
    %p138 = por %p136, %p137
    %p139 = scmp.ne.s32.totalorder %s125, %s126
    %p140 = scmp.eq.s32.totalorder %s15, 3
    %p141 = por %p139, %p140
    %p143 = scmp.ne.s32.totalorder %s126, %s142
    %p144 = scmp.eq.s32.totalorder %s15, 0
    %p145 = por %p143, %p144
    %p146 = scmp.le.s32.totalorder 1, %s9
    %p147 = scmp.lt.s32.totalorder %s9, 5
    %p148 = pnand %p146, %p147
    %p149 = pneg %p148
    // Predicated region
    $region9: #{_lambda_.25} parent=5 // pred_check
      _
    $region10: #{_lambda_.25} parent=5 // pred_check_branch
      %151 = sbr.rel (%p148) target = $region12
    $region11: #{_lambda_.25} parent=5 // pred_region
      %s152 = ssub.s32 %s9, 1
      // Predicated region
      $region13: #{_lambda_.25} parent=11 // pred_check
        %p153 = pneg %p84
      $region14: #{_lambda_.25} parent=11 // pred_check_branch
        %155 = sbr.rel (%p153) target = $region16
      $region15: #{_lambda_.25} parent=11 // pred_region
        %s156 = smul.u32 48, %s21
        %p157 = scmp.lt.s32.totalorder %s156, 47
        %s158 = scalar_select %p157, %s156, 47
        %p159 = scmp.lt.s32.totalorder %s20, 0
        %s160 = scalar_select %p159, %s20, 0
        %s161 = sadd.s32 %s160, %s158
        %s162 = smul.addr %s161, 4
        %s163 = scalar_lea.vmem %s1, %s162
        %s164 = smul.u32 48, %s21
      $region16: #{_lambda_.25} parent=11 // pred_fallthru
        _
      // Predicated region
      $region17: #{_lambda_.25} parent=11 // pred_check
        %p165 = pneg %p110
      $region18: #{_lambda_.25} parent=11 // pred_check_branch
        %167 = sbr.rel (%p165) target = $region20
      $region19: #{_lambda_.25} parent=11 // pred_region
        %p168 = scmp.lt.s32.totalorder %s20, 0
        %s169 = scalar_select %p168, %s20, 0
        %s170 = scalar_lea.vmem %s2, %s169
      $region20: #{_lambda_.25} parent=11 // pred_fallthru
        _
    $region12: #{_lambda_.25} parent=5 // pred_fallthru
      _
    %p171 = scmp.lt.s32.totalorder %s9, 4
    // Predicated region
    $region21: #{_lambda_.25} parent=5 // pred_check
      %p172 = pneg %p171
    $region22: #{_lambda_.25} parent=5 // pred_check_branch
      %174 = sbr.rel (%p172) target = $region24
    $region23: #{_lambda_.25} parent=5 // pred_region
      // Predicated region
      $region25: #{_lambda_.25} parent=23 // pred_check
        %p175 = pneg %p50
      $region26: #{_lambda_.25} parent=23 // pred_check_branch
        %177 = sbr.rel (%p175) target = $region28
      $region27: #{_lambda_.25} parent=23 // pred_region
        %s178 = smul.u32 32, %s16
        %s179 = smul.u32 3, %s18
        %p180 = scmp.lt.s32.totalorder %s178, 127
        %s181 = scalar_select %p180, %s178, 127
        %p182 = scmp.lt.s32.totalorder %s179, 2
        %s183 = scalar_select %p182, %s179, 2
        %s184 = smul.addr %s181, 3
        %s185 = sadd.s32 %s183, %s184
        %s186 = smul.addr %s185, 4
        %s187 = scalar_lea.vmem %s0, %s186
        %s188 = smul.u32 32, %s16
        %s189 = smul.u32 3, %s18
      $region28: #{_lambda_.25} parent=23 // pred_fallthru
        _
    $region24: #{_lambda_.25} parent=5 // pred_fallthru
      _
    %p190 = scmp.le.s32.totalorder 1, %s9
    %p191 = scmp.lt.s32.totalorder %s9, 5
    %p192 = pnand %p190, %p191
    %p193 = pneg %p192
    // Predicated region
    $region29: #{_lambda_.25} parent=5 // pred_check
      _
    $region30: #{_lambda_.25} parent=5 // pred_check_branch
      %195 = sbr.rel (%p192) target = $region32
    $region31: #{_lambda_.25} parent=5 // pred_region
      %s196 = ssub.s32 %s9, 1
      %s197 = smul.u32 32, %s19
      %s198 = smul.u32 3, %s21
      %p199 = scmp.lt.s32.totalorder %s197, 127
      %s200 = scalar_select %p199, %s197, 127
      %p201 = scmp.lt.s32.totalorder %s198, 2
      %s202 = scalar_select %p201, %s198, 2
      %s203 = smul.addr %s200, 3
      %s204 = sadd.s32 %s202, %s203
      %s205 = smul.addr %s204, 4
      %s206 = scalar_lea.vmem %s0, %s205
      %p207 = pneg %p56
      %p208 = pneg %p53
      %s209 = smul.u32 48, %s21
      %p210 = scmp.lt.s32.totalorder %s209, 47
      %s211 = scalar_select %p210, %s209, 47
      %p212 = scmp.lt.s32.totalorder %s20, 0
      %s213 = scalar_select %p212, %s20, 0
      %s214 = sadd.s32 %s213, %s211
      %s215 = smul.addr %s214, 4
      %s216 = scalar_lea.vmem %s1, %s215
      %p217 = pneg %p84
      %p218 = pneg %p81
      %p219 = scmp.lt.s32.totalorder %s20, 0
      %s220 = scalar_select %p219, %s20, 0
      %s221 = scalar_lea.vmem %s2, %s220
      %p222 = pneg %p110
      %p223 = pneg %p107
      %p224 = pneg %p138
      %p225 = pneg %p135
      %s226 = smul.u32 32, %s19
      %p227 = scmp.lt.s32.totalorder %s226, 127
      %s228 = scalar_select %p227, %s226, 127
      %p229 = scmp.lt.s32.totalorder %s20, 0
      %s230 = scalar_select %p229, %s20, 0
      %s231 = sadd.s32 %s230, %s228
      %s232 = smul.addr %s231, 4
      %s233 = scalar_lea.vmem %s3, %s232
      %s234 = smul.u32 32, %s19
      %s235 = smul.u32 3, %s21
      %p236 = scmp.lt.s32.totalorder %s234, 127
      %s237 = scalar_select %p236, %s234, 127
      %p238 = scmp.lt.s32.totalorder %s235, 2
      %s239 = scalar_select %p238, %s235, 2
      %s240 = smul.addr %s237, 3
      %s241 = sadd.s32 %s239, %s240
      %s242 = smul.addr %s241, 4
      %s243 = scalar_lea.vmem %s0, %s242
      %s244 = smul.u32 32, %s19
      %s245 = smul.u32 3, %s21
      %s246 = smul.u32 48, %s21
      %p247 = scmp.lt.s32.totalorder %s246, 47
      %s248 = scalar_select %p247, %s246, 47
      %p249 = scmp.lt.s32.totalorder %s20, 0
      %s250 = scalar_select %p249, %s20, 0
      %s251 = sadd.s32 %s250, %s248
      %s252 = smul.addr %s251, 4
      %s253 = scalar_lea.vmem %s1, %s252
      %s254 = smul.u32 48, %s21
      %p255 = scmp.lt.s32.totalorder %s20, 0
      %s256 = scalar_select %p255, %s20, 0
      %s257 = scalar_lea.vmem %s2, %s256
      %s258 = smul.u32 32, %s19
      %p259 = scmp.lt.s32.totalorder %s258, 127
      %s260 = scalar_select %p259, %s258, 127
      %p261 = scmp.lt.s32.totalorder %s20, 0
      %s262 = scalar_select %p261, %s20, 0
      %s263 = sadd.s32 %s262, %s260
      %s264 = smul.addr %s263, 4
      %s265 = scalar_lea.vmem %s3, %s264
      %s266 = smul.u32 32, %s19
      %p268 = scmp.eq.s32.totalorder %s21, 0
      // Predicated region
      $region33: #{_lambda_.25} parent=31 // pred_check
        %p269 = pneg %p268
      $region34: #{_lambda_.25} parent=31 // pred_check_branch
        %271 = sbr.rel (%p269) target = $region36
      $region35: #{_lambda_.25} parent=31 // pred_region
        %272 = vst [vmem:[#allocation2] sm:$0xff] 0.0
        %273 = vst [vmem:[#allocation2 + $0x8] sm:$0xff] 0.0
        %274 = vst [vmem:[#allocation2 + $0x10] sm:$0xff] 0.0
        %275 = vst [vmem:[#allocation2 + $0x18] sm:$0xff] 0.0
        %276 = vst [vmem:[#allocation2 + $0x20] sm:$0xff] 0.0
        %277 = vst [vmem:[#allocation2 + $0x28] sm:$0xff] 0.0
        %278 = vst [vmem:[#allocation2 + $0x30] sm:$0xff] 0.0
        %279 = vst [vmem:[#allocation2 + $0x38] sm:$0xff] 0.0
        %280 = vst [vmem:[#allocation2 + $0x40] sm:$0xff] 0.0
        %281 = vst [vmem:[#allocation2 + $0x48] sm:$0xff] 0.0
        %282 = vst [vmem:[#allocation2 + $0x50] sm:$0xff] 0.0
        %283 = vst [vmem:[#allocation2 + $0x58] sm:$0xff] 0.0
        %284 = vst [vmem:[#allocation2 + $0x60] sm:$0xff] 0.0
        %285 = vst [vmem:[#allocation2 + $0x68] sm:$0xff] 0.0
        %286 = vst [vmem:[#allocation2 + $0x70] sm:$0xff] 0.0
        %287 = vst [vmem:[#allocation2 + $0x78] sm:$0xff] 0.0
        %288 = vst [vmem:[#allocation2 + $0x80] sm:$0xff] 0.0
        %289 = vst [vmem:[#allocation2 + $0x88] sm:$0xff] 0.0
        %290 = vst [vmem:[#allocation2 + $0x90] sm:$0xff] 0.0
        %291 = vst [vmem:[#allocation2 + $0x98] sm:$0xff] 0.0
        %292 = vst [vmem:[#allocation2 + $0xa0] sm:$0xff] 0.0
        %293 = vst [vmem:[#allocation2 + $0xa8] sm:$0xff] 0.0
        %294 = vst [vmem:[#allocation2 + $0xb0] sm:$0xff] 0.0
        %295 = vst [vmem:[#allocation2 + $0xb8] sm:$0xff] 0.0
        %296 = vst [vmem:[#allocation2 + $0xc0] sm:$0xff] 0.0
        %297 = vst [vmem:[#allocation2 + $0xc8] sm:$0xff] 0.0
        %298 = vst [vmem:[#allocation2 + $0xd0] sm:$0xff] 0.0
        %299 = vst [vmem:[#allocation2 + $0xd8] sm:$0xff] 0.0
        %300 = vst [vmem:[#allocation2 + $0xe0] sm:$0xff] 0.0
        %301 = vst [vmem:[#allocation2 + $0xe8] sm:$0xff] 0.0
        %302 = vst [vmem:[#allocation2 + $0xf0] sm:$0xff] 0.0
        %303 = vst [vmem:[#allocation2 + $0xf8] sm:$0xff] 0.0
      $region36: #{_lambda_.25} parent=31 // pred_fallthru
        _
      %v304 = vld [vmem:[#allocation2] sm:$0xff]
      %v305 = vld [vmem:[#allocation2 + $0x8] sm:$0xff]
      %v306 = vld [vmem:[#allocation2 + $0x10] sm:$0xff]
      %v307 = vld [vmem:[#allocation2 + $0x18] sm:$0xff]
      %v308 = vld [vmem:[#allocation2 + $0x20] sm:$0xff]
      %v309 = vld [vmem:[#allocation2 + $0x28] sm:$0xff]
      %v310 = vld [vmem:[#allocation2 + $0x30] sm:$0xff]
      %v311 = vld [vmem:[#allocation2 + $0x38] sm:$0xff]
      %v312 = vld [vmem:[#allocation2 + $0x40] sm:$0xff]
      %v313 = vld [vmem:[#allocation2 + $0x48] sm:$0xff]
      %v314 = vld [vmem:[#allocation2 + $0x50] sm:$0xff]
      %v315 = vld [vmem:[#allocation2 + $0x58] sm:$0xff]
      %v316 = vld [vmem:[#allocation2 + $0x60] sm:$0xff]
      %v317 = vld [vmem:[#allocation2 + $0x68] sm:$0xff]
      %v318 = vld [vmem:[#allocation2 + $0x70] sm:$0xff]
      %v319 = vld [vmem:[#allocation2 + $0x78] sm:$0xff]
      %v320 = vld [vmem:[#allocation2 + $0x80] sm:$0xff]
      %v321 = vld [vmem:[#allocation2 + $0x88] sm:$0xff]
      %v322 = vld [vmem:[#allocation2 + $0x90] sm:$0xff]
      %v323 = vld [vmem:[#allocation2 + $0x98] sm:$0xff]
      %v324 = vld [vmem:[#allocation2 + $0xa0] sm:$0xff]
      %v325 = vld [vmem:[#allocation2 + $0xa8] sm:$0xff]
      %v326 = vld [vmem:[#allocation2 + $0xb0] sm:$0xff]
      %v327 = vld [vmem:[#allocation2 + $0xb8] sm:$0xff]
      %v328 = vld [vmem:[#allocation2 + $0xc0] sm:$0xff]
      %v329 = vld [vmem:[#allocation2 + $0xc8] sm:$0xff]
      %v330 = vld [vmem:[#allocation2 + $0xd0] sm:$0xff]
      %v331 = vld [vmem:[#allocation2 + $0xd8] sm:$0xff]
      %v332 = vld [vmem:[#allocation2 + $0xe0] sm:$0xff]
      %v333 = vld [vmem:[#allocation2 + $0xe8] sm:$0xff]
      %v334 = vld [vmem:[#allocation2 + $0xf0] sm:$0xff]
      %v335 = vld [vmem:[#allocation2 + $0xf8] sm:$0xff]
      %v336 = vld [vmem:[%s243] sm:$0xff]
      %v337 = vld [vmem:[%s243 + $0x8] sm:$0xf]
      %v338 = vld [vmem:[%s243 + $0xc] sm:$0xff]
      %v339 = vld [vmem:[%s243 + $0x14] sm:$0xf]
      %v340 = vld [vmem:[%s243 + $0x18] sm:$0xff]
      %v341 = vld [vmem:[%s243 + $0x20] sm:$0xf]
      %v342 = vld [vmem:[%s243 + $0x24] sm:$0xff]
      %v343 = vld [vmem:[%s243 + $0x2c] sm:$0xf]
      %v344 = vld [vmem:[%s243 + $0x30] sm:$0xff]
      %v345 = vld [vmem:[%s243 + $0x38] sm:$0xf]
      %v346 = vld [vmem:[%s243 + $0x3c] sm:$0xff]
      %v347 = vld [vmem:[%s243 + $0x44] sm:$0xf]
      %v348 = vld [vmem:[%s243 + $0x48] sm:$0xff]
      %v349 = vld [vmem:[%s243 + $0x50] sm:$0xf]
      %v350 = vld [vmem:[%s243 + $0x54] sm:$0xff]
      %v351 = vld [vmem:[%s243 + $0x5c] sm:$0xf]
      %v352 = vld [vmem:[%s243 + $0x60] sm:$0xff]
      %v353 = vld [vmem:[%s243 + $0x68] sm:$0xf]
      %v354 = vld [vmem:[%s243 + $0x6c] sm:$0xff]
      %v355 = vld [vmem:[%s243 + $0x74] sm:$0xf]
      %v356 = vld [vmem:[%s243 + $0x78] sm:$0xff]
      %v357 = vld [vmem:[%s243 + $0x80] sm:$0xf]
      %v358 = vld [vmem:[%s243 + $0x84] sm:$0xff]
      %v359 = vld [vmem:[%s243 + $0x8c] sm:$0xf]
      %v360 = vld [vmem:[%s243 + $0x90] sm:$0xff]
      %v361 = vld [vmem:[%s243 + $0x98] sm:$0xf]
      %v362 = vld [vmem:[%s243 + $0x9c] sm:$0xff]
      %v363 = vld [vmem:[%s243 + $0xa4] sm:$0xf]
      %v364 = vld [vmem:[%s243 + $0xa8] sm:$0xff]
      %v365 = vld [vmem:[%s243 + $0xb0] sm:$0xf]
      %v366 = vld [vmem:[%s243 + $0xb4] sm:$0xff]
      %v367 = vld [vmem:[%s243 + $0xbc] sm:$0xf]
      %v368 = vld [vmem:[%s243 + $0xc0] sm:$0xff]
      %v369 = vld [vmem:[%s243 + $0xc8] sm:$0xf]
      %v370 = vld [vmem:[%s243 + $0xcc] sm:$0xff]
      %v371 = vld [vmem:[%s243 + $0xd4] sm:$0xf]
      %v372 = vld [vmem:[%s243 + $0xd8] sm:$0xff]
      %v373 = vld [vmem:[%s243 + $0xe0] sm:$0xf]
      %v374 = vld [vmem:[%s243 + $0xe4] sm:$0xff]
      %v375 = vld [vmem:[%s243 + $0xec] sm:$0xf]
      %v376 = vld [vmem:[%s243 + $0xf0] sm:$0xff]
      %v377 = vld [vmem:[%s243 + $0xf8] sm:$0xf]
      %v378 = vld [vmem:[%s243 + $0xfc] sm:$0xff]
      %v379 = vld [vmem:[%s243 + $0x104] sm:$0xf]
      %v380 = vld [vmem:[%s243 + $0x108] sm:$0xff]
      %v381 = vld [vmem:[%s243 + $0x110] sm:$0xf]
      %v382 = vld [vmem:[%s243 + $0x114] sm:$0xff]
      %v383 = vld [vmem:[%s243 + $0x11c] sm:$0xf]
      %v384 = vld [vmem:[%s243 + $0x120] sm:$0xff]
      %v385 = vld [vmem:[%s243 + $0x128] sm:$0xf]
      %v386 = vld [vmem:[%s243 + $0x12c] sm:$0xff]
      %v387 = vld [vmem:[%s243 + $0x134] sm:$0xf]
      %v388 = vld [vmem:[%s243 + $0x138] sm:$0xff]
      %v389 = vld [vmem:[%s243 + $0x140] sm:$0xf]
      %v390 = vld [vmem:[%s243 + $0x144] sm:$0xff]
      %v391 = vld [vmem:[%s243 + $0x14c] sm:$0xf]
      %v392 = vld [vmem:[%s243 + $0x150] sm:$0xff]
      %v393 = vld [vmem:[%s243 + $0x158] sm:$0xf]
      %v394 = vld [vmem:[%s243 + $0x15c] sm:$0xff]
      %v395 = vld [vmem:[%s243 + $0x164] sm:$0xf]
      %v396 = vld [vmem:[%s243 + $0x168] sm:$0xff]
      %v397 = vld [vmem:[%s243 + $0x170] sm:$0xf]
      %v398 = vld [vmem:[%s243 + $0x174] sm:$0xff]
      %v399 = vld [vmem:[%s243 + $0x17c] sm:$0xf]
      %v400 = vld [vmem:[%s253] sm:$0xf]
      %v401 = vld [vmem:[%s253 + $0x4] sm:$0xf]
      %v402 = vld [vmem:[%s253 + $0x8] sm:$0xf]
      %v403 = vld [vmem:[%s253 + $0xc] sm:$0xf]
      %v404 = vld [vmem:[%s253 + $0x10] sm:$0xf]
      %v405 = vld [vmem:[%s253 + $0x14] sm:$0xf]
      %v406 = vld [vmem:[%s253 + $0x18] sm:$0xf]
      %v407 = vld [vmem:[%s253 + $0x1c] sm:$0xf]
      %v408 = vld [vmem:[%s253 + $0x20] sm:$0xf]
      %v409 = vld [vmem:[%s253 + $0x24] sm:$0xf]
      %v410 = vld [vmem:[%s253 + $0x28] sm:$0xf]
      %v411 = vld [vmem:[%s253 + $0x2c] sm:$0xf]
      %v412 = vld [vmem:[%s253 + $0x30] sm:$0xf]
      %v413 = vld [vmem:[%s253 + $0x34] sm:$0xf]
      %v414 = vld [vmem:[%s253 + $0x38] sm:$0xf]
      %v415 = vld [vmem:[%s253 + $0x3c] sm:$0xf]
      %v416 = vld [vmem:[%s253 + $0x40] sm:$0xf]
      %v417 = vld [vmem:[%s253 + $0x44] sm:$0xf]
      %v418 = vld [vmem:[%s253 + $0x48] sm:$0xf]
      %v419 = vld [vmem:[%s253 + $0x4c] sm:$0xf]
      %v420 = vld [vmem:[%s253 + $0x50] sm:$0xf]
      %v421 = vld [vmem:[%s253 + $0x54] sm:$0xf]
      %v422 = vld [vmem:[%s253 + $0x58] sm:$0xf]
      %v423 = vld [vmem:[%s253 + $0x5c] sm:$0xf]
      %v424 = vld [vmem:[%s253 + $0x60] sm:$0xf]
      %v425 = vld [vmem:[%s253 + $0x64] sm:$0xf]
      %v426 = vld [vmem:[%s253 + $0x68] sm:$0xf]
      %v427 = vld [vmem:[%s253 + $0x6c] sm:$0xf]
      %v428 = vld [vmem:[%s253 + $0x70] sm:$0xf]
      %v429 = vld [vmem:[%s253 + $0x74] sm:$0xf]
      %v430 = vld [vmem:[%s253 + $0x78] sm:$0xf]
      %v431 = vld [vmem:[%s253 + $0x7c] sm:$0xf]
      %v432 = vld [vmem:[%s253 + $0x80] sm:$0xf]
      %v433 = vld [vmem:[%s253 + $0x84] sm:$0xf]
      %v434 = vld [vmem:[%s253 + $0x88] sm:$0xf]
      %v435 = vld [vmem:[%s253 + $0x8c] sm:$0xf]
      %v436 = vld [vmem:[%s253 + $0x90] sm:$0xf]
      %v437 = vld [vmem:[%s253 + $0x94] sm:$0xf]
      %v438 = vld [vmem:[%s253 + $0x98] sm:$0xf]
      %v439 = vld [vmem:[%s253 + $0x9c] sm:$0xf]
      %v440 = vld [vmem:[%s253 + $0xa0] sm:$0xf]
      %v441 = vld [vmem:[%s253 + $0xa4] sm:$0xf]
      %v442 = vld [vmem:[%s253 + $0xa8] sm:$0xf]
      %v443 = vld [vmem:[%s253 + $0xac] sm:$0xf]
      %v444 = vld [vmem:[%s253 + $0xb0] sm:$0xf]
      %v445 = vld [vmem:[%s253 + $0xb4] sm:$0xf]
      %v446 = vld [vmem:[%s253 + $0xb8] sm:$0xf]
      %v447 = vld [vmem:[%s253 + $0xbc] sm:$0xf]
      %v512 = vunpack.c.l.b16 %v336
      %v513 = vunpack.c.h.b16 %v336
      %v514 = vunpack.c.l.b16 %v337
      %v515 = vunpack.c.l.b16 %v338
      %v516 = vunpack.c.h.b16 %v338
      %v517 = vunpack.c.l.b16 %v339
      %v518 = vunpack.c.l.b16 %v340
      %v519 = vunpack.c.h.b16 %v340
      %v520 = vunpack.c.l.b16 %v341
      %v521 = vunpack.c.l.b16 %v342
      %v522 = vunpack.c.h.b16 %v342
      %v523 = vunpack.c.l.b16 %v343
      %v524 = vunpack.c.l.b16 %v344
      %v525 = vunpack.c.h.b16 %v344
      %v526 = vunpack.c.l.b16 %v345
      %v527 = vunpack.c.l.b16 %v346
      %v528 = vunpack.c.h.b16 %v346
      %v529 = vunpack.c.l.b16 %v347
      %v530 = vunpack.c.l.b16 %v348
      %v531 = vunpack.c.h.b16 %v348
      %v532 = vunpack.c.l.b16 %v349
      %v533 = vunpack.c.l.b16 %v350
      %v534 = vunpack.c.h.b16 %v350
      %v535 = vunpack.c.l.b16 %v351
      %v536 = vunpack.c.l.b16 %v352
      %v537 = vunpack.c.h.b16 %v352
      %v538 = vunpack.c.l.b16 %v353
      %v539 = vunpack.c.l.b16 %v354
      %v540 = vunpack.c.h.b16 %v354
      %v541 = vunpack.c.l.b16 %v355
      %v542 = vunpack.c.l.b16 %v356
      %v543 = vunpack.c.h.b16 %v356
      %v544 = vunpack.c.l.b16 %v357
      %v545 = vunpack.c.l.b16 %v358
      %v546 = vunpack.c.h.b16 %v358
      %v547 = vunpack.c.l.b16 %v359
      %v548 = vunpack.c.l.b16 %v360
      %v549 = vunpack.c.h.b16 %v360
      %v550 = vunpack.c.l.b16 %v361
      %v551 = vunpack.c.l.b16 %v362
      %v552 = vunpack.c.h.b16 %v362
      %v553 = vunpack.c.l.b16 %v363
      %v554 = vunpack.c.l.b16 %v364
      %v555 = vunpack.c.h.b16 %v364
      %v556 = vunpack.c.l.b16 %v365
      %v557 = vunpack.c.l.b16 %v366
      %v558 = vunpack.c.h.b16 %v366
      %v559 = vunpack.c.l.b16 %v367
      %v560 = vunpack.c.l.b16 %v368
      %v561 = vunpack.c.h.b16 %v368
      %v562 = vunpack.c.l.b16 %v369
      %v563 = vunpack.c.l.b16 %v370
      %v564 = vunpack.c.h.b16 %v370
      %v565 = vunpack.c.l.b16 %v371
      %v566 = vunpack.c.l.b16 %v372
      %v567 = vunpack.c.h.b16 %v372
      %v568 = vunpack.c.l.b16 %v373
      %v569 = vunpack.c.l.b16 %v374
      %v570 = vunpack.c.h.b16 %v374
      %v571 = vunpack.c.l.b16 %v375
      %v572 = vunpack.c.l.b16 %v376
      %v573 = vunpack.c.h.b16 %v376
      %v574 = vunpack.c.l.b16 %v377
      %v575 = vunpack.c.l.b16 %v378
      %v576 = vunpack.c.h.b16 %v378
      %v577 = vunpack.c.l.b16 %v379
      %v578 = vunpack.c.l.b16 %v380
      %v579 = vunpack.c.h.b16 %v380
      %v580 = vunpack.c.l.b16 %v381
      %v581 = vunpack.c.l.b16 %v382
      %v582 = vunpack.c.h.b16 %v382
      %v583 = vunpack.c.l.b16 %v383
      %v584 = vunpack.c.l.b16 %v384
      %v585 = vunpack.c.h.b16 %v384
      %v586 = vunpack.c.l.b16 %v385
      %v587 = vunpack.c.l.b16 %v386
      %v588 = vunpack.c.h.b16 %v386
      %v589 = vunpack.c.l.b16 %v387
      %v590 = vunpack.c.l.b16 %v388
      %v591 = vunpack.c.h.b16 %v388
      %v592 = vunpack.c.l.b16 %v389
      %v593 = vunpack.c.l.b16 %v390
      %v594 = vunpack.c.h.b16 %v390
      %v595 = vunpack.c.l.b16 %v391
      %v596 = vunpack.c.l.b16 %v392
      %v597 = vunpack.c.h.b16 %v392
      %v598 = vunpack.c.l.b16 %v393
      %v599 = vunpack.c.l.b16 %v394
      %v600 = vunpack.c.h.b16 %v394
      %v601 = vunpack.c.l.b16 %v395
      %v602 = vunpack.c.l.b16 %v396
      %v603 = vunpack.c.h.b16 %v396
      %v604 = vunpack.c.l.b16 %v397
      %v605 = vunpack.c.l.b16 %v398
      %v606 = vunpack.c.h.b16 %v398
      %v607 = vunpack.c.l.b16 %v399
      %v608 = vpack.c.b16 %v515, %v512
      %v609 = vpack.c.b16 %v516, %v513
      %v610 = vpack.c.b16 %v517, %v514
      %v611 = vpack.c.b16 %v521, %v518
      %v612 = vpack.c.b16 %v522, %v519
      %v613 = vpack.c.b16 %v523, %v520
      %v614 = vpack.c.b16 %v527, %v524
      %v615 = vpack.c.b16 %v528, %v525
      %v616 = vpack.c.b16 %v529, %v526
      %v617 = vpack.c.b16 %v533, %v530
      %v618 = vpack.c.b16 %v534, %v531
      %v619 = vpack.c.b16 %v535, %v532
      %v620 = vpack.c.b16 %v539, %v536
      %v621 = vpack.c.b16 %v540, %v537
      %v622 = vpack.c.b16 %v541, %v538
      %v623 = vpack.c.b16 %v545, %v542
      %v624 = vpack.c.b16 %v546, %v543
      %v625 = vpack.c.b16 %v547, %v544
      %v626 = vpack.c.b16 %v551, %v548
      %v627 = vpack.c.b16 %v552, %v549
      %v628 = vpack.c.b16 %v553, %v550
      %v629 = vpack.c.b16 %v557, %v554
      %v630 = vpack.c.b16 %v558, %v555
      %v631 = vpack.c.b16 %v559, %v556
      %v632 = vpack.c.b16 %v563, %v560
      %v633 = vpack.c.b16 %v564, %v561
      %v634 = vpack.c.b16 %v565, %v562
      %v635 = vpack.c.b16 %v569, %v566
      %v636 = vpack.c.b16 %v570, %v567
      %v637 = vpack.c.b16 %v571, %v568
      %v638 = vpack.c.b16 %v575, %v572
      %v639 = vpack.c.b16 %v576, %v573
      %v640 = vpack.c.b16 %v577, %v574
      %v641 = vpack.c.b16 %v581, %v578
      %v642 = vpack.c.b16 %v582, %v579
      %v643 = vpack.c.b16 %v583, %v580
      %v644 = vpack.c.b16 %v587, %v584
      %v645 = vpack.c.b16 %v588, %v585
      %v646 = vpack.c.b16 %v589, %v586
      %v647 = vpack.c.b16 %v593, %v590
      %v648 = vpack.c.b16 %v594, %v591
      %v649 = vpack.c.b16 %v595, %v592
      %v650 = vpack.c.b16 %v599, %v596
      %v651 = vpack.c.b16 %v600, %v597
      %v652 = vpack.c.b16 %v601, %v598
      %v653 = vpack.c.b16 %v605, %v602
      %v654 = vpack.c.b16 %v606, %v603
      %v655 = vpack.c.b16 %v607, %v604
      %v752 = vunpack.c.l.b16 %v400
      %v753 = vunpack.c.l.b16 %v401
      %v754 = vunpack.c.l.b16 %v402
      %v755 = vunpack.c.l.b16 %v403
      %v756 = vunpack.c.l.b16 %v404
      %v757 = vunpack.c.l.b16 %v405
      %v758 = vunpack.c.l.b16 %v406
      %v759 = vunpack.c.l.b16 %v407
      %v760 = vunpack.c.l.b16 %v408
      %v761 = vunpack.c.l.b16 %v409
      %v762 = vunpack.c.l.b16 %v410
      %v763 = vunpack.c.l.b16 %v411
      %v764 = vunpack.c.l.b16 %v412
      %v765 = vunpack.c.l.b16 %v413
      %v766 = vunpack.c.l.b16 %v414
      %v767 = vunpack.c.l.b16 %v415
      %v768 = vunpack.c.l.b16 %v416
      %v769 = vunpack.c.l.b16 %v417
      %v770 = vunpack.c.l.b16 %v418
      %v771 = vunpack.c.l.b16 %v419
      %v772 = vunpack.c.l.b16 %v420
      %v773 = vunpack.c.l.b16 %v421
      %v774 = vunpack.c.l.b16 %v422
      %v775 = vunpack.c.l.b16 %v423
      %v776 = vunpack.c.l.b16 %v424
      %v777 = vunpack.c.l.b16 %v425
      %v778 = vunpack.c.l.b16 %v426
      %v779 = vunpack.c.l.b16 %v427
      %v780 = vunpack.c.l.b16 %v428
      %v781 = vunpack.c.l.b16 %v429
      %v782 = vunpack.c.l.b16 %v430
      %v783 = vunpack.c.l.b16 %v431
      %v784 = vunpack.c.l.b16 %v432
      %v785 = vunpack.c.l.b16 %v433
      %v786 = vunpack.c.l.b16 %v434
      %v787 = vunpack.c.l.b16 %v435
      %v788 = vunpack.c.l.b16 %v436
      %v789 = vunpack.c.l.b16 %v437
      %v790 = vunpack.c.l.b16 %v438
      %v791 = vunpack.c.l.b16 %v439
      %v792 = vunpack.c.l.b16 %v440
      %v793 = vunpack.c.l.b16 %v441
      %v794 = vunpack.c.l.b16 %v442
      %v795 = vunpack.c.l.b16 %v443
      %v796 = vunpack.c.l.b16 %v444
      %v797 = vunpack.c.l.b16 %v445
      %v798 = vunpack.c.l.b16 %v446
      %v799 = vunpack.c.l.b16 %v447
      %v800 = vpack.c.b16 %v753, %v752
      %v801 = vpack.c.b16 %v755, %v754
      %v802 = vpack.c.b16 %v757, %v756
      %v803 = vpack.c.b16 %v759, %v758
      %v804 = vpack.c.b16 %v761, %v760
      %v805 = vpack.c.b16 %v763, %v762
      %v806 = vpack.c.b16 %v765, %v764
      %v807 = vpack.c.b16 %v767, %v766
      %v808 = vpack.c.b16 %v769, %v768
      %v809 = vpack.c.b16 %v771, %v770
      %v810 = vpack.c.b16 %v773, %v772
      %v811 = vpack.c.b16 %v775, %v774
      %v812 = vpack.c.b16 %v777, %v776
      %v813 = vpack.c.b16 %v779, %v778
      %v814 = vpack.c.b16 %v781, %v780
      %v815 = vpack.c.b16 %v783, %v782
      %v816 = vpack.c.b16 %v785, %v784
      %v817 = vpack.c.b16 %v787, %v786
      %v818 = vpack.c.b16 %v789, %v788
      %v819 = vpack.c.b16 %v791, %v790
      %v820 = vpack.c.b16 %v793, %v792
      %v821 = vpack.c.b16 %v795, %v794
      %v822 = vpack.c.b16 %v797, %v796
      %v823 = vpack.c.b16 %v799, %v798
      %848 = vmatprep.subr.bf16.mxu0 0
      %849 = vmatpush1.bf16.msra.mxu0 %v800
      %850 = vmatprep.subr.bf16.mxu0 0
      %851 = vmatpush1.bf16.msra.mxu0 %v801
      %852 = vmatprep.subr.bf16.mxu0 0
      %853 = vmatpush1.bf16.msra.mxu0 %v802
      %854 = vmatprep.subr.bf16.mxu0 0
      %855 = vmatpush1.bf16.msra.mxu0 %v803
      %856 = vmatprep.subr.bf16.mxu0 0
      %857 = vmatpush1.bf16.msra.mxu0 %v804
      %858 = vmatprep.subr.bf16.mxu0 0
      %859 = vmatpush1.bf16.msra.mxu0 %v805
      %860 = vmatprep.subr.bf16.mxu0 0
      %861 = vmatpush1.bf16.msra.mxu0 %v806
      %862 = vmatprep.subr.bf16.mxu0 0
      %863 = vmatpush1.bf16.msra.mxu0 %v807
      %864 = vmatprep.subr.bf16.mxu0 0
      %865 = vmatpush1.bf16.msra.mxu0 %v808
      %866 = vmatprep.subr.bf16.mxu0 0
      %867 = vmatpush1.bf16.msra.mxu0 %v809
      %868 = vmatprep.subr.bf16.mxu0 0
      %869 = vmatpush1.bf16.msra.mxu0 %v810
      %870 = vmatprep.subr.bf16.mxu0 0
      %871 = vmatpush1.bf16.msra.mxu0 %v811
      %872 = vmatprep.subr.bf16.mxu0 0
      %873 = vmatpush1.bf16.msra.mxu0 %v812
      %874 = vmatprep.subr.bf16.mxu0 0
      %875 = vmatpush1.bf16.msra.mxu0 %v813
      %876 = vmatprep.subr.bf16.mxu0 0
      %877 = vmatpush1.bf16.msra.mxu0 %v814
      %878 = vmatprep.subr.bf16.mxu0 0
      %879 = vmatpush1.bf16.msra.mxu0 %v815
      %880 = vmatprep.mubr.bf16.mxu0 %v609
      %881 = vmatmul.mubr.bf16.gmra.mrb[0].mxu0 %v608
      %v882 = vpop.f32.mrb[0].mxu0
      %v883 = vadd.f32 0.0, %v882
      %v884 = vpop.f32.mrb[0].mxu0
      %v885 = vpop.f32.mrb[0].mxu0
      %v886 = vadd.f32 0.0, %v885
      %v887 = vpop.f32.mrb[0].mxu0
      %888 = vmatprep.mubr.bf16.mxu0 %v612
      %889 = vmatmul.mubr.bf16.gmra.mrb[0].mxu0 %v611
      %v890 = vpop.f32.mrb[0].mxu0
      %v891 = vadd.f32 0.0, %v890
      %v892 = vpop.f32.mrb[0].mxu0
      %v893 = vpop.f32.mrb[0].mxu0
      %v894 = vadd.f32 0.0, %v893
      %v895 = vpop.f32.mrb[0].mxu0
      %896 = vmatprep.mubr.bf16.mxu0 %v615
      %897 = vmatmul.mubr.bf16.gmra.mrb[0].mxu0 %v614
      %v898 = vpop.f32.mrb[0].mxu0
      %v899 = vadd.f32 0.0, %v898
      %v900 = vpop.f32.mrb[0].mxu0
      %v901 = vpop.f32.mrb[0].mxu0
      %v902 = vadd.f32 0.0, %v901
      %v903 = vpop.f32.mrb[0].mxu0
      %904 = vmatprep.mubr.bf16.mxu0 %v618
      %905 = vmatmul.mubr.bf16.gmra.mrb[0].mxu0 %v617
      %v906 = vpop.f32.mrb[0].mxu0
      %v907 = vadd.f32 0.0, %v906
      %v908 = vpop.f32.mrb[0].mxu0
      %v909 = vpop.f32.mrb[0].mxu0
      %v910 = vadd.f32 0.0, %v909
      %v911 = vpop.f32.mrb[0].mxu0
      %912 = vmatprep.mubr.bf16.mxu0 %v621
      %913 = vmatmul.mubr.bf16.gmra.mrb[0].mxu0 %v620
      %v914 = vpop.f32.mrb[0].mxu0
      %v915 = vadd.f32 0.0, %v914
      %v916 = vpop.f32.mrb[0].mxu0
      %v917 = vpop.f32.mrb[0].mxu0
      %v918 = vadd.f32 0.0, %v917
      %v919 = vpop.f32.mrb[0].mxu0
      %920 = vmatprep.mubr.bf16.mxu0 %v624
      %921 = vmatmul.mubr.bf16.gmra.mrb[0].mxu0 %v623
      %v922 = vpop.f32.mrb[0].mxu0
      %v923 = vadd.f32 0.0, %v922
      %v924 = vpop.f32.mrb[0].mxu0
      %v925 = vpop.f32.mrb[0].mxu0
      %v926 = vadd.f32 0.0, %v925
      %v927 = vpop.f32.mrb[0].mxu0
      %928 = vmatprep.mubr.bf16.mxu0 %v627
      %929 = vmatmul.mubr.bf16.gmra.mrb[0].mxu0 %v626
      %v930 = vpop.f32.mrb[0].mxu0
      %v931 = vadd.f32 0.0, %v930
      %v932 = vpop.f32.mrb[0].mxu0
      %v933 = vpop.f32.mrb[0].mxu0
      %v934 = vadd.f32 0.0, %v933
      %v935 = vpop.f32.mrb[0].mxu0
      %936 = vmatprep.mubr.bf16.mxu0 %v630
      %937 = vmatmul.mubr.bf16.gmra.mrb[0].mxu0 %v629
      %v938 = vpop.f32.mrb[0].mxu0
      %v939 = vadd.f32 0.0, %v938
      %v940 = vpop.f32.mrb[0].mxu0
      %v941 = vpop.f32.mrb[0].mxu0
      %v942 = vadd.f32 0.0, %v941
      %v943 = vpop.f32.mrb[0].mxu0
      %944 = vmatprep.mubr.bf16.mxu0 %v633
      %945 = vmatmul.mubr.bf16.gmra.mrb[0].mxu0 %v632
      %v946 = vpop.f32.mrb[0].mxu0
      %v947 = vadd.f32 0.0, %v946
      %v948 = vpop.f32.mrb[0].mxu0
      %v949 = vpop.f32.mrb[0].mxu0
      %v950 = vadd.f32 0.0, %v949
      %v951 = vpop.f32.mrb[0].mxu0
      %952 = vmatprep.mubr.bf16.mxu0 %v636
      %953 = vmatmul.mubr.bf16.gmra.mrb[0].mxu0 %v635
      %v954 = vpop.f32.mrb[0].mxu0
      %v955 = vadd.f32 0.0, %v954
      %v956 = vpop.f32.mrb[0].mxu0
      %v957 = vpop.f32.mrb[0].mxu0
      %v958 = vadd.f32 0.0, %v957
      %v959 = vpop.f32.mrb[0].mxu0
      %960 = vmatprep.mubr.bf16.mxu0 %v639
      %961 = vmatmul.mubr.bf16.gmra.mrb[0].mxu0 %v638
      %v962 = vpop.f32.mrb[0].mxu0
      %v963 = vadd.f32 0.0, %v962
      %v964 = vpop.f32.mrb[0].mxu0
      %v965 = vpop.f32.mrb[0].mxu0
      %v966 = vadd.f32 0.0, %v965
      %v967 = vpop.f32.mrb[0].mxu0
      %968 = vmatprep.mubr.bf16.mxu0 %v642
      %969 = vmatmul.mubr.bf16.gmra.mrb[0].mxu0 %v641
      %v970 = vpop.f32.mrb[0].mxu0
      %v971 = vadd.f32 0.0, %v970
      %v972 = vpop.f32.mrb[0].mxu0
      %v973 = vpop.f32.mrb[0].mxu0
      %v974 = vadd.f32 0.0, %v973
      %v975 = vpop.f32.mrb[0].mxu0
      %976 = vmatprep.mubr.bf16.mxu0 %v645
      %977 = vmatmul.mubr.bf16.gmra.mrb[0].mxu0 %v644
      %v978 = vpop.f32.mrb[0].mxu0
      %v979 = vadd.f32 0.0, %v978
      %v980 = vpop.f32.mrb[0].mxu0
      %v981 = vpop.f32.mrb[0].mxu0
      %v982 = vadd.f32 0.0, %v981
      %v983 = vpop.f32.mrb[0].mxu0
      %984 = vmatprep.mubr.bf16.mxu0 %v648
      %985 = vmatmul.mubr.bf16.gmra.mrb[0].mxu0 %v647
      %v986 = vpop.f32.mrb[0].mxu0
      %v987 = vadd.f32 0.0, %v986
      %v988 = vpop.f32.mrb[0].mxu0
      %v989 = vpop.f32.mrb[0].mxu0
      %v990 = vadd.f32 0.0, %v989
      %v991 = vpop.f32.mrb[0].mxu0
      %992 = vmatprep.mubr.bf16.mxu0 %v651
      %993 = vmatmul.mubr.bf16.gmra.mrb[0].mxu0 %v650
      %v994 = vpop.f32.mrb[0].mxu0
      %v995 = vadd.f32 0.0, %v994
      %v996 = vpop.f32.mrb[0].mxu0
      %v997 = vpop.f32.mrb[0].mxu0
      %v998 = vadd.f32 0.0, %v997
      %v999 = vpop.f32.mrb[0].mxu0
      %1000 = vmatprep.mubr.bf16.mxu0 %v654
      %1001 = vmatmul.mubr.bf16.gmra.mrb[0].mxu0 %v653
      %v1002 = vpop.f32.mrb[0].mxu0
      %v1003 = vadd.f32 0.0, %v1002
      %v1004 = vpop.f32.mrb[0].mxu0
      %v1005 = vpop.f32.mrb[0].mxu0
      %v1006 = vadd.f32 0.0, %v1005
      %v1007 = vpop.f32.mrb[0].mxu0
      %1008 = vdwg.mxu0
      %1009 = vmatprep.subr.bf16.mxu0 0
      %1010 = vmatpush1.bf16.msra.mxu0 %v816
      %1011 = vmatprep.subr.bf16.mxu0 0
      %1012 = vmatpush1.bf16.msra.mxu0 %v817
      %1013 = vmatprep.subr.bf16.mxu0 0
      %1014 = vmatpush1.bf16.msra.mxu0 %v818
      %1015 = vmatprep.subr.bf16.mxu0 0
      %1016 = vmatpush1.bf16.msra.mxu0 %v819
      %1017 = vmatprep.subr.bf16.mxu0 0
      %1018 = vmatpush1.bf16.msra.mxu0 %v820
      %1019 = vmatprep.subr.bf16.mxu0 0
      %1020 = vmatpush1.bf16.msra.mxu0 %v821
      %1021 = vmatprep.subr.bf16.mxu0 0
      %1022 = vmatpush1.bf16.msra.mxu0 %v822
      %1023 = vmatprep.subr.bf16.mxu0 0
      %1024 = vmatpush1.bf16.msra.mxu0 %v823
      %1025 = vmatprep.subr.bf16.mxu0 0
      %1026 = vmatpush1.bf16.msra.mxu0 0
      %1027 = vmatprep.subr.bf16.mxu0 0
      %1028 = vmatpush1.bf16.msra.mxu0 0
      %1029 = vmatprep.subr.bf16.mxu0 0
      %1030 = vmatpush1.bf16.msra.mxu0 0
      %1031 = vmatprep.subr.bf16.mxu0 0
      %1032 = vmatpush1.bf16.msra.mxu0 0
      %1033 = vmatprep.subr.bf16.mxu0 0
      %1034 = vmatpush1.bf16.msra.mxu0 0
      %1035 = vmatprep.subr.bf16.mxu0 0
      %1036 = vmatpush1.bf16.msra.mxu0 0
      %1037 = vmatprep.subr.bf16.mxu0 0
      %1038 = vmatpush1.bf16.msra.mxu0 0
      %1039 = vmatprep.subr.bf16.mxu0 0
      %1040 = vmatpush1.bf16.msra.mxu0 0
      %1041 = vmatprep.mubr.bf16.mxu0 0
      %1042 = vmatmul.mubr.bf16.gmra.mrb[0].mxu0 %v610
      %v1043 = vpop.f32.mrb[0].mxu0
      %v1044 = vadd.f32 %v883, %v1043
      %v1045 = vpop.f32.mrb[0].mxu0
      %v1046 = vpop.f32.mrb[0].mxu0
      %v1047 = vadd.f32 %v886, %v1046
      %v1048 = vpop.f32.mrb[0].mxu0
      %1049 = vmatprep.mubr.bf16.mxu0 0
      %1050 = vmatmul.mubr.bf16.gmra.mrb[0].mxu0 %v613
      %v1051 = vpop.f32.mrb[0].mxu0
      %v1052 = vadd.f32 %v891, %v1051
      %v1053 = vpop.f32.mrb[0].mxu0
      %v1054 = vpop.f32.mrb[0].mxu0
      %v1055 = vadd.f32 %v894, %v1054
      %v1056 = vpop.f32.mrb[0].mxu0
      %1057 = vmatprep.mubr.bf16.mxu0 0
      %1058 = vmatmul.mubr.bf16.gmra.mrb[0].mxu0 %v616
      %v1059 = vpop.f32.mrb[0].mxu0
      %v1060 = vadd.f32 %v899, %v1059
      %v1061 = vpop.f32.mrb[0].mxu0
      %v1062 = vpop.f32.mrb[0].mxu0
      %v1063 = vadd.f32 %v902, %v1062
      %v1064 = vpop.f32.mrb[0].mxu0
      %1065 = vmatprep.mubr.bf16.mxu0 0
      %1066 = vmatmul.mubr.bf16.gmra.mrb[0].mxu0 %v619
      %v1067 = vpop.f32.mrb[0].mxu0
      %v1068 = vadd.f32 %v907, %v1067
      %v1069 = vpop.f32.mrb[0].mxu0
      %v1070 = vpop.f32.mrb[0].mxu0
      %v1071 = vadd.f32 %v910, %v1070
      %v1072 = vpop.f32.mrb[0].mxu0
      %1073 = vmatprep.mubr.bf16.mxu0 0
      %1074 = vmatmul.mubr.bf16.gmra.mrb[0].mxu0 %v622
      %v1075 = vpop.f32.mrb[0].mxu0
      %v1076 = vadd.f32 %v915, %v1075
      %v1077 = vpop.f32.mrb[0].mxu0
      %v1078 = vpop.f32.mrb[0].mxu0
      %v1079 = vadd.f32 %v918, %v1078
      %v1080 = vpop.f32.mrb[0].mxu0
      %1081 = vmatprep.mubr.bf16.mxu0 0
      %1082 = vmatmul.mubr.bf16.gmra.mrb[0].mxu0 %v625
      %v1083 = vpop.f32.mrb[0].mxu0
      %v1084 = vadd.f32 %v923, %v1083
      %v1085 = vpop.f32.mrb[0].mxu0
      %v1086 = vpop.f32.mrb[0].mxu0
      %v1087 = vadd.f32 %v926, %v1086
      %v1088 = vpop.f32.mrb[0].mxu0
      %1089 = vmatprep.mubr.bf16.mxu0 0
      %1090 = vmatmul.mubr.bf16.gmra.mrb[0].mxu0 %v628
      %v1091 = vpop.f32.mrb[0].mxu0
      %v1092 = vadd.f32 %v931, %v1091
      %v1093 = vpop.f32.mrb[0].mxu0
      %v1094 = vpop.f32.mrb[0].mxu0
      %v1095 = vadd.f32 %v934, %v1094
      %v1096 = vpop.f32.mrb[0].mxu0
      %1097 = vmatprep.mubr.bf16.mxu0 0
      %1098 = vmatmul.mubr.bf16.gmra.mrb[0].mxu0 %v631
      %v1099 = vpop.f32.mrb[0].mxu0
      %v1100 = vadd.f32 %v939, %v1099
      %v1101 = vpop.f32.mrb[0].mxu0
      %v1102 = vpop.f32.mrb[0].mxu0
      %v1103 = vadd.f32 %v942, %v1102
      %v1104 = vpop.f32.mrb[0].mxu0
      %1105 = vmatprep.mubr.bf16.mxu0 0
      %1106 = vmatmul.mubr.bf16.gmra.mrb[0].mxu0 %v634
      %v1107 = vpop.f32.mrb[0].mxu0
      %v1108 = vadd.f32 %v947, %v1107
      %v1109 = vpop.f32.mrb[0].mxu0
      %v1110 = vpop.f32.mrb[0].mxu0
      %v1111 = vadd.f32 %v950, %v1110
      %v1112 = vpop.f32.mrb[0].mxu0
      %1113 = vmatprep.mubr.bf16.mxu0 0
      %1114 = vmatmul.mubr.bf16.gmra.mrb[0].mxu0 %v637
      %v1115 = vpop.f32.mrb[0].mxu0
      %v1116 = vadd.f32 %v955, %v1115
      %v1117 = vpop.f32.mrb[0].mxu0
      %v1118 = vpop.f32.mrb[0].mxu0
      %v1119 = vadd.f32 %v958, %v1118
      %v1120 = vpop.f32.mrb[0].mxu0
      %1121 = vmatprep.mubr.bf16.mxu0 0
      %1122 = vmatmul.mubr.bf16.gmra.mrb[0].mxu0 %v640
      %v1123 = vpop.f32.mrb[0].mxu0
      %v1124 = vadd.f32 %v963, %v1123
      %v1125 = vpop.f32.mrb[0].mxu0
      %v1126 = vpop.f32.mrb[0].mxu0
      %v1127 = vadd.f32 %v966, %v1126
      %v1128 = vpop.f32.mrb[0].mxu0
      %1129 = vmatprep.mubr.bf16.mxu0 0
      %1130 = vmatmul.mubr.bf16.gmra.mrb[0].mxu0 %v643
      %v1131 = vpop.f32.mrb[0].mxu0
      %v1132 = vadd.f32 %v971, %v1131
      %v1133 = vpop.f32.mrb[0].mxu0
      %v1134 = vpop.f32.mrb[0].mxu0
      %v1135 = vadd.f32 %v974, %v1134
      %v1136 = vpop.f32.mrb[0].mxu0
      %1137 = vmatprep.mubr.bf16.mxu0 0
      %1138 = vmatmul.mubr.bf16.gmra.mrb[0].mxu0 %v646
      %v1139 = vpop.f32.mrb[0].mxu0
      %v1140 = vadd.f32 %v979, %v1139
      %v1141 = vpop.f32.mrb[0].mxu0
      %v1142 = vpop.f32.mrb[0].mxu0
      %v1143 = vadd.f32 %v982, %v1142
      %v1144 = vpop.f32.mrb[0].mxu0
      %1145 = vmatprep.mubr.bf16.mxu0 0
      %1146 = vmatmul.mubr.bf16.gmra.mrb[0].mxu0 %v649
      %v1147 = vpop.f32.mrb[0].mxu0
      %v1148 = vadd.f32 %v987, %v1147
      %v1149 = vpop.f32.mrb[0].mxu0
      %v1150 = vpop.f32.mrb[0].mxu0
      %v1151 = vadd.f32 %v990, %v1150
      %v1152 = vpop.f32.mrb[0].mxu0
      %1153 = vmatprep.mubr.bf16.mxu0 0
      %1154 = vmatmul.mubr.bf16.gmra.mrb[0].mxu0 %v652
      %v1155 = vpop.f32.mrb[0].mxu0
      %v1156 = vadd.f32 %v995, %v1155
      %v1157 = vpop.f32.mrb[0].mxu0
      %v1158 = vpop.f32.mrb[0].mxu0
      %v1159 = vadd.f32 %v998, %v1158
      %v1160 = vpop.f32.mrb[0].mxu0
      %1161 = vmatprep.mubr.bf16.mxu0 0
      %1162 = vmatmul.mubr.bf16.gmra.mrb[0].mxu0 %v655
      %v1163 = vpop.f32.mrb[0].mxu0
      %v1164 = vadd.f32 %v1003, %v1163
      %v1165 = vpop.f32.mrb[0].mxu0
      %v1166 = vpop.f32.mrb[0].mxu0
      %v1167 = vadd.f32 %v1006, %v1166
      %v1168 = vpop.f32.mrb[0].mxu0
      %1169 = vdwg.mxu0
      %v1170 = vadd.f32 %v304, %v1044
      %v1171 = vadd.f32 %v305, %v1047
      %v1172 = vadd.f32 %v306, %v1052
      %v1173 = vadd.f32 %v307, %v1055
      %v1174 = vadd.f32 %v308, %v1060
      %v1175 = vadd.f32 %v309, %v1063
      %v1176 = vadd.f32 %v310, %v1068
      %v1177 = vadd.f32 %v311, %v1071
      %v1178 = vadd.f32 %v312, %v1076
      %v1179 = vadd.f32 %v313, %v1079
      %v1180 = vadd.f32 %v314, %v1084
      %v1181 = vadd.f32 %v315, %v1087
      %v1182 = vadd.f32 %v316, %v1092
      %v1183 = vadd.f32 %v317, %v1095
      %v1184 = vadd.f32 %v318, %v1100
      %v1185 = vadd.f32 %v319, %v1103
      %v1186 = vadd.f32 %v320, %v1108
      %v1187 = vadd.f32 %v321, %v1111
      %v1188 = vadd.f32 %v322, %v1116
      %v1189 = vadd.f32 %v323, %v1119
      %v1190 = vadd.f32 %v324, %v1124
      %v1191 = vadd.f32 %v325, %v1127
      %v1192 = vadd.f32 %v326, %v1132
      %v1193 = vadd.f32 %v327, %v1135
      %v1194 = vadd.f32 %v328, %v1140
      %v1195 = vadd.f32 %v329, %v1143
      %v1196 = vadd.f32 %v330, %v1148
      %v1197 = vadd.f32 %v331, %v1151
      %v1198 = vadd.f32 %v332, %v1156
      %v1199 = vadd.f32 %v333, %v1159
      %v1200 = vadd.f32 %v334, %v1164
      %v1201 = vadd.f32 %v335, %v1167
      %1202 = vst [vmem:[#allocation2] sm:$0xff] %v1170
      %1203 = vst [vmem:[#allocation2 + $0x8] sm:$0xff] %v1171
      %1204 = vst [vmem:[#allocation2 + $0x10] sm:$0xff] %v1172
      %1205 = vst [vmem:[#allocation2 + $0x18] sm:$0xff] %v1173
      %1206 = vst [vmem:[#allocation2 + $0x20] sm:$0xff] %v1174
      %1207 = vst [vmem:[#allocation2 + $0x28] sm:$0xff] %v1175
      %1208 = vst [vmem:[#allocation2 + $0x30] sm:$0xff] %v1176
      %1209 = vst [vmem:[#allocation2 + $0x38] sm:$0xff] %v1177
      %1210 = vst [vmem:[#allocation2 + $0x40] sm:$0xff] %v1178
      %1211 = vst [vmem:[#allocation2 + $0x48] sm:$0xff] %v1179
      %1212 = vst [vmem:[#allocation2 + $0x50] sm:$0xff] %v1180
      %1213 = vst [vmem:[#allocation2 + $0x58] sm:$0xff] %v1181
      %1214 = vst [vmem:[#allocation2 + $0x60] sm:$0xff] %v1182
      %1215 = vst [vmem:[#allocation2 + $0x68] sm:$0xff] %v1183
      %1216 = vst [vmem:[#allocation2 + $0x70] sm:$0xff] %v1184
      %1217 = vst [vmem:[#allocation2 + $0x78] sm:$0xff] %v1185
      %1218 = vst [vmem:[#allocation2 + $0x80] sm:$0xff] %v1186
      %1219 = vst [vmem:[#allocation2 + $0x88] sm:$0xff] %v1187
      %1220 = vst [vmem:[#allocation2 + $0x90] sm:$0xff] %v1188
      %1221 = vst [vmem:[#allocation2 + $0x98] sm:$0xff] %v1189
      %1222 = vst [vmem:[#allocation2 + $0xa0] sm:$0xff] %v1190
      %1223 = vst [vmem:[#allocation2 + $0xa8] sm:$0xff] %v1191
      %1224 = vst [vmem:[#allocation2 + $0xb0] sm:$0xff] %v1192
      %1225 = vst [vmem:[#allocation2 + $0xb8] sm:$0xff] %v1193
      %1226 = vst [vmem:[#allocation2 + $0xc0] sm:$0xff] %v1194
      %1227 = vst [vmem:[#allocation2 + $0xc8] sm:$0xff] %v1195
      %1228 = vst [vmem:[#allocation2 + $0xd0] sm:$0xff] %v1196
      %1229 = vst [vmem:[#allocation2 + $0xd8] sm:$0xff] %v1197
      %1230 = vst [vmem:[#allocation2 + $0xe0] sm:$0xff] %v1198
      %1231 = vst [vmem:[#allocation2 + $0xe8] sm:$0xff] %v1199
      %1232 = vst [vmem:[#allocation2 + $0xf0] sm:$0xff] %v1200
      %1233 = vst [vmem:[#allocation2 + $0xf8] sm:$0xff] %v1201
      // Predicated region
      $region37: #{_lambda_.25} parent=31 // pred_check
        %p1234 = pneg %p268
      $region38: #{_lambda_.25} parent=31 // pred_check_branch
        %1236 = sbr.rel (%p1234) target = $region40
      $region39: #{_lambda_.25} parent=31 // pred_region
        %v1237 = vld [vmem:[#allocation2] sm:$0xff]
        %v1238 = vld [vmem:[#allocation2 + $0x8] sm:$0xff]
        %v1239 = vld [vmem:[#allocation2 + $0x10] sm:$0xff]
        %v1240 = vld [vmem:[#allocation2 + $0x18] sm:$0xff]
        %v1241 = vld [vmem:[#allocation2 + $0x20] sm:$0xff]
        %v1242 = vld [vmem:[#allocation2 + $0x28] sm:$0xff]
        %v1243 = vld [vmem:[#allocation2 + $0x30] sm:$0xff]
        %v1244 = vld [vmem:[#allocation2 + $0x38] sm:$0xff]
        %v1245 = vld [vmem:[#allocation2 + $0x40] sm:$0xff]
        %v1246 = vld [vmem:[#allocation2 + $0x48] sm:$0xff]
        %v1247 = vld [vmem:[#allocation2 + $0x50] sm:$0xff]
        %v1248 = vld [vmem:[#allocation2 + $0x58] sm:$0xff]
        %v1249 = vld [vmem:[#allocation2 + $0x60] sm:$0xff]
        %v1250 = vld [vmem:[#allocation2 + $0x68] sm:$0xff]
        %v1251 = vld [vmem:[#allocation2 + $0x70] sm:$0xff]
        %v1252 = vld [vmem:[#allocation2 + $0x78] sm:$0xff]
        %v1253 = vld [vmem:[#allocation2 + $0x80] sm:$0xff]
        %v1254 = vld [vmem:[#allocation2 + $0x88] sm:$0xff]
        %v1255 = vld [vmem:[#allocation2 + $0x90] sm:$0xff]
        %v1256 = vld [vmem:[#allocation2 + $0x98] sm:$0xff]
        %v1257 = vld [vmem:[#allocation2 + $0xa0] sm:$0xff]
        %v1258 = vld [vmem:[#allocation2 + $0xa8] sm:$0xff]
        %v1259 = vld [vmem:[#allocation2 + $0xb0] sm:$0xff]
        %v1260 = vld [vmem:[#allocation2 + $0xb8] sm:$0xff]
        %v1261 = vld [vmem:[#allocation2 + $0xc0] sm:$0xff]
        %v1262 = vld [vmem:[#allocation2 + $0xc8] sm:$0xff]
        %v1263 = vld [vmem:[#allocation2 + $0xd0] sm:$0xff]
        %v1264 = vld [vmem:[#allocation2 + $0xd8] sm:$0xff]
        %v1265 = vld [vmem:[#allocation2 + $0xe0] sm:$0xff]
        %v1266 = vld [vmem:[#allocation2 + $0xe8] sm:$0xff]
        %v1267 = vld [vmem:[#allocation2 + $0xf0] sm:$0xff]
        %v1268 = vld [vmem:[#allocation2 + $0xf8] sm:$0xff]
        %v1269 = vld [vmem:[%s257] sm:$0x1]
        %v1271 = vlaneseq
        %v1272 = vshrl.u32 %v1271, 7
        %v1273 = vsub.s32 0, %v1272
        %v1274 = vrot.slane %v1269, %v1273
        %v1276 = vadd.f32 %v1237, %v1274
        %v1277 = vadd.f32 %v1238, %v1274
        %v1278 = vadd.f32 %v1239, %v1274
        %v1279 = vadd.f32 %v1240, %v1274
        %v1280 = vadd.f32 %v1241, %v1274
        %v1281 = vadd.f32 %v1242, %v1274
        %v1282 = vadd.f32 %v1243, %v1274
        %v1283 = vadd.f32 %v1244, %v1274
        %v1284 = vadd.f32 %v1245, %v1274
        %v1285 = vadd.f32 %v1246, %v1274
        %v1286 = vadd.f32 %v1247, %v1274
        %v1287 = vadd.f32 %v1248, %v1274
        %v1288 = vadd.f32 %v1249, %v1274
        %v1289 = vadd.f32 %v1250, %v1274
        %v1290 = vadd.f32 %v1251, %v1274
        %v1291 = vadd.f32 %v1252, %v1274
        %v1292 = vadd.f32 %v1253, %v1274
        %v1293 = vadd.f32 %v1254, %v1274
        %v1294 = vadd.f32 %v1255, %v1274
        %v1295 = vadd.f32 %v1256, %v1274
        %v1296 = vadd.f32 %v1257, %v1274
        %v1297 = vadd.f32 %v1258, %v1274
        %v1298 = vadd.f32 %v1259, %v1274
        %v1299 = vadd.f32 %v1260, %v1274
        %v1300 = vadd.f32 %v1261, %v1274
        %v1301 = vadd.f32 %v1262, %v1274
        %v1302 = vadd.f32 %v1263, %v1274
        %v1303 = vadd.f32 %v1264, %v1274
        %v1304 = vadd.f32 %v1265, %v1274
        %v1305 = vadd.f32 %v1266, %v1274
        %v1306 = vadd.f32 %v1267, %v1274
        %v1307 = vadd.f32 %v1268, %v1274
        %v1308 = vmax.f32 %v1276, 0.0
        %v1309 = vmax.f32 %v1277, 0.0
        %v1310 = vmax.f32 %v1278, 0.0
        %v1311 = vmax.f32 %v1279, 0.0
        %v1312 = vmax.f32 %v1280, 0.0
        %v1313 = vmax.f32 %v1281, 0.0
        %v1314 = vmax.f32 %v1282, 0.0
        %v1315 = vmax.f32 %v1283, 0.0
        %v1316 = vmax.f32 %v1284, 0.0
        %v1317 = vmax.f32 %v1285, 0.0
        %v1318 = vmax.f32 %v1286, 0.0
        %v1319 = vmax.f32 %v1287, 0.0
        %v1320 = vmax.f32 %v1288, 0.0
        %v1321 = vmax.f32 %v1289, 0.0
        %v1322 = vmax.f32 %v1290, 0.0
        %v1323 = vmax.f32 %v1291, 0.0
        %v1324 = vmax.f32 %v1292, 0.0
        %v1325 = vmax.f32 %v1293, 0.0
        %v1326 = vmax.f32 %v1294, 0.0
        %v1327 = vmax.f32 %v1295, 0.0
        %v1328 = vmax.f32 %v1296, 0.0
        %v1329 = vmax.f32 %v1297, 0.0
        %v1330 = vmax.f32 %v1298, 0.0
        %v1331 = vmax.f32 %v1299, 0.0
        %v1332 = vmax.f32 %v1300, 0.0
        %v1333 = vmax.f32 %v1301, 0.0
        %v1334 = vmax.f32 %v1302, 0.0
        %v1335 = vmax.f32 %v1303, 0.0
        %v1336 = vmax.f32 %v1304, 0.0
        %v1337 = vmax.f32 %v1305, 0.0
        %v1338 = vmax.f32 %v1306, 0.0
        %v1339 = vmax.f32 %v1307, 0.0
        %v1340 = vpack.c.bf16 %v1309, %v1308
        %v1341 = vpack.c.bf16 %v1311, %v1310
        %v1342 = vpack.c.bf16 %v1313, %v1312
        %v1343 = vpack.c.bf16 %v1315, %v1314
        %v1344 = vpack.c.bf16 %v1317, %v1316
        %v1345 = vpack.c.bf16 %v1319, %v1318
        %v1346 = vpack.c.bf16 %v1321, %v1320
        %v1347 = vpack.c.bf16 %v1323, %v1322
        %v1348 = vpack.c.bf16 %v1325, %v1324
        %v1349 = vpack.c.bf16 %v1327, %v1326
        %v1350 = vpack.c.bf16 %v1329, %v1328
        %v1351 = vpack.c.bf16 %v1331, %v1330
        %v1352 = vpack.c.bf16 %v1333, %v1332
        %v1353 = vpack.c.bf16 %v1335, %v1334
        %v1354 = vpack.c.bf16 %v1337, %v1336
        %v1355 = vpack.c.bf16 %v1339, %v1338
        %v1372 = vunpack.c.l.b16 %v1340
        %v1373 = vunpack.c.h.b16 %v1340
        %v1374 = vunpack.c.l.b16 %v1341
        %v1375 = vunpack.c.h.b16 %v1341
        %v1376 = vunpack.c.l.b16 %v1342
        %v1377 = vunpack.c.h.b16 %v1342
        %v1378 = vunpack.c.l.b16 %v1343
        %v1379 = vunpack.c.h.b16 %v1343
        %v1380 = vunpack.c.l.b16 %v1344
        %v1381 = vunpack.c.h.b16 %v1344
        %v1382 = vunpack.c.l.b16 %v1345
        %v1383 = vunpack.c.h.b16 %v1345
        %v1384 = vunpack.c.l.b16 %v1346
        %v1385 = vunpack.c.h.b16 %v1346
        %v1386 = vunpack.c.l.b16 %v1347
        %v1387 = vunpack.c.h.b16 %v1347
        %v1388 = vunpack.c.l.b16 %v1348
        %v1389 = vunpack.c.h.b16 %v1348
        %v1390 = vunpack.c.l.b16 %v1349
        %v1391 = vunpack.c.h.b16 %v1349
        %v1392 = vunpack.c.l.b16 %v1350
        %v1393 = vunpack.c.h.b16 %v1350
        %v1394 = vunpack.c.l.b16 %v1351
        %v1395 = vunpack.c.h.b16 %v1351
        %v1396 = vunpack.c.l.b16 %v1352
        %v1397 = vunpack.c.h.b16 %v1352
        %v1398 = vunpack.c.l.b16 %v1353
        %v1399 = vunpack.c.h.b16 %v1353
        %v1400 = vunpack.c.l.b16 %v1354
        %v1401 = vunpack.c.h.b16 %v1354
        %v1402 = vunpack.c.l.b16 %v1355
        %v1403 = vunpack.c.h.b16 %v1355
        %v1404 = vpack.c.b16 %v1372, %v1372
        %v1405 = vpack.c.b16 %v1373, %v1373
        %v1406 = vpack.c.b16 %v1374, %v1374
        %v1407 = vpack.c.b16 %v1375, %v1375
        %v1408 = vpack.c.b16 %v1376, %v1376
        %v1409 = vpack.c.b16 %v1377, %v1377
        %v1410 = vpack.c.b16 %v1378, %v1378
        %v1411 = vpack.c.b16 %v1379, %v1379
        %v1412 = vpack.c.b16 %v1380, %v1380
        %v1413 = vpack.c.b16 %v1381, %v1381
        %v1414 = vpack.c.b16 %v1382, %v1382
        %v1415 = vpack.c.b16 %v1383, %v1383
        %v1416 = vpack.c.b16 %v1384, %v1384
        %v1417 = vpack.c.b16 %v1385, %v1385
        %v1418 = vpack.c.b16 %v1386, %v1386
        %v1419 = vpack.c.b16 %v1387, %v1387
        %v1420 = vpack.c.b16 %v1388, %v1388
        %v1421 = vpack.c.b16 %v1389, %v1389
        %v1422 = vpack.c.b16 %v1390, %v1390
        %v1423 = vpack.c.b16 %v1391, %v1391
        %v1424 = vpack.c.b16 %v1392, %v1392
        %v1425 = vpack.c.b16 %v1393, %v1393
        %v1426 = vpack.c.b16 %v1394, %v1394
        %v1427 = vpack.c.b16 %v1395, %v1395
        %v1428 = vpack.c.b16 %v1396, %v1396
        %v1429 = vpack.c.b16 %v1397, %v1397
        %v1430 = vpack.c.b16 %v1398, %v1398
        %v1431 = vpack.c.b16 %v1399, %v1399
        %v1432 = vpack.c.b16 %v1400, %v1400
        %v1433 = vpack.c.b16 %v1401, %v1401
        %v1434 = vpack.c.b16 %v1402, %v1402
        %v1435 = vpack.c.b16 %v1403, %v1403
        %1468 = vst [vmem:[%s265] sm:$0xf] %v1404
        %1469 = vst [vmem:[%s265 + $0x4] sm:$0xf] %v1405
        %1470 = vst [vmem:[%s265 + $0x8] sm:$0xf] %v1406
        %1471 = vst [vmem:[%s265 + $0xc] sm:$0xf] %v1407
        %1472 = vst [vmem:[%s265 + $0x10] sm:$0xf] %v1408
        %1473 = vst [vmem:[%s265 + $0x14] sm:$0xf] %v1409
        %1474 = vst [vmem:[%s265 + $0x18] sm:$0xf] %v1410
        %1475 = vst [vmem:[%s265 + $0x1c] sm:$0xf] %v1411
        %1476 = vst [vmem:[%s265 + $0x20] sm:$0xf] %v1412
        %1477 = vst [vmem:[%s265 + $0x24] sm:$0xf] %v1413
        %1478 = vst [vmem:[%s265 + $0x28] sm:$0xf] %v1414
        %1479 = vst [vmem:[%s265 + $0x2c] sm:$0xf] %v1415
        %1480 = vst [vmem:[%s265 + $0x30] sm:$0xf] %v1416
        %1481 = vst [vmem:[%s265 + $0x34] sm:$0xf] %v1417
        %1482 = vst [vmem:[%s265 + $0x38] sm:$0xf] %v1418
        %1483 = vst [vmem:[%s265 + $0x3c] sm:$0xf] %v1419
        %1484 = vst [vmem:[%s265 + $0x40] sm:$0xf] %v1420
        %1485 = vst [vmem:[%s265 + $0x44] sm:$0xf] %v1421
        %1486 = vst [vmem:[%s265 + $0x48] sm:$0xf] %v1422
        %1487 = vst [vmem:[%s265 + $0x4c] sm:$0xf] %v1423
        %1488 = vst [vmem:[%s265 + $0x50] sm:$0xf] %v1424
        %1489 = vst [vmem:[%s265 + $0x54] sm:$0xf] %v1425
        %1490 = vst [vmem:[%s265 + $0x58] sm:$0xf] %v1426
        %1491 = vst [vmem:[%s265 + $0x5c] sm:$0xf] %v1427
        %1492 = vst [vmem:[%s265 + $0x60] sm:$0xf] %v1428
        %1493 = vst [vmem:[%s265 + $0x64] sm:$0xf] %v1429
        %1494 = vst [vmem:[%s265 + $0x68] sm:$0xf] %v1430
        %1495 = vst [vmem:[%s265 + $0x6c] sm:$0xf] %v1431
        %1496 = vst [vmem:[%s265 + $0x70] sm:$0xf] %v1432
        %1497 = vst [vmem:[%s265 + $0x74] sm:$0xf] %v1433
        %1498 = vst [vmem:[%s265 + $0x78] sm:$0xf] %v1434
        %1499 = vst [vmem:[%s265 + $0x7c] sm:$0xf] %v1435
      $region40: #{_lambda_.25} parent=31 // pred_fallthru
        _
      %s1500 = smul.u32 32, %s19
      %p1501 = scmp.lt.s32.totalorder %s1500, 127
      %s1502 = scalar_select %p1501, %s1500, 127
      %p1503 = scmp.lt.s32.totalorder %s20, 0
      %s1504 = scalar_select %p1503, %s20, 0
      %s1505 = sadd.s32 %s1504, %s1502
      %s1506 = smul.addr %s1505, 4
      %s1507 = scalar_lea.vmem %s3, %s1506
      // Predicated region
      $region41: #{_lambda_.25} parent=31 // pred_check
        %p1508 = pneg %p135
      $region42: #{_lambda_.25} parent=31 // pred_check_branch
        %1510 = sbr.rel (%p1508) target = $region44
      $region43: #{_lambda_.25} parent=31 // pred_region
        %s1511 = smul.u32 32, %s19
      $region44: #{_lambda_.25} parent=31 // pred_fallthru
        _
    $region32: #{_lambda_.25} parent=5 // pred_fallthru
      _
    %p1512 = scmp.le.s32.totalorder 2, %s9
    // Predicated region
    $region45: #{_lambda_.25} parent=5 // pred_check
      %p1513 = pneg %p1512
    $region46: #{_lambda_.25} parent=5 // pred_check_branch
      %1515 = sbr.rel (%p1513) target = $region48
    $region47: #{_lambda_.25} parent=5 // pred_region
      %s1516 = ssub.s32 %s9, 2
      // Predicated region
      $region49: #{_lambda_.25} parent=47 // pred_check
        %p1517 = pneg %p141
      $region50: #{_lambda_.25} parent=47 // pred_check_branch
        %1519 = sbr.rel (%p1517) target = $region52
      $region51: #{_lambda_.25} parent=47 // pred_region
        %s1520 = smul.u32 32, %s22
        %p1521 = scmp.lt.s32.totalorder %s1520, 127
        %s1522 = scalar_select %p1521, %s1520, 127
        %p1523 = scmp.lt.s32.totalorder %s23, 0
        %s1524 = scalar_select %p1523, %s23, 0
        %s1525 = sadd.s32 %s1524, %s1522
        %s1526 = smul.addr %s1525, 4
        %s1527 = scalar_lea.vmem %s3, %s1526
      $region52: #{_lambda_.25} parent=47 // pred_fallthru
        _
    $region48: #{_lambda_.25} parent=5 // pred_fallthru
      _
  $region6: #{_lambda_.25} parent=0 // loop_footer
    %s13 = sadd.s32 1, %s9
  $region7: #{_lambda_.25} parent=0 // loop_footer_branch
    %8 = sbr.rel target = $region3
  $region8: #{_lambda_.25} parent=0 // loop_exit
    _

// kernel: _lambda_.26
$region0: #{_lambda_.26}
  #allocation0 [shape = 'u32[]', space=smem, size = 0x4, offset = 0x4, fixed_abs, tag = 'smem constant byte address 0x4 - core index']
  #allocation1 [shape = 'u32[144,128]{1,0:T(1,128)}', space=vmem, size = 0x12000, scoped, tag = 'internal scratch']
  %s0 = inlined_call_operand.vmem [shape: bf16[15,15,4,128], index: 0, kind: input, shape index: {}]
  %s1 = inlined_call_operand.vmem [shape: bf16[7,7,4,128], index: 1, kind: output, shape index: {}]
  %s2 = sld [smem:[#allocation0]]
  $region14: #{_lambda_.26} parent=0
    _
  %s4 = ssub.s32 1, %s2
  %s5 = scalar_select 0, %s4, %s2
  // Predicated region
  $region2: #{_lambda_.26} parent=0 // pred_check
    _
  $region3: #{_lambda_.26} parent=0 // pred_check_branch
    %7 = sbr.rel (0) target = $region5
  $region4: #{_lambda_.26} parent=0 // pred_region
    _
  $region5: #{_lambda_.26} parent=0 // pred_fallthru
    _
  %v9 = vld [vmem:[%s0] sm:$0x3]
  %v10 = vld [vmem:[%s0 + $0x2] sm:$0x3]
  %v11 = vld [vmem:[%s0 + $0x4] sm:$0x3]
  %v12 = vld [vmem:[%s0 + $0x6] sm:$0x3]
  %v13 = vld [vmem:[%s0 + $0x8] sm:$0x3]
  %v14 = vld [vmem:[%s0 + $0xa] sm:$0x3]
  %v15 = vld [vmem:[%s0 + $0xc] sm:$0x3]
  %v16 = vld [vmem:[%s0 + $0xe] sm:$0x3]
  %v17 = vld [vmem:[%s0 + $0x10] sm:$0x3]
  %v18 = vld [vmem:[%s0 + $0x12] sm:$0x3]
  %v19 = vld [vmem:[%s0 + $0x14] sm:$0x3]
  %v20 = vld [vmem:[%s0 + $0x16] sm:$0x3]
  %v21 = vld [vmem:[%s0 + $0x18] sm:$0x3]
  %v22 = vld [vmem:[%s0 + $0x1a] sm:$0x3]
  %v23 = vld [vmem:[%s0 + $0x1c] sm:$0x3]
  %v24 = vld [vmem:[%s0 + $0x1e] sm:$0x3]
  %v25 = vld [vmem:[%s0 + $0x20] sm:$0x3]
  %v26 = vld [vmem:[%s0 + $0x22] sm:$0x3]
  %v27 = vld [vmem:[%s0 + $0x24] sm:$0x3]
  %v28 = vld [vmem:[%s0 + $0x26] sm:$0x3]
  %v29 = vld [vmem:[%s0 + $0x28] sm:$0x3]
  %v30 = vld [vmem:[%s0 + $0x2a] sm:$0x3]
  %v31 = vld [vmem:[%s0 + $0x2c] sm:$0x3]
  %v32 = vld [vmem:[%s0 + $0x2e] sm:$0x3]
  %v33 = vld [vmem:[%s0 + $0x30] sm:$0x3]
  %v34 = vld [vmem:[%s0 + $0x32] sm:$0x3]
  %v35 = vld [vmem:[%s0 + $0x34] sm:$0x3]
  %v36 = vld [vmem:[%s0 + $0x36] sm:$0x3]
  %v37 = vld [vmem:[%s0 + $0x38] sm:$0x3]
  %v38 = vld [vmem:[%s0 + $0x3a] sm:$0x3]
  %v39 = vld [vmem:[%s0 + $0x3c] sm:$0x3]
  %v40 = vld [vmem:[%s0 + $0x3e] sm:$0x3]
  %v41 = vld [vmem:[%s0 + $0x40] sm:$0x3]
  %v42 = vld [vmem:[%s0 + $0x42] sm:$0x3]
  %v43 = vld [vmem:[%s0 + $0x44] sm:$0x3]
  %v44 = vld [vmem:[%s0 + $0x46] sm:$0x3]
  %v45 = vld [vmem:[%s0 + $0x48] sm:$0x3]
  %v46 = vld [vmem:[%s0 + $0x4a] sm:$0x3]
  %v47 = vld [vmem:[%s0 + $0x4c] sm:$0x3]
  %v48 = vld [vmem:[%s0 + $0x4e] sm:$0x3]
  %v49 = vld [vmem:[%s0 + $0x50] sm:$0x3]
  %v50 = vld [vmem:[%s0 + $0x52] sm:$0x3]
  %v51 = vld [vmem:[%s0 + $0x54] sm:$0x3]
  %v52 = vld [vmem:[%s0 + $0x56] sm:$0x3]
  %v53 = vld [vmem:[%s0 + $0x58] sm:$0x3]
  %v54 = vld [vmem:[%s0 + $0x5a] sm:$0x3]
  %v55 = vld [vmem:[%s0 + $0x5c] sm:$0x3]
  %v56 = vld [vmem:[%s0 + $0x5e] sm:$0x3]
  %v57 = vld [vmem:[%s0 + $0x60] sm:$0x3]
  %v58 = vld [vmem:[%s0 + $0x62] sm:$0x3]
  %v59 = vld [vmem:[%s0 + $0x64] sm:$0x3]
  %v60 = vld [vmem:[%s0 + $0x66] sm:$0x3]
  %v61 = vld [vmem:[%s0 + $0x68] sm:$0x3]
  %v62 = vld [vmem:[%s0 + $0x6a] sm:$0x3]
  %v63 = vld [vmem:[%s0 + $0x6c] sm:$0x3]
  %v64 = vld [vmem:[%s0 + $0x6e] sm:$0x3]
  %v65 = vld [vmem:[%s0 + $0x70] sm:$0x3]
  %v66 = vld [vmem:[%s0 + $0x72] sm:$0x3]
  %v67 = vld [vmem:[%s0 + $0x74] sm:$0x3]
  %v68 = vld [vmem:[%s0 + $0x76] sm:$0x3]
  %v69 = vld [vmem:[%s0 + $0x78] sm:$0x3]
  %v70 = vld [vmem:[%s0 + $0x7a] sm:$0x3]
  %v71 = vld [vmem:[%s0 + $0x7c] sm:$0x3]
  %v72 = vld [vmem:[%s0 + $0x7e] sm:$0x3]
  %v73 = vld [vmem:[%s0 + $0x80] sm:$0x3]
  %v74 = vld [vmem:[%s0 + $0x82] sm:$0x3]
  %v75 = vld [vmem:[%s0 + $0x84] sm:$0x3]
  %v76 = vld [vmem:[%s0 + $0x86] sm:$0x3]
  %v77 = vld [vmem:[%s0 + $0x88] sm:$0x3]
  %v78 = vld [vmem:[%s0 + $0x8a] sm:$0x3]
  %v79 = vld [vmem:[%s0 + $0x8c] sm:$0x3]
  %v80 = vld [vmem:[%s0 + $0x8e] sm:$0x3]
  %v81 = vld [vmem:[%s0 + $0x90] sm:$0x3]
  %v82 = vld [vmem:[%s0 + $0x92] sm:$0x3]
  %v83 = vld [vmem:[%s0 + $0x94] sm:$0x3]
  %v84 = vld [vmem:[%s0 + $0x96] sm:$0x3]
  %v85 = vld [vmem:[%s0 + $0x98] sm:$0x3]
  %v86 = vld [vmem:[%s0 + $0x9a] sm:$0x3]
  %v87 = vld [vmem:[%s0 + $0x9c] sm:$0x3]
  %v88 = vld [vmem:[%s0 + $0x9e] sm:$0x3]
  %v89 = vld [vmem:[%s0 + $0xa0] sm:$0x3]
  %v90 = vld [vmem:[%s0 + $0xa2] sm:$0x3]
  %v91 = vld [vmem:[%s0 + $0xa4] sm:$0x3]
  %v92 = vld [vmem:[%s0 + $0xa6] sm:$0x3]
  %v93 = vld [vmem:[%s0 + $0xa8] sm:$0x3]
  %v94 = vld [vmem:[%s0 + $0xaa] sm:$0x3]
  %v95 = vld [vmem:[%s0 + $0xac] sm:$0x3]
  %v96 = vld [vmem:[%s0 + $0xae] sm:$0x3]
  %v97 = vld [vmem:[%s0 + $0xb0] sm:$0x3]
  %v98 = vld [vmem:[%s0 + $0xb2] sm:$0x3]
  %v99 = vld [vmem:[%s0 + $0xb4] sm:$0x3]
  %v100 = vld [vmem:[%s0 + $0xb6] sm:$0x3]
  %v101 = vld [vmem:[%s0 + $0xb8] sm:$0x3]
  %v102 = vld [vmem:[%s0 + $0xba] sm:$0x3]
  %v103 = vld [vmem:[%s0 + $0xbc] sm:$0x3]
  %v104 = vld [vmem:[%s0 + $0xbe] sm:$0x3]
  %v105 = vld [vmem:[%s0 + $0xc0] sm:$0x3]
  %v106 = vld [vmem:[%s0 + $0xc2] sm:$0x3]
  %v107 = vld [vmem:[%s0 + $0xc4] sm:$0x3]
  %v108 = vld [vmem:[%s0 + $0xc6] sm:$0x3]
  %v109 = vld [vmem:[%s0 + $0xc8] sm:$0x3]
  %v110 = vld [vmem:[%s0 + $0xca] sm:$0x3]
  %v111 = vld [vmem:[%s0 + $0xcc] sm:$0x3]
  %v112 = vld [vmem:[%s0 + $0xce] sm:$0x3]
  %v113 = vld [vmem:[%s0 + $0xd0] sm:$0x3]
  %v114 = vld [vmem:[%s0 + $0xd2] sm:$0x3]
  %v115 = vld [vmem:[%s0 + $0xd4] sm:$0x3]
  %v116 = vld [vmem:[%s0 + $0xd6] sm:$0x3]
  %v117 = vld [vmem:[%s0 + $0xd8] sm:$0x3]
  %v118 = vld [vmem:[%s0 + $0xda] sm:$0x3]
  %v119 = vld [vmem:[%s0 + $0xdc] sm:$0x3]
  %v120 = vld [vmem:[%s0 + $0xde] sm:$0x3]
  %v121 = vld [vmem:[%s0 + $0xe0] sm:$0x3]
  %v122 = vld [vmem:[%s0 + $0xe2] sm:$0x3]
  %v123 = vld [vmem:[%s0 + $0xe4] sm:$0x3]
  %v124 = vld [vmem:[%s0 + $0xe6] sm:$0x3]
  %v125 = vld [vmem:[%s0 + $0xe8] sm:$0x3]
  %v126 = vld [vmem:[%s0 + $0xea] sm:$0x3]
  %v127 = vld [vmem:[%s0 + $0xec] sm:$0x3]
  %v128 = vld [vmem:[%s0 + $0xee] sm:$0x3]
  %v129 = vld [vmem:[%s0 + $0xf0] sm:$0x3]
  %v130 = vld [vmem:[%s0 + $0xf2] sm:$0x3]
  %v131 = vld [vmem:[%s0 + $0xf4] sm:$0x3]
  %v132 = vld [vmem:[%s0 + $0xf6] sm:$0x3]
  %v133 = vld [vmem:[%s0 + $0xf8] sm:$0x3]
  %v134 = vld [vmem:[%s0 + $0xfa] sm:$0x3]
  %v135 = vld [vmem:[%s0 + $0xfc] sm:$0x3]
  %v136 = vld [vmem:[%s0 + $0xfe] sm:$0x3]
  %v137 = vld [vmem:[%s0 + $0x100] sm:$0x3]
  %v138 = vld [vmem:[%s0 + $0x102] sm:$0x3]
  %v139 = vld [vmem:[%s0 + $0x104] sm:$0x3]
  %v140 = vld [vmem:[%s0 + $0x106] sm:$0x3]
  %v141 = vld [vmem:[%s0 + $0x108] sm:$0x3]
  %v142 = vld [vmem:[%s0 + $0x10a] sm:$0x3]
  %v143 = vld [vmem:[%s0 + $0x10c] sm:$0x3]
  %v144 = vld [vmem:[%s0 + $0x10e] sm:$0x3]
  %v145 = vld [vmem:[%s0 + $0x110] sm:$0x3]
  %v146 = vld [vmem:[%s0 + $0x112] sm:$0x3]
  %v147 = vld [vmem:[%s0 + $0x114] sm:$0x3]
  %v148 = vld [vmem:[%s0 + $0x116] sm:$0x3]
  %v149 = vld [vmem:[%s0 + $0x118] sm:$0x3]
  %v150 = vld [vmem:[%s0 + $0x11a] sm:$0x3]
  %v151 = vld [vmem:[%s0 + $0x11c] sm:$0x3]
  %v152 = vld [vmem:[%s0 + $0x11e] sm:$0x3]
  %v153 = vld [vmem:[%s0 + $0x120] sm:$0x3]
  %v154 = vld [vmem:[%s0 + $0x122] sm:$0x3]
  %v155 = vld [vmem:[%s0 + $0x124] sm:$0x3]
  %v156 = vld [vmem:[%s0 + $0x126] sm:$0x3]
  %v157 = vld [vmem:[%s0 + $0x128] sm:$0x3]
  %v158 = vld [vmem:[%s0 + $0x12a] sm:$0x3]
  %v159 = vld [vmem:[%s0 + $0x12c] sm:$0x3]
  %v160 = vld [vmem:[%s0 + $0x12e] sm:$0x3]
  %v161 = vld [vmem:[%s0 + $0x130] sm:$0x3]
  %v162 = vld [vmem:[%s0 + $0x132] sm:$0x3]
  %v163 = vld [vmem:[%s0 + $0x134] sm:$0x3]
  %v164 = vld [vmem:[%s0 + $0x136] sm:$0x3]
  %v165 = vld [vmem:[%s0 + $0x138] sm:$0x3]
  %v166 = vld [vmem:[%s0 + $0x13a] sm:$0x3]
  %v167 = vld [vmem:[%s0 + $0x13c] sm:$0x3]
  %v168 = vld [vmem:[%s0 + $0x13e] sm:$0x3]
  %v169 = vld [vmem:[%s0 + $0x140] sm:$0x3]
  %v170 = vld [vmem:[%s0 + $0x142] sm:$0x3]
  %v171 = vld [vmem:[%s0 + $0x144] sm:$0x3]
  %v172 = vld [vmem:[%s0 + $0x146] sm:$0x3]
  %v173 = vld [vmem:[%s0 + $0x148] sm:$0x3]
  %v174 = vld [vmem:[%s0 + $0x14a] sm:$0x3]
  %v175 = vld [vmem:[%s0 + $0x14c] sm:$0x3]
  %v176 = vld [vmem:[%s0 + $0x14e] sm:$0x3]
  %v177 = vld [vmem:[%s0 + $0x150] sm:$0x3]
  %v178 = vld [vmem:[%s0 + $0x152] sm:$0x3]
  %v179 = vld [vmem:[%s0 + $0x154] sm:$0x3]
  %v180 = vld [vmem:[%s0 + $0x156] sm:$0x3]
  %v181 = vld [vmem:[%s0 + $0x158] sm:$0x3]
  %v182 = vld [vmem:[%s0 + $0x15a] sm:$0x3]
  %v183 = vld [vmem:[%s0 + $0x15c] sm:$0x3]
  %v184 = vld [vmem:[%s0 + $0x15e] sm:$0x3]
  %v185 = vld [vmem:[%s0 + $0x160] sm:$0x3]
  %v186 = vld [vmem:[%s0 + $0x162] sm:$0x3]
  %v187 = vld [vmem:[%s0 + $0x164] sm:$0x3]
  %v188 = vld [vmem:[%s0 + $0x166] sm:$0x3]
  %v189 = vld [vmem:[%s0 + $0x168] sm:$0x3]
  %v190 = vld [vmem:[%s0 + $0x16a] sm:$0x3]
  %v191 = vld [vmem:[%s0 + $0x16c] sm:$0x3]
  %v192 = vld [vmem:[%s0 + $0x16e] sm:$0x3]
  %v193 = vld [vmem:[%s0 + $0x170] sm:$0x3]
  %v194 = vld [vmem:[%s0 + $0x172] sm:$0x3]
  %v195 = vld [vmem:[%s0 + $0x174] sm:$0x3]
  %v196 = vld [vmem:[%s0 + $0x176] sm:$0x3]
  %v197 = vld [vmem:[%s0 + $0x178] sm:$0x3]
  %v198 = vld [vmem:[%s0 + $0x17a] sm:$0x3]
  %v199 = vld [vmem:[%s0 + $0x17c] sm:$0x3]
  %v200 = vld [vmem:[%s0 + $0x17e] sm:$0x3]
  %v201 = vld [vmem:[%s0 + $0x180] sm:$0x3]
  %v202 = vld [vmem:[%s0 + $0x182] sm:$0x3]
  %v203 = vld [vmem:[%s0 + $0x184] sm:$0x3]
  %v204 = vld [vmem:[%s0 + $0x186] sm:$0x3]
  %v205 = vld [vmem:[%s0 + $0x188] sm:$0x3]
  %v206 = vld [vmem:[%s0 + $0x18a] sm:$0x3]
  %v207 = vld [vmem:[%s0 + $0x18c] sm:$0x3]
  %v208 = vld [vmem:[%s0 + $0x18e] sm:$0x3]
  %v209 = vld [vmem:[%s0 + $0x190] sm:$0x3]
  %v210 = vld [vmem:[%s0 + $0x192] sm:$0x3]
  %v211 = vld [vmem:[%s0 + $0x194] sm:$0x3]
  %v212 = vld [vmem:[%s0 + $0x196] sm:$0x3]
  %v213 = vld [vmem:[%s0 + $0x198] sm:$0x3]
  %v214 = vld [vmem:[%s0 + $0x19a] sm:$0x3]
  %v215 = vld [vmem:[%s0 + $0x19c] sm:$0x3]
  %v216 = vld [vmem:[%s0 + $0x19e] sm:$0x3]
  %v217 = vld [vmem:[%s0 + $0x1a0] sm:$0x3]
  %v218 = vld [vmem:[%s0 + $0x1a2] sm:$0x3]
  %v219 = vld [vmem:[%s0 + $0x1a4] sm:$0x3]
  %v220 = vld [vmem:[%s0 + $0x1a6] sm:$0x3]
  %v221 = vld [vmem:[%s0 + $0x1a8] sm:$0x3]
  %v222 = vld [vmem:[%s0 + $0x1aa] sm:$0x3]
  %v223 = vld [vmem:[%s0 + $0x1ac] sm:$0x3]
  %v224 = vld [vmem:[%s0 + $0x1ae] sm:$0x3]
  %v225 = vld [vmem:[%s0 + $0x1b0] sm:$0x3]
  %v226 = vld [vmem:[%s0 + $0x1b2] sm:$0x3]
  %v227 = vld [vmem:[%s0 + $0x1b4] sm:$0x3]
  %v228 = vld [vmem:[%s0 + $0x1b6] sm:$0x3]
  %v229 = vld [vmem:[%s0 + $0x1b8] sm:$0x3]
  %v230 = vld [vmem:[%s0 + $0x1ba] sm:$0x3]
  %v231 = vld [vmem:[%s0 + $0x1bc] sm:$0x3]
  %v232 = vld [vmem:[%s0 + $0x1be] sm:$0x3]
  %v233 = vld [vmem:[%s0 + $0x1c0] sm:$0x3]
  %v234 = vmax.bf16 %v9, %v24
  %v235 = vmax.bf16 %v10, %v25
  %v236 = vmax.bf16 %v11, %v26
  %v237 = vmax.bf16 %v12, %v27
  %v238 = vmax.bf16 %v13, %v28
  %v239 = vmax.bf16 %v14, %v29
  %v240 = vmax.bf16 %v15, %v30
  %v241 = vmax.bf16 %v16, %v31
  %v242 = vmax.bf16 %v17, %v32
  %v243 = vmax.bf16 %v18, %v33
  %v244 = vmax.bf16 %v19, %v34
  %v245 = vmax.bf16 %v20, %v35
  %v246 = vmax.bf16 %v21, %v36
  %v247 = vmax.bf16 %v22, %v37
  %v248 = vmax.bf16 %v23, %v38
  %v249 = vmax.bf16 %v24, %v39
  %v250 = vmax.bf16 %v25, %v40
  %v251 = vmax.bf16 %v26, %v41
  %v252 = vmax.bf16 %v27, %v42
  %v253 = vmax.bf16 %v28, %v43
  %v254 = vmax.bf16 %v29, %v44
  %v255 = vmax.bf16 %v30, %v45
  %v256 = vmax.bf16 %v31, %v46
  %v257 = vmax.bf16 %v32, %v47
  %v258 = vmax.bf16 %v33, %v48
  %v259 = vmax.bf16 %v34, %v49
  %v260 = vmax.bf16 %v35, %v50
  %v261 = vmax.bf16 %v36, %v51
  %v262 = vmax.bf16 %v37, %v52
  %v263 = vmax.bf16 %v38, %v53
  %v264 = vmax.bf16 %v39, %v54
  %v265 = vmax.bf16 %v40, %v55
  %v266 = vmax.bf16 %v41, %v56
  %v267 = vmax.bf16 %v42, %v57
  %v268 = vmax.bf16 %v43, %v58
  %v269 = vmax.bf16 %v44, %v59
  %v270 = vmax.bf16 %v45, %v60
  %v271 = vmax.bf16 %v46, %v61
  %v272 = vmax.bf16 %v47, %v62
  %v273 = vmax.bf16 %v48, %v63
  %v274 = vmax.bf16 %v49, %v64
  %v275 = vmax.bf16 %v50, %v65
  %v276 = vmax.bf16 %v51, %v66
  %v277 = vmax.bf16 %v52, %v67
  %v278 = vmax.bf16 %v53, %v68
  %v279 = vmax.bf16 %v54, %v69
  %v280 = vmax.bf16 %v55, %v70
  %v281 = vmax.bf16 %v56, %v71
  %v282 = vmax.bf16 %v57, %v72
  %v283 = vmax.bf16 %v58, %v73
  %v284 = vmax.bf16 %v59, %v74
  %v285 = vmax.bf16 %v60, %v75
  %v286 = vmax.bf16 %v61, %v76
  %v287 = vmax.bf16 %v62, %v77
  %v288 = vmax.bf16 %v63, %v78
  %v289 = vmax.bf16 %v64, %v79
  %v290 = vmax.bf16 %v65, %v80
  %v291 = vmax.bf16 %v66, %v81
  %v292 = vmax.bf16 %v67, %v82
  %v293 = vmax.bf16 %v68, %v83
  %v294 = vmax.bf16 %v69, %v84
  %v295 = vmax.bf16 %v70, %v85
  %v296 = vmax.bf16 %v71, %v86
  %v297 = vmax.bf16 %v72, %v87
  %v298 = vmax.bf16 %v73, %v88
  %v299 = vmax.bf16 %v74, %v89
  %v300 = vmax.bf16 %v75, %v90
  %v301 = vmax.bf16 %v76, %v91
  %v302 = vmax.bf16 %v77, %v92
  %v303 = vmax.bf16 %v78, %v93
  %v304 = vmax.bf16 %v79, %v94
  %v305 = vmax.bf16 %v80, %v95
  %v306 = vmax.bf16 %v81, %v96
  %v307 = vmax.bf16 %v82, %v97
  %v308 = vmax.bf16 %v83, %v98
  %v309 = vmax.bf16 %v84, %v99
  %v310 = vmax.bf16 %v85, %v100
  %v311 = vmax.bf16 %v86, %v101
  %v312 = vmax.bf16 %v87, %v102
  %v313 = vmax.bf16 %v88, %v103
  %v314 = vmax.bf16 %v89, %v104
  %v315 = vmax.bf16 %v90, %v105
  %v316 = vmax.bf16 %v91, %v106
  %v317 = vmax.bf16 %v92, %v107
  %v318 = vmax.bf16 %v93, %v108
  %v319 = vmax.bf16 %v94, %v109
  %v320 = vmax.bf16 %v95, %v110
  %v321 = vmax.bf16 %v96, %v111
  %v322 = vmax.bf16 %v97, %v112
  %v323 = vmax.bf16 %v98, %v113
  %v324 = vmax.bf16 %v99, %v114
  %v325 = vmax.bf16 %v100, %v115
  %v326 = vmax.bf16 %v101, %v116
  %v327 = vmax.bf16 %v102, %v117
  %v328 = vmax.bf16 %v103, %v118
  %v329 = vmax.bf16 %v104, %v119
  %v330 = vmax.bf16 %v105, %v120
  %v331 = vmax.bf16 %v106, %v121
  %v332 = vmax.bf16 %v107, %v122
  %v333 = vmax.bf16 %v108, %v123
  %v334 = vmax.bf16 %v109, %v124
  %v335 = vmax.bf16 %v110, %v125
  %v336 = vmax.bf16 %v111, %v126
  %v337 = vmax.bf16 %v112, %v127
  %v338 = vmax.bf16 %v113, %v128
  %v339 = vmax.bf16 %v114, %v129
  %v340 = vmax.bf16 %v115, %v130
  %v341 = vmax.bf16 %v116, %v131
  %v342 = vmax.bf16 %v117, %v132
  %v343 = vmax.bf16 %v118, %v133
  %v344 = vmax.bf16 %v119, %v134
  %v345 = vmax.bf16 %v120, %v135
  %v346 = vmax.bf16 %v121, %v136
  %v347 = vmax.bf16 %v122, %v137
  %v348 = vmax.bf16 %v123, %v138
  %v349 = vmax.bf16 %v124, %v139
  %v350 = vmax.bf16 %v125, %v140
  %v351 = vmax.bf16 %v126, %v141
  %v352 = vmax.bf16 %v127, %v142
  %v353 = vmax.bf16 %v128, %v143
  %v354 = vmax.bf16 %v129, %v144
  %v355 = vmax.bf16 %v130, %v145
  %v356 = vmax.bf16 %v131, %v146
  %v357 = vmax.bf16 %v132, %v147
  %v358 = vmax.bf16 %v133, %v148
  %v359 = vmax.bf16 %v134, %v149
  %v360 = vmax.bf16 %v135, %v150
  %v361 = vmax.bf16 %v136, %v151
  %v362 = vmax.bf16 %v137, %v152
  %v363 = vmax.bf16 %v138, %v153
  %v364 = vmax.bf16 %v139, %v154
  %v365 = vmax.bf16 %v140, %v155
  %v366 = vmax.bf16 %v141, %v156
  %v367 = vmax.bf16 %v142, %v157
  %v368 = vmax.bf16 %v143, %v158
  %v369 = vmax.bf16 %v144, %v159
  %v370 = vmax.bf16 %v145, %v160
  %v371 = vmax.bf16 %v146, %v161
  %v372 = vmax.bf16 %v147, %v162
  %v373 = vmax.bf16 %v148, %v163
  %v374 = vmax.bf16 %v149, %v164
  %v375 = vmax.bf16 %v150, %v165
  %v376 = vmax.bf16 %v151, %v166
  %v377 = vmax.bf16 %v152, %v167
  %v378 = vmax.bf16 %v153, %v168
  %v379 = vmax.bf16 %v154, %v169
  %v380 = vmax.bf16 %v155, %v170
  %v381 = vmax.bf16 %v156, %v171
  %v382 = vmax.bf16 %v157, %v172
  %v383 = vmax.bf16 %v158, %v173
  %v384 = vmax.bf16 %v159, %v174
  %v385 = vmax.bf16 %v160, %v175
  %v386 = vmax.bf16 %v161, %v176
  %v387 = vmax.bf16 %v162, %v177
  %v388 = vmax.bf16 %v163, %v178
  %v389 = vmax.bf16 %v164, %v179
  %v390 = vmax.bf16 %v165, %v180
  %v391 = vmax.bf16 %v166, %v181
  %v392 = vmax.bf16 %v167, %v182
  %v393 = vmax.bf16 %v168, %v183
  %v394 = vmax.bf16 %v169, %v184
  %v395 = vmax.bf16 %v170, %v185
  %v396 = vmax.bf16 %v171, %v186
  %v397 = vmax.bf16 %v172, %v187
  %v398 = vmax.bf16 %v173, %v188
  %v399 = vmax.bf16 %v174, %v189
  %v400 = vmax.bf16 %v175, %v190
  %v401 = vmax.bf16 %v176, %v191
  %v402 = vmax.bf16 %v177, %v192
  %v403 = vmax.bf16 %v178, %v193
  %v404 = vmax.bf16 %v179, %v194
  %v405 = vmax.bf16 %v180, %v195
  %v406 = vmax.bf16 %v181, %v196
  %v407 = vmax.bf16 %v182, %v197
  %v408 = vmax.bf16 %v183, %v198
  %v409 = vmax.bf16 %v184, %v199
  %v410 = vmax.bf16 %v185, %v200
  %v411 = vmax.bf16 %v186, %v201
  %v412 = vmax.bf16 %v187, %v202
  %v413 = vmax.bf16 %v188, %v203
  %v414 = vmax.bf16 %v189, %v204
  %v415 = vmax.bf16 %v190, %v205
  %v416 = vmax.bf16 %v191, %v206
  %v417 = vmax.bf16 %v192, %v207
  %v418 = vmax.bf16 %v193, %v208
  %v419 = vmax.bf16 %v194, %v209
  %v420 = vmax.bf16 %v195, %v210
  %v421 = vmax.bf16 %v196, %v211
  %v422 = vmax.bf16 %v197, %v212
  %v423 = vmax.bf16 %v198, %v213
  %v424 = vmax.bf16 %v199, %v214
  %v425 = vmax.bf16 %v200, %v215
  %v426 = vmax.bf16 %v201, %v216
  %v427 = vmax.bf16 %v202, %v217
  %v428 = vmax.bf16 %v203, %v218
  %v429 = vmax.bf16 %v204, %v219
  %v430 = vmax.bf16 %v205, %v220
  %v431 = vmax.bf16 %v206, %v221
  %v432 = vmax.bf16 %v207, %v222
  %v433 = vmax.bf16 %v208, %v223
  %v434 = vmax.bf16 %v209, %v224
  %v435 = vmax.bf16 %v210, %v225
  %v436 = vmax.bf16 %v211, %v226
  %v437 = vmax.bf16 %v212, %v227
  %v438 = vmax.bf16 %v213, %v228
  %v439 = vmax.bf16 %v214, %v229
  %v440 = vmax.bf16 %v215, %v230
  %v441 = vmax.bf16 %v216, %v231
  %v442 = vmax.bf16 %v217, %v232
  %v443 = vmax.bf16 %v218, %v233
  %vm444 = vcmask 1041408
  %v447 = vsel %vm444, %v234, 4286644096
  %v450 = vsel %vm444, %v249, 4286644096
  %v452 = vmax.bf16 %v447, %v450
  %v454 = vsel %vm444, %v235, 4286644096
  %v457 = vsel %vm444, %v250, 4286644096
  %v459 = vmax.bf16 %v454, %v457
  %v461 = vsel %vm444, %v236, 4286644096
  %v464 = vsel %vm444, %v251, 4286644096
  %v466 = vmax.bf16 %v461, %v464
  %v468 = vsel %vm444, %v237, 4286644096
  %v471 = vsel %vm444, %v252, 4286644096
  %v473 = vmax.bf16 %v468, %v471
  %v475 = vsel %vm444, %v238, 4286644096
  %v478 = vsel %vm444, %v253, 4286644096
  %v480 = vmax.bf16 %v475, %v478
  %v482 = vsel %vm444, %v239, 4286644096
  %v485 = vsel %vm444, %v254, 4286644096
  %v487 = vmax.bf16 %v482, %v485
  %v489 = vsel %vm444, %v240, 4286644096
  %v492 = vsel %vm444, %v255, 4286644096
  %v494 = vmax.bf16 %v489, %v492
  %v496 = vsel %vm444, %v241, 4286644096
  %v499 = vsel %vm444, %v256, 4286644096
  %v501 = vmax.bf16 %v496, %v499
  %v503 = vsel %vm444, %v242, 4286644096
  %v506 = vsel %vm444, %v257, 4286644096
  %v508 = vmax.bf16 %v503, %v506
  %v510 = vsel %vm444, %v243, 4286644096
  %v513 = vsel %vm444, %v258, 4286644096
  %v515 = vmax.bf16 %v510, %v513
  %v517 = vsel %vm444, %v244, 4286644096
  %v520 = vsel %vm444, %v259, 4286644096
  %v522 = vmax.bf16 %v517, %v520
  %v524 = vsel %vm444, %v245, 4286644096
  %v527 = vsel %vm444, %v260, 4286644096
  %v529 = vmax.bf16 %v524, %v527
  %v531 = vsel %vm444, %v246, 4286644096
  %v534 = vsel %vm444, %v261, 4286644096
  %v536 = vmax.bf16 %v531, %v534
  %v538 = vsel %vm444, %v247, 4286644096
  %v541 = vsel %vm444, %v262, 4286644096
  %v543 = vmax.bf16 %v538, %v541
  %v545 = vsel %vm444, %v248, 4286644096
  %v548 = vsel %vm444, %v263, 4286644096
  %v550 = vmax.bf16 %v545, %v548
  %v552 = vsel %vm444, %v264, 4286644096
  %v555 = vsel %vm444, %v279, 4286644096
  %v557 = vmax.bf16 %v552, %v555
  %v559 = vsel %vm444, %v265, 4286644096
  %v562 = vsel %vm444, %v280, 4286644096
  %v564 = vmax.bf16 %v559, %v562
  %v566 = vsel %vm444, %v266, 4286644096
  %v569 = vsel %vm444, %v281, 4286644096
  %v571 = vmax.bf16 %v566, %v569
  %v573 = vsel %vm444, %v267, 4286644096
  %v576 = vsel %vm444, %v282, 4286644096
  %v578 = vmax.bf16 %v573, %v576
  %v580 = vsel %vm444, %v268, 4286644096
  %v583 = vsel %vm444, %v283, 4286644096
  %v585 = vmax.bf16 %v580, %v583
  %v587 = vsel %vm444, %v269, 4286644096
  %v590 = vsel %vm444, %v284, 4286644096
  %v592 = vmax.bf16 %v587, %v590
  %v594 = vsel %vm444, %v270, 4286644096
  %v597 = vsel %vm444, %v285, 4286644096
  %v599 = vmax.bf16 %v594, %v597
  %v601 = vsel %vm444, %v271, 4286644096
  %v604 = vsel %vm444, %v286, 4286644096
  %v606 = vmax.bf16 %v601, %v604
  %v608 = vsel %vm444, %v272, 4286644096
  %v611 = vsel %vm444, %v287, 4286644096
  %v613 = vmax.bf16 %v608, %v611
  %v615 = vsel %vm444, %v273, 4286644096
  %v618 = vsel %vm444, %v288, 4286644096
  %v620 = vmax.bf16 %v615, %v618
  %v622 = vsel %vm444, %v274, 4286644096
  %v625 = vsel %vm444, %v289, 4286644096
  %v627 = vmax.bf16 %v622, %v625
  %v629 = vsel %vm444, %v275, 4286644096
  %v632 = vsel %vm444, %v290, 4286644096
  %v634 = vmax.bf16 %v629, %v632
  %v636 = vsel %vm444, %v276, 4286644096
  %v639 = vsel %vm444, %v291, 4286644096
  %v641 = vmax.bf16 %v636, %v639
  %v643 = vsel %vm444, %v277, 4286644096
  %v646 = vsel %vm444, %v292, 4286644096
  %v648 = vmax.bf16 %v643, %v646
  %v650 = vsel %vm444, %v278, 4286644096
  %v653 = vsel %vm444, %v293, 4286644096
  %v655 = vmax.bf16 %v650, %v653
  %v657 = vsel %vm444, %v294, 4286644096
  %v660 = vsel %vm444, %v309, 4286644096
  %v662 = vmax.bf16 %v657, %v660
  %v664 = vsel %vm444, %v295, 4286644096
  %v667 = vsel %vm444, %v310, 4286644096
  %v669 = vmax.bf16 %v664, %v667
  %v671 = vsel %vm444, %v296, 4286644096
  %v674 = vsel %vm444, %v311, 4286644096
  %v676 = vmax.bf16 %v671, %v674
  %v678 = vsel %vm444, %v297, 4286644096
  %v681 = vsel %vm444, %v312, 4286644096
  %v683 = vmax.bf16 %v678, %v681
  %v685 = vsel %vm444, %v298, 4286644096
  %v688 = vsel %vm444, %v313, 4286644096
  %v690 = vmax.bf16 %v685, %v688
  %v692 = vsel %vm444, %v299, 4286644096
  %v695 = vsel %vm444, %v314, 4286644096
  %v697 = vmax.bf16 %v692, %v695
  %v699 = vsel %vm444, %v300, 4286644096
  %v702 = vsel %vm444, %v315, 4286644096
  %v704 = vmax.bf16 %v699, %v702
  %v706 = vsel %vm444, %v301, 4286644096
  %v709 = vsel %vm444, %v316, 4286644096
  %v711 = vmax.bf16 %v706, %v709
  %v713 = vsel %vm444, %v302, 4286644096
  %v716 = vsel %vm444, %v317, 4286644096
  %v718 = vmax.bf16 %v713, %v716
  %v720 = vsel %vm444, %v303, 4286644096
  %v723 = vsel %vm444, %v318, 4286644096
  %v725 = vmax.bf16 %v720, %v723
  %v727 = vsel %vm444, %v304, 4286644096
  %v730 = vsel %vm444, %v319, 4286644096
  %v732 = vmax.bf16 %v727, %v730
  %v734 = vsel %vm444, %v305, 4286644096
  %v737 = vsel %vm444, %v320, 4286644096
  %v739 = vmax.bf16 %v734, %v737
  %v741 = vsel %vm444, %v306, 4286644096
  %v744 = vsel %vm444, %v321, 4286644096
  %v746 = vmax.bf16 %v741, %v744
  %v748 = vsel %vm444, %v307, 4286644096
  %v751 = vsel %vm444, %v322, 4286644096
  %v753 = vmax.bf16 %v748, %v751
  %v755 = vsel %vm444, %v308, 4286644096
  %v758 = vsel %vm444, %v323, 4286644096
  %v760 = vmax.bf16 %v755, %v758
  %v762 = vsel %vm444, %v324, 4286644096
  %v765 = vsel %vm444, %v339, 4286644096
  %v767 = vmax.bf16 %v762, %v765
  %v769 = vsel %vm444, %v325, 4286644096
  %v772 = vsel %vm444, %v340, 4286644096
  %v774 = vmax.bf16 %v769, %v772
  %v776 = vsel %vm444, %v326, 4286644096
  %v779 = vsel %vm444, %v341, 4286644096
  %v781 = vmax.bf16 %v776, %v779
  %v783 = vsel %vm444, %v327, 4286644096
  %v786 = vsel %vm444, %v342, 4286644096
  %v788 = vmax.bf16 %v783, %v786
  %v790 = vsel %vm444, %v328, 4286644096
  %v793 = vsel %vm444, %v343, 4286644096
  %v795 = vmax.bf16 %v790, %v793
  %v797 = vsel %vm444, %v329, 4286644096
  %v800 = vsel %vm444, %v344, 4286644096
  %v802 = vmax.bf16 %v797, %v800
  %v804 = vsel %vm444, %v330, 4286644096
  %v807 = vsel %vm444, %v345, 4286644096
  %v809 = vmax.bf16 %v804, %v807
  %v811 = vsel %vm444, %v331, 4286644096
  %v814 = vsel %vm444, %v346, 4286644096
  %v816 = vmax.bf16 %v811, %v814
  %v818 = vsel %vm444, %v332, 4286644096
  %v821 = vsel %vm444, %v347, 4286644096
  %v823 = vmax.bf16 %v818, %v821
  %v825 = vsel %vm444, %v333, 4286644096
  %v828 = vsel %vm444, %v348, 4286644096
  %v830 = vmax.bf16 %v825, %v828
  %v832 = vsel %vm444, %v334, 4286644096
  %v835 = vsel %vm444, %v349, 4286644096
  %v837 = vmax.bf16 %v832, %v835
  %v839 = vsel %vm444, %v335, 4286644096
  %v842 = vsel %vm444, %v350, 4286644096
  %v844 = vmax.bf16 %v839, %v842
  %v846 = vsel %vm444, %v336, 4286644096
  %v849 = vsel %vm444, %v351, 4286644096
  %v851 = vmax.bf16 %v846, %v849
  %v853 = vsel %vm444, %v337, 4286644096
  %v856 = vsel %vm444, %v352, 4286644096
  %v858 = vmax.bf16 %v853, %v856
  %v860 = vsel %vm444, %v338, 4286644096
  %v863 = vsel %vm444, %v353, 4286644096
  %v865 = vmax.bf16 %v860, %v863
  %v867 = vsel %vm444, %v354, 4286644096
  %v870 = vsel %vm444, %v369, 4286644096
  %v872 = vmax.bf16 %v867, %v870
  %v874 = vsel %vm444, %v355, 4286644096
  %v877 = vsel %vm444, %v370, 4286644096
  %v879 = vmax.bf16 %v874, %v877
  %v881 = vsel %vm444, %v356, 4286644096
  %v884 = vsel %vm444, %v371, 4286644096
  %v886 = vmax.bf16 %v881, %v884
  %v888 = vsel %vm444, %v357, 4286644096
  %v891 = vsel %vm444, %v372, 4286644096
  %v893 = vmax.bf16 %v888, %v891
  %v895 = vsel %vm444, %v358, 4286644096
  %v898 = vsel %vm444, %v373, 4286644096
  %v900 = vmax.bf16 %v895, %v898
  %v902 = vsel %vm444, %v359, 4286644096
  %v905 = vsel %vm444, %v374, 4286644096
  %v907 = vmax.bf16 %v902, %v905
  %v909 = vsel %vm444, %v360, 4286644096
  %v912 = vsel %vm444, %v375, 4286644096
  %v914 = vmax.bf16 %v909, %v912
  %v916 = vsel %vm444, %v361, 4286644096
  %v919 = vsel %vm444, %v376, 4286644096
  %v921 = vmax.bf16 %v916, %v919
  %v923 = vsel %vm444, %v362, 4286644096
  %v926 = vsel %vm444, %v377, 4286644096
  %v928 = vmax.bf16 %v923, %v926
  %v930 = vsel %vm444, %v363, 4286644096
  %v933 = vsel %vm444, %v378, 4286644096
  %v935 = vmax.bf16 %v930, %v933
  %v937 = vsel %vm444, %v364, 4286644096
  %v940 = vsel %vm444, %v379, 4286644096
  %v942 = vmax.bf16 %v937, %v940
  %v944 = vsel %vm444, %v365, 4286644096
  %v947 = vsel %vm444, %v380, 4286644096
  %v949 = vmax.bf16 %v944, %v947
  %v951 = vsel %vm444, %v366, 4286644096
  %v954 = vsel %vm444, %v381, 4286644096
  %v956 = vmax.bf16 %v951, %v954
  %v958 = vsel %vm444, %v367, 4286644096
  %v961 = vsel %vm444, %v382, 4286644096
  %v963 = vmax.bf16 %v958, %v961
  %v965 = vsel %vm444, %v368, 4286644096
  %v968 = vsel %vm444, %v383, 4286644096
  %v970 = vmax.bf16 %v965, %v968
  %v972 = vsel %vm444, %v384, 4286644096
  %v975 = vsel %vm444, %v399, 4286644096
  %v977 = vmax.bf16 %v972, %v975
  %v979 = vsel %vm444, %v385, 4286644096
  %v982 = vsel %vm444, %v400, 4286644096
  %v984 = vmax.bf16 %v979, %v982
  %v986 = vsel %vm444, %v386, 4286644096
  %v989 = vsel %vm444, %v401, 4286644096
  %v991 = vmax.bf16 %v986, %v989
  %v993 = vsel %vm444, %v387, 4286644096
  %v996 = vsel %vm444, %v402, 4286644096
  %v998 = vmax.bf16 %v993, %v996
  %v1000 = vsel %vm444, %v388, 4286644096
  %v1003 = vsel %vm444, %v403, 4286644096
  %v1005 = vmax.bf16 %v1000, %v1003
  %v1007 = vsel %vm444, %v389, 4286644096
  %v1010 = vsel %vm444, %v404, 4286644096
  %v1012 = vmax.bf16 %v1007, %v1010
  %v1014 = vsel %vm444, %v390, 4286644096
  %v1017 = vsel %vm444, %v405, 4286644096
  %v1019 = vmax.bf16 %v1014, %v1017
  %v1021 = vsel %vm444, %v391, 4286644096
  %v1024 = vsel %vm444, %v406, 4286644096
  %v1026 = vmax.bf16 %v1021, %v1024
  %v1028 = vsel %vm444, %v392, 4286644096
  %v1031 = vsel %vm444, %v407, 4286644096
  %v1033 = vmax.bf16 %v1028, %v1031
  %v1035 = vsel %vm444, %v393, 4286644096
  %v1038 = vsel %vm444, %v408, 4286644096
  %v1040 = vmax.bf16 %v1035, %v1038
  %v1042 = vsel %vm444, %v394, 4286644096
  %v1045 = vsel %vm444, %v409, 4286644096
  %v1047 = vmax.bf16 %v1042, %v1045
  %v1049 = vsel %vm444, %v395, 4286644096
  %v1052 = vsel %vm444, %v410, 4286644096
  %v1054 = vmax.bf16 %v1049, %v1052
  %v1056 = vsel %vm444, %v396, 4286644096
  %v1059 = vsel %vm444, %v411, 4286644096
  %v1061 = vmax.bf16 %v1056, %v1059
  %v1063 = vsel %vm444, %v397, 4286644096
  %v1066 = vsel %vm444, %v412, 4286644096
  %v1068 = vmax.bf16 %v1063, %v1066
  %v1070 = vsel %vm444, %v398, 4286644096
  %v1073 = vsel %vm444, %v413, 4286644096
  %v1075 = vmax.bf16 %v1070, %v1073
  %v1077 = vsel %vm444, %v414, 4286644096
  %v1080 = vsel %vm444, %v429, 4286644096
  %v1082 = vmax.bf16 %v1077, %v1080
  %v1084 = vsel %vm444, %v415, 4286644096
  %v1087 = vsel %vm444, %v430, 4286644096
  %v1089 = vmax.bf16 %v1084, %v1087
  %v1091 = vsel %vm444, %v416, 4286644096
  %v1094 = vsel %vm444, %v431, 4286644096
  %v1096 = vmax.bf16 %v1091, %v1094
  %v1098 = vsel %vm444, %v417, 4286644096
  %v1101 = vsel %vm444, %v432, 4286644096
  %v1103 = vmax.bf16 %v1098, %v1101
  %v1105 = vsel %vm444, %v418, 4286644096
  %v1108 = vsel %vm444, %v433, 4286644096
  %v1110 = vmax.bf16 %v1105, %v1108
  %v1112 = vsel %vm444, %v419, 4286644096
  %v1115 = vsel %vm444, %v434, 4286644096
  %v1117 = vmax.bf16 %v1112, %v1115
  %v1119 = vsel %vm444, %v420, 4286644096
  %v1122 = vsel %vm444, %v435, 4286644096
  %v1124 = vmax.bf16 %v1119, %v1122
  %v1126 = vsel %vm444, %v421, 4286644096
  %v1129 = vsel %vm444, %v436, 4286644096
  %v1131 = vmax.bf16 %v1126, %v1129
  %v1133 = vsel %vm444, %v422, 4286644096
  %v1136 = vsel %vm444, %v437, 4286644096
  %v1138 = vmax.bf16 %v1133, %v1136
  %v1140 = vsel %vm444, %v423, 4286644096
  %v1143 = vsel %vm444, %v438, 4286644096
  %v1145 = vmax.bf16 %v1140, %v1143
  %v1147 = vsel %vm444, %v424, 4286644096
  %v1150 = vsel %vm444, %v439, 4286644096
  %v1152 = vmax.bf16 %v1147, %v1150
  %v1154 = vsel %vm444, %v425, 4286644096
  %v1157 = vsel %vm444, %v440, 4286644096
  %v1159 = vmax.bf16 %v1154, %v1157
  %v1161 = vsel %vm444, %v426, 4286644096
  %v1164 = vsel %vm444, %v441, 4286644096
  %v1166 = vmax.bf16 %v1161, %v1164
  %v1168 = vsel %vm444, %v427, 4286644096
  %v1171 = vsel %vm444, %v442, 4286644096
  %v1173 = vmax.bf16 %v1168, %v1171
  %v1175 = vsel %vm444, %v428, 4286644096
  %v1178 = vsel %vm444, %v443, 4286644096
  %v1180 = vmax.bf16 %v1175, %v1178
  %v1181 = vmax.bf16 %v452, %v459
  %v1182 = vmax.bf16 %v459, %v466
  %v1183 = vmax.bf16 %v466, %v473
  %v1184 = vmax.bf16 %v473, %v480
  %v1185 = vmax.bf16 %v480, %v487
  %v1186 = vmax.bf16 %v487, %v494
  %v1187 = vmax.bf16 %v494, %v501
  %v1188 = vmax.bf16 %v501, %v508
  %v1189 = vmax.bf16 %v508, %v515
  %v1190 = vmax.bf16 %v515, %v522
  %v1191 = vmax.bf16 %v522, %v529
  %v1192 = vmax.bf16 %v529, %v536
  %v1193 = vmax.bf16 %v536, %v543
  %v1194 = vmax.bf16 %v543, %v550
  %v1195 = vmax.bf16 %v557, %v564
  %v1196 = vmax.bf16 %v564, %v571
  %v1197 = vmax.bf16 %v571, %v578
  %v1198 = vmax.bf16 %v578, %v585
  %v1199 = vmax.bf16 %v585, %v592
  %v1200 = vmax.bf16 %v592, %v599
  %v1201 = vmax.bf16 %v599, %v606
  %v1202 = vmax.bf16 %v606, %v613
  %v1203 = vmax.bf16 %v613, %v620
  %v1204 = vmax.bf16 %v620, %v627
  %v1205 = vmax.bf16 %v627, %v634
  %v1206 = vmax.bf16 %v634, %v641
  %v1207 = vmax.bf16 %v641, %v648
  %v1208 = vmax.bf16 %v648, %v655
  %v1209 = vmax.bf16 %v662, %v669
  %v1210 = vmax.bf16 %v669, %v676
  %v1211 = vmax.bf16 %v676, %v683
  %v1212 = vmax.bf16 %v683, %v690
  %v1213 = vmax.bf16 %v690, %v697
  %v1214 = vmax.bf16 %v697, %v704
  %v1215 = vmax.bf16 %v704, %v711
  %v1216 = vmax.bf16 %v711, %v718
  %v1217 = vmax.bf16 %v718, %v725
  %v1218 = vmax.bf16 %v725, %v732
  %v1219 = vmax.bf16 %v732, %v739
  %v1220 = vmax.bf16 %v739, %v746
  %v1221 = vmax.bf16 %v746, %v753
  %v1222 = vmax.bf16 %v753, %v760
  %v1223 = vmax.bf16 %v767, %v774
  %v1224 = vmax.bf16 %v774, %v781
  %v1225 = vmax.bf16 %v781, %v788
  %v1226 = vmax.bf16 %v788, %v795
  %v1227 = vmax.bf16 %v795, %v802
  %v1228 = vmax.bf16 %v802, %v809
  %v1229 = vmax.bf16 %v809, %v816
  %v1230 = vmax.bf16 %v816, %v823
  %v1231 = vmax.bf16 %v823, %v830
  %v1232 = vmax.bf16 %v830, %v837
  %v1233 = vmax.bf16 %v837, %v844
  %v1234 = vmax.bf16 %v844, %v851
  %v1235 = vmax.bf16 %v851, %v858
  %v1236 = vmax.bf16 %v858, %v865
  %v1237 = vmax.bf16 %v872, %v879
  %v1238 = vmax.bf16 %v879, %v886
  %v1239 = vmax.bf16 %v886, %v893
  %v1240 = vmax.bf16 %v893, %v900
  %v1241 = vmax.bf16 %v900, %v907
  %v1242 = vmax.bf16 %v907, %v914
  %v1243 = vmax.bf16 %v914, %v921
  %v1244 = vmax.bf16 %v921, %v928
  %v1245 = vmax.bf16 %v928, %v935
  %v1246 = vmax.bf16 %v935, %v942
  %v1247 = vmax.bf16 %v942, %v949
  %v1248 = vmax.bf16 %v949, %v956
  %v1249 = vmax.bf16 %v956, %v963
  %v1250 = vmax.bf16 %v963, %v970
  %v1251 = vmax.bf16 %v977, %v984
  %v1252 = vmax.bf16 %v984, %v991
  %v1253 = vmax.bf16 %v991, %v998
  %v1254 = vmax.bf16 %v998, %v1005
  %v1255 = vmax.bf16 %v1005, %v1012
  %v1256 = vmax.bf16 %v1012, %v1019
  %v1257 = vmax.bf16 %v1019, %v1026
  %v1258 = vmax.bf16 %v1026, %v1033
  %v1259 = vmax.bf16 %v1033, %v1040
  %v1260 = vmax.bf16 %v1040, %v1047
  %v1261 = vmax.bf16 %v1047, %v1054
  %v1262 = vmax.bf16 %v1054, %v1061
  %v1263 = vmax.bf16 %v1061, %v1068
  %v1264 = vmax.bf16 %v1068, %v1075
  %v1265 = vmax.bf16 %v1082, %v1089
  %v1266 = vmax.bf16 %v1089, %v1096
  %v1267 = vmax.bf16 %v1096, %v1103
  %v1268 = vmax.bf16 %v1103, %v1110
  %v1269 = vmax.bf16 %v1110, %v1117
  %v1270 = vmax.bf16 %v1117, %v1124
  %v1271 = vmax.bf16 %v1124, %v1131
  %v1272 = vmax.bf16 %v1131, %v1138
  %v1273 = vmax.bf16 %v1138, %v1145
  %v1274 = vmax.bf16 %v1145, %v1152
  %v1275 = vmax.bf16 %v1152, %v1159
  %v1276 = vmax.bf16 %v1159, %v1166
  %v1277 = vmax.bf16 %v1166, %v1173
  %v1278 = vmax.bf16 %v1173, %v1180
  %v1280 = vsel %vm444, %v1181, 4286644096
  %v1283 = vsel %vm444, %v1182, 4286644096
  %v1285 = vmax.bf16 %v1280, %v1283
  %v1287 = vsel %vm444, %v1183, 4286644096
  %v1290 = vsel %vm444, %v1184, 4286644096
  %v1292 = vmax.bf16 %v1287, %v1290
  %v1294 = vsel %vm444, %v1185, 4286644096
  %v1297 = vsel %vm444, %v1186, 4286644096
  %v1299 = vmax.bf16 %v1294, %v1297
  %v1301 = vsel %vm444, %v1187, 4286644096
  %v1304 = vsel %vm444, %v1188, 4286644096
  %v1306 = vmax.bf16 %v1301, %v1304
  %v1308 = vsel %vm444, %v1189, 4286644096
  %v1311 = vsel %vm444, %v1190, 4286644096
  %v1313 = vmax.bf16 %v1308, %v1311
  %v1315 = vsel %vm444, %v1191, 4286644096
  %v1318 = vsel %vm444, %v1192, 4286644096
  %v1320 = vmax.bf16 %v1315, %v1318
  %v1322 = vsel %vm444, %v1193, 4286644096
  %v1325 = vsel %vm444, %v1194, 4286644096
  %v1327 = vmax.bf16 %v1322, %v1325
  %v1329 = vsel %vm444, %v1195, 4286644096
  %v1332 = vsel %vm444, %v1196, 4286644096
  %v1334 = vmax.bf16 %v1329, %v1332
  %v1336 = vsel %vm444, %v1197, 4286644096
  %v1339 = vsel %vm444, %v1198, 4286644096
  %v1341 = vmax.bf16 %v1336, %v1339
  %v1343 = vsel %vm444, %v1199, 4286644096
  %v1346 = vsel %vm444, %v1200, 4286644096
  %v1348 = vmax.bf16 %v1343, %v1346
  %v1350 = vsel %vm444, %v1201, 4286644096
  %v1353 = vsel %vm444, %v1202, 4286644096
  %v1355 = vmax.bf16 %v1350, %v1353
  %v1357 = vsel %vm444, %v1203, 4286644096
  %v1360 = vsel %vm444, %v1204, 4286644096
  %v1362 = vmax.bf16 %v1357, %v1360
  %v1364 = vsel %vm444, %v1205, 4286644096
  %v1367 = vsel %vm444, %v1206, 4286644096
  %v1369 = vmax.bf16 %v1364, %v1367
  %v1371 = vsel %vm444, %v1207, 4286644096
  %v1374 = vsel %vm444, %v1208, 4286644096
  %v1376 = vmax.bf16 %v1371, %v1374
  %v1378 = vsel %vm444, %v1209, 4286644096
  %v1381 = vsel %vm444, %v1210, 4286644096
  %v1383 = vmax.bf16 %v1378, %v1381
  %v1385 = vsel %vm444, %v1211, 4286644096
  %v1388 = vsel %vm444, %v1212, 4286644096
  %v1390 = vmax.bf16 %v1385, %v1388
  %v1392 = vsel %vm444, %v1213, 4286644096
  %v1395 = vsel %vm444, %v1214, 4286644096
  %v1397 = vmax.bf16 %v1392, %v1395
  %v1399 = vsel %vm444, %v1215, 4286644096
  %v1402 = vsel %vm444, %v1216, 4286644096
  %v1404 = vmax.bf16 %v1399, %v1402
  %v1406 = vsel %vm444, %v1217, 4286644096
  %v1409 = vsel %vm444, %v1218, 4286644096
  %v1411 = vmax.bf16 %v1406, %v1409
  %v1413 = vsel %vm444, %v1219, 4286644096
  %v1416 = vsel %vm444, %v1220, 4286644096
  %v1418 = vmax.bf16 %v1413, %v1416
  %v1420 = vsel %vm444, %v1221, 4286644096
  %v1423 = vsel %vm444, %v1222, 4286644096
  %v1425 = vmax.bf16 %v1420, %v1423
  %v1427 = vsel %vm444, %v1223, 4286644096
  %v1430 = vsel %vm444, %v1224, 4286644096
  %v1432 = vmax.bf16 %v1427, %v1430
  %v1434 = vsel %vm444, %v1225, 4286644096
  %v1437 = vsel %vm444, %v1226, 4286644096
  %v1439 = vmax.bf16 %v1434, %v1437
  %v1441 = vsel %vm444, %v1227, 4286644096
  %v1444 = vsel %vm444, %v1228, 4286644096
  %v1446 = vmax.bf16 %v1441, %v1444
  %v1448 = vsel %vm444, %v1229, 4286644096
  %v1451 = vsel %vm444, %v1230, 4286644096
  %v1453 = vmax.bf16 %v1448, %v1451
  %v1455 = vsel %vm444, %v1231, 4286644096
  %v1458 = vsel %vm444, %v1232, 4286644096
  %v1460 = vmax.bf16 %v1455, %v1458
  %v1462 = vsel %vm444, %v1233, 4286644096
  %v1465 = vsel %vm444, %v1234, 4286644096
  %v1467 = vmax.bf16 %v1462, %v1465
  %v1469 = vsel %vm444, %v1235, 4286644096
  %v1472 = vsel %vm444, %v1236, 4286644096
  %v1474 = vmax.bf16 %v1469, %v1472
  %v1476 = vsel %vm444, %v1237, 4286644096
  %v1479 = vsel %vm444, %v1238, 4286644096
  %v1481 = vmax.bf16 %v1476, %v1479
  %v1483 = vsel %vm444, %v1239, 4286644096
  %v1486 = vsel %vm444, %v1240, 4286644096
  %v1488 = vmax.bf16 %v1483, %v1486
  %v1490 = vsel %vm444, %v1241, 4286644096
  %v1493 = vsel %vm444, %v1242, 4286644096
  %v1495 = vmax.bf16 %v1490, %v1493
  %v1497 = vsel %vm444, %v1243, 4286644096
  %v1500 = vsel %vm444, %v1244, 4286644096
  %v1502 = vmax.bf16 %v1497, %v1500
  %v1504 = vsel %vm444, %v1245, 4286644096
  %v1507 = vsel %vm444, %v1246, 4286644096
  %v1509 = vmax.bf16 %v1504, %v1507
  %v1511 = vsel %vm444, %v1247, 4286644096
  %v1514 = vsel %vm444, %v1248, 4286644096
  %v1516 = vmax.bf16 %v1511, %v1514
  %v1518 = vsel %vm444, %v1249, 4286644096
  %v1521 = vsel %vm444, %v1250, 4286644096
  %v1523 = vmax.bf16 %v1518, %v1521
  %v1525 = vsel %vm444, %v1251, 4286644096
  %v1528 = vsel %vm444, %v1252, 4286644096
  %v1530 = vmax.bf16 %v1525, %v1528
  %v1532 = vsel %vm444, %v1253, 4286644096
  %v1535 = vsel %vm444, %v1254, 4286644096
  %v1537 = vmax.bf16 %v1532, %v1535
  %v1539 = vsel %vm444, %v1255, 4286644096
  %v1542 = vsel %vm444, %v1256, 4286644096
  %v1544 = vmax.bf16 %v1539, %v1542
  %v1546 = vsel %vm444, %v1257, 4286644096
  %v1549 = vsel %vm444, %v1258, 4286644096
  %v1551 = vmax.bf16 %v1546, %v1549
  %v1553 = vsel %vm444, %v1259, 4286644096
  %v1556 = vsel %vm444, %v1260, 4286644096
  %v1558 = vmax.bf16 %v1553, %v1556
  %v1560 = vsel %vm444, %v1261, 4286644096
  %v1563 = vsel %vm444, %v1262, 4286644096
  %v1565 = vmax.bf16 %v1560, %v1563
  %v1567 = vsel %vm444, %v1263, 4286644096
  %v1570 = vsel %vm444, %v1264, 4286644096
  %v1572 = vmax.bf16 %v1567, %v1570
  %v1574 = vsel %vm444, %v1265, 4286644096
  %v1577 = vsel %vm444, %v1266, 4286644096
  %v1579 = vmax.bf16 %v1574, %v1577
  %v1581 = vsel %vm444, %v1267, 4286644096
  %v1584 = vsel %vm444, %v1268, 4286644096
  %v1586 = vmax.bf16 %v1581, %v1584
  %v1588 = vsel %vm444, %v1269, 4286644096
  %v1591 = vsel %vm444, %v1270, 4286644096
  %v1593 = vmax.bf16 %v1588, %v1591
  %v1595 = vsel %vm444, %v1271, 4286644096
  %v1598 = vsel %vm444, %v1272, 4286644096
  %v1600 = vmax.bf16 %v1595, %v1598
  %v1602 = vsel %vm444, %v1273, 4286644096
  %v1605 = vsel %vm444, %v1274, 4286644096
  %v1607 = vmax.bf16 %v1602, %v1605
  %v1609 = vsel %vm444, %v1275, 4286644096
  %v1612 = vsel %vm444, %v1276, 4286644096
  %v1614 = vmax.bf16 %v1609, %v1612
  %v1616 = vsel %vm444, %v1277, 4286644096
  %v1619 = vsel %vm444, %v1278, 4286644096
  %v1621 = vmax.bf16 %v1616, %v1619
  %1622 = vst [vmem:[%s1] sm:$0x3] %v1285
  %1623 = vst [vmem:[%s1 + $0x2] sm:$0x3] %v1292
  %1624 = vst [vmem:[%s1 + $0x4] sm:$0x3] %v1299
  %1625 = vst [vmem:[%s1 + $0x6] sm:$0x3] %v1306
  %1626 = vst [vmem:[%s1 + $0x8] sm:$0x3] %v1313
  %1627 = vst [vmem:[%s1 + $0xa] sm:$0x3] %v1320
  %1628 = vst [vmem:[%s1 + $0xc] sm:$0x3] %v1327
  %1629 = vst [vmem:[%s1 + $0xe] sm:$0x3] %v1334
  %1630 = vst [vmem:[%s1 + $0x10] sm:$0x3] %v1341
  %1631 = vst [vmem:[%s1 + $0x12] sm:$0x3] %v1348
  %1632 = vst [vmem:[%s1 + $0x14] sm:$0x3] %v1355
  %1633 = vst [vmem:[%s1 + $0x16] sm:$0x3] %v1362
  %1634 = vst [vmem:[%s1 + $0x18] sm:$0x3] %v1369
  %1635 = vst [vmem:[%s1 + $0x1a] sm:$0x3] %v1376
  %1636 = vst [vmem:[%s1 + $0x1c] sm:$0x3] %v1383
  %1637 = vst [vmem:[%s1 + $0x1e] sm:$0x3] %v1390
  %1638 = vst [vmem:[%s1 + $0x20] sm:$0x3] %v1397
  %1639 = vst [vmem:[%s1 + $0x22] sm:$0x3] %v1404
  %1640 = vst [vmem:[%s1 + $0x24] sm:$0x3] %v1411
  %1641 = vst [vmem:[%s1 + $0x26] sm:$0x3] %v1418
  %1642 = vst [vmem:[%s1 + $0x28] sm:$0x3] %v1425
  %1643 = vst [vmem:[%s1 + $0x2a] sm:$0x3] %v1432
  %1644 = vst [vmem:[%s1 + $0x2c] sm:$0x3] %v1439
  %1645 = vst [vmem:[%s1 + $0x2e] sm:$0x3] %v1446
  %1646 = vst [vmem:[%s1 + $0x30] sm:$0x3] %v1453
  %1647 = vst [vmem:[%s1 + $0x32] sm:$0x3] %v1460
  %1648 = vst [vmem:[%s1 + $0x34] sm:$0x3] %v1467
  %1649 = vst [vmem:[%s1 + $0x36] sm:$0x3] %v1474
  %1650 = vst [vmem:[%s1 + $0x38] sm:$0x3] %v1481
  %1651 = vst [vmem:[%s1 + $0x3a] sm:$0x3] %v1488
  %1652 = vst [vmem:[%s1 + $0x3c] sm:$0x3] %v1495
  %1653 = vst [vmem:[%s1 + $0x3e] sm:$0x3] %v1502
  %1654 = vst [vmem:[%s1 + $0x40] sm:$0x3] %v1509
  %1655 = vst [vmem:[%s1 + $0x42] sm:$0x3] %v1516
  %1656 = vst [vmem:[%s1 + $0x44] sm:$0x3] %v1523
  %1657 = vst [vmem:[%s1 + $0x46] sm:$0x3] %v1530
  %1658 = vst [vmem:[%s1 + $0x48] sm:$0x3] %v1537
  %1659 = vst [vmem:[%s1 + $0x4a] sm:$0x3] %v1544
  %1660 = vst [vmem:[%s1 + $0x4c] sm:$0x3] %v1551
  %1661 = vst [vmem:[%s1 + $0x4e] sm:$0x3] %v1558
  %1662 = vst [vmem:[%s1 + $0x50] sm:$0x3] %v1565
  %1663 = vst [vmem:[%s1 + $0x52] sm:$0x3] %v1572
  %1664 = vst [vmem:[%s1 + $0x54] sm:$0x3] %v1579
  %1665 = vst [vmem:[%s1 + $0x56] sm:$0x3] %v1586
  %1666 = vst [vmem:[%s1 + $0x58] sm:$0x3] %v1593
  %1667 = vst [vmem:[%s1 + $0x5a] sm:$0x3] %v1600
  %1668 = vst [vmem:[%s1 + $0x5c] sm:$0x3] %v1607
  %1669 = vst [vmem:[%s1 + $0x5e] sm:$0x3] %v1614
  %1670 = vst [vmem:[%s1 + $0x60] sm:$0x3] %v1621
  // Predicated region
  $region6: #{_lambda_.26} parent=0 // pred_check
    _
  $region7: #{_lambda_.26} parent=0 // pred_check_branch
    %1672 = sbr.rel (0) target = $region9
  $region8: #{_lambda_.26} parent=0 // pred_region
    _
  $region9: #{_lambda_.26} parent=0 // pred_fallthru
    _
  // Predicated region
  $region10: #{_lambda_.26} parent=0 // pred_check
    _
  $region11: #{_lambda_.26} parent=0 // pred_check_branch
    %1674 = sbr.rel (0) target = $region13
  $region12: #{_lambda_.26} parent=0 // pred_region
    _
  $region13: #{_lambda_.26} parent=0 // pred_fallthru
    _

// kernel: _lambda_.27
$region0: #{_lambda_.27}
  #allocation0 [shape = 'u32[]', space=smem, size = 0x4, offset = 0x4, fixed_abs, tag = 'smem constant byte address 0x4 - core index']
  #allocation1 [shape = 'u32[144,128]{1,0:T(1,128)}', space=vmem, size = 0x12000, scoped, tag = 'internal scratch']
  #allocation2 [shape = 'f32[208,256]{1,0:T(8,128)}', space=vmem, size = 0x34000, scoped, tag = 'scratch operand']
  %s0 = inlined_call_operand.vmem [shape: bf16[208,3200], index: 0, kind: input, shape index: {}]
  %s1 = inlined_call_operand.vmem [shape: bf16[3200,256], index: 1, kind: input, shape index: {}]
  %s2 = inlined_call_operand.vmem [shape: f32[1,256], index: 2, kind: input, shape index: {}]
  %s3 = inlined_call_operand.vmem [shape: bf16[208,256], index: 3, kind: output, shape index: {}]
  %s4 = sld [smem:[#allocation0]]
  $region94: #{_lambda_.27} parent=0
    _
  %s6 = ssub.s32 1, %s4
  %s7 = scalar_select 0, %s6, %s4
  $region1: #{_lambda_.27} parent=0
    #allocation3 [shape = 'u8[106496]{0}', space=vmem, size = 0x1a000, scoped, tag = 'input window, operand 0']
    loop: start=0, step=1, limit=27
    $region2: #{_lambda_.27} parent=1 // loop_pre_header
      _
    $region3: #{_lambda_.27} parent=1 // loop_header
      %s9 = sphi 0, %s13
      %p10 = scmp.ge.s32.totalorder %s9, 27
      %s16 = sphi 0, %s35
      %s17 = sphi 0, %s31
      %s18 = sphi 0, %s27
      %s19 = sphi 0, %s16
      %s20 = sphi 0, %s17
      %s21 = sphi 0, %s18
      %s22 = sphi 0, %s19
      %s23 = sphi 0, %s20
      %s24 = sphi 0, %s21
      %s40 = sphi 0, %s42
      %s43 = sphi 0, %s40
      %s44 = sphi 0, %s43
      %s60 = sphi 0, %s44
      %s68 = sphi 0, %s70
      %s71 = sphi 0, %s68
      %s72 = sphi 0, %s71
      %s88 = sphi 0, %s72
      %s94 = sphi 0, %s96
      %s97 = sphi 0, %s94
      %s98 = sphi 0, %s97
      %s114 = sphi 0, %s98
      %s122 = sphi 0, %s124
      %s125 = sphi 0, %s122
      %s126 = sphi 0, %s125
      %s142 = sphi 0, %s126
    $region4: #{_lambda_.27} parent=1 // loop_header_branch
      %12 = sbr.rel (%p10) target = $region8
    $region5: #{_lambda_.27} parent=1 // loop_body
      %s14 = ssub.s32 %s9, 1
      %s15 = ssub.s32 %s9, 2
      %s25 = sadd.s32 1, %s18
      %p26 = scmp.ge.s32.totalorder %s25, 25
      %s27 = scalar_select %p26, 0, %s25
      %s28 = sadd.s32 1, %s17
      %s29 = scalar_select %p26, %s28, %s17
      %p30 = scmp.ge.s32.totalorder %s29, 1
      %s31 = scalar_select %p30, 0, %s29
      %s32 = sadd.s32 1, %s16
      %s33 = scalar_select %p30, %s32, %s16
      %p34 = scmp.ge.s32.totalorder %s33, 1
      %s35 = scalar_select %p34, 0, %s33
      %s36 = ssub.s32 %s16, %s35
      %s37 = ssub.s32 %s18, %s27
      %s38 = sor.u32 %s36, %s37
      %p39 = scmp.eq.s32.totalorder %s38, 0
      %s41 = sadd.s32 %s40, 1
      %s42 = scalar_select %p39, %s40, %s41
      %p45 = pneg %p39
      %p46 = scmp.eq.s32.totalorder %s9, 24
      %p47 = por %p45, %p46
      %p48 = scmp.ne.s32.totalorder %s40, %s43
      %p49 = scmp.eq.s32.totalorder %s9, 0
      %p50 = por %p48, %p49
      %p51 = scmp.ne.s32.totalorder %s40, %s43
      %p52 = scmp.eq.s32.totalorder %s14, 24
      %p53 = por %p51, %p52
      %p54 = scmp.ne.s32.totalorder %s43, %s44
      %p55 = scmp.eq.s32.totalorder %s14, 0
      %p56 = por %p54, %p55
      %p57 = scmp.ne.s32.totalorder %s43, %s44
      %p58 = scmp.eq.s32.totalorder %s15, 24
      %p59 = por %p57, %p58
      %p61 = scmp.ne.s32.totalorder %s44, %s60
      %p62 = scmp.eq.s32.totalorder %s15, 0
      %p63 = por %p61, %p62
      %s64 = ssub.s32 %s18, %s27
      %s65 = ssub.s32 %s17, %s31
      %s66 = sor.u32 %s64, %s65
      %p67 = scmp.eq.s32.totalorder %s66, 0
      %s69 = sadd.s32 %s68, 1
      %s70 = scalar_select %p67, %s68, %s69
      %p73 = pneg %p67
      %p74 = scmp.eq.s32.totalorder %s9, 24
      %p75 = por %p73, %p74
      %p76 = scmp.ne.s32.totalorder %s68, %s71
      %p77 = scmp.eq.s32.totalorder %s9, 0
      %p78 = por %p76, %p77
      %p79 = scmp.ne.s32.totalorder %s68, %s71
      %p80 = scmp.eq.s32.totalorder %s14, 24
      %p81 = por %p79, %p80
      %p82 = scmp.ne.s32.totalorder %s71, %s72
      %p83 = scmp.eq.s32.totalorder %s14, 0
      %p84 = por %p82, %p83
      %p85 = scmp.ne.s32.totalorder %s71, %s72
      %p86 = scmp.eq.s32.totalorder %s15, 24
      %p87 = por %p85, %p86
      %p89 = scmp.ne.s32.totalorder %s72, %s88
      %p90 = scmp.eq.s32.totalorder %s15, 0
      %p91 = por %p89, %p90
      %s92 = ssub.s32 %s17, %s31
      %p93 = scmp.eq.s32.totalorder %s92, 0
      %s95 = sadd.s32 %s94, 1
      %s96 = scalar_select %p93, %s94, %s95
      %p99 = pneg %p93
      %p100 = scmp.eq.s32.totalorder %s9, 24
      %p101 = por %p99, %p100
      %p102 = scmp.ne.s32.totalorder %s94, %s97
      %p103 = scmp.eq.s32.totalorder %s9, 0
      %p104 = por %p102, %p103
      %p105 = scmp.ne.s32.totalorder %s94, %s97
      %p106 = scmp.eq.s32.totalorder %s14, 24
      %p107 = por %p105, %p106
      %p108 = scmp.ne.s32.totalorder %s97, %s98
      %p109 = scmp.eq.s32.totalorder %s14, 0
      %p110 = por %p108, %p109
      %p111 = scmp.ne.s32.totalorder %s97, %s98
      %p112 = scmp.eq.s32.totalorder %s15, 24
      %p113 = por %p111, %p112
      %p115 = scmp.ne.s32.totalorder %s98, %s114
      %p116 = scmp.eq.s32.totalorder %s15, 0
      %p117 = por %p115, %p116
      %s118 = ssub.s32 %s16, %s35
      %s119 = ssub.s32 %s17, %s31
      %s120 = sor.u32 %s118, %s119
      %p121 = scmp.eq.s32.totalorder %s120, 0
      %s123 = sadd.s32 %s122, 1
      %s124 = scalar_select %p121, %s122, %s123
      %p127 = pneg %p121
      %p128 = scmp.eq.s32.totalorder %s9, 24
      %p129 = por %p127, %p128
      %p130 = scmp.ne.s32.totalorder %s122, %s125
      %p131 = scmp.eq.s32.totalorder %s9, 0
      %p132 = por %p130, %p131
      %p133 = scmp.ne.s32.totalorder %s122, %s125
      %p134 = scmp.eq.s32.totalorder %s14, 24
      %p135 = por %p133, %p134
      %p136 = scmp.ne.s32.totalorder %s125, %s126
      %p137 = scmp.eq.s32.totalorder %s14, 0
      %p138 = por %p136, %p137
      %p139 = scmp.ne.s32.totalorder %s125, %s126
      %p140 = scmp.eq.s32.totalorder %s15, 24
      %p141 = por %p139, %p140
      %p143 = scmp.ne.s32.totalorder %s126, %s142
      %p144 = scmp.eq.s32.totalorder %s15, 0
      %p145 = por %p143, %p144
      %p146 = scmp.le.s32.totalorder 1, %s9
      %p147 = scmp.lt.s32.totalorder %s9, 26
      %p148 = pnand %p146, %p147
      %p149 = pneg %p148
      // Predicated region
      $region9: #{_lambda_.27} parent=5 // pred_check
        _
      $region10: #{_lambda_.27} parent=5 // pred_check_branch
        %151 = sbr.rel (%p148) target = $region12
      $region11: #{_lambda_.27} parent=5 // pred_region
        %s152 = ssub.s32 %s9, 1
        // Predicated region
        $region13: #{_lambda_.27} parent=11 // pred_check
          %p153 = pneg %p110
        $region14: #{_lambda_.27} parent=11 // pred_check_branch
          %155 = sbr.rel (%p153) target = $region16
        $region15: #{_lambda_.27} parent=11 // pred_region
          %s156 = smul.u32 2, %s20
          %p157 = scmp.lt.s32.totalorder %s156, 1
          %s158 = scalar_select %p157, %s156, 1
          %s159 = scalar_lea.vmem %s2, %s158
          %s160 = smul.u32 2, %s20
        $region16: #{_lambda_.27} parent=11 // pred_fallthru
          _
      $region12: #{_lambda_.27} parent=5 // pred_fallthru
        _
      %p161 = scmp.lt.s32.totalorder %s9, 25
      // Predicated region
      $region17: #{_lambda_.27} parent=5 // pred_check
        %p162 = pneg %p161
      $region18: #{_lambda_.27} parent=5 // pred_check_branch
        %164 = sbr.rel (%p162) target = $region20
      $region19: #{_lambda_.27} parent=5 // pred_region
        // Predicated region
        $region21: #{_lambda_.27} parent=19 // pred_check
          %p165 = pneg %p50
        $region22: #{_lambda_.27} parent=19 // pred_check_branch
          %167 = sbr.rel (%p165) target = $region24
        $region23: #{_lambda_.27} parent=19 // pred_region
          %s168 = sand.u32 %s40, 1
          %s169 = sand.u32 %s40, 1
          %s170 = smul.addr %s169, 104
          %s171 = scalar_lea.vmem [#allocation3], %s170
          %s172 = smul.u32 26, %s16
          %s173 = smul.addr %s172, 25
          %s174 = sadd.s32 %s18, %s173
          %s175 = smul.addr %s174, 4
          %s176 = scalar_lea.vmem %s0, %s175
          // Predicated region
          $region25: #{_lambda_.27} parent=23 // pred_check
            _
          $region26: #{_lambda_.27} parent=23 // pred_check_branch
            %178 = sbr.rel (0) target = $region28
          $region27: #{_lambda_.27} parent=23 // pred_region
            // Predicated region
            $region29: #{_lambda_.27} parent=27 // pred_check
              _
            $region30: #{_lambda_.27} parent=27 // pred_check_branch
              %180 = sbr.rel target = $region32
            $region31: #{_lambda_.27} parent=27 // pred_region
              // Predicated region
              $region44: #{_lambda_.27} parent=31 // pred_check
                _
              $region45: #{_lambda_.27} parent=31 // pred_check_branch
                %245 = sbr.rel (0) target = $region47
              $region46: #{_lambda_.27} parent=31 // pred_region
                loop: start=0, step=1, limit=1
                $region48: #{_lambda_.27} parent=46 // loop_pre_header
                  _
                $region49: #{_lambda_.27} parent=46 // loop_header
                  %s247 = sphi 0, %s251
                  %p248 = scmp.ge.s32.totalorder %s247, 1
                  %s252 = sphi %s176, %s176
                  %s253 = sphi %s171, %s171
                $region50: #{_lambda_.27} parent=46 // loop_header_branch
                  %250 = sbr.rel (%p248) target = $region54
                $region51: #{_lambda_.27} parent=46 // loop_body
                  _
                $region52: #{_lambda_.27} parent=46 // loop_footer
                  %s251 = sadd.s32 1, %s247
                $region53: #{_lambda_.27} parent=46 // loop_footer_branch
                  %246 = sbr.rel target = $region49
                $region54: #{_lambda_.27} parent=46 // loop_exit
                  _
                loop: start=0, step=1, limit=1
                $region55: #{_lambda_.27} parent=46 // loop_pre_header
                  _
                $region56: #{_lambda_.27} parent=46 // loop_header
                  %s256 = sphi 0, %s260
                  %p257 = scmp.ge.s32.totalorder %s256, 1
                  %s261 = sphi %s176, %s176
                  %s262 = sphi %s171, %s171
                $region57: #{_lambda_.27} parent=46 // loop_header_branch
                  %259 = sbr.rel (%p257) target = $region61
                $region58: #{_lambda_.27} parent=46 // loop_body
                  %v263 = vld [vmem:[%s261] sm:$0xf]
                  %264 = vst [vmem:[%s262] sm:$0xf] %v263
                  %v265 = vld [vmem:[%s261 + $0x64] sm:$0xf]
                  %266 = vst [vmem:[%s262 + $0x4] sm:$0xf] %v265
                  %v267 = vld [vmem:[%s261 + $0xc8] sm:$0xf]
                  %268 = vst [vmem:[%s262 + $0x8] sm:$0xf] %v267
                  %v269 = vld [vmem:[%s261 + $0x12c] sm:$0xf]
                  %270 = vst [vmem:[%s262 + $0xc] sm:$0xf] %v269
                  %v271 = vld [vmem:[%s261 + $0x190] sm:$0xf]
                  %272 = vst [vmem:[%s262 + $0x10] sm:$0xf] %v271
                  %v273 = vld [vmem:[%s261 + $0x1f4] sm:$0xf]
                  %274 = vst [vmem:[%s262 + $0x14] sm:$0xf] %v273
                  %v275 = vld [vmem:[%s261 + $0x258] sm:$0xf]
                  %276 = vst [vmem:[%s262 + $0x18] sm:$0xf] %v275
                  %v277 = vld [vmem:[%s261 + $0x2bc] sm:$0xf]
                  %278 = vst [vmem:[%s262 + $0x1c] sm:$0xf] %v277
                  %v279 = vld [vmem:[%s261 + $0x320] sm:$0xf]
                  %280 = vst [vmem:[%s262 + $0x20] sm:$0xf] %v279
                  %v281 = vld [vmem:[%s261 + $0x384] sm:$0xf]
                  %282 = vst [vmem:[%s262 + $0x24] sm:$0xf] %v281
                  %v283 = vld [vmem:[%s261 + $0x3e8] sm:$0xf]
                  %284 = vst [vmem:[%s262 + $0x28] sm:$0xf] %v283
                  %v285 = vld [vmem:[%s261 + $0x44c] sm:$0xf]
                  %286 = vst [vmem:[%s262 + $0x2c] sm:$0xf] %v285
                  %v287 = vld [vmem:[%s261 + $0x4b0] sm:$0xf]
                  %288 = vst [vmem:[%s262 + $0x30] sm:$0xf] %v287
                  %v289 = vld [vmem:[%s261 + $0x514] sm:$0xf]
                  %290 = vst [vmem:[%s262 + $0x34] sm:$0xf] %v289
                  %v291 = vld [vmem:[%s261 + $0x578] sm:$0xf]
                  %292 = vst [vmem:[%s262 + $0x38] sm:$0xf] %v291
                  %v293 = vld [vmem:[%s261 + $0x5dc] sm:$0xf]
                  %294 = vst [vmem:[%s262 + $0x3c] sm:$0xf] %v293
                  %v295 = vld [vmem:[%s261 + $0x640] sm:$0xf]
                  %296 = vst [vmem:[%s262 + $0x40] sm:$0xf] %v295
                  %v297 = vld [vmem:[%s261 + $0x6a4] sm:$0xf]
                  %298 = vst [vmem:[%s262 + $0x44] sm:$0xf] %v297
                  %v299 = vld [vmem:[%s261 + $0x708] sm:$0xf]
                  %300 = vst [vmem:[%s262 + $0x48] sm:$0xf] %v299
                  %v301 = vld [vmem:[%s261 + $0x76c] sm:$0xf]
                  %302 = vst [vmem:[%s262 + $0x4c] sm:$0xf] %v301
                  %v303 = vld [vmem:[%s261 + $0x7d0] sm:$0xf]
                  %304 = vst [vmem:[%s262 + $0x50] sm:$0xf] %v303
                  %v305 = vld [vmem:[%s261 + $0x834] sm:$0xf]
                  %306 = vst [vmem:[%s262 + $0x54] sm:$0xf] %v305
                  %v307 = vld [vmem:[%s261 + $0x898] sm:$0xf]
                  %308 = vst [vmem:[%s262 + $0x58] sm:$0xf] %v307
                  %v309 = vld [vmem:[%s261 + $0x8fc] sm:$0xf]
                  %310 = vst [vmem:[%s262 + $0x5c] sm:$0xf] %v309
                  %v311 = vld [vmem:[%s261 + $0x960] sm:$0xf]
                  %312 = vst [vmem:[%s262 + $0x60] sm:$0xf] %v311
                  %v313 = vld [vmem:[%s261 + $0x9c4] sm:$0xf]
                  %314 = vst [vmem:[%s262 + $0x64] sm:$0xf] %v313
                $region59: #{_lambda_.27} parent=46 // loop_footer
                  %s260 = sadd.s32 1, %s256
                $region60: #{_lambda_.27} parent=46 // loop_footer_branch
                  %255 = sbr.rel target = $region56
                $region61: #{_lambda_.27} parent=46 // loop_exit
                  _
              $region47: #{_lambda_.27} parent=31 // pred_fallthru
                _
            $region32: #{_lambda_.27} parent=27 // pred_fallthru
              _
            // Predicated region
            $region33: #{_lambda_.27} parent=27 // pred_check
              _
            $region34: #{_lambda_.27} parent=27 // pred_check_branch
              %182 = sbr.rel (0) target = $region36
            $region35: #{_lambda_.27} parent=27 // pred_region
              loop: start=0, step=1, limit=1
              $region37: #{_lambda_.27} parent=35 // loop_pre_header
                _
              $region38: #{_lambda_.27} parent=35 // loop_header
                %s185 = sphi 0, %s189
                %p186 = scmp.ge.s32.totalorder %s185, 1
                %s190 = sphi %s176, %s176
                %s191 = sphi %s171, %s171
              $region39: #{_lambda_.27} parent=35 // loop_header_branch
                %188 = sbr.rel (%p186) target = $region43
              $region40: #{_lambda_.27} parent=35 // loop_body
                %v192 = vld [vmem:[%s190] sm:$0xf]
                %193 = vst [vmem:[%s191] sm:$0xf] %v192
                %v194 = vld [vmem:[%s190 + $0x64] sm:$0xf]
                %195 = vst [vmem:[%s191 + $0x4] sm:$0xf] %v194
                %v196 = vld [vmem:[%s190 + $0xc8] sm:$0xf]
                %197 = vst [vmem:[%s191 + $0x8] sm:$0xf] %v196
                %v198 = vld [vmem:[%s190 + $0x12c] sm:$0xf]
                %199 = vst [vmem:[%s191 + $0xc] sm:$0xf] %v198
                %v200 = vld [vmem:[%s190 + $0x190] sm:$0xf]
                %201 = vst [vmem:[%s191 + $0x10] sm:$0xf] %v200
                %v202 = vld [vmem:[%s190 + $0x1f4] sm:$0xf]
                %203 = vst [vmem:[%s191 + $0x14] sm:$0xf] %v202
                %v204 = vld [vmem:[%s190 + $0x258] sm:$0xf]
                %205 = vst [vmem:[%s191 + $0x18] sm:$0xf] %v204
                %v206 = vld [vmem:[%s190 + $0x2bc] sm:$0xf]
                %207 = vst [vmem:[%s191 + $0x1c] sm:$0xf] %v206
                %v208 = vld [vmem:[%s190 + $0x320] sm:$0xf]
                %209 = vst [vmem:[%s191 + $0x20] sm:$0xf] %v208
                %v210 = vld [vmem:[%s190 + $0x384] sm:$0xf]
                %211 = vst [vmem:[%s191 + $0x24] sm:$0xf] %v210
                %v212 = vld [vmem:[%s190 + $0x3e8] sm:$0xf]
                %213 = vst [vmem:[%s191 + $0x28] sm:$0xf] %v212
                %v214 = vld [vmem:[%s190 + $0x44c] sm:$0xf]
                %215 = vst [vmem:[%s191 + $0x2c] sm:$0xf] %v214
                %v216 = vld [vmem:[%s190 + $0x4b0] sm:$0xf]
                %217 = vst [vmem:[%s191 + $0x30] sm:$0xf] %v216
                %v218 = vld [vmem:[%s190 + $0x514] sm:$0xf]
                %219 = vst [vmem:[%s191 + $0x34] sm:$0xf] %v218
                %v220 = vld [vmem:[%s190 + $0x578] sm:$0xf]
                %221 = vst [vmem:[%s191 + $0x38] sm:$0xf] %v220
                %v222 = vld [vmem:[%s190 + $0x5dc] sm:$0xf]
                %223 = vst [vmem:[%s191 + $0x3c] sm:$0xf] %v222
                %v224 = vld [vmem:[%s190 + $0x640] sm:$0xf]
                %225 = vst [vmem:[%s191 + $0x40] sm:$0xf] %v224
                %v226 = vld [vmem:[%s190 + $0x6a4] sm:$0xf]
                %227 = vst [vmem:[%s191 + $0x44] sm:$0xf] %v226
                %v228 = vld [vmem:[%s190 + $0x708] sm:$0xf]
                %229 = vst [vmem:[%s191 + $0x48] sm:$0xf] %v228
                %v230 = vld [vmem:[%s190 + $0x76c] sm:$0xf]
                %231 = vst [vmem:[%s191 + $0x4c] sm:$0xf] %v230
                %v232 = vld [vmem:[%s190 + $0x7d0] sm:$0xf]
                %233 = vst [vmem:[%s191 + $0x50] sm:$0xf] %v232
                %v234 = vld [vmem:[%s190 + $0x834] sm:$0xf]
                %235 = vst [vmem:[%s191 + $0x54] sm:$0xf] %v234
                %v236 = vld [vmem:[%s190 + $0x898] sm:$0xf]
                %237 = vst [vmem:[%s191 + $0x58] sm:$0xf] %v236
                %v238 = vld [vmem:[%s190 + $0x8fc] sm:$0xf]
                %239 = vst [vmem:[%s191 + $0x5c] sm:$0xf] %v238
                %v240 = vld [vmem:[%s190 + $0x960] sm:$0xf]
                %241 = vst [vmem:[%s191 + $0x60] sm:$0xf] %v240
                %v242 = vld [vmem:[%s190 + $0x9c4] sm:$0xf]
                %243 = vst [vmem:[%s191 + $0x64] sm:$0xf] %v242
              $region41: #{_lambda_.27} parent=35 // loop_footer
                %s189 = sadd.s32 1, %s185
              $region42: #{_lambda_.27} parent=35 // loop_footer_branch
                %184 = sbr.rel target = $region38
              $region43: #{_lambda_.27} parent=35 // loop_exit
                _
            $region36: #{_lambda_.27} parent=27 // pred_fallthru
              _
          $region28: #{_lambda_.27} parent=23 // pred_fallthru
            _
          %315 = vnop
        $region24: #{_lambda_.27} parent=19 // pred_fallthru
          _
        // Predicated region
        $region62: #{_lambda_.27} parent=19 // pred_check
          %p316 = pneg %p78
        $region63: #{_lambda_.27} parent=19 // pred_check_branch
          %318 = sbr.rel (%p316) target = $region65
        $region64: #{_lambda_.27} parent=19 // pred_region
          %s319 = smul.u32 16, %s18
          %s320 = smul.u32 2, %s17
          %p321 = scmp.lt.s32.totalorder %s319, 399
          %s322 = scalar_select %p321, %s319, 399
          %p323 = scmp.lt.s32.totalorder %s320, 1
          %s324 = scalar_select %p323, %s320, 1
          %s325 = smul.addr %s322, 2
          %s326 = sadd.s32 %s324, %s325
          %s327 = smul.addr %s326, 4
          %s328 = scalar_lea.vmem %s1, %s327
          %s329 = smul.u32 16, %s18
          %s330 = smul.u32 2, %s17
        $region65: #{_lambda_.27} parent=19 // pred_fallthru
          _
      $region20: #{_lambda_.27} parent=5 // pred_fallthru
        _
      %p331 = scmp.le.s32.totalorder 1, %s9
      %p332 = scmp.lt.s32.totalorder %s9, 26
      %p333 = pnand %p331, %p332
      %p334 = pneg %p333
      // Predicated region
      $region66: #{_lambda_.27} parent=5 // pred_check
        _
      $region67: #{_lambda_.27} parent=5 // pred_check_branch
        %336 = sbr.rel (%p333) target = $region69
      $region68: #{_lambda_.27} parent=5 // pred_region
        %s337 = ssub.s32 %s9, 1
        %s338 = sand.u32 %s43, 1
        %s339 = sand.u32 %s43, 1
        %s340 = smul.addr %s339, 104
        %s341 = scalar_lea.vmem [#allocation3], %s340
        // Predicated region
        $region70: #{_lambda_.27} parent=68 // pred_check
          %p342 = pneg %p56
        $region71: #{_lambda_.27} parent=68 // pred_check_branch
          %344 = sbr.rel (%p342) target = $region73
        $region72: #{_lambda_.27} parent=68 // pred_region
          _
        $region73: #{_lambda_.27} parent=68 // pred_fallthru
          _
        %s345 = sand.u32 %s43, 1
        %s346 = sand.u32 %s43, 1
        %s347 = smul.addr %s346, 104
        %s348 = scalar_lea.vmem [#allocation3], %s347
        %p349 = pneg %p56
        %p350 = pneg %p53
        %s351 = smul.u32 16, %s21
        %s352 = smul.u32 2, %s20
        %p353 = scmp.lt.s32.totalorder %s351, 399
        %s354 = scalar_select %p353, %s351, 399
        %p355 = scmp.lt.s32.totalorder %s352, 1
        %s356 = scalar_select %p355, %s352, 1
        %s357 = smul.addr %s354, 2
        %s358 = sadd.s32 %s356, %s357
        %s359 = smul.addr %s358, 4
        %s360 = scalar_lea.vmem %s1, %s359
        %p361 = pneg %p84
        %p362 = pneg %p81
        %s363 = smul.u32 2, %s20
        %p364 = scmp.lt.s32.totalorder %s363, 1
        %s365 = scalar_select %p364, %s363, 1
        %s366 = scalar_lea.vmem %s2, %s365
        %p367 = pneg %p110
        %p368 = pneg %p107
        %p369 = pneg %p138
        %p370 = pneg %p135
        %s371 = smul.u32 26, %s19
        %s372 = smul.u32 2, %s20
        %p373 = scmp.lt.s32.totalorder %s371, 25
        %s374 = scalar_select %p373, %s371, 25
        %p375 = scmp.lt.s32.totalorder %s372, 1
        %s376 = scalar_select %p375, %s372, 1
        %s377 = smul.addr %s374, 2
        %s378 = sadd.s32 %s376, %s377
        %s379 = smul.addr %s378, 4
        %s380 = scalar_lea.vmem %s3, %s379
        %s381 = smul.u32 26, %s19
        %s382 = smul.u32 16, %s21
        %s383 = smul.u32 2, %s20
        %p384 = scmp.lt.s32.totalorder %s382, 399
        %s385 = scalar_select %p384, %s382, 399
        %p386 = scmp.lt.s32.totalorder %s383, 1
        %s387 = scalar_select %p386, %s383, 1
        %s388 = smul.addr %s385, 2
        %s389 = sadd.s32 %s387, %s388
        %s390 = smul.addr %s389, 4
        %s391 = scalar_lea.vmem %s1, %s390
        %s392 = smul.u32 16, %s21
        %s393 = smul.u32 2, %s20
        %s394 = smul.u32 2, %s20
        %p395 = scmp.lt.s32.totalorder %s394, 1
        %s396 = scalar_select %p395, %s394, 1
        %s397 = scalar_lea.vmem %s2, %s396
        %s398 = smul.u32 2, %s20
        %s399 = smul.u32 26, %s19
        %s400 = smul.u32 2, %s20
        %p401 = scmp.lt.s32.totalorder %s399, 25
        %s402 = scalar_select %p401, %s399, 25
        %p403 = scmp.lt.s32.totalorder %s400, 1
        %s404 = scalar_select %p403, %s400, 1
        %s405 = smul.addr %s402, 2
        %s406 = sadd.s32 %s404, %s405
        %s407 = smul.addr %s406, 4
        %s408 = scalar_lea.vmem %s3, %s407
        %s409 = smul.u32 26, %s19
        %s410 = smul.u32 2, %s20
        %p412 = scmp.eq.s32.totalorder %s21, 0
        // Predicated region
        $region74: #{_lambda_.27} parent=68 // pred_check
          %p413 = pneg %p412
        $region75: #{_lambda_.27} parent=68 // pred_check_branch
          %415 = sbr.rel (%p413) target = $region77
        $region76: #{_lambda_.27} parent=68 // pred_region
          %416 = vst [vmem:[#allocation2] sm:$0xff] 0.0
          %417 = vst [vmem:[#allocation2 + $0x8] sm:$0xff] 0.0
          %418 = vst [vmem:[#allocation2 + $0x10] sm:$0xff] 0.0
          %419 = vst [vmem:[#allocation2 + $0x18] sm:$0xff] 0.0
          %420 = vst [vmem:[#allocation2 + $0x20] sm:$0xff] 0.0
          %421 = vst [vmem:[#allocation2 + $0x28] sm:$0xff] 0.0
          %422 = vst [vmem:[#allocation2 + $0x30] sm:$0xff] 0.0
          %423 = vst [vmem:[#allocation2 + $0x38] sm:$0xff] 0.0
          %424 = vst [vmem:[#allocation2 + $0x40] sm:$0xff] 0.0
          %425 = vst [vmem:[#allocation2 + $0x48] sm:$0xff] 0.0
          %426 = vst [vmem:[#allocation2 + $0x50] sm:$0xff] 0.0
          %427 = vst [vmem:[#allocation2 + $0x58] sm:$0xff] 0.0
          %428 = vst [vmem:[#allocation2 + $0x60] sm:$0xff] 0.0
          %429 = vst [vmem:[#allocation2 + $0x68] sm:$0xff] 0.0
          %430 = vst [vmem:[#allocation2 + $0x70] sm:$0xff] 0.0
          %431 = vst [vmem:[#allocation2 + $0x78] sm:$0xff] 0.0
          %432 = vst [vmem:[#allocation2 + $0x80] sm:$0xff] 0.0
          %433 = vst [vmem:[#allocation2 + $0x88] sm:$0xff] 0.0
          %434 = vst [vmem:[#allocation2 + $0x90] sm:$0xff] 0.0
          %435 = vst [vmem:[#allocation2 + $0x98] sm:$0xff] 0.0
          %436 = vst [vmem:[#allocation2 + $0xa0] sm:$0xff] 0.0
          %437 = vst [vmem:[#allocation2 + $0xa8] sm:$0xff] 0.0
          %438 = vst [vmem:[#allocation2 + $0xb0] sm:$0xff] 0.0
          %439 = vst [vmem:[#allocation2 + $0xb8] sm:$0xff] 0.0
          %440 = vst [vmem:[#allocation2 + $0xc0] sm:$0xff] 0.0
          %441 = vst [vmem:[#allocation2 + $0xc8] sm:$0xff] 0.0
          %442 = vst [vmem:[#allocation2 + $0xd0] sm:$0xff] 0.0
          %443 = vst [vmem:[#allocation2 + $0xd8] sm:$0xff] 0.0
          %444 = vst [vmem:[#allocation2 + $0xe0] sm:$0xff] 0.0
          %445 = vst [vmem:[#allocation2 + $0xe8] sm:$0xff] 0.0
          %446 = vst [vmem:[#allocation2 + $0xf0] sm:$0xff] 0.0
          %447 = vst [vmem:[#allocation2 + $0xf8] sm:$0xff] 0.0
          %448 = vst [vmem:[#allocation2 + $0x100] sm:$0xff] 0.0
          %449 = vst [vmem:[#allocation2 + $0x108] sm:$0xff] 0.0
          %450 = vst [vmem:[#allocation2 + $0x110] sm:$0xff] 0.0
          %451 = vst [vmem:[#allocation2 + $0x118] sm:$0xff] 0.0
          %452 = vst [vmem:[#allocation2 + $0x120] sm:$0xff] 0.0
          %453 = vst [vmem:[#allocation2 + $0x128] sm:$0xff] 0.0
          %454 = vst [vmem:[#allocation2 + $0x130] sm:$0xff] 0.0
          %455 = vst [vmem:[#allocation2 + $0x138] sm:$0xff] 0.0
          %456 = vst [vmem:[#allocation2 + $0x140] sm:$0xff] 0.0
          %457 = vst [vmem:[#allocation2 + $0x148] sm:$0xff] 0.0
          %458 = vst [vmem:[#allocation2 + $0x150] sm:$0xff] 0.0
          %459 = vst [vmem:[#allocation2 + $0x158] sm:$0xff] 0.0
          %460 = vst [vmem:[#allocation2 + $0x160] sm:$0xff] 0.0
          %461 = vst [vmem:[#allocation2 + $0x168] sm:$0xff] 0.0
          %462 = vst [vmem:[#allocation2 + $0x170] sm:$0xff] 0.0
          %463 = vst [vmem:[#allocation2 + $0x178] sm:$0xff] 0.0
          %464 = vst [vmem:[#allocation2 + $0x180] sm:$0xff] 0.0
          %465 = vst [vmem:[#allocation2 + $0x188] sm:$0xff] 0.0
          %466 = vst [vmem:[#allocation2 + $0x190] sm:$0xff] 0.0
          %467 = vst [vmem:[#allocation2 + $0x198] sm:$0xff] 0.0
        $region77: #{_lambda_.27} parent=68 // pred_fallthru
          _
        %v468 = vld [vmem:[#allocation2] sm:$0xff]
        %v469 = vld [vmem:[#allocation2 + $0x8] sm:$0xff]
        %v470 = vld [vmem:[#allocation2 + $0x10] sm:$0xff]
        %v471 = vld [vmem:[#allocation2 + $0x18] sm:$0xff]
        %v472 = vld [vmem:[#allocation2 + $0x20] sm:$0xff]
        %v473 = vld [vmem:[#allocation2 + $0x28] sm:$0xff]
        %v474 = vld [vmem:[#allocation2 + $0x30] sm:$0xff]
        %v475 = vld [vmem:[#allocation2 + $0x38] sm:$0xff]
        %v476 = vld [vmem:[#allocation2 + $0x40] sm:$0xff]
        %v477 = vld [vmem:[#allocation2 + $0x48] sm:$0xff]
        %v478 = vld [vmem:[#allocation2 + $0x50] sm:$0xff]
        %v479 = vld [vmem:[#allocation2 + $0x58] sm:$0xff]
        %v480 = vld [vmem:[#allocation2 + $0x60] sm:$0xff]
        %v481 = vld [vmem:[#allocation2 + $0x68] sm:$0xff]
        %v482 = vld [vmem:[#allocation2 + $0x70] sm:$0xff]
        %v483 = vld [vmem:[#allocation2 + $0x78] sm:$0xff]
        %v484 = vld [vmem:[#allocation2 + $0x80] sm:$0xff]
        %v485 = vld [vmem:[#allocation2 + $0x88] sm:$0xff]
        %v486 = vld [vmem:[#allocation2 + $0x90] sm:$0xff]
        %v487 = vld [vmem:[#allocation2 + $0x98] sm:$0xff]
        %v488 = vld [vmem:[#allocation2 + $0xa0] sm:$0xff]
        %v489 = vld [vmem:[#allocation2 + $0xa8] sm:$0xff]
        %v490 = vld [vmem:[#allocation2 + $0xb0] sm:$0xff]
        %v491 = vld [vmem:[#allocation2 + $0xb8] sm:$0xff]
        %v492 = vld [vmem:[#allocation2 + $0xc0] sm:$0xff]
        %v493 = vld [vmem:[#allocation2 + $0xc8] sm:$0xff]
        %v494 = vld [vmem:[#allocation2 + $0xd0] sm:$0xff]
        %v495 = vld [vmem:[#allocation2 + $0xd8] sm:$0xff]
        %v496 = vld [vmem:[#allocation2 + $0xe0] sm:$0xff]
        %v497 = vld [vmem:[#allocation2 + $0xe8] sm:$0xff]
        %v498 = vld [vmem:[#allocation2 + $0xf0] sm:$0xff]
        %v499 = vld [vmem:[#allocation2 + $0xf8] sm:$0xff]
        %v500 = vld [vmem:[#allocation2 + $0x100] sm:$0xff]
        %v501 = vld [vmem:[#allocation2 + $0x108] sm:$0xff]
        %v502 = vld [vmem:[#allocation2 + $0x110] sm:$0xff]
        %v503 = vld [vmem:[#allocation2 + $0x118] sm:$0xff]
        %v504 = vld [vmem:[#allocation2 + $0x120] sm:$0xff]
        %v505 = vld [vmem:[#allocation2 + $0x128] sm:$0xff]
        %v506 = vld [vmem:[#allocation2 + $0x130] sm:$0xff]
        %v507 = vld [vmem:[#allocation2 + $0x138] sm:$0xff]
        %v508 = vld [vmem:[#allocation2 + $0x140] sm:$0xff]
        %v509 = vld [vmem:[#allocation2 + $0x148] sm:$0xff]
        %v510 = vld [vmem:[#allocation2 + $0x150] sm:$0xff]
        %v511 = vld [vmem:[#allocation2 + $0x158] sm:$0xff]
        %v512 = vld [vmem:[#allocation2 + $0x160] sm:$0xff]
        %v513 = vld [vmem:[#allocation2 + $0x168] sm:$0xff]
        %v514 = vld [vmem:[#allocation2 + $0x170] sm:$0xff]
        %v515 = vld [vmem:[#allocation2 + $0x178] sm:$0xff]
        %v516 = vld [vmem:[#allocation2 + $0x180] sm:$0xff]
        %v517 = vld [vmem:[#allocation2 + $0x188] sm:$0xff]
        %v518 = vld [vmem:[#allocation2 + $0x190] sm:$0xff]
        %v519 = vld [vmem:[#allocation2 + $0x198] sm:$0xff]
        %v520 = vld [vmem:[%s341] sm:$0xf]
        %v521 = vld [vmem:[%s341 + $0x4] sm:$0xf]
        %v522 = vld [vmem:[%s341 + $0x8] sm:$0xf]
        %v523 = vld [vmem:[%s341 + $0xc] sm:$0xf]
        %v524 = vld [vmem:[%s341 + $0x10] sm:$0xf]
        %v525 = vld [vmem:[%s341 + $0x14] sm:$0xf]
        %v526 = vld [vmem:[%s341 + $0x18] sm:$0xf]
        %v527 = vld [vmem:[%s341 + $0x1c] sm:$0xf]
        %v528 = vld [vmem:[%s341 + $0x20] sm:$0xf]
        %v529 = vld [vmem:[%s341 + $0x24] sm:$0xf]
        %v530 = vld [vmem:[%s341 + $0x28] sm:$0xf]
        %v531 = vld [vmem:[%s341 + $0x2c] sm:$0xf]
        %v532 = vld [vmem:[%s341 + $0x30] sm:$0xf]
        %v533 = vld [vmem:[%s341 + $0x34] sm:$0xf]
        %v534 = vld [vmem:[%s341 + $0x38] sm:$0xf]
        %v535 = vld [vmem:[%s341 + $0x3c] sm:$0xf]
        %v536 = vld [vmem:[%s341 + $0x40] sm:$0xf]
        %v537 = vld [vmem:[%s341 + $0x44] sm:$0xf]
        %v538 = vld [vmem:[%s341 + $0x48] sm:$0xf]
        %v539 = vld [vmem:[%s341 + $0x4c] sm:$0xf]
        %v540 = vld [vmem:[%s341 + $0x50] sm:$0xf]
        %v541 = vld [vmem:[%s341 + $0x54] sm:$0xf]
        %v542 = vld [vmem:[%s341 + $0x58] sm:$0xf]
        %v543 = vld [vmem:[%s341 + $0x5c] sm:$0xf]
        %v544 = vld [vmem:[%s341 + $0x60] sm:$0xf]
        %v545 = vld [vmem:[%s341 + $0x64] sm:$0xf]
        %v546 = vld [vmem:[%s391] sm:$0xff]
        %v547 = vld [vmem:[%s391 + $0x8] sm:$0xff]
        %v548 = vld [vmem:[%s391 + $0x10] sm:$0xff]
        %v549 = vld [vmem:[%s391 + $0x18] sm:$0xff]
        %v550 = vld [vmem:[%s391 + $0x20] sm:$0xff]
        %v551 = vld [vmem:[%s391 + $0x28] sm:$0xff]
        %v552 = vld [vmem:[%s391 + $0x30] sm:$0xff]
        %v553 = vld [vmem:[%s391 + $0x38] sm:$0xff]
        %v554 = vld [vmem:[%s391 + $0x40] sm:$0xff]
        %v555 = vld [vmem:[%s391 + $0x48] sm:$0xff]
        %v556 = vld [vmem:[%s391 + $0x50] sm:$0xff]
        %v557 = vld [vmem:[%s391 + $0x58] sm:$0xff]
        %v558 = vld [vmem:[%s391 + $0x60] sm:$0xff]
        %v559 = vld [vmem:[%s391 + $0x68] sm:$0xff]
        %v560 = vld [vmem:[%s391 + $0x70] sm:$0xff]
        %v561 = vld [vmem:[%s391 + $0x78] sm:$0xff]
        %v588 = vunpack.c.l.b16 %v520
        %v589 = vunpack.c.l.b16 %v521
        %v590 = vunpack.c.l.b16 %v522
        %v591 = vunpack.c.l.b16 %v523
        %v592 = vunpack.c.l.b16 %v524
        %v593 = vunpack.c.l.b16 %v525
        %v594 = vunpack.c.l.b16 %v526
        %v595 = vunpack.c.l.b16 %v527
        %v596 = vunpack.c.l.b16 %v528
        %v597 = vunpack.c.l.b16 %v529
        %v598 = vunpack.c.l.b16 %v530
        %v599 = vunpack.c.l.b16 %v531
        %v600 = vunpack.c.l.b16 %v532
        %v601 = vunpack.c.l.b16 %v533
        %v602 = vunpack.c.l.b16 %v534
        %v603 = vunpack.c.l.b16 %v535
        %v604 = vunpack.c.l.b16 %v536
        %v605 = vunpack.c.l.b16 %v537
        %v606 = vunpack.c.l.b16 %v538
        %v607 = vunpack.c.l.b16 %v539
        %v608 = vunpack.c.l.b16 %v540
        %v609 = vunpack.c.l.b16 %v541
        %v610 = vunpack.c.l.b16 %v542
        %v611 = vunpack.c.l.b16 %v543
        %v612 = vunpack.c.l.b16 %v544
        %v613 = vunpack.c.l.b16 %v545
        %v614 = vpack.c.b16 %v589, %v588
        %v615 = vpack.c.b16 %v591, %v590
        %v616 = vpack.c.b16 %v593, %v592
        %v617 = vpack.c.b16 %v595, %v594
        %v618 = vpack.c.b16 %v597, %v596
        %v619 = vpack.c.b16 %v599, %v598
        %v620 = vpack.c.b16 %v601, %v600
        %v621 = vpack.c.b16 %v603, %v602
        %v622 = vpack.c.b16 %v605, %v604
        %v623 = vpack.c.b16 %v607, %v606
        %v624 = vpack.c.b16 %v609, %v608
        %v625 = vpack.c.b16 %v611, %v610
        %v626 = vpack.c.b16 %v613, %v612
        %v656 = vunpack.c.l.b16 %v546
        %v657 = vunpack.c.h.b16 %v546
        %v658 = vunpack.c.l.b16 %v547
        %v659 = vunpack.c.h.b16 %v547
        %v660 = vunpack.c.l.b16 %v548
        %v661 = vunpack.c.h.b16 %v548
        %v662 = vunpack.c.l.b16 %v549
        %v663 = vunpack.c.h.b16 %v549
        %v664 = vunpack.c.l.b16 %v550
        %v665 = vunpack.c.h.b16 %v550
        %v666 = vunpack.c.l.b16 %v551
        %v667 = vunpack.c.h.b16 %v551
        %v668 = vunpack.c.l.b16 %v552
        %v669 = vunpack.c.h.b16 %v552
        %v670 = vunpack.c.l.b16 %v553
        %v671 = vunpack.c.h.b16 %v553
        %v672 = vunpack.c.l.b16 %v554
        %v673 = vunpack.c.h.b16 %v554
        %v674 = vunpack.c.l.b16 %v555
        %v675 = vunpack.c.h.b16 %v555
        %v676 = vunpack.c.l.b16 %v556
        %v677 = vunpack.c.h.b16 %v556
        %v678 = vunpack.c.l.b16 %v557
        %v679 = vunpack.c.h.b16 %v557
        %v680 = vunpack.c.l.b16 %v558
        %v681 = vunpack.c.h.b16 %v558
        %v682 = vunpack.c.l.b16 %v559
        %v683 = vunpack.c.h.b16 %v559
        %v684 = vunpack.c.l.b16 %v560
        %v685 = vunpack.c.h.b16 %v560
        %v686 = vunpack.c.l.b16 %v561
        %v687 = vunpack.c.h.b16 %v561
        %v688 = vpack.c.b16 %v658, %v656
        %v689 = vpack.c.b16 %v659, %v657
        %v690 = vpack.c.b16 %v662, %v660
        %v691 = vpack.c.b16 %v663, %v661
        %v692 = vpack.c.b16 %v666, %v664
        %v693 = vpack.c.b16 %v667, %v665
        %v694 = vpack.c.b16 %v670, %v668
        %v695 = vpack.c.b16 %v671, %v669
        %v696 = vpack.c.b16 %v674, %v672
        %v697 = vpack.c.b16 %v675, %v673
        %v698 = vpack.c.b16 %v678, %v676
        %v699 = vpack.c.b16 %v679, %v677
        %v700 = vpack.c.b16 %v682, %v680
        %v701 = vpack.c.b16 %v683, %v681
        %v702 = vpack.c.b16 %v686, %v684
        %v703 = vpack.c.b16 %v687, %v685
        %720 = vmatprep.subr.bf16.mxu0 %v689
        %721 = vmatpush1.bf16.msra.mxu0 %v688
        %722 = vmatprep.subr.bf16.mxu0 %v691
        %723 = vmatpush1.bf16.msra.mxu0 %v690
        %724 = vmatprep.subr.bf16.mxu0 %v693
        %725 = vmatpush1.bf16.msra.mxu0 %v692
        %726 = vmatprep.subr.bf16.mxu0 %v695
        %727 = vmatpush1.bf16.msra.mxu0 %v694
        %728 = vmatprep.subr.bf16.mxu0 %v697
        %729 = vmatpush1.bf16.msra.mxu0 %v696
        %730 = vmatprep.subr.bf16.mxu0 %v699
        %731 = vmatpush1.bf16.msra.mxu0 %v698
        %732 = vmatprep.subr.bf16.mxu0 %v701
        %733 = vmatpush1.bf16.msra.mxu0 %v700
        %734 = vmatprep.subr.bf16.mxu0 %v703
        %735 = vmatpush1.bf16.msra.mxu0 %v702
        %736 = vmatprep.subr.bf16.mxu0 0
        %737 = vmatpush1.bf16.msra.mxu0 0
        %738 = vmatprep.subr.bf16.mxu0 0
        %739 = vmatpush1.bf16.msra.mxu0 0
        %740 = vmatprep.subr.bf16.mxu0 0
        %741 = vmatpush1.bf16.msra.mxu0 0
        %742 = vmatprep.subr.bf16.mxu0 0
        %743 = vmatpush1.bf16.msra.mxu0 0
        %744 = vmatprep.subr.bf16.mxu0 0
        %745 = vmatpush1.bf16.msra.mxu0 0
        %746 = vmatprep.subr.bf16.mxu0 0
        %747 = vmatpush1.bf16.msra.mxu0 0
        %748 = vmatprep.subr.bf16.mxu0 0
        %749 = vmatpush1.bf16.msra.mxu0 0
        %750 = vmatprep.subr.bf16.mxu0 0
        %751 = vmatpush1.bf16.msra.mxu0 0
        %752 = vmatprep.mubr.bf16.mxu0 0
        %753 = vmatmul.mubr.bf16.gmra.mrb[0].mxu0 %v614
        %v754 = vpop.f32.mrb[0].mxu0
        %v755 = vadd.f32 0.0, %v754
        %v756 = vpop.f32.mrb[0].mxu0
        %v757 = vadd.f32 0.0, %v756
        %v758 = vpop.f32.mrb[0].mxu0
        %v759 = vadd.f32 0.0, %v758
        %v760 = vpop.f32.mrb[0].mxu0
        %v761 = vadd.f32 0.0, %v760
        %762 = vmatprep.mubr.bf16.mxu0 0
        %763 = vmatmul.mubr.bf16.gmra.mrb[0].mxu0 %v615
        %v764 = vpop.f32.mrb[0].mxu0
        %v765 = vadd.f32 0.0, %v764
        %v766 = vpop.f32.mrb[0].mxu0
        %v767 = vadd.f32 0.0, %v766
        %v768 = vpop.f32.mrb[0].mxu0
        %v769 = vadd.f32 0.0, %v768
        %v770 = vpop.f32.mrb[0].mxu0
        %v771 = vadd.f32 0.0, %v770
        %772 = vmatprep.mubr.bf16.mxu0 0
        %773 = vmatmul.mubr.bf16.gmra.mrb[0].mxu0 %v616
        %v774 = vpop.f32.mrb[0].mxu0
        %v775 = vadd.f32 0.0, %v774
        %v776 = vpop.f32.mrb[0].mxu0
        %v777 = vadd.f32 0.0, %v776
        %v778 = vpop.f32.mrb[0].mxu0
        %v779 = vadd.f32 0.0, %v778
        %v780 = vpop.f32.mrb[0].mxu0
        %v781 = vadd.f32 0.0, %v780
        %782 = vmatprep.mubr.bf16.mxu0 0
        %783 = vmatmul.mubr.bf16.gmra.mrb[0].mxu0 %v617
        %v784 = vpop.f32.mrb[0].mxu0
        %v785 = vadd.f32 0.0, %v784
        %v786 = vpop.f32.mrb[0].mxu0
        %v787 = vadd.f32 0.0, %v786
        %v788 = vpop.f32.mrb[0].mxu0
        %v789 = vadd.f32 0.0, %v788
        %v790 = vpop.f32.mrb[0].mxu0
        %v791 = vadd.f32 0.0, %v790
        %792 = vmatprep.mubr.bf16.mxu0 0
        %793 = vmatmul.mubr.bf16.gmra.mrb[0].mxu0 %v618
        %v794 = vpop.f32.mrb[0].mxu0
        %v795 = vadd.f32 0.0, %v794
        %v796 = vpop.f32.mrb[0].mxu0
        %v797 = vadd.f32 0.0, %v796
        %v798 = vpop.f32.mrb[0].mxu0
        %v799 = vadd.f32 0.0, %v798
        %v800 = vpop.f32.mrb[0].mxu0
        %v801 = vadd.f32 0.0, %v800
        %802 = vmatprep.mubr.bf16.mxu0 0
        %803 = vmatmul.mubr.bf16.gmra.mrb[0].mxu0 %v619
        %v804 = vpop.f32.mrb[0].mxu0
        %v805 = vadd.f32 0.0, %v804
        %v806 = vpop.f32.mrb[0].mxu0
        %v807 = vadd.f32 0.0, %v806
        %v808 = vpop.f32.mrb[0].mxu0
        %v809 = vadd.f32 0.0, %v808
        %v810 = vpop.f32.mrb[0].mxu0
        %v811 = vadd.f32 0.0, %v810
        %812 = vmatprep.mubr.bf16.mxu0 0
        %813 = vmatmul.mubr.bf16.gmra.mrb[0].mxu0 %v620
        %v814 = vpop.f32.mrb[0].mxu0
        %v815 = vadd.f32 0.0, %v814
        %v816 = vpop.f32.mrb[0].mxu0
        %v817 = vadd.f32 0.0, %v816
        %v818 = vpop.f32.mrb[0].mxu0
        %v819 = vadd.f32 0.0, %v818
        %v820 = vpop.f32.mrb[0].mxu0
        %v821 = vadd.f32 0.0, %v820
        %822 = vmatprep.mubr.bf16.mxu0 0
        %823 = vmatmul.mubr.bf16.gmra.mrb[0].mxu0 %v621
        %v824 = vpop.f32.mrb[0].mxu0
        %v825 = vadd.f32 0.0, %v824
        %v826 = vpop.f32.mrb[0].mxu0
        %v827 = vadd.f32 0.0, %v826
        %v828 = vpop.f32.mrb[0].mxu0
        %v829 = vadd.f32 0.0, %v828
        %v830 = vpop.f32.mrb[0].mxu0
        %v831 = vadd.f32 0.0, %v830
        %832 = vmatprep.mubr.bf16.mxu0 0
        %833 = vmatmul.mubr.bf16.gmra.mrb[0].mxu0 %v622
        %v834 = vpop.f32.mrb[0].mxu0
        %v835 = vadd.f32 0.0, %v834
        %v836 = vpop.f32.mrb[0].mxu0
        %v837 = vadd.f32 0.0, %v836
        %v838 = vpop.f32.mrb[0].mxu0
        %v839 = vadd.f32 0.0, %v838
        %v840 = vpop.f32.mrb[0].mxu0
        %v841 = vadd.f32 0.0, %v840
        %842 = vmatprep.mubr.bf16.mxu0 0
        %843 = vmatmul.mubr.bf16.gmra.mrb[0].mxu0 %v623
        %v844 = vpop.f32.mrb[0].mxu0
        %v845 = vadd.f32 0.0, %v844
        %v846 = vpop.f32.mrb[0].mxu0
        %v847 = vadd.f32 0.0, %v846
        %v848 = vpop.f32.mrb[0].mxu0
        %v849 = vadd.f32 0.0, %v848
        %v850 = vpop.f32.mrb[0].mxu0
        %v851 = vadd.f32 0.0, %v850
        %852 = vmatprep.mubr.bf16.mxu0 0
        %853 = vmatmul.mubr.bf16.gmra.mrb[0].mxu0 %v624
        %v854 = vpop.f32.mrb[0].mxu0
        %v855 = vadd.f32 0.0, %v854
        %v856 = vpop.f32.mrb[0].mxu0
        %v857 = vadd.f32 0.0, %v856
        %v858 = vpop.f32.mrb[0].mxu0
        %v859 = vadd.f32 0.0, %v858
        %v860 = vpop.f32.mrb[0].mxu0
        %v861 = vadd.f32 0.0, %v860
        %862 = vmatprep.mubr.bf16.mxu0 0
        %863 = vmatmul.mubr.bf16.gmra.mrb[0].mxu0 %v625
        %v864 = vpop.f32.mrb[0].mxu0
        %v865 = vadd.f32 0.0, %v864
        %v866 = vpop.f32.mrb[0].mxu0
        %v867 = vadd.f32 0.0, %v866
        %v868 = vpop.f32.mrb[0].mxu0
        %v869 = vadd.f32 0.0, %v868
        %v870 = vpop.f32.mrb[0].mxu0
        %v871 = vadd.f32 0.0, %v870
        %872 = vmatprep.mubr.bf16.mxu0 0
        %873 = vmatmul.mubr.bf16.gmra.mrb[0].mxu0 %v626
        %v874 = vpop.f32.mrb[0].mxu0
        %v875 = vadd.f32 0.0, %v874
        %v876 = vpop.f32.mrb[0].mxu0
        %v877 = vadd.f32 0.0, %v876
        %v878 = vpop.f32.mrb[0].mxu0
        %v879 = vadd.f32 0.0, %v878
        %v880 = vpop.f32.mrb[0].mxu0
        %v881 = vadd.f32 0.0, %v880
        %882 = vdwg.mxu0
        %v883 = vadd.f32 %v468, %v755
        %v884 = vadd.f32 %v469, %v757
        %v885 = vadd.f32 %v470, %v759
        %v886 = vadd.f32 %v471, %v761
        %v887 = vadd.f32 %v472, %v765
        %v888 = vadd.f32 %v473, %v767
        %v889 = vadd.f32 %v474, %v769
        %v890 = vadd.f32 %v475, %v771
        %v891 = vadd.f32 %v476, %v775
        %v892 = vadd.f32 %v477, %v777
        %v893 = vadd.f32 %v478, %v779
        %v894 = vadd.f32 %v479, %v781
        %v895 = vadd.f32 %v480, %v785
        %v896 = vadd.f32 %v481, %v787
        %v897 = vadd.f32 %v482, %v789
        %v898 = vadd.f32 %v483, %v791
        %v899 = vadd.f32 %v484, %v795
        %v900 = vadd.f32 %v485, %v797
        %v901 = vadd.f32 %v486, %v799
        %v902 = vadd.f32 %v487, %v801
        %v903 = vadd.f32 %v488, %v805
        %v904 = vadd.f32 %v489, %v807
        %v905 = vadd.f32 %v490, %v809
        %v906 = vadd.f32 %v491, %v811
        %v907 = vadd.f32 %v492, %v815
        %v908 = vadd.f32 %v493, %v817
        %v909 = vadd.f32 %v494, %v819
        %v910 = vadd.f32 %v495, %v821
        %v911 = vadd.f32 %v496, %v825
        %v912 = vadd.f32 %v497, %v827
        %v913 = vadd.f32 %v498, %v829
        %v914 = vadd.f32 %v499, %v831
        %v915 = vadd.f32 %v500, %v835
        %v916 = vadd.f32 %v501, %v837
        %v917 = vadd.f32 %v502, %v839
        %v918 = vadd.f32 %v503, %v841
        %v919 = vadd.f32 %v504, %v845
        %v920 = vadd.f32 %v505, %v847
        %v921 = vadd.f32 %v506, %v849
        %v922 = vadd.f32 %v507, %v851
        %v923 = vadd.f32 %v508, %v855
        %v924 = vadd.f32 %v509, %v857
        %v925 = vadd.f32 %v510, %v859
        %v926 = vadd.f32 %v511, %v861
        %v927 = vadd.f32 %v512, %v865
        %v928 = vadd.f32 %v513, %v867
        %v929 = vadd.f32 %v514, %v869
        %v930 = vadd.f32 %v515, %v871
        %v931 = vadd.f32 %v516, %v875
        %v932 = vadd.f32 %v517, %v877
        %v933 = vadd.f32 %v518, %v879
        %v934 = vadd.f32 %v519, %v881
        %935 = vst [vmem:[#allocation2] sm:$0xff] %v883
        %936 = vst [vmem:[#allocation2 + $0x8] sm:$0xff] %v884
        %937 = vst [vmem:[#allocation2 + $0x10] sm:$0xff] %v885
        %938 = vst [vmem:[#allocation2 + $0x18] sm:$0xff] %v886
        %939 = vst [vmem:[#allocation2 + $0x20] sm:$0xff] %v887
        %940 = vst [vmem:[#allocation2 + $0x28] sm:$0xff] %v888
        %941 = vst [vmem:[#allocation2 + $0x30] sm:$0xff] %v889
        %942 = vst [vmem:[#allocation2 + $0x38] sm:$0xff] %v890
        %943 = vst [vmem:[#allocation2 + $0x40] sm:$0xff] %v891
        %944 = vst [vmem:[#allocation2 + $0x48] sm:$0xff] %v892
        %945 = vst [vmem:[#allocation2 + $0x50] sm:$0xff] %v893
        %946 = vst [vmem:[#allocation2 + $0x58] sm:$0xff] %v894
        %947 = vst [vmem:[#allocation2 + $0x60] sm:$0xff] %v895
        %948 = vst [vmem:[#allocation2 + $0x68] sm:$0xff] %v896
        %949 = vst [vmem:[#allocation2 + $0x70] sm:$0xff] %v897
        %950 = vst [vmem:[#allocation2 + $0x78] sm:$0xff] %v898
        %951 = vst [vmem:[#allocation2 + $0x80] sm:$0xff] %v899
        %952 = vst [vmem:[#allocation2 + $0x88] sm:$0xff] %v900
        %953 = vst [vmem:[#allocation2 + $0x90] sm:$0xff] %v901
        %954 = vst [vmem:[#allocation2 + $0x98] sm:$0xff] %v902
        %955 = vst [vmem:[#allocation2 + $0xa0] sm:$0xff] %v903
        %956 = vst [vmem:[#allocation2 + $0xa8] sm:$0xff] %v904
        %957 = vst [vmem:[#allocation2 + $0xb0] sm:$0xff] %v905
        %958 = vst [vmem:[#allocation2 + $0xb8] sm:$0xff] %v906
        %959 = vst [vmem:[#allocation2 + $0xc0] sm:$0xff] %v907
        %960 = vst [vmem:[#allocation2 + $0xc8] sm:$0xff] %v908
        %961 = vst [vmem:[#allocation2 + $0xd0] sm:$0xff] %v909
        %962 = vst [vmem:[#allocation2 + $0xd8] sm:$0xff] %v910
        %963 = vst [vmem:[#allocation2 + $0xe0] sm:$0xff] %v911
        %964 = vst [vmem:[#allocation2 + $0xe8] sm:$0xff] %v912
        %965 = vst [vmem:[#allocation2 + $0xf0] sm:$0xff] %v913
        %966 = vst [vmem:[#allocation2 + $0xf8] sm:$0xff] %v914
        %967 = vst [vmem:[#allocation2 + $0x100] sm:$0xff] %v915
        %968 = vst [vmem:[#allocation2 + $0x108] sm:$0xff] %v916
        %969 = vst [vmem:[#allocation2 + $0x110] sm:$0xff] %v917
        %970 = vst [vmem:[#allocation2 + $0x118] sm:$0xff] %v918
        %971 = vst [vmem:[#allocation2 + $0x120] sm:$0xff] %v919
        %972 = vst [vmem:[#allocation2 + $0x128] sm:$0xff] %v920
        %973 = vst [vmem:[#allocation2 + $0x130] sm:$0xff] %v921
        %974 = vst [vmem:[#allocation2 + $0x138] sm:$0xff] %v922
        %975 = vst [vmem:[#allocation2 + $0x140] sm:$0xff] %v923
        %976 = vst [vmem:[#allocation2 + $0x148] sm:$0xff] %v924
        %977 = vst [vmem:[#allocation2 + $0x150] sm:$0xff] %v925
        %978 = vst [vmem:[#allocation2 + $0x158] sm:$0xff] %v926
        %979 = vst [vmem:[#allocation2 + $0x160] sm:$0xff] %v927
        %980 = vst [vmem:[#allocation2 + $0x168] sm:$0xff] %v928
        %981 = vst [vmem:[#allocation2 + $0x170] sm:$0xff] %v929
        %982 = vst [vmem:[#allocation2 + $0x178] sm:$0xff] %v930
        %983 = vst [vmem:[#allocation2 + $0x180] sm:$0xff] %v931
        %984 = vst [vmem:[#allocation2 + $0x188] sm:$0xff] %v932
        %985 = vst [vmem:[#allocation2 + $0x190] sm:$0xff] %v933
        %986 = vst [vmem:[#allocation2 + $0x198] sm:$0xff] %v934
        %p987 = scmp.eq.s32.totalorder %s21, 24
        // Predicated region
        $region78: #{_lambda_.27} parent=68 // pred_check
          %p988 = pneg %p987
        $region79: #{_lambda_.27} parent=68 // pred_check_branch
          %990 = sbr.rel (%p988) target = $region81
        $region80: #{_lambda_.27} parent=68 // pred_region
          %v991 = vld [vmem:[#allocation2] sm:$0xff]
          %v992 = vld [vmem:[#allocation2 + $0x8] sm:$0xff]
          %v993 = vld [vmem:[#allocation2 + $0x10] sm:$0xff]
          %v994 = vld [vmem:[#allocation2 + $0x18] sm:$0xff]
          %v995 = vld [vmem:[#allocation2 + $0x20] sm:$0xff]
          %v996 = vld [vmem:[#allocation2 + $0x28] sm:$0xff]
          %v997 = vld [vmem:[#allocation2 + $0x30] sm:$0xff]
          %v998 = vld [vmem:[#allocation2 + $0x38] sm:$0xff]
          %v999 = vld [vmem:[#allocation2 + $0x40] sm:$0xff]
          %v1000 = vld [vmem:[#allocation2 + $0x48] sm:$0xff]
          %v1001 = vld [vmem:[#allocation2 + $0x50] sm:$0xff]
          %v1002 = vld [vmem:[#allocation2 + $0x58] sm:$0xff]
          %v1003 = vld [vmem:[#allocation2 + $0x60] sm:$0xff]
          %v1004 = vld [vmem:[#allocation2 + $0x68] sm:$0xff]
          %v1005 = vld [vmem:[#allocation2 + $0x70] sm:$0xff]
          %v1006 = vld [vmem:[#allocation2 + $0x78] sm:$0xff]
          %v1007 = vld [vmem:[#allocation2 + $0x80] sm:$0xff]
          %v1008 = vld [vmem:[#allocation2 + $0x88] sm:$0xff]
          %v1009 = vld [vmem:[#allocation2 + $0x90] sm:$0xff]
          %v1010 = vld [vmem:[#allocation2 + $0x98] sm:$0xff]
          %v1011 = vld [vmem:[#allocation2 + $0xa0] sm:$0xff]
          %v1012 = vld [vmem:[#allocation2 + $0xa8] sm:$0xff]
          %v1013 = vld [vmem:[#allocation2 + $0xb0] sm:$0xff]
          %v1014 = vld [vmem:[#allocation2 + $0xb8] sm:$0xff]
          %v1015 = vld [vmem:[#allocation2 + $0xc0] sm:$0xff]
          %v1016 = vld [vmem:[#allocation2 + $0xc8] sm:$0xff]
          %v1017 = vld [vmem:[#allocation2 + $0xd0] sm:$0xff]
          %v1018 = vld [vmem:[#allocation2 + $0xd8] sm:$0xff]
          %v1019 = vld [vmem:[#allocation2 + $0xe0] sm:$0xff]
          %v1020 = vld [vmem:[#allocation2 + $0xe8] sm:$0xff]
          %v1021 = vld [vmem:[#allocation2 + $0xf0] sm:$0xff]
          %v1022 = vld [vmem:[#allocation2 + $0xf8] sm:$0xff]
          %v1023 = vld [vmem:[#allocation2 + $0x100] sm:$0xff]
          %v1024 = vld [vmem:[#allocation2 + $0x108] sm:$0xff]
          %v1025 = vld [vmem:[#allocation2 + $0x110] sm:$0xff]
          %v1026 = vld [vmem:[#allocation2 + $0x118] sm:$0xff]
          %v1027 = vld [vmem:[#allocation2 + $0x120] sm:$0xff]
          %v1028 = vld [vmem:[#allocation2 + $0x128] sm:$0xff]
          %v1029 = vld [vmem:[#allocation2 + $0x130] sm:$0xff]
          %v1030 = vld [vmem:[#allocation2 + $0x138] sm:$0xff]
          %v1031 = vld [vmem:[#allocation2 + $0x140] sm:$0xff]
          %v1032 = vld [vmem:[#allocation2 + $0x148] sm:$0xff]
          %v1033 = vld [vmem:[#allocation2 + $0x150] sm:$0xff]
          %v1034 = vld [vmem:[#allocation2 + $0x158] sm:$0xff]
          %v1035 = vld [vmem:[#allocation2 + $0x160] sm:$0xff]
          %v1036 = vld [vmem:[#allocation2 + $0x168] sm:$0xff]
          %v1037 = vld [vmem:[#allocation2 + $0x170] sm:$0xff]
          %v1038 = vld [vmem:[#allocation2 + $0x178] sm:$0xff]
          %v1039 = vld [vmem:[#allocation2 + $0x180] sm:$0xff]
          %v1040 = vld [vmem:[#allocation2 + $0x188] sm:$0xff]
          %v1041 = vld [vmem:[#allocation2 + $0x190] sm:$0xff]
          %v1042 = vld [vmem:[#allocation2 + $0x198] sm:$0xff]
          %v1043 = vld [vmem:[%s397] sm:$0x3]
          %v1045 = vlaneseq
          %v1046 = vshrl.u32 %v1045, 7
          %v1047 = vsub.s32 0, %v1046
          %v1048 = vrot.slane %v1043, %v1047
          %v1049 = vlaneseq
          %v1050 = vshrl.u32 %v1049, 7
          %v1051 = vsub.s32 1, %v1050
          %v1052 = vrot.slane %v1043, %v1051
          %v1055 = vadd.f32 %v991, %v1048
          %v1056 = vadd.f32 %v992, %v1052
          %v1057 = vadd.f32 %v993, %v1048
          %v1058 = vadd.f32 %v994, %v1052
          %v1059 = vadd.f32 %v995, %v1048
          %v1060 = vadd.f32 %v996, %v1052
          %v1061 = vadd.f32 %v997, %v1048
          %v1062 = vadd.f32 %v998, %v1052
          %v1063 = vadd.f32 %v999, %v1048
          %v1064 = vadd.f32 %v1000, %v1052
          %v1065 = vadd.f32 %v1001, %v1048
          %v1066 = vadd.f32 %v1002, %v1052
          %v1067 = vadd.f32 %v1003, %v1048
          %v1068 = vadd.f32 %v1004, %v1052
          %v1069 = vadd.f32 %v1005, %v1048
          %v1070 = vadd.f32 %v1006, %v1052
          %v1071 = vadd.f32 %v1007, %v1048
          %v1072 = vadd.f32 %v1008, %v1052
          %v1073 = vadd.f32 %v1009, %v1048
          %v1074 = vadd.f32 %v1010, %v1052
          %v1075 = vadd.f32 %v1011, %v1048
          %v1076 = vadd.f32 %v1012, %v1052
          %v1077 = vadd.f32 %v1013, %v1048
          %v1078 = vadd.f32 %v1014, %v1052
          %v1079 = vadd.f32 %v1015, %v1048
          %v1080 = vadd.f32 %v1016, %v1052
          %v1081 = vadd.f32 %v1017, %v1048
          %v1082 = vadd.f32 %v1018, %v1052
          %v1083 = vadd.f32 %v1019, %v1048
          %v1084 = vadd.f32 %v1020, %v1052
          %v1085 = vadd.f32 %v1021, %v1048
          %v1086 = vadd.f32 %v1022, %v1052
          %v1087 = vadd.f32 %v1023, %v1048
          %v1088 = vadd.f32 %v1024, %v1052
          %v1089 = vadd.f32 %v1025, %v1048
          %v1090 = vadd.f32 %v1026, %v1052
          %v1091 = vadd.f32 %v1027, %v1048
          %v1092 = vadd.f32 %v1028, %v1052
          %v1093 = vadd.f32 %v1029, %v1048
          %v1094 = vadd.f32 %v1030, %v1052
          %v1095 = vadd.f32 %v1031, %v1048
          %v1096 = vadd.f32 %v1032, %v1052
          %v1097 = vadd.f32 %v1033, %v1048
          %v1098 = vadd.f32 %v1034, %v1052
          %v1099 = vadd.f32 %v1035, %v1048
          %v1100 = vadd.f32 %v1036, %v1052
          %v1101 = vadd.f32 %v1037, %v1048
          %v1102 = vadd.f32 %v1038, %v1052
          %v1103 = vadd.f32 %v1039, %v1048
          %v1104 = vadd.f32 %v1040, %v1052
          %v1105 = vadd.f32 %v1041, %v1048
          %v1106 = vadd.f32 %v1042, %v1052
          %v1107 = vmax.f32 %v1055, 0.0
          %v1108 = vmax.f32 %v1056, 0.0
          %v1109 = vmax.f32 %v1057, 0.0
          %v1110 = vmax.f32 %v1058, 0.0
          %v1111 = vmax.f32 %v1059, 0.0
          %v1112 = vmax.f32 %v1060, 0.0
          %v1113 = vmax.f32 %v1061, 0.0
          %v1114 = vmax.f32 %v1062, 0.0
          %v1115 = vmax.f32 %v1063, 0.0
          %v1116 = vmax.f32 %v1064, 0.0
          %v1117 = vmax.f32 %v1065, 0.0
          %v1118 = vmax.f32 %v1066, 0.0
          %v1119 = vmax.f32 %v1067, 0.0
          %v1120 = vmax.f32 %v1068, 0.0
          %v1121 = vmax.f32 %v1069, 0.0
          %v1122 = vmax.f32 %v1070, 0.0
          %v1123 = vmax.f32 %v1071, 0.0
          %v1124 = vmax.f32 %v1072, 0.0
          %v1125 = vmax.f32 %v1073, 0.0
          %v1126 = vmax.f32 %v1074, 0.0
          %v1127 = vmax.f32 %v1075, 0.0
          %v1128 = vmax.f32 %v1076, 0.0
          %v1129 = vmax.f32 %v1077, 0.0
          %v1130 = vmax.f32 %v1078, 0.0
          %v1131 = vmax.f32 %v1079, 0.0
          %v1132 = vmax.f32 %v1080, 0.0
          %v1133 = vmax.f32 %v1081, 0.0
          %v1134 = vmax.f32 %v1082, 0.0
          %v1135 = vmax.f32 %v1083, 0.0
          %v1136 = vmax.f32 %v1084, 0.0
          %v1137 = vmax.f32 %v1085, 0.0
          %v1138 = vmax.f32 %v1086, 0.0
          %v1139 = vmax.f32 %v1087, 0.0
          %v1140 = vmax.f32 %v1088, 0.0
          %v1141 = vmax.f32 %v1089, 0.0
          %v1142 = vmax.f32 %v1090, 0.0
          %v1143 = vmax.f32 %v1091, 0.0
          %v1144 = vmax.f32 %v1092, 0.0
          %v1145 = vmax.f32 %v1093, 0.0
          %v1146 = vmax.f32 %v1094, 0.0
          %v1147 = vmax.f32 %v1095, 0.0
          %v1148 = vmax.f32 %v1096, 0.0
          %v1149 = vmax.f32 %v1097, 0.0
          %v1150 = vmax.f32 %v1098, 0.0
          %v1151 = vmax.f32 %v1099, 0.0
          %v1152 = vmax.f32 %v1100, 0.0
          %v1153 = vmax.f32 %v1101, 0.0
          %v1154 = vmax.f32 %v1102, 0.0
          %v1155 = vmax.f32 %v1103, 0.0
          %v1156 = vmax.f32 %v1104, 0.0
          %v1157 = vmax.f32 %v1105, 0.0
          %v1158 = vmax.f32 %v1106, 0.0
          %v1159 = vpack.c.bf16 %v1109, %v1107
          %v1160 = vpack.c.bf16 %v1110, %v1108
          %v1161 = vpack.c.bf16 %v1113, %v1111
          %v1162 = vpack.c.bf16 %v1114, %v1112
          %v1163 = vpack.c.bf16 %v1117, %v1115
          %v1164 = vpack.c.bf16 %v1118, %v1116
          %v1165 = vpack.c.bf16 %v1121, %v1119
          %v1166 = vpack.c.bf16 %v1122, %v1120
          %v1167 = vpack.c.bf16 %v1125, %v1123
          %v1168 = vpack.c.bf16 %v1126, %v1124
          %v1169 = vpack.c.bf16 %v1129, %v1127
          %v1170 = vpack.c.bf16 %v1130, %v1128
          %v1171 = vpack.c.bf16 %v1133, %v1131
          %v1172 = vpack.c.bf16 %v1134, %v1132
          %v1173 = vpack.c.bf16 %v1137, %v1135
          %v1174 = vpack.c.bf16 %v1138, %v1136
          %v1175 = vpack.c.bf16 %v1141, %v1139
          %v1176 = vpack.c.bf16 %v1142, %v1140
          %v1177 = vpack.c.bf16 %v1145, %v1143
          %v1178 = vpack.c.bf16 %v1146, %v1144
          %v1179 = vpack.c.bf16 %v1149, %v1147
          %v1180 = vpack.c.bf16 %v1150, %v1148
          %v1181 = vpack.c.bf16 %v1153, %v1151
          %v1182 = vpack.c.bf16 %v1154, %v1152
          %v1183 = vpack.c.bf16 %v1157, %v1155
          %v1184 = vpack.c.bf16 %v1158, %v1156
          %v1211 = vunpack.c.l.b16 %v1159
          %v1212 = vunpack.c.l.b16 %v1160
          %v1213 = vunpack.c.h.b16 %v1159
          %v1214 = vunpack.c.h.b16 %v1160
          %v1215 = vunpack.c.l.b16 %v1161
          %v1216 = vunpack.c.l.b16 %v1162
          %v1217 = vunpack.c.h.b16 %v1161
          %v1218 = vunpack.c.h.b16 %v1162
          %v1219 = vunpack.c.l.b16 %v1163
          %v1220 = vunpack.c.l.b16 %v1164
          %v1221 = vunpack.c.h.b16 %v1163
          %v1222 = vunpack.c.h.b16 %v1164
          %v1223 = vunpack.c.l.b16 %v1165
          %v1224 = vunpack.c.l.b16 %v1166
          %v1225 = vunpack.c.h.b16 %v1165
          %v1226 = vunpack.c.h.b16 %v1166
          %v1227 = vunpack.c.l.b16 %v1167
          %v1228 = vunpack.c.l.b16 %v1168
          %v1229 = vunpack.c.h.b16 %v1167
          %v1230 = vunpack.c.h.b16 %v1168
          %v1231 = vunpack.c.l.b16 %v1169
          %v1232 = vunpack.c.l.b16 %v1170
          %v1233 = vunpack.c.h.b16 %v1169
          %v1234 = vunpack.c.h.b16 %v1170
          %v1235 = vunpack.c.l.b16 %v1171
          %v1236 = vunpack.c.l.b16 %v1172
          %v1237 = vunpack.c.h.b16 %v1171
          %v1238 = vunpack.c.h.b16 %v1172
          %v1239 = vunpack.c.l.b16 %v1173
          %v1240 = vunpack.c.l.b16 %v1174
          %v1241 = vunpack.c.h.b16 %v1173
          %v1242 = vunpack.c.h.b16 %v1174
          %v1243 = vunpack.c.l.b16 %v1175
          %v1244 = vunpack.c.l.b16 %v1176
          %v1245 = vunpack.c.h.b16 %v1175
          %v1246 = vunpack.c.h.b16 %v1176
          %v1247 = vunpack.c.l.b16 %v1177
          %v1248 = vunpack.c.l.b16 %v1178
          %v1249 = vunpack.c.h.b16 %v1177
          %v1250 = vunpack.c.h.b16 %v1178
          %v1251 = vunpack.c.l.b16 %v1179
          %v1252 = vunpack.c.l.b16 %v1180
          %v1253 = vunpack.c.h.b16 %v1179
          %v1254 = vunpack.c.h.b16 %v1180
          %v1255 = vunpack.c.l.b16 %v1181
          %v1256 = vunpack.c.l.b16 %v1182
          %v1257 = vunpack.c.h.b16 %v1181
          %v1258 = vunpack.c.h.b16 %v1182
          %v1259 = vunpack.c.l.b16 %v1183
          %v1260 = vunpack.c.l.b16 %v1184
          %v1261 = vunpack.c.h.b16 %v1183
          %v1262 = vunpack.c.h.b16 %v1184
          %v1263 = vpack.c.b16 %v1212, %v1211
          %v1264 = vpack.c.b16 %v1214, %v1213
          %v1265 = vpack.c.b16 %v1216, %v1215
          %v1266 = vpack.c.b16 %v1218, %v1217
          %v1267 = vpack.c.b16 %v1220, %v1219
          %v1268 = vpack.c.b16 %v1222, %v1221
          %v1269 = vpack.c.b16 %v1224, %v1223
          %v1270 = vpack.c.b16 %v1226, %v1225
          %v1271 = vpack.c.b16 %v1228, %v1227
          %v1272 = vpack.c.b16 %v1230, %v1229
          %v1273 = vpack.c.b16 %v1232, %v1231
          %v1274 = vpack.c.b16 %v1234, %v1233
          %v1275 = vpack.c.b16 %v1236, %v1235
          %v1276 = vpack.c.b16 %v1238, %v1237
          %v1277 = vpack.c.b16 %v1240, %v1239
          %v1278 = vpack.c.b16 %v1242, %v1241
          %v1279 = vpack.c.b16 %v1244, %v1243
          %v1280 = vpack.c.b16 %v1246, %v1245
          %v1281 = vpack.c.b16 %v1248, %v1247
          %v1282 = vpack.c.b16 %v1250, %v1249
          %v1283 = vpack.c.b16 %v1252, %v1251
          %v1284 = vpack.c.b16 %v1254, %v1253
          %v1285 = vpack.c.b16 %v1256, %v1255
          %v1286 = vpack.c.b16 %v1258, %v1257
          %v1287 = vpack.c.b16 %v1260, %v1259
          %v1288 = vpack.c.b16 %v1262, %v1261
          %1315 = vst [vmem:[%s408] sm:$0xff] %v1263
          %1316 = vst [vmem:[%s408 + $0x8] sm:$0xff] %v1264
          %1317 = vst [vmem:[%s408 + $0x10] sm:$0xff] %v1265
          %1318 = vst [vmem:[%s408 + $0x18] sm:$0xff] %v1266
          %1319 = vst [vmem:[%s408 + $0x20] sm:$0xff] %v1267
          %1320 = vst [vmem:[%s408 + $0x28] sm:$0xff] %v1268
          %1321 = vst [vmem:[%s408 + $0x30] sm:$0xff] %v1269
          %1322 = vst [vmem:[%s408 + $0x38] sm:$0xff] %v1270
          %1323 = vst [vmem:[%s408 + $0x40] sm:$0xff] %v1271
          %1324 = vst [vmem:[%s408 + $0x48] sm:$0xff] %v1272
          %1325 = vst [vmem:[%s408 + $0x50] sm:$0xff] %v1273
          %1326 = vst [vmem:[%s408 + $0x58] sm:$0xff] %v1274
          %1327 = vst [vmem:[%s408 + $0x60] sm:$0xff] %v1275
          %1328 = vst [vmem:[%s408 + $0x68] sm:$0xff] %v1276
          %1329 = vst [vmem:[%s408 + $0x70] sm:$0xff] %v1277
          %1330 = vst [vmem:[%s408 + $0x78] sm:$0xff] %v1278
          %1331 = vst [vmem:[%s408 + $0x80] sm:$0xff] %v1279
          %1332 = vst [vmem:[%s408 + $0x88] sm:$0xff] %v1280
          %1333 = vst [vmem:[%s408 + $0x90] sm:$0xff] %v1281
          %1334 = vst [vmem:[%s408 + $0x98] sm:$0xff] %v1282
          %1335 = vst [vmem:[%s408 + $0xa0] sm:$0xff] %v1283
          %1336 = vst [vmem:[%s408 + $0xa8] sm:$0xff] %v1284
          %1337 = vst [vmem:[%s408 + $0xb0] sm:$0xff] %v1285
          %1338 = vst [vmem:[%s408 + $0xb8] sm:$0xff] %v1286
          %1339 = vst [vmem:[%s408 + $0xc0] sm:$0xff] %v1287
          %1340 = vst [vmem:[%s408 + $0xc8] sm:$0xff] %v1288
        $region81: #{_lambda_.27} parent=68 // pred_fallthru
          _
        %s1341 = smul.u32 26, %s19
        %s1342 = smul.u32 2, %s20
        %p1343 = scmp.lt.s32.totalorder %s1341, 25
        %s1344 = scalar_select %p1343, %s1341, 25
        %p1345 = scmp.lt.s32.totalorder %s1342, 1
        %s1346 = scalar_select %p1345, %s1342, 1
        %s1347 = smul.addr %s1344, 2
        %s1348 = sadd.s32 %s1346, %s1347
        %s1349 = smul.addr %s1348, 4
        %s1350 = scalar_lea.vmem %s3, %s1349
        // Predicated region
        $region82: #{_lambda_.27} parent=68 // pred_check
          %p1351 = pneg %p135
        $region83: #{_lambda_.27} parent=68 // pred_check_branch
          %1353 = sbr.rel (%p1351) target = $region85
        $region84: #{_lambda_.27} parent=68 // pred_region
          %s1354 = smul.u32 26, %s19
          %s1355 = smul.u32 2, %s20
        $region85: #{_lambda_.27} parent=68 // pred_fallthru
          _
        // Predicated region
        $region86: #{_lambda_.27} parent=68 // pred_check
          %p1356 = pneg %p135
        $region87: #{_lambda_.27} parent=68 // pred_check_branch
          %1358 = sbr.rel (%p1356) target = $region89
        $region88: #{_lambda_.27} parent=68 // pred_region
          %s1359 = smul.u32 26, %s19
          %s1360 = smul.u32 2, %s20
          %p1361 = scmp.lt.s32.totalorder %s1359, 25
          %s1362 = scalar_select %p1361, %s1359, 25
          %p1363 = scmp.lt.s32.totalorder %s1360, 1
          %s1364 = scalar_select %p1363, %s1360, 1
          %s1365 = smul.addr %s1362, 2
          %s1366 = sadd.s32 %s1364, %s1365
          %s1367 = smul.addr %s1366, 4
          %s1368 = scalar_lea.vmem %s3, %s1367
        $region89: #{_lambda_.27} parent=68 // pred_fallthru
          _
      $region69: #{_lambda_.27} parent=5 // pred_fallthru
        _
      %p1369 = scmp.le.s32.totalorder 2, %s9
      // Predicated region
      $region90: #{_lambda_.27} parent=5 // pred_check
        %p1370 = pneg %p1369
      $region91: #{_lambda_.27} parent=5 // pred_check_branch
        %1372 = sbr.rel (%p1370) target = $region93
      $region92: #{_lambda_.27} parent=5 // pred_region
        %s1373 = ssub.s32 %s9, 2
      $region93: #{_lambda_.27} parent=5 // pred_fallthru
        _
    $region6: #{_lambda_.27} parent=1 // loop_footer
      %s13 = sadd.s32 1, %s9
    $region7: #{_lambda_.27} parent=1 // loop_footer_branch
      %8 = sbr.rel target = $region3
    $region8: #{_lambda_.27} parent=1 // loop_exit
      _

// kernel: _lambda_.28
$region0: #{_lambda_.28}
  #allocation0 [shape = 'u32[]', space=smem, size = 0x4, offset = 0x4, fixed_abs, tag = 'smem constant byte address 0x4 - core index']
  #allocation1 [shape = 'u32[144,128]{1,0:T(1,128)}', space=vmem, size = 0x12000, scoped, tag = 'internal scratch']
  %s0 = inlined_call_operand.vmem [shape: bf16[7,7,4,256], index: 0, kind: input, shape index: {}]
  %s1 = inlined_call_operand.vmem [shape: bf16[3,3,4,256], index: 1, kind: output, shape index: {}]
  %s2 = sld [smem:[#allocation0]]
  $region115: #{_lambda_.28} parent=0
    _
  %s4 = ssub.s32 1, %s2
  %s5 = scalar_select 0, %s4, %s2
  $region1: #{_lambda_.28} parent=0
    #allocation2 [shape = 'u8[100352]{0}', space=vmem, size = 0x18800, scoped, tag = 'input window, operand 0']
    #allocation3 [shape = 'u8[18432]{0}', space=vmem, size = 0x4800, scoped, tag = 'output window, operand 0']
    loop: start=0, step=1, limit=4
    $region2: #{_lambda_.28} parent=1 // loop_pre_header
      _
    $region3: #{_lambda_.28} parent=1 // loop_header
      %s7 = sphi 0, %s11
      %p8 = scmp.ge.s32.totalorder %s7, 4
      %s17 = sphi 0, %s19
      %s20 = sphi 0, %s17
      %s21 = sphi 0, %s20
      %s37 = sphi 0, %s21
      %s43 = sphi 0, %s45
      %s46 = sphi 0, %s43
      %s47 = sphi 0, %s46
      %s63 = sphi 0, %s47
    $region4: #{_lambda_.28} parent=1 // loop_header_branch
      %10 = sbr.rel (%p8) target = $region8
    $region5: #{_lambda_.28} parent=1 // loop_body
      %s12 = ssub.s32 %s7, 1
      %s13 = ssub.s32 %s7, 2
      %s14 = sadd.s32 %s7, 1
      %s15 = ssub.s32 %s7, %s14
      %p16 = scmp.eq.s32.totalorder %s15, 0
      %s18 = sadd.s32 %s17, 1
      %s19 = scalar_select %p16, %s17, %s18
      %p22 = pneg %p16
      %p23 = scmp.eq.s32.totalorder %s7, 1
      %p24 = por %p22, %p23
      %p25 = scmp.ne.s32.totalorder %s17, %s20
      %p26 = scmp.eq.s32.totalorder %s7, 0
      %p27 = por %p25, %p26
      %p28 = scmp.ne.s32.totalorder %s17, %s20
      %p29 = scmp.eq.s32.totalorder %s12, 1
      %p30 = por %p28, %p29
      %p31 = scmp.ne.s32.totalorder %s20, %s21
      %p32 = scmp.eq.s32.totalorder %s12, 0
      %p33 = por %p31, %p32
      %p34 = scmp.ne.s32.totalorder %s20, %s21
      %p35 = scmp.eq.s32.totalorder %s13, 1
      %p36 = por %p34, %p35
      %p38 = scmp.ne.s32.totalorder %s21, %s37
      %p39 = scmp.eq.s32.totalorder %s13, 0
      %p40 = por %p38, %p39
      %s41 = ssub.s32 %s7, %s14
      %p42 = scmp.eq.s32.totalorder %s41, 0
      %s44 = sadd.s32 %s43, 1
      %s45 = scalar_select %p42, %s43, %s44
      %p48 = pneg %p42
      %p49 = scmp.eq.s32.totalorder %s7, 1
      %p50 = por %p48, %p49
      %p51 = scmp.ne.s32.totalorder %s43, %s46
      %p52 = scmp.eq.s32.totalorder %s7, 0
      %p53 = por %p51, %p52
      %p54 = scmp.ne.s32.totalorder %s43, %s46
      %p55 = scmp.eq.s32.totalorder %s12, 1
      %p56 = por %p54, %p55
      %p57 = scmp.ne.s32.totalorder %s46, %s47
      %p58 = scmp.eq.s32.totalorder %s12, 0
      %p59 = por %p57, %p58
      %p60 = scmp.ne.s32.totalorder %s46, %s47
      %p61 = scmp.eq.s32.totalorder %s13, 1
      %p62 = por %p60, %p61
      %p64 = scmp.ne.s32.totalorder %s47, %s63
      %p65 = scmp.eq.s32.totalorder %s13, 0
      %p66 = por %p64, %p65
      %p67 = scmp.le.s32.totalorder 1, %s7
      %p68 = scmp.lt.s32.totalorder %s7, 3
      %p69 = pnand %p67, %p68
      %p70 = pneg %p69
      // Predicated region
      $region9: #{_lambda_.28} parent=5 // pred_check
        _
      $region10: #{_lambda_.28} parent=5 // pred_check_branch
        %72 = sbr.rel (%p69) target = $region12
      $region11: #{_lambda_.28} parent=5 // pred_region
        %s73 = ssub.s32 %s7, 1
      $region12: #{_lambda_.28} parent=5 // pred_fallthru
        _
      %p74 = scmp.lt.s32.totalorder %s7, 2
      // Predicated region
      $region13: #{_lambda_.28} parent=5 // pred_check
        %p75 = pneg %p74
      $region14: #{_lambda_.28} parent=5 // pred_check_branch
        %77 = sbr.rel (%p75) target = $region16
      $region15: #{_lambda_.28} parent=5 // pred_region
        // Predicated region
        $region17: #{_lambda_.28} parent=15 // pred_check
          %p78 = pneg %p27
        $region18: #{_lambda_.28} parent=15 // pred_check_branch
          %80 = sbr.rel (%p78) target = $region20
        $region19: #{_lambda_.28} parent=15 // pred_region
          %s81 = sand.u32 %s17, 1
          %s82 = sand.u32 %s17, 1
          %s83 = smul.addr %s82, 98
          %s84 = scalar_lea.vmem [#allocation2], %s83
          %s85 = smul.addr %s7, 2
          %s86 = scalar_lea.vmem %s0, %s85
          // Predicated region
          $region21: #{_lambda_.28} parent=19 // pred_check
            _
          $region22: #{_lambda_.28} parent=19 // pred_check_branch
            %88 = sbr.rel (0) target = $region24
          $region23: #{_lambda_.28} parent=19 // pred_region
            // Predicated region
            $region25: #{_lambda_.28} parent=23 // pred_check
              _
            $region26: #{_lambda_.28} parent=23 // pred_check_branch
              %90 = sbr.rel target = $region28
            $region27: #{_lambda_.28} parent=23 // pred_region
              // Predicated region
              $region40: #{_lambda_.28} parent=27 // pred_check
                _
              $region41: #{_lambda_.28} parent=27 // pred_check_branch
                %201 = sbr.rel (0) target = $region43
              $region42: #{_lambda_.28} parent=27 // pred_region
                loop: start=0, step=1, limit=1
                $region44: #{_lambda_.28} parent=42 // loop_pre_header
                  _
                $region45: #{_lambda_.28} parent=42 // loop_header
                  %s203 = sphi 0, %s207
                  %p204 = scmp.ge.s32.totalorder %s203, 1
                  %s208 = sphi %s86, %s86
                  %s209 = sphi %s84, %s84
                $region46: #{_lambda_.28} parent=42 // loop_header_branch
                  %206 = sbr.rel (%p204) target = $region50
                $region47: #{_lambda_.28} parent=42 // loop_body
                  _
                $region48: #{_lambda_.28} parent=42 // loop_footer
                  %s207 = sadd.s32 1, %s203
                $region49: #{_lambda_.28} parent=42 // loop_footer_branch
                  %202 = sbr.rel target = $region45
                $region50: #{_lambda_.28} parent=42 // loop_exit
                  _
                loop: start=0, step=1, limit=1
                $region51: #{_lambda_.28} parent=42 // loop_pre_header
                  _
                $region52: #{_lambda_.28} parent=42 // loop_header
                  %s212 = sphi 0, %s216
                  %p213 = scmp.ge.s32.totalorder %s212, 1
                  %s217 = sphi %s86, %s86
                  %s218 = sphi %s84, %s84
                $region53: #{_lambda_.28} parent=42 // loop_header_branch
                  %215 = sbr.rel (%p213) target = $region57
                $region54: #{_lambda_.28} parent=42 // loop_body
                  %v219 = vld [vmem:[%s217] sm:$0x3]
                  %220 = vst [vmem:[%s218] sm:$0x3] %v219
                  %v221 = vld [vmem:[%s217 + $0x4] sm:$0x3]
                  %222 = vst [vmem:[%s218 + $0x2] sm:$0x3] %v221
                  %v223 = vld [vmem:[%s217 + $0x8] sm:$0x3]
                  %224 = vst [vmem:[%s218 + $0x4] sm:$0x3] %v223
                  %v225 = vld [vmem:[%s217 + $0xc] sm:$0x3]
                  %226 = vst [vmem:[%s218 + $0x6] sm:$0x3] %v225
                  %v227 = vld [vmem:[%s217 + $0x10] sm:$0x3]
                  %228 = vst [vmem:[%s218 + $0x8] sm:$0x3] %v227
                  %v229 = vld [vmem:[%s217 + $0x14] sm:$0x3]
                  %230 = vst [vmem:[%s218 + $0xa] sm:$0x3] %v229
                  %v231 = vld [vmem:[%s217 + $0x18] sm:$0x3]
                  %232 = vst [vmem:[%s218 + $0xc] sm:$0x3] %v231
                  %v233 = vld [vmem:[%s217 + $0x1c] sm:$0x3]
                  %234 = vst [vmem:[%s218 + $0xe] sm:$0x3] %v233
                  %v235 = vld [vmem:[%s217 + $0x20] sm:$0x3]
                  %236 = vst [vmem:[%s218 + $0x10] sm:$0x3] %v235
                  %v237 = vld [vmem:[%s217 + $0x24] sm:$0x3]
                  %238 = vst [vmem:[%s218 + $0x12] sm:$0x3] %v237
                  %v239 = vld [vmem:[%s217 + $0x28] sm:$0x3]
                  %240 = vst [vmem:[%s218 + $0x14] sm:$0x3] %v239
                  %v241 = vld [vmem:[%s217 + $0x2c] sm:$0x3]
                  %242 = vst [vmem:[%s218 + $0x16] sm:$0x3] %v241
                  %v243 = vld [vmem:[%s217 + $0x30] sm:$0x3]
                  %244 = vst [vmem:[%s218 + $0x18] sm:$0x3] %v243
                  %v245 = vld [vmem:[%s217 + $0x34] sm:$0x3]
                  %246 = vst [vmem:[%s218 + $0x1a] sm:$0x3] %v245
                  %v247 = vld [vmem:[%s217 + $0x38] sm:$0x3]
                  %248 = vst [vmem:[%s218 + $0x1c] sm:$0x3] %v247
                  %v249 = vld [vmem:[%s217 + $0x3c] sm:$0x3]
                  %250 = vst [vmem:[%s218 + $0x1e] sm:$0x3] %v249
                  %v251 = vld [vmem:[%s217 + $0x40] sm:$0x3]
                  %252 = vst [vmem:[%s218 + $0x20] sm:$0x3] %v251
                  %v253 = vld [vmem:[%s217 + $0x44] sm:$0x3]
                  %254 = vst [vmem:[%s218 + $0x22] sm:$0x3] %v253
                  %v255 = vld [vmem:[%s217 + $0x48] sm:$0x3]
                  %256 = vst [vmem:[%s218 + $0x24] sm:$0x3] %v255
                  %v257 = vld [vmem:[%s217 + $0x4c] sm:$0x3]
                  %258 = vst [vmem:[%s218 + $0x26] sm:$0x3] %v257
                  %v259 = vld [vmem:[%s217 + $0x50] sm:$0x3]
                  %260 = vst [vmem:[%s218 + $0x28] sm:$0x3] %v259
                  %v261 = vld [vmem:[%s217 + $0x54] sm:$0x3]
                  %262 = vst [vmem:[%s218 + $0x2a] sm:$0x3] %v261
                  %v263 = vld [vmem:[%s217 + $0x58] sm:$0x3]
                  %264 = vst [vmem:[%s218 + $0x2c] sm:$0x3] %v263
                  %v265 = vld [vmem:[%s217 + $0x5c] sm:$0x3]
                  %266 = vst [vmem:[%s218 + $0x2e] sm:$0x3] %v265
                  %v267 = vld [vmem:[%s217 + $0x60] sm:$0x3]
                  %268 = vst [vmem:[%s218 + $0x30] sm:$0x3] %v267
                  %v269 = vld [vmem:[%s217 + $0x64] sm:$0x3]
                  %270 = vst [vmem:[%s218 + $0x32] sm:$0x3] %v269
                  %v271 = vld [vmem:[%s217 + $0x68] sm:$0x3]
                  %272 = vst [vmem:[%s218 + $0x34] sm:$0x3] %v271
                  %v273 = vld [vmem:[%s217 + $0x6c] sm:$0x3]
                  %274 = vst [vmem:[%s218 + $0x36] sm:$0x3] %v273
                  %v275 = vld [vmem:[%s217 + $0x70] sm:$0x3]
                  %276 = vst [vmem:[%s218 + $0x38] sm:$0x3] %v275
                  %v277 = vld [vmem:[%s217 + $0x74] sm:$0x3]
                  %278 = vst [vmem:[%s218 + $0x3a] sm:$0x3] %v277
                  %v279 = vld [vmem:[%s217 + $0x78] sm:$0x3]
                  %280 = vst [vmem:[%s218 + $0x3c] sm:$0x3] %v279
                  %v281 = vld [vmem:[%s217 + $0x7c] sm:$0x3]
                  %282 = vst [vmem:[%s218 + $0x3e] sm:$0x3] %v281
                  %v283 = vld [vmem:[%s217 + $0x80] sm:$0x3]
                  %284 = vst [vmem:[%s218 + $0x40] sm:$0x3] %v283
                  %v285 = vld [vmem:[%s217 + $0x84] sm:$0x3]
                  %286 = vst [vmem:[%s218 + $0x42] sm:$0x3] %v285
                  %v287 = vld [vmem:[%s217 + $0x88] sm:$0x3]
                  %288 = vst [vmem:[%s218 + $0x44] sm:$0x3] %v287
                  %v289 = vld [vmem:[%s217 + $0x8c] sm:$0x3]
                  %290 = vst [vmem:[%s218 + $0x46] sm:$0x3] %v289
                  %v291 = vld [vmem:[%s217 + $0x90] sm:$0x3]
                  %292 = vst [vmem:[%s218 + $0x48] sm:$0x3] %v291
                  %v293 = vld [vmem:[%s217 + $0x94] sm:$0x3]
                  %294 = vst [vmem:[%s218 + $0x4a] sm:$0x3] %v293
                  %v295 = vld [vmem:[%s217 + $0x98] sm:$0x3]
                  %296 = vst [vmem:[%s218 + $0x4c] sm:$0x3] %v295
                  %v297 = vld [vmem:[%s217 + $0x9c] sm:$0x3]
                  %298 = vst [vmem:[%s218 + $0x4e] sm:$0x3] %v297
                  %v299 = vld [vmem:[%s217 + $0xa0] sm:$0x3]
                  %300 = vst [vmem:[%s218 + $0x50] sm:$0x3] %v299
                  %v301 = vld [vmem:[%s217 + $0xa4] sm:$0x3]
                  %302 = vst [vmem:[%s218 + $0x52] sm:$0x3] %v301
                  %v303 = vld [vmem:[%s217 + $0xa8] sm:$0x3]
                  %304 = vst [vmem:[%s218 + $0x54] sm:$0x3] %v303
                  %v305 = vld [vmem:[%s217 + $0xac] sm:$0x3]
                  %306 = vst [vmem:[%s218 + $0x56] sm:$0x3] %v305
                  %v307 = vld [vmem:[%s217 + $0xb0] sm:$0x3]
                  %308 = vst [vmem:[%s218 + $0x58] sm:$0x3] %v307
                  %v309 = vld [vmem:[%s217 + $0xb4] sm:$0x3]
                  %310 = vst [vmem:[%s218 + $0x5a] sm:$0x3] %v309
                  %v311 = vld [vmem:[%s217 + $0xb8] sm:$0x3]
                  %312 = vst [vmem:[%s218 + $0x5c] sm:$0x3] %v311
                  %v313 = vld [vmem:[%s217 + $0xbc] sm:$0x3]
                  %314 = vst [vmem:[%s218 + $0x5e] sm:$0x3] %v313
                  %v315 = vld [vmem:[%s217 + $0xc0] sm:$0x3]
                  %316 = vst [vmem:[%s218 + $0x60] sm:$0x3] %v315
                $region55: #{_lambda_.28} parent=42 // loop_footer
                  %s216 = sadd.s32 1, %s212
                $region56: #{_lambda_.28} parent=42 // loop_footer_branch
                  %211 = sbr.rel target = $region52
                $region57: #{_lambda_.28} parent=42 // loop_exit
                  _
              $region43: #{_lambda_.28} parent=27 // pred_fallthru
                _
            $region28: #{_lambda_.28} parent=23 // pred_fallthru
              _
            // Predicated region
            $region29: #{_lambda_.28} parent=23 // pred_check
              _
            $region30: #{_lambda_.28} parent=23 // pred_check_branch
              %92 = sbr.rel (0) target = $region32
            $region31: #{_lambda_.28} parent=23 // pred_region
              loop: start=0, step=1, limit=1
              $region33: #{_lambda_.28} parent=31 // loop_pre_header
                _
              $region34: #{_lambda_.28} parent=31 // loop_header
                %s95 = sphi 0, %s99
                %p96 = scmp.ge.s32.totalorder %s95, 1
                %s100 = sphi %s86, %s86
                %s101 = sphi %s84, %s84
              $region35: #{_lambda_.28} parent=31 // loop_header_branch
                %98 = sbr.rel (%p96) target = $region39
              $region36: #{_lambda_.28} parent=31 // loop_body
                %v102 = vld [vmem:[%s100] sm:$0x3]
                %103 = vst [vmem:[%s101] sm:$0x3] %v102
                %v104 = vld [vmem:[%s100 + $0x4] sm:$0x3]
                %105 = vst [vmem:[%s101 + $0x2] sm:$0x3] %v104
                %v106 = vld [vmem:[%s100 + $0x8] sm:$0x3]
                %107 = vst [vmem:[%s101 + $0x4] sm:$0x3] %v106
                %v108 = vld [vmem:[%s100 + $0xc] sm:$0x3]
                %109 = vst [vmem:[%s101 + $0x6] sm:$0x3] %v108
                %v110 = vld [vmem:[%s100 + $0x10] sm:$0x3]
                %111 = vst [vmem:[%s101 + $0x8] sm:$0x3] %v110
                %v112 = vld [vmem:[%s100 + $0x14] sm:$0x3]
                %113 = vst [vmem:[%s101 + $0xa] sm:$0x3] %v112
                %v114 = vld [vmem:[%s100 + $0x18] sm:$0x3]
                %115 = vst [vmem:[%s101 + $0xc] sm:$0x3] %v114
                %v116 = vld [vmem:[%s100 + $0x1c] sm:$0x3]
                %117 = vst [vmem:[%s101 + $0xe] sm:$0x3] %v116
                %v118 = vld [vmem:[%s100 + $0x20] sm:$0x3]
                %119 = vst [vmem:[%s101 + $0x10] sm:$0x3] %v118
                %v120 = vld [vmem:[%s100 + $0x24] sm:$0x3]
                %121 = vst [vmem:[%s101 + $0x12] sm:$0x3] %v120
                %v122 = vld [vmem:[%s100 + $0x28] sm:$0x3]
                %123 = vst [vmem:[%s101 + $0x14] sm:$0x3] %v122
                %v124 = vld [vmem:[%s100 + $0x2c] sm:$0x3]
                %125 = vst [vmem:[%s101 + $0x16] sm:$0x3] %v124
                %v126 = vld [vmem:[%s100 + $0x30] sm:$0x3]
                %127 = vst [vmem:[%s101 + $0x18] sm:$0x3] %v126
                %v128 = vld [vmem:[%s100 + $0x34] sm:$0x3]
                %129 = vst [vmem:[%s101 + $0x1a] sm:$0x3] %v128
                %v130 = vld [vmem:[%s100 + $0x38] sm:$0x3]
                %131 = vst [vmem:[%s101 + $0x1c] sm:$0x3] %v130
                %v132 = vld [vmem:[%s100 + $0x3c] sm:$0x3]
                %133 = vst [vmem:[%s101 + $0x1e] sm:$0x3] %v132
                %v134 = vld [vmem:[%s100 + $0x40] sm:$0x3]
                %135 = vst [vmem:[%s101 + $0x20] sm:$0x3] %v134
                %v136 = vld [vmem:[%s100 + $0x44] sm:$0x3]
                %137 = vst [vmem:[%s101 + $0x22] sm:$0x3] %v136
                %v138 = vld [vmem:[%s100 + $0x48] sm:$0x3]
                %139 = vst [vmem:[%s101 + $0x24] sm:$0x3] %v138
                %v140 = vld [vmem:[%s100 + $0x4c] sm:$0x3]
                %141 = vst [vmem:[%s101 + $0x26] sm:$0x3] %v140
                %v142 = vld [vmem:[%s100 + $0x50] sm:$0x3]
                %143 = vst [vmem:[%s101 + $0x28] sm:$0x3] %v142
                %v144 = vld [vmem:[%s100 + $0x54] sm:$0x3]
                %145 = vst [vmem:[%s101 + $0x2a] sm:$0x3] %v144
                %v146 = vld [vmem:[%s100 + $0x58] sm:$0x3]
                %147 = vst [vmem:[%s101 + $0x2c] sm:$0x3] %v146
                %v148 = vld [vmem:[%s100 + $0x5c] sm:$0x3]
                %149 = vst [vmem:[%s101 + $0x2e] sm:$0x3] %v148
                %v150 = vld [vmem:[%s100 + $0x60] sm:$0x3]
                %151 = vst [vmem:[%s101 + $0x30] sm:$0x3] %v150
                %v152 = vld [vmem:[%s100 + $0x64] sm:$0x3]
                %153 = vst [vmem:[%s101 + $0x32] sm:$0x3] %v152
                %v154 = vld [vmem:[%s100 + $0x68] sm:$0x3]
                %155 = vst [vmem:[%s101 + $0x34] sm:$0x3] %v154
                %v156 = vld [vmem:[%s100 + $0x6c] sm:$0x3]
                %157 = vst [vmem:[%s101 + $0x36] sm:$0x3] %v156
                %v158 = vld [vmem:[%s100 + $0x70] sm:$0x3]
                %159 = vst [vmem:[%s101 + $0x38] sm:$0x3] %v158
                %v160 = vld [vmem:[%s100 + $0x74] sm:$0x3]
                %161 = vst [vmem:[%s101 + $0x3a] sm:$0x3] %v160
                %v162 = vld [vmem:[%s100 + $0x78] sm:$0x3]
                %163 = vst [vmem:[%s101 + $0x3c] sm:$0x3] %v162
                %v164 = vld [vmem:[%s100 + $0x7c] sm:$0x3]
                %165 = vst [vmem:[%s101 + $0x3e] sm:$0x3] %v164
                %v166 = vld [vmem:[%s100 + $0x80] sm:$0x3]
                %167 = vst [vmem:[%s101 + $0x40] sm:$0x3] %v166
                %v168 = vld [vmem:[%s100 + $0x84] sm:$0x3]
                %169 = vst [vmem:[%s101 + $0x42] sm:$0x3] %v168
                %v170 = vld [vmem:[%s100 + $0x88] sm:$0x3]
                %171 = vst [vmem:[%s101 + $0x44] sm:$0x3] %v170
                %v172 = vld [vmem:[%s100 + $0x8c] sm:$0x3]
                %173 = vst [vmem:[%s101 + $0x46] sm:$0x3] %v172
                %v174 = vld [vmem:[%s100 + $0x90] sm:$0x3]
                %175 = vst [vmem:[%s101 + $0x48] sm:$0x3] %v174
                %v176 = vld [vmem:[%s100 + $0x94] sm:$0x3]
                %177 = vst [vmem:[%s101 + $0x4a] sm:$0x3] %v176
                %v178 = vld [vmem:[%s100 + $0x98] sm:$0x3]
                %179 = vst [vmem:[%s101 + $0x4c] sm:$0x3] %v178
                %v180 = vld [vmem:[%s100 + $0x9c] sm:$0x3]
                %181 = vst [vmem:[%s101 + $0x4e] sm:$0x3] %v180
                %v182 = vld [vmem:[%s100 + $0xa0] sm:$0x3]
                %183 = vst [vmem:[%s101 + $0x50] sm:$0x3] %v182
                %v184 = vld [vmem:[%s100 + $0xa4] sm:$0x3]
                %185 = vst [vmem:[%s101 + $0x52] sm:$0x3] %v184
                %v186 = vld [vmem:[%s100 + $0xa8] sm:$0x3]
                %187 = vst [vmem:[%s101 + $0x54] sm:$0x3] %v186
                %v188 = vld [vmem:[%s100 + $0xac] sm:$0x3]
                %189 = vst [vmem:[%s101 + $0x56] sm:$0x3] %v188
                %v190 = vld [vmem:[%s100 + $0xb0] sm:$0x3]
                %191 = vst [vmem:[%s101 + $0x58] sm:$0x3] %v190
                %v192 = vld [vmem:[%s100 + $0xb4] sm:$0x3]
                %193 = vst [vmem:[%s101 + $0x5a] sm:$0x3] %v192
                %v194 = vld [vmem:[%s100 + $0xb8] sm:$0x3]
                %195 = vst [vmem:[%s101 + $0x5c] sm:$0x3] %v194
                %v196 = vld [vmem:[%s100 + $0xbc] sm:$0x3]
                %197 = vst [vmem:[%s101 + $0x5e] sm:$0x3] %v196
                %v198 = vld [vmem:[%s100 + $0xc0] sm:$0x3]
                %199 = vst [vmem:[%s101 + $0x60] sm:$0x3] %v198
              $region37: #{_lambda_.28} parent=31 // loop_footer
                %s99 = sadd.s32 1, %s95
              $region38: #{_lambda_.28} parent=31 // loop_footer_branch
                %94 = sbr.rel target = $region34
              $region39: #{_lambda_.28} parent=31 // loop_exit
                _
            $region32: #{_lambda_.28} parent=23 // pred_fallthru
              _
          $region24: #{_lambda_.28} parent=19 // pred_fallthru
            _
          %317 = vnop
        $region20: #{_lambda_.28} parent=15 // pred_fallthru
          _
      $region16: #{_lambda_.28} parent=5 // pred_fallthru
        _
      %p318 = scmp.le.s32.totalorder 1, %s7
      %p319 = scmp.lt.s32.totalorder %s7, 3
      %p320 = pnand %p318, %p319
      %p321 = pneg %p320
      // Predicated region
      $region58: #{_lambda_.28} parent=5 // pred_check
        _
      $region59: #{_lambda_.28} parent=5 // pred_check_branch
        %323 = sbr.rel (%p320) target = $region61
      $region60: #{_lambda_.28} parent=5 // pred_region
        %s324 = ssub.s32 %s7, 1
        %s325 = sand.u32 %s20, 1
        %s326 = sand.u32 %s20, 1
        %s327 = smul.addr %s326, 98
        %s328 = scalar_lea.vmem [#allocation2], %s327
        // Predicated region
        $region62: #{_lambda_.28} parent=60 // pred_check
          %p329 = pneg %p33
        $region63: #{_lambda_.28} parent=60 // pred_check_branch
          %331 = sbr.rel (%p329) target = $region65
        $region64: #{_lambda_.28} parent=60 // pred_region
          _
        $region65: #{_lambda_.28} parent=60 // pred_fallthru
          _
        %s332 = sand.u32 %s20, 1
        %s333 = sand.u32 %s20, 1
        %s334 = smul.addr %s333, 98
        %s335 = scalar_lea.vmem [#allocation2], %s334
        %p336 = pneg %p33
        %p337 = pneg %p30
        %p338 = pneg %p59
        %p339 = pneg %p56
        %s340 = sand.u32 %s46, 1
        %s341 = sand.u32 %s46, 1
        %s342 = smul.addr %s341, 18
        %s343 = scalar_lea.vmem [#allocation3], %s342
        %v345 = vld [vmem:[%s328] sm:$0x3]
        %v346 = vld [vmem:[%s328 + $0x2] sm:$0x3]
        %v347 = vld [vmem:[%s328 + $0x4] sm:$0x3]
        %v348 = vld [vmem:[%s328 + $0x6] sm:$0x3]
        %v349 = vld [vmem:[%s328 + $0x8] sm:$0x3]
        %v350 = vld [vmem:[%s328 + $0xa] sm:$0x3]
        %v351 = vld [vmem:[%s328 + $0xc] sm:$0x3]
        %v352 = vld [vmem:[%s328 + $0xe] sm:$0x3]
        %v353 = vld [vmem:[%s328 + $0x10] sm:$0x3]
        %v354 = vld [vmem:[%s328 + $0x12] sm:$0x3]
        %v355 = vld [vmem:[%s328 + $0x14] sm:$0x3]
        %v356 = vld [vmem:[%s328 + $0x16] sm:$0x3]
        %v357 = vld [vmem:[%s328 + $0x18] sm:$0x3]
        %v358 = vld [vmem:[%s328 + $0x1a] sm:$0x3]
        %v359 = vld [vmem:[%s328 + $0x1c] sm:$0x3]
        %v360 = vld [vmem:[%s328 + $0x1e] sm:$0x3]
        %v361 = vld [vmem:[%s328 + $0x20] sm:$0x3]
        %v362 = vld [vmem:[%s328 + $0x22] sm:$0x3]
        %v363 = vld [vmem:[%s328 + $0x24] sm:$0x3]
        %v364 = vld [vmem:[%s328 + $0x26] sm:$0x3]
        %v365 = vld [vmem:[%s328 + $0x28] sm:$0x3]
        %v366 = vld [vmem:[%s328 + $0x2a] sm:$0x3]
        %v367 = vld [vmem:[%s328 + $0x2c] sm:$0x3]
        %v368 = vld [vmem:[%s328 + $0x2e] sm:$0x3]
        %v369 = vld [vmem:[%s328 + $0x30] sm:$0x3]
        %v370 = vld [vmem:[%s328 + $0x32] sm:$0x3]
        %v371 = vld [vmem:[%s328 + $0x34] sm:$0x3]
        %v372 = vld [vmem:[%s328 + $0x36] sm:$0x3]
        %v373 = vld [vmem:[%s328 + $0x38] sm:$0x3]
        %v374 = vld [vmem:[%s328 + $0x3a] sm:$0x3]
        %v375 = vld [vmem:[%s328 + $0x3c] sm:$0x3]
        %v376 = vld [vmem:[%s328 + $0x3e] sm:$0x3]
        %v377 = vld [vmem:[%s328 + $0x40] sm:$0x3]
        %v378 = vld [vmem:[%s328 + $0x42] sm:$0x3]
        %v379 = vld [vmem:[%s328 + $0x44] sm:$0x3]
        %v380 = vld [vmem:[%s328 + $0x46] sm:$0x3]
        %v381 = vld [vmem:[%s328 + $0x48] sm:$0x3]
        %v382 = vld [vmem:[%s328 + $0x4a] sm:$0x3]
        %v383 = vld [vmem:[%s328 + $0x4c] sm:$0x3]
        %v384 = vld [vmem:[%s328 + $0x4e] sm:$0x3]
        %v385 = vld [vmem:[%s328 + $0x50] sm:$0x3]
        %v386 = vld [vmem:[%s328 + $0x52] sm:$0x3]
        %v387 = vld [vmem:[%s328 + $0x54] sm:$0x3]
        %v388 = vld [vmem:[%s328 + $0x56] sm:$0x3]
        %v389 = vld [vmem:[%s328 + $0x58] sm:$0x3]
        %v390 = vld [vmem:[%s328 + $0x5a] sm:$0x3]
        %v391 = vld [vmem:[%s328 + $0x5c] sm:$0x3]
        %v392 = vld [vmem:[%s328 + $0x5e] sm:$0x3]
        %v393 = vld [vmem:[%s328 + $0x60] sm:$0x3]
        %v394 = vmax.bf16 %v345, %v352
        %v395 = vmax.bf16 %v346, %v353
        %v396 = vmax.bf16 %v347, %v354
        %v397 = vmax.bf16 %v348, %v355
        %v398 = vmax.bf16 %v349, %v356
        %v399 = vmax.bf16 %v350, %v357
        %v400 = vmax.bf16 %v351, %v358
        %v401 = vmax.bf16 %v352, %v359
        %v402 = vmax.bf16 %v353, %v360
        %v403 = vmax.bf16 %v354, %v361
        %v404 = vmax.bf16 %v355, %v362
        %v405 = vmax.bf16 %v356, %v363
        %v406 = vmax.bf16 %v357, %v364
        %v407 = vmax.bf16 %v358, %v365
        %v408 = vmax.bf16 %v359, %v366
        %v409 = vmax.bf16 %v360, %v367
        %v410 = vmax.bf16 %v361, %v368
        %v411 = vmax.bf16 %v362, %v369
        %v412 = vmax.bf16 %v363, %v370
        %v413 = vmax.bf16 %v364, %v371
        %v414 = vmax.bf16 %v365, %v372
        %v415 = vmax.bf16 %v366, %v373
        %v416 = vmax.bf16 %v367, %v374
        %v417 = vmax.bf16 %v368, %v375
        %v418 = vmax.bf16 %v369, %v376
        %v419 = vmax.bf16 %v370, %v377
        %v420 = vmax.bf16 %v371, %v378
        %v421 = vmax.bf16 %v372, %v379
        %v422 = vmax.bf16 %v373, %v380
        %v423 = vmax.bf16 %v374, %v381
        %v424 = vmax.bf16 %v375, %v382
        %v425 = vmax.bf16 %v376, %v383
        %v426 = vmax.bf16 %v377, %v384
        %v427 = vmax.bf16 %v378, %v385
        %v428 = vmax.bf16 %v379, %v386
        %v429 = vmax.bf16 %v380, %v387
        %v430 = vmax.bf16 %v381, %v388
        %v431 = vmax.bf16 %v382, %v389
        %v432 = vmax.bf16 %v383, %v390
        %v433 = vmax.bf16 %v384, %v391
        %v434 = vmax.bf16 %v385, %v392
        %v435 = vmax.bf16 %v386, %v393
        %vm436 = vcmask 1041408
        %v439 = vsel %vm436, %v394, 4286644096
        %v442 = vsel %vm436, %v401, 4286644096
        %v444 = vmax.bf16 %v439, %v442
        %v446 = vsel %vm436, %v395, 4286644096
        %v449 = vsel %vm436, %v402, 4286644096
        %v451 = vmax.bf16 %v446, %v449
        %v453 = vsel %vm436, %v396, 4286644096
        %v456 = vsel %vm436, %v403, 4286644096
        %v458 = vmax.bf16 %v453, %v456
        %v460 = vsel %vm436, %v397, 4286644096
        %v463 = vsel %vm436, %v404, 4286644096
        %v465 = vmax.bf16 %v460, %v463
        %v467 = vsel %vm436, %v398, 4286644096
        %v470 = vsel %vm436, %v405, 4286644096
        %v472 = vmax.bf16 %v467, %v470
        %v474 = vsel %vm436, %v399, 4286644096
        %v477 = vsel %vm436, %v406, 4286644096
        %v479 = vmax.bf16 %v474, %v477
        %v481 = vsel %vm436, %v400, 4286644096
        %v484 = vsel %vm436, %v407, 4286644096
        %v486 = vmax.bf16 %v481, %v484
        %v488 = vsel %vm436, %v408, 4286644096
        %v491 = vsel %vm436, %v415, 4286644096
        %v493 = vmax.bf16 %v488, %v491
        %v495 = vsel %vm436, %v409, 4286644096
        %v498 = vsel %vm436, %v416, 4286644096
        %v500 = vmax.bf16 %v495, %v498
        %v502 = vsel %vm436, %v410, 4286644096
        %v505 = vsel %vm436, %v417, 4286644096
        %v507 = vmax.bf16 %v502, %v505
        %v509 = vsel %vm436, %v411, 4286644096
        %v512 = vsel %vm436, %v418, 4286644096
        %v514 = vmax.bf16 %v509, %v512
        %v516 = vsel %vm436, %v412, 4286644096
        %v519 = vsel %vm436, %v419, 4286644096
        %v521 = vmax.bf16 %v516, %v519
        %v523 = vsel %vm436, %v413, 4286644096
        %v526 = vsel %vm436, %v420, 4286644096
        %v528 = vmax.bf16 %v523, %v526
        %v530 = vsel %vm436, %v414, 4286644096
        %v533 = vsel %vm436, %v421, 4286644096
        %v535 = vmax.bf16 %v530, %v533
        %v537 = vsel %vm436, %v422, 4286644096
        %v540 = vsel %vm436, %v429, 4286644096
        %v542 = vmax.bf16 %v537, %v540
        %v544 = vsel %vm436, %v423, 4286644096
        %v547 = vsel %vm436, %v430, 4286644096
        %v549 = vmax.bf16 %v544, %v547
        %v551 = vsel %vm436, %v424, 4286644096
        %v554 = vsel %vm436, %v431, 4286644096
        %v556 = vmax.bf16 %v551, %v554
        %v558 = vsel %vm436, %v425, 4286644096
        %v561 = vsel %vm436, %v432, 4286644096
        %v563 = vmax.bf16 %v558, %v561
        %v565 = vsel %vm436, %v426, 4286644096
        %v568 = vsel %vm436, %v433, 4286644096
        %v570 = vmax.bf16 %v565, %v568
        %v572 = vsel %vm436, %v427, 4286644096
        %v575 = vsel %vm436, %v434, 4286644096
        %v577 = vmax.bf16 %v572, %v575
        %v579 = vsel %vm436, %v428, 4286644096
        %v582 = vsel %vm436, %v435, 4286644096
        %v584 = vmax.bf16 %v579, %v582
        %v585 = vmax.bf16 %v444, %v451
        %v586 = vmax.bf16 %v451, %v458
        %v587 = vmax.bf16 %v458, %v465
        %v588 = vmax.bf16 %v465, %v472
        %v589 = vmax.bf16 %v472, %v479
        %v590 = vmax.bf16 %v479, %v486
        %v591 = vmax.bf16 %v493, %v500
        %v592 = vmax.bf16 %v500, %v507
        %v593 = vmax.bf16 %v507, %v514
        %v594 = vmax.bf16 %v514, %v521
        %v595 = vmax.bf16 %v521, %v528
        %v596 = vmax.bf16 %v528, %v535
        %v597 = vmax.bf16 %v542, %v549
        %v598 = vmax.bf16 %v549, %v556
        %v599 = vmax.bf16 %v556, %v563
        %v600 = vmax.bf16 %v563, %v570
        %v601 = vmax.bf16 %v570, %v577
        %v602 = vmax.bf16 %v577, %v584
        %v604 = vsel %vm436, %v585, 4286644096
        %v607 = vsel %vm436, %v586, 4286644096
        %v609 = vmax.bf16 %v604, %v607
        %v611 = vsel %vm436, %v587, 4286644096
        %v614 = vsel %vm436, %v588, 4286644096
        %v616 = vmax.bf16 %v611, %v614
        %v618 = vsel %vm436, %v589, 4286644096
        %v621 = vsel %vm436, %v590, 4286644096
        %v623 = vmax.bf16 %v618, %v621
        %v625 = vsel %vm436, %v591, 4286644096
        %v628 = vsel %vm436, %v592, 4286644096
        %v630 = vmax.bf16 %v625, %v628
        %v632 = vsel %vm436, %v593, 4286644096
        %v635 = vsel %vm436, %v594, 4286644096
        %v637 = vmax.bf16 %v632, %v635
        %v639 = vsel %vm436, %v595, 4286644096
        %v642 = vsel %vm436, %v596, 4286644096
        %v644 = vmax.bf16 %v639, %v642
        %v646 = vsel %vm436, %v597, 4286644096
        %v649 = vsel %vm436, %v598, 4286644096
        %v651 = vmax.bf16 %v646, %v649
        %v653 = vsel %vm436, %v599, 4286644096
        %v656 = vsel %vm436, %v600, 4286644096
        %v658 = vmax.bf16 %v653, %v656
        %v660 = vsel %vm436, %v601, 4286644096
        %v663 = vsel %vm436, %v602, 4286644096
        %v665 = vmax.bf16 %v660, %v663
        %666 = vst [vmem:[%s343] sm:$0x3] %v609
        %667 = vst [vmem:[%s343 + $0x2] sm:$0x3] %v616
        %668 = vst [vmem:[%s343 + $0x4] sm:$0x3] %v623
        %669 = vst [vmem:[%s343 + $0x6] sm:$0x3] %v630
        %670 = vst [vmem:[%s343 + $0x8] sm:$0x3] %v637
        %671 = vst [vmem:[%s343 + $0xa] sm:$0x3] %v644
        %672 = vst [vmem:[%s343 + $0xc] sm:$0x3] %v651
        %673 = vst [vmem:[%s343 + $0xe] sm:$0x3] %v658
        %674 = vst [vmem:[%s343 + $0x10] sm:$0x3] %v665
        %s675 = sand.u32 %s46, 1
        %s676 = sand.u32 %s46, 1
        %s677 = smul.addr %s676, 18
        %s678 = scalar_lea.vmem [#allocation3], %s677
        // Predicated region
        $region66: #{_lambda_.28} parent=60 // pred_check
          %p679 = pneg %p56
        $region67: #{_lambda_.28} parent=60 // pred_check_branch
          %681 = sbr.rel (%p679) target = $region69
        $region68: #{_lambda_.28} parent=60 // pred_region
          %s682 = smul.addr %s12, 2
          %s683 = scalar_lea.vmem %s1, %s682
          // Predicated region
          $region70: #{_lambda_.28} parent=68 // pred_check
            _
          $region71: #{_lambda_.28} parent=68 // pred_check_branch
            %685 = sbr.rel (0) target = $region73
          $region72: #{_lambda_.28} parent=68 // pred_region
            // Predicated region
            $region74: #{_lambda_.28} parent=72 // pred_check
              _
            $region75: #{_lambda_.28} parent=72 // pred_check_branch
              %687 = sbr.rel target = $region77
            $region76: #{_lambda_.28} parent=72 // pred_region
              // Predicated region
              $region89: #{_lambda_.28} parent=76 // pred_check
                _
              $region90: #{_lambda_.28} parent=76 // pred_check_branch
                %718 = sbr.rel (0) target = $region92
              $region91: #{_lambda_.28} parent=76 // pred_region
                loop: start=0, step=1, limit=1
                $region93: #{_lambda_.28} parent=91 // loop_pre_header
                  _
                $region94: #{_lambda_.28} parent=91 // loop_header
                  %s720 = sphi 0, %s724
                  %p721 = scmp.ge.s32.totalorder %s720, 1
                  %s725 = sphi %s678, %s678
                  %s726 = sphi %s683, %s683
                $region95: #{_lambda_.28} parent=91 // loop_header_branch
                  %723 = sbr.rel (%p721) target = $region99
                $region96: #{_lambda_.28} parent=91 // loop_body
                  _
                $region97: #{_lambda_.28} parent=91 // loop_footer
                  %s724 = sadd.s32 1, %s720
                $region98: #{_lambda_.28} parent=91 // loop_footer_branch
                  %719 = sbr.rel target = $region94
                $region99: #{_lambda_.28} parent=91 // loop_exit
                  _
                loop: start=0, step=1, limit=1
                $region100: #{_lambda_.28} parent=91 // loop_pre_header
                  _
                $region101: #{_lambda_.28} parent=91 // loop_header
                  %s729 = sphi 0, %s733
                  %p730 = scmp.ge.s32.totalorder %s729, 1
                  %s734 = sphi %s678, %s678
                  %s735 = sphi %s683, %s683
                $region102: #{_lambda_.28} parent=91 // loop_header_branch
                  %732 = sbr.rel (%p730) target = $region106
                $region103: #{_lambda_.28} parent=91 // loop_body
                  %v736 = vld [vmem:[%s734] sm:$0x3]
                  %737 = vst [vmem:[%s735] sm:$0x3] %v736
                  %v738 = vld [vmem:[%s734 + $0x2] sm:$0x3]
                  %739 = vst [vmem:[%s735 + $0x4] sm:$0x3] %v738
                  %v740 = vld [vmem:[%s734 + $0x4] sm:$0x3]
                  %741 = vst [vmem:[%s735 + $0x8] sm:$0x3] %v740
                  %v742 = vld [vmem:[%s734 + $0x6] sm:$0x3]
                  %743 = vst [vmem:[%s735 + $0xc] sm:$0x3] %v742
                  %v744 = vld [vmem:[%s734 + $0x8] sm:$0x3]
                  %745 = vst [vmem:[%s735 + $0x10] sm:$0x3] %v744
                  %v746 = vld [vmem:[%s734 + $0xa] sm:$0x3]
                  %747 = vst [vmem:[%s735 + $0x14] sm:$0x3] %v746
                  %v748 = vld [vmem:[%s734 + $0xc] sm:$0x3]
                  %749 = vst [vmem:[%s735 + $0x18] sm:$0x3] %v748
                  %v750 = vld [vmem:[%s734 + $0xe] sm:$0x3]
                  %751 = vst [vmem:[%s735 + $0x1c] sm:$0x3] %v750
                  %v752 = vld [vmem:[%s734 + $0x10] sm:$0x3]
                  %753 = vst [vmem:[%s735 + $0x20] sm:$0x3] %v752
                $region104: #{_lambda_.28} parent=91 // loop_footer
                  %s733 = sadd.s32 1, %s729
                $region105: #{_lambda_.28} parent=91 // loop_footer_branch
                  %728 = sbr.rel target = $region101
                $region106: #{_lambda_.28} parent=91 // loop_exit
                  _
              $region92: #{_lambda_.28} parent=76 // pred_fallthru
                _
            $region77: #{_lambda_.28} parent=72 // pred_fallthru
              _
            // Predicated region
            $region78: #{_lambda_.28} parent=72 // pred_check
              _
            $region79: #{_lambda_.28} parent=72 // pred_check_branch
              %689 = sbr.rel (0) target = $region81
            $region80: #{_lambda_.28} parent=72 // pred_region
              loop: start=0, step=1, limit=1
              $region82: #{_lambda_.28} parent=80 // loop_pre_header
                _
              $region83: #{_lambda_.28} parent=80 // loop_header
                %s692 = sphi 0, %s696
                %p693 = scmp.ge.s32.totalorder %s692, 1
                %s697 = sphi %s678, %s678
                %s698 = sphi %s683, %s683
              $region84: #{_lambda_.28} parent=80 // loop_header_branch
                %695 = sbr.rel (%p693) target = $region88
              $region85: #{_lambda_.28} parent=80 // loop_body
                %v699 = vld [vmem:[%s697] sm:$0x3]
                %700 = vst [vmem:[%s698] sm:$0x3] %v699
                %v701 = vld [vmem:[%s697 + $0x2] sm:$0x3]
                %702 = vst [vmem:[%s698 + $0x4] sm:$0x3] %v701
                %v703 = vld [vmem:[%s697 + $0x4] sm:$0x3]
                %704 = vst [vmem:[%s698 + $0x8] sm:$0x3] %v703
                %v705 = vld [vmem:[%s697 + $0x6] sm:$0x3]
                %706 = vst [vmem:[%s698 + $0xc] sm:$0x3] %v705
                %v707 = vld [vmem:[%s697 + $0x8] sm:$0x3]
                %708 = vst [vmem:[%s698 + $0x10] sm:$0x3] %v707
                %v709 = vld [vmem:[%s697 + $0xa] sm:$0x3]
                %710 = vst [vmem:[%s698 + $0x14] sm:$0x3] %v709
                %v711 = vld [vmem:[%s697 + $0xc] sm:$0x3]
                %712 = vst [vmem:[%s698 + $0x18] sm:$0x3] %v711
                %v713 = vld [vmem:[%s697 + $0xe] sm:$0x3]
                %714 = vst [vmem:[%s698 + $0x1c] sm:$0x3] %v713
                %v715 = vld [vmem:[%s697 + $0x10] sm:$0x3]
                %716 = vst [vmem:[%s698 + $0x20] sm:$0x3] %v715
              $region86: #{_lambda_.28} parent=80 // loop_footer
                %s696 = sadd.s32 1, %s692
              $region87: #{_lambda_.28} parent=80 // loop_footer_branch
                %691 = sbr.rel target = $region83
              $region88: #{_lambda_.28} parent=80 // loop_exit
                _
            $region81: #{_lambda_.28} parent=72 // pred_fallthru
              _
          $region73: #{_lambda_.28} parent=68 // pred_fallthru
            _
          %754 = vnop
        $region69: #{_lambda_.28} parent=60 // pred_fallthru
          _
      $region61: #{_lambda_.28} parent=5 // pred_fallthru
        _
      %p755 = scmp.le.s32.totalorder 2, %s7
      // Predicated region
      $region107: #{_lambda_.28} parent=5 // pred_check
        %p756 = pneg %p755
      $region108: #{_lambda_.28} parent=5 // pred_check_branch
        %758 = sbr.rel (%p756) target = $region110
      $region109: #{_lambda_.28} parent=5 // pred_region
        %s759 = ssub.s32 %s7, 2
        // Predicated region
        $region111: #{_lambda_.28} parent=109 // pred_check
          %p760 = pneg %p62
        $region112: #{_lambda_.28} parent=109 // pred_check_branch
          %762 = sbr.rel (%p760) target = $region114
        $region113: #{_lambda_.28} parent=109 // pred_region
          %s763 = sand.u32 %s47, 1
          %s764 = sand.u32 %s47, 1
          %s765 = smul.addr %s764, 18
          %s766 = scalar_lea.vmem [#allocation3], %s765
        $region114: #{_lambda_.28} parent=109 // pred_fallthru
          _
      $region110: #{_lambda_.28} parent=5 // pred_fallthru
        _
    $region6: #{_lambda_.28} parent=1 // loop_footer
      %s11 = sadd.s32 1, %s7
    $region7: #{_lambda_.28} parent=1 // loop_footer_branch
      %6 = sbr.rel target = $region3
    $region8: #{_lambda_.28} parent=1 // loop_exit
      _

// kernel: _lambda_.29
$region0: #{_lambda_.29}
  #allocation0 [shape = 'u32[]', space=smem, size = 0x4, offset = 0x4, fixed_abs, tag = 'smem constant byte address 0x4 - core index']
  #allocation1 [shape = 'u32[144,128]{1,0:T(1,128)}', space=vmem, size = 0x12000, scoped, tag = 'internal scratch']
  #allocation2 [shape = 'f32[48,384]{1,0:T(8,128)}', space=vmem, size = 0x12000, scoped, tag = 'scratch operand']
  %s0 = inlined_call_operand.vmem [shape: bf16[48,2304], index: 0, kind: input, shape index: {}]
  %s1 = inlined_call_operand.vmem [shape: bf16[2304,384], index: 1, kind: input, shape index: {}]
  %s2 = inlined_call_operand.vmem [shape: f32[1,384], index: 2, kind: input, shape index: {}]
  %s3 = inlined_call_operand.vmem [shape: bf16[48,384], index: 3, kind: output, shape index: {}]
  %s4 = sld [smem:[#allocation0]]
  $region79: #{_lambda_.29} parent=0
    _
  %s6 = ssub.s32 1, %s4
  %s7 = scalar_select 0, %s6, %s4
  $region1: #{_lambda_.29} parent=0
    #allocation3 [shape = 'u8[73728]{0}', space=vmem, size = 0x12000, scoped, tag = 'input window, operand 0']
    loop: start=0, step=1, limit=8
    $region2: #{_lambda_.29} parent=1 // loop_pre_header
      _
    $region3: #{_lambda_.29} parent=1 // loop_header
      %s9 = sphi 0, %s13
      %p10 = scmp.ge.s32.totalorder %s9, 8
      %s16 = sphi 0, %s35
      %s17 = sphi 0, %s31
      %s18 = sphi 0, %s27
      %s19 = sphi 0, %s16
      %s20 = sphi 0, %s17
      %s21 = sphi 0, %s18
      %s22 = sphi 0, %s19
      %s23 = sphi 0, %s20
      %s24 = sphi 0, %s21
      %s40 = sphi 0, %s42
      %s43 = sphi 0, %s40
      %s44 = sphi 0, %s43
      %s60 = sphi 0, %s44
      %s68 = sphi 0, %s70
      %s71 = sphi 0, %s68
      %s72 = sphi 0, %s71
      %s88 = sphi 0, %s72
      %s94 = sphi 0, %s96
      %s97 = sphi 0, %s94
      %s98 = sphi 0, %s97
      %s114 = sphi 0, %s98
      %s122 = sphi 0, %s124
      %s125 = sphi 0, %s122
      %s126 = sphi 0, %s125
      %s142 = sphi 0, %s126
    $region4: #{_lambda_.29} parent=1 // loop_header_branch
      %12 = sbr.rel (%p10) target = $region8
    $region5: #{_lambda_.29} parent=1 // loop_body
      %s14 = ssub.s32 %s9, 1
      %s15 = ssub.s32 %s9, 2
      %s25 = sadd.s32 1, %s18
      %p26 = scmp.ge.s32.totalorder %s25, 6
      %s27 = scalar_select %p26, 0, %s25
      %s28 = sadd.s32 1, %s17
      %s29 = scalar_select %p26, %s28, %s17
      %p30 = scmp.ge.s32.totalorder %s29, 1
      %s31 = scalar_select %p30, 0, %s29
      %s32 = sadd.s32 1, %s16
      %s33 = scalar_select %p30, %s32, %s16
      %p34 = scmp.ge.s32.totalorder %s33, 1
      %s35 = scalar_select %p34, 0, %s33
      %s36 = ssub.s32 %s16, %s35
      %s37 = ssub.s32 %s18, %s27
      %s38 = sor.u32 %s36, %s37
      %p39 = scmp.eq.s32.totalorder %s38, 0
      %s41 = sadd.s32 %s40, 1
      %s42 = scalar_select %p39, %s40, %s41
      %p45 = pneg %p39
      %p46 = scmp.eq.s32.totalorder %s9, 5
      %p47 = por %p45, %p46
      %p48 = scmp.ne.s32.totalorder %s40, %s43
      %p49 = scmp.eq.s32.totalorder %s9, 0
      %p50 = por %p48, %p49
      %p51 = scmp.ne.s32.totalorder %s40, %s43
      %p52 = scmp.eq.s32.totalorder %s14, 5
      %p53 = por %p51, %p52
      %p54 = scmp.ne.s32.totalorder %s43, %s44
      %p55 = scmp.eq.s32.totalorder %s14, 0
      %p56 = por %p54, %p55
      %p57 = scmp.ne.s32.totalorder %s43, %s44
      %p58 = scmp.eq.s32.totalorder %s15, 5
      %p59 = por %p57, %p58
      %p61 = scmp.ne.s32.totalorder %s44, %s60
      %p62 = scmp.eq.s32.totalorder %s15, 0
      %p63 = por %p61, %p62
      %s64 = ssub.s32 %s18, %s27
      %s65 = ssub.s32 %s17, %s31
      %s66 = sor.u32 %s64, %s65
      %p67 = scmp.eq.s32.totalorder %s66, 0
      %s69 = sadd.s32 %s68, 1
      %s70 = scalar_select %p67, %s68, %s69
      %p73 = pneg %p67
      %p74 = scmp.eq.s32.totalorder %s9, 5
      %p75 = por %p73, %p74
      %p76 = scmp.ne.s32.totalorder %s68, %s71
      %p77 = scmp.eq.s32.totalorder %s9, 0
      %p78 = por %p76, %p77
      %p79 = scmp.ne.s32.totalorder %s68, %s71
      %p80 = scmp.eq.s32.totalorder %s14, 5
      %p81 = por %p79, %p80
      %p82 = scmp.ne.s32.totalorder %s71, %s72
      %p83 = scmp.eq.s32.totalorder %s14, 0
      %p84 = por %p82, %p83
      %p85 = scmp.ne.s32.totalorder %s71, %s72
      %p86 = scmp.eq.s32.totalorder %s15, 5
      %p87 = por %p85, %p86
      %p89 = scmp.ne.s32.totalorder %s72, %s88
      %p90 = scmp.eq.s32.totalorder %s15, 0
      %p91 = por %p89, %p90
      %s92 = ssub.s32 %s17, %s31
      %p93 = scmp.eq.s32.totalorder %s92, 0
      %s95 = sadd.s32 %s94, 1
      %s96 = scalar_select %p93, %s94, %s95
      %p99 = pneg %p93
      %p100 = scmp.eq.s32.totalorder %s9, 5
      %p101 = por %p99, %p100
      %p102 = scmp.ne.s32.totalorder %s94, %s97
      %p103 = scmp.eq.s32.totalorder %s9, 0
      %p104 = por %p102, %p103
      %p105 = scmp.ne.s32.totalorder %s94, %s97
      %p106 = scmp.eq.s32.totalorder %s14, 5
      %p107 = por %p105, %p106
      %p108 = scmp.ne.s32.totalorder %s97, %s98
      %p109 = scmp.eq.s32.totalorder %s14, 0
      %p110 = por %p108, %p109
      %p111 = scmp.ne.s32.totalorder %s97, %s98
      %p112 = scmp.eq.s32.totalorder %s15, 5
      %p113 = por %p111, %p112
      %p115 = scmp.ne.s32.totalorder %s98, %s114
      %p116 = scmp.eq.s32.totalorder %s15, 0
      %p117 = por %p115, %p116
      %s118 = ssub.s32 %s16, %s35
      %s119 = ssub.s32 %s17, %s31
      %s120 = sor.u32 %s118, %s119
      %p121 = scmp.eq.s32.totalorder %s120, 0
      %s123 = sadd.s32 %s122, 1
      %s124 = scalar_select %p121, %s122, %s123
      %p127 = pneg %p121
      %p128 = scmp.eq.s32.totalorder %s9, 5
      %p129 = por %p127, %p128
      %p130 = scmp.ne.s32.totalorder %s122, %s125
      %p131 = scmp.eq.s32.totalorder %s9, 0
      %p132 = por %p130, %p131
      %p133 = scmp.ne.s32.totalorder %s122, %s125
      %p134 = scmp.eq.s32.totalorder %s14, 5
      %p135 = por %p133, %p134
      %p136 = scmp.ne.s32.totalorder %s125, %s126
      %p137 = scmp.eq.s32.totalorder %s14, 0
      %p138 = por %p136, %p137
      %p139 = scmp.ne.s32.totalorder %s125, %s126
      %p140 = scmp.eq.s32.totalorder %s15, 5
      %p141 = por %p139, %p140
      %p143 = scmp.ne.s32.totalorder %s126, %s142
      %p144 = scmp.eq.s32.totalorder %s15, 0
      %p145 = por %p143, %p144
      %p146 = scmp.le.s32.totalorder 1, %s9
      %p147 = scmp.lt.s32.totalorder %s9, 7
      %p148 = pnand %p146, %p147
      %p149 = pneg %p148
      // Predicated region
      $region9: #{_lambda_.29} parent=5 // pred_check
        _
      $region10: #{_lambda_.29} parent=5 // pred_check_branch
        %151 = sbr.rel (%p148) target = $region12
      $region11: #{_lambda_.29} parent=5 // pred_region
        %s152 = ssub.s32 %s9, 1
        // Predicated region
        $region13: #{_lambda_.29} parent=11 // pred_check
          %p153 = pneg %p110
        $region14: #{_lambda_.29} parent=11 // pred_check_branch
          %155 = sbr.rel (%p153) target = $region16
        $region15: #{_lambda_.29} parent=11 // pred_region
          %s156 = smul.u32 3, %s20
          %p157 = scmp.lt.s32.totalorder %s156, 2
          %s158 = scalar_select %p157, %s156, 2
          %s159 = scalar_lea.vmem %s2, %s158
          %s160 = smul.u32 3, %s20
        $region16: #{_lambda_.29} parent=11 // pred_fallthru
          _
      $region12: #{_lambda_.29} parent=5 // pred_fallthru
        _
      %p161 = scmp.lt.s32.totalorder %s9, 6
      // Predicated region
      $region17: #{_lambda_.29} parent=5 // pred_check
        %p162 = pneg %p161
      $region18: #{_lambda_.29} parent=5 // pred_check_branch
        %164 = sbr.rel (%p162) target = $region20
      $region19: #{_lambda_.29} parent=5 // pred_region
        // Predicated region
        $region21: #{_lambda_.29} parent=19 // pred_check
          %p165 = pneg %p50
        $region22: #{_lambda_.29} parent=19 // pred_check_branch
          %167 = sbr.rel (%p165) target = $region24
        $region23: #{_lambda_.29} parent=19 // pred_region
          %s168 = sand.u32 %s40, 1
          %s169 = sand.u32 %s40, 1
          %s170 = smul.addr %s169, 72
          %s171 = scalar_lea.vmem [#allocation3], %s170
          %s172 = smul.u32 6, %s16
          %s173 = smul.u32 3, %s18
          %s174 = smul.addr %s172, 18
          %s175 = sadd.s32 %s173, %s174
          %s176 = smul.addr %s175, 4
          %s177 = scalar_lea.vmem %s0, %s176
          // Predicated region
          $region25: #{_lambda_.29} parent=23 // pred_check
            _
          $region26: #{_lambda_.29} parent=23 // pred_check_branch
            %179 = sbr.rel (0) target = $region28
          $region27: #{_lambda_.29} parent=23 // pred_region
            // Predicated region
            $region29: #{_lambda_.29} parent=27 // pred_check
              _
            $region30: #{_lambda_.29} parent=27 // pred_check_branch
              %181 = sbr.rel (0) target = $region32
            $region31: #{_lambda_.29} parent=27 // pred_region
              %s182 = scalar_lea.vmem %s177, 8
              %s183 = scalar_lea.vmem %s171, 8 [#allocation3]
              loop: start=0, step=1, limit=1
              $region33: #{_lambda_.29} parent=31 // loop_pre_header
                _
              $region34: #{_lambda_.29} parent=31 // loop_header
                %s185 = sphi 0, %s189
                %p186 = scmp.ge.s32.totalorder %s185, 1
                %s190 = sphi %s177, %s177
                %s191 = sphi %s171, %s171
              $region35: #{_lambda_.29} parent=31 // loop_header_branch
                %188 = sbr.rel (%p186) target = $region39
              $region36: #{_lambda_.29} parent=31 // loop_body
                %v192 = vld [vmem:[%s190] sm:$0xff]
                %193 = vst [vmem:[%s191] sm:$0xff] %v192
                %v194 = vld [vmem:[%s190 + $0x48] sm:$0xff]
                %195 = vst [vmem:[%s191 + $0xc] sm:$0xff] %v194
                %v196 = vld [vmem:[%s190 + $0x90] sm:$0xff]
                %197 = vst [vmem:[%s191 + $0x18] sm:$0xff] %v196
                %v198 = vld [vmem:[%s190 + $0xd8] sm:$0xff]
                %199 = vst [vmem:[%s191 + $0x24] sm:$0xff] %v198
                %v200 = vld [vmem:[%s190 + $0x120] sm:$0xff]
                %201 = vst [vmem:[%s191 + $0x30] sm:$0xff] %v200
                %v202 = vld [vmem:[%s190 + $0x168] sm:$0xff]
                %203 = vst [vmem:[%s191 + $0x3c] sm:$0xff] %v202
              $region37: #{_lambda_.29} parent=31 // loop_footer
                %s189 = sadd.s32 1, %s185
              $region38: #{_lambda_.29} parent=31 // loop_footer_branch
                %184 = sbr.rel target = $region34
              $region39: #{_lambda_.29} parent=31 // loop_exit
                _
              loop: start=0, step=1, limit=1
              $region40: #{_lambda_.29} parent=31 // loop_pre_header
                _
              $region41: #{_lambda_.29} parent=31 // loop_header
                %s206 = sphi 0, %s210
                %p207 = scmp.ge.s32.totalorder %s206, 1
                %s211 = sphi %s182, %s182
                %s212 = sphi %s183, %s183
              $region42: #{_lambda_.29} parent=31 // loop_header_branch
                %209 = sbr.rel (%p207) target = $region46
              $region43: #{_lambda_.29} parent=31 // loop_body
                %v213 = vld [vmem:[%s211] sm:$0xf]
                %214 = vst [vmem:[%s212] sm:$0xf] %v213
                %v215 = vld [vmem:[%s211 + $0x48] sm:$0xf]
                %216 = vst [vmem:[%s212 + $0xc] sm:$0xf] %v215
                %v217 = vld [vmem:[%s211 + $0x90] sm:$0xf]
                %218 = vst [vmem:[%s212 + $0x18] sm:$0xf] %v217
                %v219 = vld [vmem:[%s211 + $0xd8] sm:$0xf]
                %220 = vst [vmem:[%s212 + $0x24] sm:$0xf] %v219
                %v221 = vld [vmem:[%s211 + $0x120] sm:$0xf]
                %222 = vst [vmem:[%s212 + $0x30] sm:$0xf] %v221
                %v223 = vld [vmem:[%s211 + $0x168] sm:$0xf]
                %224 = vst [vmem:[%s212 + $0x3c] sm:$0xf] %v223
              $region44: #{_lambda_.29} parent=31 // loop_footer
                %s210 = sadd.s32 1, %s206
              $region45: #{_lambda_.29} parent=31 // loop_footer_branch
                %205 = sbr.rel target = $region41
              $region46: #{_lambda_.29} parent=31 // loop_exit
                _
            $region32: #{_lambda_.29} parent=27 // pred_fallthru
              _
          $region28: #{_lambda_.29} parent=23 // pred_fallthru
            _
          %225 = vnop
        $region24: #{_lambda_.29} parent=19 // pred_fallthru
          _
        // Predicated region
        $region47: #{_lambda_.29} parent=19 // pred_check
          %p226 = pneg %p78
        $region48: #{_lambda_.29} parent=19 // pred_check_branch
          %228 = sbr.rel (%p226) target = $region50
        $region49: #{_lambda_.29} parent=19 // pred_region
          %s229 = smul.u32 48, %s18
          %s230 = smul.u32 3, %s17
          %p231 = scmp.lt.s32.totalorder %s229, 287
          %s232 = scalar_select %p231, %s229, 287
          %p233 = scmp.lt.s32.totalorder %s230, 2
          %s234 = scalar_select %p233, %s230, 2
          %s235 = smul.addr %s232, 3
          %s236 = sadd.s32 %s234, %s235
          %s237 = smul.addr %s236, 4
          %s238 = scalar_lea.vmem %s1, %s237
          %s239 = smul.u32 48, %s18
          %s240 = smul.u32 3, %s17
        $region50: #{_lambda_.29} parent=19 // pred_fallthru
          _
      $region20: #{_lambda_.29} parent=5 // pred_fallthru
        _
      %p241 = scmp.le.s32.totalorder 1, %s9
      %p242 = scmp.lt.s32.totalorder %s9, 7
      %p243 = pnand %p241, %p242
      %p244 = pneg %p243
      // Predicated region
      $region51: #{_lambda_.29} parent=5 // pred_check
        _
      $region52: #{_lambda_.29} parent=5 // pred_check_branch
        %246 = sbr.rel (%p243) target = $region54
      $region53: #{_lambda_.29} parent=5 // pred_region
        %s247 = ssub.s32 %s9, 1
        %s248 = sand.u32 %s43, 1
        %s249 = sand.u32 %s43, 1
        %s250 = smul.addr %s249, 72
        %s251 = scalar_lea.vmem [#allocation3], %s250
        // Predicated region
        $region55: #{_lambda_.29} parent=53 // pred_check
          %p252 = pneg %p56
        $region56: #{_lambda_.29} parent=53 // pred_check_branch
          %254 = sbr.rel (%p252) target = $region58
        $region57: #{_lambda_.29} parent=53 // pred_region
          _
        $region58: #{_lambda_.29} parent=53 // pred_fallthru
          _
        %s255 = sand.u32 %s43, 1
        %s256 = sand.u32 %s43, 1
        %s257 = smul.addr %s256, 72
        %s258 = scalar_lea.vmem [#allocation3], %s257
        %p259 = pneg %p56
        %p260 = pneg %p53
        %s261 = smul.u32 48, %s21
        %s262 = smul.u32 3, %s20
        %p263 = scmp.lt.s32.totalorder %s261, 287
        %s264 = scalar_select %p263, %s261, 287
        %p265 = scmp.lt.s32.totalorder %s262, 2
        %s266 = scalar_select %p265, %s262, 2
        %s267 = smul.addr %s264, 3
        %s268 = sadd.s32 %s266, %s267
        %s269 = smul.addr %s268, 4
        %s270 = scalar_lea.vmem %s1, %s269
        %p271 = pneg %p84
        %p272 = pneg %p81
        %s273 = smul.u32 3, %s20
        %p274 = scmp.lt.s32.totalorder %s273, 2
        %s275 = scalar_select %p274, %s273, 2
        %s276 = scalar_lea.vmem %s2, %s275
        %p277 = pneg %p110
        %p278 = pneg %p107
        %p279 = pneg %p138
        %p280 = pneg %p135
        %s281 = smul.u32 6, %s19
        %s282 = smul.u32 3, %s20
        %p283 = scmp.lt.s32.totalorder %s281, 5
        %s284 = scalar_select %p283, %s281, 5
        %p285 = scmp.lt.s32.totalorder %s282, 2
        %s286 = scalar_select %p285, %s282, 2
        %s287 = smul.addr %s284, 3
        %s288 = sadd.s32 %s286, %s287
        %s289 = smul.addr %s288, 4
        %s290 = scalar_lea.vmem %s3, %s289
        %s291 = smul.u32 6, %s19
        %s292 = smul.u32 3, %s21
        %s293 = smul.u32 48, %s21
        %s294 = smul.u32 3, %s20
        %p295 = scmp.lt.s32.totalorder %s293, 287
        %s296 = scalar_select %p295, %s293, 287
        %p297 = scmp.lt.s32.totalorder %s294, 2
        %s298 = scalar_select %p297, %s294, 2
        %s299 = smul.addr %s296, 3
        %s300 = sadd.s32 %s298, %s299
        %s301 = smul.addr %s300, 4
        %s302 = scalar_lea.vmem %s1, %s301
        %s303 = smul.u32 48, %s21
        %s304 = smul.u32 3, %s20
        %s305 = smul.u32 3, %s20
        %p306 = scmp.lt.s32.totalorder %s305, 2
        %s307 = scalar_select %p306, %s305, 2
        %s308 = scalar_lea.vmem %s2, %s307
        %s309 = smul.u32 3, %s20
        %s310 = smul.u32 6, %s19
        %s311 = smul.u32 3, %s20
        %p312 = scmp.lt.s32.totalorder %s310, 5
        %s313 = scalar_select %p312, %s310, 5
        %p314 = scmp.lt.s32.totalorder %s311, 2
        %s315 = scalar_select %p314, %s311, 2
        %s316 = smul.addr %s313, 3
        %s317 = sadd.s32 %s315, %s316
        %s318 = smul.addr %s317, 4
        %s319 = scalar_lea.vmem %s3, %s318
        %s320 = smul.u32 6, %s19
        %s321 = smul.u32 3, %s20
        %p323 = scmp.eq.s32.totalorder %s21, 0
        // Predicated region
        $region59: #{_lambda_.29} parent=53 // pred_check
          %p324 = pneg %p323
        $region60: #{_lambda_.29} parent=53 // pred_check_branch
          %326 = sbr.rel (%p324) target = $region62
        $region61: #{_lambda_.29} parent=53 // pred_region
          %327 = vst [vmem:[#allocation2] sm:$0xff] 0.0
          %328 = vst [vmem:[#allocation2 + $0x8] sm:$0xff] 0.0
          %329 = vst [vmem:[#allocation2 + $0x10] sm:$0xff] 0.0
          %330 = vst [vmem:[#allocation2 + $0x18] sm:$0xff] 0.0
          %331 = vst [vmem:[#allocation2 + $0x20] sm:$0xff] 0.0
          %332 = vst [vmem:[#allocation2 + $0x28] sm:$0xff] 0.0
          %333 = vst [vmem:[#allocation2 + $0x30] sm:$0xff] 0.0
          %334 = vst [vmem:[#allocation2 + $0x38] sm:$0xff] 0.0
          %335 = vst [vmem:[#allocation2 + $0x40] sm:$0xff] 0.0
          %336 = vst [vmem:[#allocation2 + $0x48] sm:$0xff] 0.0
          %337 = vst [vmem:[#allocation2 + $0x50] sm:$0xff] 0.0
          %338 = vst [vmem:[#allocation2 + $0x58] sm:$0xff] 0.0
          %339 = vst [vmem:[#allocation2 + $0x60] sm:$0xff] 0.0
          %340 = vst [vmem:[#allocation2 + $0x68] sm:$0xff] 0.0
          %341 = vst [vmem:[#allocation2 + $0x70] sm:$0xff] 0.0
          %342 = vst [vmem:[#allocation2 + $0x78] sm:$0xff] 0.0
          %343 = vst [vmem:[#allocation2 + $0x80] sm:$0xff] 0.0
          %344 = vst [vmem:[#allocation2 + $0x88] sm:$0xff] 0.0
        $region62: #{_lambda_.29} parent=53 // pred_fallthru
          _
        %v345 = vld [vmem:[#allocation2] sm:$0xff]
        %v346 = vld [vmem:[#allocation2 + $0x8] sm:$0xff]
        %v347 = vld [vmem:[#allocation2 + $0x10] sm:$0xff]
        %v348 = vld [vmem:[#allocation2 + $0x18] sm:$0xff]
        %v349 = vld [vmem:[#allocation2 + $0x20] sm:$0xff]
        %v350 = vld [vmem:[#allocation2 + $0x28] sm:$0xff]
        %v351 = vld [vmem:[#allocation2 + $0x30] sm:$0xff]
        %v352 = vld [vmem:[#allocation2 + $0x38] sm:$0xff]
        %v353 = vld [vmem:[#allocation2 + $0x40] sm:$0xff]
        %v354 = vld [vmem:[#allocation2 + $0x48] sm:$0xff]
        %v355 = vld [vmem:[#allocation2 + $0x50] sm:$0xff]
        %v356 = vld [vmem:[#allocation2 + $0x58] sm:$0xff]
        %v357 = vld [vmem:[#allocation2 + $0x60] sm:$0xff]
        %v358 = vld [vmem:[#allocation2 + $0x68] sm:$0xff]
        %v359 = vld [vmem:[#allocation2 + $0x70] sm:$0xff]
        %v360 = vld [vmem:[#allocation2 + $0x78] sm:$0xff]
        %v361 = vld [vmem:[#allocation2 + $0x80] sm:$0xff]
        %v362 = vld [vmem:[#allocation2 + $0x88] sm:$0xff]
        %v363 = vld [vmem:[%s251] sm:$0xff]
        %v364 = vld [vmem:[%s251 + $0x8] sm:$0xf]
        %v365 = vld [vmem:[%s251 + $0xc] sm:$0xff]
        %v366 = vld [vmem:[%s251 + $0x14] sm:$0xf]
        %v367 = vld [vmem:[%s251 + $0x18] sm:$0xff]
        %v368 = vld [vmem:[%s251 + $0x20] sm:$0xf]
        %v369 = vld [vmem:[%s251 + $0x24] sm:$0xff]
        %v370 = vld [vmem:[%s251 + $0x2c] sm:$0xf]
        %v371 = vld [vmem:[%s251 + $0x30] sm:$0xff]
        %v372 = vld [vmem:[%s251 + $0x38] sm:$0xf]
        %v373 = vld [vmem:[%s251 + $0x3c] sm:$0xff]
        %v374 = vld [vmem:[%s251 + $0x44] sm:$0xf]
        %v375 = vld [vmem:[%s302] sm:$0xff]
        %v376 = vld [vmem:[%s302 + $0x8] sm:$0xf]
        %v377 = vld [vmem:[%s302 + $0xc] sm:$0xff]
        %v378 = vld [vmem:[%s302 + $0x14] sm:$0xf]
        %v379 = vld [vmem:[%s302 + $0x18] sm:$0xff]
        %v380 = vld [vmem:[%s302 + $0x20] sm:$0xf]
        %v381 = vld [vmem:[%s302 + $0x24] sm:$0xff]
        %v382 = vld [vmem:[%s302 + $0x2c] sm:$0xf]
        %v383 = vld [vmem:[%s302 + $0x30] sm:$0xff]
        %v384 = vld [vmem:[%s302 + $0x38] sm:$0xf]
        %v385 = vld [vmem:[%s302 + $0x3c] sm:$0xff]
        %v386 = vld [vmem:[%s302 + $0x44] sm:$0xf]
        %v387 = vld [vmem:[%s302 + $0x48] sm:$0xff]
        %v388 = vld [vmem:[%s302 + $0x50] sm:$0xf]
        %v389 = vld [vmem:[%s302 + $0x54] sm:$0xff]
        %v390 = vld [vmem:[%s302 + $0x5c] sm:$0xf]
        %v391 = vld [vmem:[%s302 + $0x60] sm:$0xff]
        %v392 = vld [vmem:[%s302 + $0x68] sm:$0xf]
        %v393 = vld [vmem:[%s302 + $0x6c] sm:$0xff]
        %v394 = vld [vmem:[%s302 + $0x74] sm:$0xf]
        %v395 = vld [vmem:[%s302 + $0x78] sm:$0xff]
        %v396 = vld [vmem:[%s302 + $0x80] sm:$0xf]
        %v397 = vld [vmem:[%s302 + $0x84] sm:$0xff]
        %v398 = vld [vmem:[%s302 + $0x8c] sm:$0xf]
        %v399 = vld [vmem:[%s302 + $0x90] sm:$0xff]
        %v400 = vld [vmem:[%s302 + $0x98] sm:$0xf]
        %v401 = vld [vmem:[%s302 + $0x9c] sm:$0xff]
        %v402 = vld [vmem:[%s302 + $0xa4] sm:$0xf]
        %v403 = vld [vmem:[%s302 + $0xa8] sm:$0xff]
        %v404 = vld [vmem:[%s302 + $0xb0] sm:$0xf]
        %v405 = vld [vmem:[%s302 + $0xb4] sm:$0xff]
        %v406 = vld [vmem:[%s302 + $0xbc] sm:$0xf]
        %v407 = vld [vmem:[%s302 + $0xc0] sm:$0xff]
        %v408 = vld [vmem:[%s302 + $0xc8] sm:$0xf]
        %v409 = vld [vmem:[%s302 + $0xcc] sm:$0xff]
        %v410 = vld [vmem:[%s302 + $0xd4] sm:$0xf]
        %v411 = vld [vmem:[%s302 + $0xd8] sm:$0xff]
        %v412 = vld [vmem:[%s302 + $0xe0] sm:$0xf]
        %v413 = vld [vmem:[%s302 + $0xe4] sm:$0xff]
        %v414 = vld [vmem:[%s302 + $0xec] sm:$0xf]
        %v415 = vld [vmem:[%s302 + $0xf0] sm:$0xff]
        %v416 = vld [vmem:[%s302 + $0xf8] sm:$0xf]
        %v417 = vld [vmem:[%s302 + $0xfc] sm:$0xff]
        %v418 = vld [vmem:[%s302 + $0x104] sm:$0xf]
        %v419 = vld [vmem:[%s302 + $0x108] sm:$0xff]
        %v420 = vld [vmem:[%s302 + $0x110] sm:$0xf]
        %v421 = vld [vmem:[%s302 + $0x114] sm:$0xff]
        %v422 = vld [vmem:[%s302 + $0x11c] sm:$0xf]
        %v423 = vld [vmem:[%s302 + $0x120] sm:$0xff]
        %v424 = vld [vmem:[%s302 + $0x128] sm:$0xf]
        %v425 = vld [vmem:[%s302 + $0x12c] sm:$0xff]
        %v426 = vld [vmem:[%s302 + $0x134] sm:$0xf]
        %v427 = vld [vmem:[%s302 + $0x138] sm:$0xff]
        %v428 = vld [vmem:[%s302 + $0x140] sm:$0xf]
        %v429 = vld [vmem:[%s302 + $0x144] sm:$0xff]
        %v430 = vld [vmem:[%s302 + $0x14c] sm:$0xf]
        %v431 = vld [vmem:[%s302 + $0x150] sm:$0xff]
        %v432 = vld [vmem:[%s302 + $0x158] sm:$0xf]
        %v433 = vld [vmem:[%s302 + $0x15c] sm:$0xff]
        %v434 = vld [vmem:[%s302 + $0x164] sm:$0xf]
        %v435 = vld [vmem:[%s302 + $0x168] sm:$0xff]
        %v436 = vld [vmem:[%s302 + $0x170] sm:$0xf]
        %v437 = vld [vmem:[%s302 + $0x174] sm:$0xff]
        %v438 = vld [vmem:[%s302 + $0x17c] sm:$0xf]
        %v439 = vld [vmem:[%s302 + $0x180] sm:$0xff]
        %v440 = vld [vmem:[%s302 + $0x188] sm:$0xf]
        %v441 = vld [vmem:[%s302 + $0x18c] sm:$0xff]
        %v442 = vld [vmem:[%s302 + $0x194] sm:$0xf]
        %v443 = vld [vmem:[%s302 + $0x198] sm:$0xff]
        %v444 = vld [vmem:[%s302 + $0x1a0] sm:$0xf]
        %v445 = vld [vmem:[%s302 + $0x1a4] sm:$0xff]
        %v446 = vld [vmem:[%s302 + $0x1ac] sm:$0xf]
        %v447 = vld [vmem:[%s302 + $0x1b0] sm:$0xff]
        %v448 = vld [vmem:[%s302 + $0x1b8] sm:$0xf]
        %v449 = vld [vmem:[%s302 + $0x1bc] sm:$0xff]
        %v450 = vld [vmem:[%s302 + $0x1c4] sm:$0xf]
        %v451 = vld [vmem:[%s302 + $0x1c8] sm:$0xff]
        %v452 = vld [vmem:[%s302 + $0x1d0] sm:$0xf]
        %v453 = vld [vmem:[%s302 + $0x1d4] sm:$0xff]
        %v454 = vld [vmem:[%s302 + $0x1dc] sm:$0xf]
        %v455 = vld [vmem:[%s302 + $0x1e0] sm:$0xff]
        %v456 = vld [vmem:[%s302 + $0x1e8] sm:$0xf]
        %v457 = vld [vmem:[%s302 + $0x1ec] sm:$0xff]
        %v458 = vld [vmem:[%s302 + $0x1f4] sm:$0xf]
        %v459 = vld [vmem:[%s302 + $0x1f8] sm:$0xff]
        %v460 = vld [vmem:[%s302 + $0x200] sm:$0xf]
        %v461 = vld [vmem:[%s302 + $0x204] sm:$0xff]
        %v462 = vld [vmem:[%s302 + $0x20c] sm:$0xf]
        %v463 = vld [vmem:[%s302 + $0x210] sm:$0xff]
        %v464 = vld [vmem:[%s302 + $0x218] sm:$0xf]
        %v465 = vld [vmem:[%s302 + $0x21c] sm:$0xff]
        %v466 = vld [vmem:[%s302 + $0x224] sm:$0xf]
        %v467 = vld [vmem:[%s302 + $0x228] sm:$0xff]
        %v468 = vld [vmem:[%s302 + $0x230] sm:$0xf]
        %v469 = vld [vmem:[%s302 + $0x234] sm:$0xff]
        %v470 = vld [vmem:[%s302 + $0x23c] sm:$0xf]
        %v483 = vunpack.c.l.b16 %v363
        %v484 = vunpack.c.h.b16 %v363
        %v485 = vunpack.c.l.b16 %v364
        %v486 = vunpack.c.l.b16 %v365
        %v487 = vunpack.c.h.b16 %v365
        %v488 = vunpack.c.l.b16 %v366
        %v489 = vunpack.c.l.b16 %v367
        %v490 = vunpack.c.h.b16 %v367
        %v491 = vunpack.c.l.b16 %v368
        %v492 = vunpack.c.l.b16 %v369
        %v493 = vunpack.c.h.b16 %v369
        %v494 = vunpack.c.l.b16 %v370
        %v495 = vunpack.c.l.b16 %v371
        %v496 = vunpack.c.h.b16 %v371
        %v497 = vunpack.c.l.b16 %v372
        %v498 = vunpack.c.l.b16 %v373
        %v499 = vunpack.c.h.b16 %v373
        %v500 = vunpack.c.l.b16 %v374
        %v501 = vpack.c.b16 %v486, %v483
        %v502 = vpack.c.b16 %v487, %v484
        %v503 = vpack.c.b16 %v488, %v485
        %v504 = vpack.c.b16 %v492, %v489
        %v505 = vpack.c.b16 %v493, %v490
        %v506 = vpack.c.b16 %v494, %v491
        %v507 = vpack.c.b16 %v498, %v495
        %v508 = vpack.c.b16 %v499, %v496
        %v509 = vpack.c.b16 %v500, %v497
        %v615 = vunpack.c.l.b16 %v375
        %v616 = vunpack.c.h.b16 %v375
        %v617 = vunpack.c.l.b16 %v376
        %v618 = vunpack.c.l.b16 %v377
        %v619 = vunpack.c.h.b16 %v377
        %v620 = vunpack.c.l.b16 %v378
        %v621 = vunpack.c.l.b16 %v379
        %v622 = vunpack.c.h.b16 %v379
        %v623 = vunpack.c.l.b16 %v380
        %v624 = vunpack.c.l.b16 %v381
        %v625 = vunpack.c.h.b16 %v381
        %v626 = vunpack.c.l.b16 %v382
        %v627 = vunpack.c.l.b16 %v383
        %v628 = vunpack.c.h.b16 %v383
        %v629 = vunpack.c.l.b16 %v384
        %v630 = vunpack.c.l.b16 %v385
        %v631 = vunpack.c.h.b16 %v385
        %v632 = vunpack.c.l.b16 %v386
        %v633 = vunpack.c.l.b16 %v387
        %v634 = vunpack.c.h.b16 %v387
        %v635 = vunpack.c.l.b16 %v388
        %v636 = vunpack.c.l.b16 %v389
        %v637 = vunpack.c.h.b16 %v389
        %v638 = vunpack.c.l.b16 %v390
        %v639 = vunpack.c.l.b16 %v391
        %v640 = vunpack.c.h.b16 %v391
        %v641 = vunpack.c.l.b16 %v392
        %v642 = vunpack.c.l.b16 %v393
        %v643 = vunpack.c.h.b16 %v393
        %v644 = vunpack.c.l.b16 %v394
        %v645 = vunpack.c.l.b16 %v395
        %v646 = vunpack.c.h.b16 %v395
        %v647 = vunpack.c.l.b16 %v396
        %v648 = vunpack.c.l.b16 %v397
        %v649 = vunpack.c.h.b16 %v397
        %v650 = vunpack.c.l.b16 %v398
        %v651 = vunpack.c.l.b16 %v399
        %v652 = vunpack.c.h.b16 %v399
        %v653 = vunpack.c.l.b16 %v400
        %v654 = vunpack.c.l.b16 %v401
        %v655 = vunpack.c.h.b16 %v401
        %v656 = vunpack.c.l.b16 %v402
        %v657 = vunpack.c.l.b16 %v403
        %v658 = vunpack.c.h.b16 %v403
        %v659 = vunpack.c.l.b16 %v404
        %v660 = vunpack.c.l.b16 %v405
        %v661 = vunpack.c.h.b16 %v405
        %v662 = vunpack.c.l.b16 %v406
        %v663 = vunpack.c.l.b16 %v407
        %v664 = vunpack.c.h.b16 %v407
        %v665 = vunpack.c.l.b16 %v408
        %v666 = vunpack.c.l.b16 %v409
        %v667 = vunpack.c.h.b16 %v409
        %v668 = vunpack.c.l.b16 %v410
        %v669 = vunpack.c.l.b16 %v411
        %v670 = vunpack.c.h.b16 %v411
        %v671 = vunpack.c.l.b16 %v412
        %v672 = vunpack.c.l.b16 %v413
        %v673 = vunpack.c.h.b16 %v413
        %v674 = vunpack.c.l.b16 %v414
        %v675 = vunpack.c.l.b16 %v415
        %v676 = vunpack.c.h.b16 %v415
        %v677 = vunpack.c.l.b16 %v416
        %v678 = vunpack.c.l.b16 %v417
        %v679 = vunpack.c.h.b16 %v417
        %v680 = vunpack.c.l.b16 %v418
        %v681 = vunpack.c.l.b16 %v419
        %v682 = vunpack.c.h.b16 %v419
        %v683 = vunpack.c.l.b16 %v420
        %v684 = vunpack.c.l.b16 %v421
        %v685 = vunpack.c.h.b16 %v421
        %v686 = vunpack.c.l.b16 %v422
        %v687 = vunpack.c.l.b16 %v423
        %v688 = vunpack.c.h.b16 %v423
        %v689 = vunpack.c.l.b16 %v424
        %v690 = vunpack.c.l.b16 %v425
        %v691 = vunpack.c.h.b16 %v425
        %v692 = vunpack.c.l.b16 %v426
        %v693 = vunpack.c.l.b16 %v427
        %v694 = vunpack.c.h.b16 %v427
        %v695 = vunpack.c.l.b16 %v428
        %v696 = vunpack.c.l.b16 %v429
        %v697 = vunpack.c.h.b16 %v429
        %v698 = vunpack.c.l.b16 %v430
        %v699 = vunpack.c.l.b16 %v431
        %v700 = vunpack.c.h.b16 %v431
        %v701 = vunpack.c.l.b16 %v432
        %v702 = vunpack.c.l.b16 %v433
        %v703 = vunpack.c.h.b16 %v433
        %v704 = vunpack.c.l.b16 %v434
        %v705 = vunpack.c.l.b16 %v435
        %v706 = vunpack.c.h.b16 %v435
        %v707 = vunpack.c.l.b16 %v436
        %v708 = vunpack.c.l.b16 %v437
        %v709 = vunpack.c.h.b16 %v437
        %v710 = vunpack.c.l.b16 %v438
        %v711 = vunpack.c.l.b16 %v439
        %v712 = vunpack.c.h.b16 %v439
        %v713 = vunpack.c.l.b16 %v440
        %v714 = vunpack.c.l.b16 %v441
        %v715 = vunpack.c.h.b16 %v441
        %v716 = vunpack.c.l.b16 %v442
        %v717 = vunpack.c.l.b16 %v443
        %v718 = vunpack.c.h.b16 %v443
        %v719 = vunpack.c.l.b16 %v444
        %v720 = vunpack.c.l.b16 %v445
        %v721 = vunpack.c.h.b16 %v445
        %v722 = vunpack.c.l.b16 %v446
        %v723 = vunpack.c.l.b16 %v447
        %v724 = vunpack.c.h.b16 %v447
        %v725 = vunpack.c.l.b16 %v448
        %v726 = vunpack.c.l.b16 %v449
        %v727 = vunpack.c.h.b16 %v449
        %v728 = vunpack.c.l.b16 %v450
        %v729 = vunpack.c.l.b16 %v451
        %v730 = vunpack.c.h.b16 %v451
        %v731 = vunpack.c.l.b16 %v452
        %v732 = vunpack.c.l.b16 %v453
        %v733 = vunpack.c.h.b16 %v453
        %v734 = vunpack.c.l.b16 %v454
        %v735 = vunpack.c.l.b16 %v455
        %v736 = vunpack.c.h.b16 %v455
        %v737 = vunpack.c.l.b16 %v456
        %v738 = vunpack.c.l.b16 %v457
        %v739 = vunpack.c.h.b16 %v457
        %v740 = vunpack.c.l.b16 %v458
        %v741 = vunpack.c.l.b16 %v459
        %v742 = vunpack.c.h.b16 %v459
        %v743 = vunpack.c.l.b16 %v460
        %v744 = vunpack.c.l.b16 %v461
        %v745 = vunpack.c.h.b16 %v461
        %v746 = vunpack.c.l.b16 %v462
        %v747 = vunpack.c.l.b16 %v463
        %v748 = vunpack.c.h.b16 %v463
        %v749 = vunpack.c.l.b16 %v464
        %v750 = vunpack.c.l.b16 %v465
        %v751 = vunpack.c.h.b16 %v465
        %v752 = vunpack.c.l.b16 %v466
        %v753 = vunpack.c.l.b16 %v467
        %v754 = vunpack.c.h.b16 %v467
        %v755 = vunpack.c.l.b16 %v468
        %v756 = vunpack.c.l.b16 %v469
        %v757 = vunpack.c.h.b16 %v469
        %v758 = vunpack.c.l.b16 %v470
        %v759 = vpack.c.b16 %v618, %v615
        %v760 = vpack.c.b16 %v619, %v616
        %v761 = vpack.c.b16 %v620, %v617
        %v762 = vpack.c.b16 %v624, %v621
        %v763 = vpack.c.b16 %v625, %v622
        %v764 = vpack.c.b16 %v626, %v623
        %v765 = vpack.c.b16 %v630, %v627
        %v766 = vpack.c.b16 %v631, %v628
        %v767 = vpack.c.b16 %v632, %v629
        %v768 = vpack.c.b16 %v636, %v633
        %v769 = vpack.c.b16 %v637, %v634
        %v770 = vpack.c.b16 %v638, %v635
        %v771 = vpack.c.b16 %v642, %v639
        %v772 = vpack.c.b16 %v643, %v640
        %v773 = vpack.c.b16 %v644, %v641
        %v774 = vpack.c.b16 %v648, %v645
        %v775 = vpack.c.b16 %v649, %v646
        %v776 = vpack.c.b16 %v650, %v647
        %v777 = vpack.c.b16 %v654, %v651
        %v778 = vpack.c.b16 %v655, %v652
        %v779 = vpack.c.b16 %v656, %v653
        %v780 = vpack.c.b16 %v660, %v657
        %v781 = vpack.c.b16 %v661, %v658
        %v782 = vpack.c.b16 %v662, %v659
        %v783 = vpack.c.b16 %v666, %v663
        %v784 = vpack.c.b16 %v667, %v664
        %v785 = vpack.c.b16 %v668, %v665
        %v786 = vpack.c.b16 %v672, %v669
        %v787 = vpack.c.b16 %v673, %v670
        %v788 = vpack.c.b16 %v674, %v671
        %v789 = vpack.c.b16 %v678, %v675
        %v790 = vpack.c.b16 %v679, %v676
        %v791 = vpack.c.b16 %v680, %v677
        %v792 = vpack.c.b16 %v684, %v681
        %v793 = vpack.c.b16 %v685, %v682
        %v794 = vpack.c.b16 %v686, %v683
        %v795 = vpack.c.b16 %v690, %v687
        %v796 = vpack.c.b16 %v691, %v688
        %v797 = vpack.c.b16 %v692, %v689
        %v798 = vpack.c.b16 %v696, %v693
        %v799 = vpack.c.b16 %v697, %v694
        %v800 = vpack.c.b16 %v698, %v695
        %v801 = vpack.c.b16 %v702, %v699
        %v802 = vpack.c.b16 %v703, %v700
        %v803 = vpack.c.b16 %v704, %v701
        %v804 = vpack.c.b16 %v708, %v705
        %v805 = vpack.c.b16 %v709, %v706
        %v806 = vpack.c.b16 %v710, %v707
        %v807 = vpack.c.b16 %v714, %v711
        %v808 = vpack.c.b16 %v715, %v712
        %v809 = vpack.c.b16 %v716, %v713
        %v810 = vpack.c.b16 %v720, %v717
        %v811 = vpack.c.b16 %v721, %v718
        %v812 = vpack.c.b16 %v722, %v719
        %v813 = vpack.c.b16 %v726, %v723
        %v814 = vpack.c.b16 %v727, %v724
        %v815 = vpack.c.b16 %v728, %v725
        %v816 = vpack.c.b16 %v732, %v729
        %v817 = vpack.c.b16 %v733, %v730
        %v818 = vpack.c.b16 %v734, %v731
        %v819 = vpack.c.b16 %v738, %v735
        %v820 = vpack.c.b16 %v739, %v736
        %v821 = vpack.c.b16 %v740, %v737
        %v822 = vpack.c.b16 %v744, %v741
        %v823 = vpack.c.b16 %v745, %v742
        %v824 = vpack.c.b16 %v746, %v743
        %v825 = vpack.c.b16 %v750, %v747
        %v826 = vpack.c.b16 %v751, %v748
        %v827 = vpack.c.b16 %v752, %v749
        %v828 = vpack.c.b16 %v756, %v753
        %v829 = vpack.c.b16 %v757, %v754
        %v830 = vpack.c.b16 %v758, %v755
        %903 = vmatprep.subr.bf16.mxu0 %v760
        %904 = vmatpush1.bf16.msra.mxu0 %v759
        %905 = vmatprep.subr.bf16.mxu0 %v763
        %906 = vmatpush1.bf16.msra.mxu0 %v762
        %907 = vmatprep.subr.bf16.mxu0 %v766
        %908 = vmatpush1.bf16.msra.mxu0 %v765
        %909 = vmatprep.subr.bf16.mxu0 %v769
        %910 = vmatpush1.bf16.msra.mxu0 %v768
        %911 = vmatprep.subr.bf16.mxu0 %v772
        %912 = vmatpush1.bf16.msra.mxu0 %v771
        %913 = vmatprep.subr.bf16.mxu0 %v775
        %914 = vmatpush1.bf16.msra.mxu0 %v774
        %915 = vmatprep.subr.bf16.mxu0 %v778
        %916 = vmatpush1.bf16.msra.mxu0 %v777
        %917 = vmatprep.subr.bf16.mxu0 %v781
        %918 = vmatpush1.bf16.msra.mxu0 %v780
        %919 = vmatprep.subr.bf16.mxu0 %v784
        %920 = vmatpush1.bf16.msra.mxu0 %v783
        %921 = vmatprep.subr.bf16.mxu0 %v787
        %922 = vmatpush1.bf16.msra.mxu0 %v786
        %923 = vmatprep.subr.bf16.mxu0 %v790
        %924 = vmatpush1.bf16.msra.mxu0 %v789
        %925 = vmatprep.subr.bf16.mxu0 %v793
        %926 = vmatpush1.bf16.msra.mxu0 %v792
        %927 = vmatprep.subr.bf16.mxu0 %v796
        %928 = vmatpush1.bf16.msra.mxu0 %v795
        %929 = vmatprep.subr.bf16.mxu0 %v799
        %930 = vmatpush1.bf16.msra.mxu0 %v798
        %931 = vmatprep.subr.bf16.mxu0 %v802
        %932 = vmatpush1.bf16.msra.mxu0 %v801
        %933 = vmatprep.subr.bf16.mxu0 %v805
        %934 = vmatpush1.bf16.msra.mxu0 %v804
        %935 = vmatprep.mubr.bf16.mxu0 %v502
        %936 = vmatmul.mubr.bf16.gmra.mrb[0].mxu0 %v501
        %v937 = vpop.f32.mrb[0].mxu0
        %v938 = vadd.f32 0.0, %v937
        %v939 = vpop.f32.mrb[0].mxu0
        %v940 = vadd.f32 0.0, %v939
        %v941 = vpop.f32.mrb[0].mxu0
        %v942 = vadd.f32 0.0, %v941
        %v943 = vpop.f32.mrb[0].mxu0
        %v944 = vadd.f32 0.0, %v943
        %945 = vmatprep.mubr.bf16.mxu0 %v505
        %946 = vmatmul.mubr.bf16.gmra.mrb[0].mxu0 %v504
        %v947 = vpop.f32.mrb[0].mxu0
        %v948 = vadd.f32 0.0, %v947
        %v949 = vpop.f32.mrb[0].mxu0
        %v950 = vadd.f32 0.0, %v949
        %v951 = vpop.f32.mrb[0].mxu0
        %v952 = vadd.f32 0.0, %v951
        %v953 = vpop.f32.mrb[0].mxu0
        %v954 = vadd.f32 0.0, %v953
        %955 = vmatprep.mubr.bf16.mxu0 %v508
        %956 = vmatmul.mubr.bf16.gmra.mrb[0].mxu0 %v507
        %v957 = vpop.f32.mrb[0].mxu0
        %v958 = vadd.f32 0.0, %v957
        %v959 = vpop.f32.mrb[0].mxu0
        %v960 = vadd.f32 0.0, %v959
        %v961 = vpop.f32.mrb[0].mxu0
        %v962 = vadd.f32 0.0, %v961
        %v963 = vpop.f32.mrb[0].mxu0
        %v964 = vadd.f32 0.0, %v963
        %965 = vdwg.mxu0
        %966 = vmatprep.subr.bf16.mxu0 %v808
        %967 = vmatpush1.bf16.msra.mxu0 %v807
        %968 = vmatprep.subr.bf16.mxu0 %v811
        %969 = vmatpush1.bf16.msra.mxu0 %v810
        %970 = vmatprep.subr.bf16.mxu0 %v814
        %971 = vmatpush1.bf16.msra.mxu0 %v813
        %972 = vmatprep.subr.bf16.mxu0 %v817
        %973 = vmatpush1.bf16.msra.mxu0 %v816
        %974 = vmatprep.subr.bf16.mxu0 %v820
        %975 = vmatpush1.bf16.msra.mxu0 %v819
        %976 = vmatprep.subr.bf16.mxu0 %v823
        %977 = vmatpush1.bf16.msra.mxu0 %v822
        %978 = vmatprep.subr.bf16.mxu0 %v826
        %979 = vmatpush1.bf16.msra.mxu0 %v825
        %980 = vmatprep.subr.bf16.mxu0 %v829
        %981 = vmatpush1.bf16.msra.mxu0 %v828
        %982 = vmatprep.subr.bf16.mxu0 0
        %983 = vmatpush1.bf16.msra.mxu0 0
        %984 = vmatprep.subr.bf16.mxu0 0
        %985 = vmatpush1.bf16.msra.mxu0 0
        %986 = vmatprep.subr.bf16.mxu0 0
        %987 = vmatpush1.bf16.msra.mxu0 0
        %988 = vmatprep.subr.bf16.mxu0 0
        %989 = vmatpush1.bf16.msra.mxu0 0
        %990 = vmatprep.subr.bf16.mxu0 0
        %991 = vmatpush1.bf16.msra.mxu0 0
        %992 = vmatprep.subr.bf16.mxu0 0
        %993 = vmatpush1.bf16.msra.mxu0 0
        %994 = vmatprep.subr.bf16.mxu0 0
        %995 = vmatpush1.bf16.msra.mxu0 0
        %996 = vmatprep.subr.bf16.mxu0 0
        %997 = vmatpush1.bf16.msra.mxu0 0
        %998 = vmatprep.mubr.bf16.mxu0 0
        %999 = vmatmul.mubr.bf16.gmra.mrb[0].mxu0 %v503
        %v1000 = vpop.f32.mrb[0].mxu0
        %v1001 = vadd.f32 %v938, %v1000
        %v1002 = vpop.f32.mrb[0].mxu0
        %v1003 = vadd.f32 %v940, %v1002
        %v1004 = vpop.f32.mrb[0].mxu0
        %v1005 = vadd.f32 %v942, %v1004
        %v1006 = vpop.f32.mrb[0].mxu0
        %v1007 = vadd.f32 %v944, %v1006
        %1008 = vmatprep.mubr.bf16.mxu0 0
        %1009 = vmatmul.mubr.bf16.gmra.mrb[0].mxu0 %v506
        %v1010 = vpop.f32.mrb[0].mxu0
        %v1011 = vadd.f32 %v948, %v1010
        %v1012 = vpop.f32.mrb[0].mxu0
        %v1013 = vadd.f32 %v950, %v1012
        %v1014 = vpop.f32.mrb[0].mxu0
        %v1015 = vadd.f32 %v952, %v1014
        %v1016 = vpop.f32.mrb[0].mxu0
        %v1017 = vadd.f32 %v954, %v1016
        %1018 = vmatprep.mubr.bf16.mxu0 0
        %1019 = vmatmul.mubr.bf16.gmra.mrb[0].mxu0 %v509
        %v1020 = vpop.f32.mrb[0].mxu0
        %v1021 = vadd.f32 %v958, %v1020
        %v1022 = vpop.f32.mrb[0].mxu0
        %v1023 = vadd.f32 %v960, %v1022
        %v1024 = vpop.f32.mrb[0].mxu0
        %v1025 = vadd.f32 %v962, %v1024
        %v1026 = vpop.f32.mrb[0].mxu0
        %v1027 = vadd.f32 %v964, %v1026
        %1028 = vdwg.mxu0
        %1029 = vmatprep.subr.bf16.mxu0 0
        %1030 = vmatpush1.bf16.msra.mxu0 %v761
        %1031 = vmatprep.subr.bf16.mxu0 0
        %1032 = vmatpush1.bf16.msra.mxu0 %v764
        %1033 = vmatprep.subr.bf16.mxu0 0
        %1034 = vmatpush1.bf16.msra.mxu0 %v767
        %1035 = vmatprep.subr.bf16.mxu0 0
        %1036 = vmatpush1.bf16.msra.mxu0 %v770
        %1037 = vmatprep.subr.bf16.mxu0 0
        %1038 = vmatpush1.bf16.msra.mxu0 %v773
        %1039 = vmatprep.subr.bf16.mxu0 0
        %1040 = vmatpush1.bf16.msra.mxu0 %v776
        %1041 = vmatprep.subr.bf16.mxu0 0
        %1042 = vmatpush1.bf16.msra.mxu0 %v779
        %1043 = vmatprep.subr.bf16.mxu0 0
        %1044 = vmatpush1.bf16.msra.mxu0 %v782
        %1045 = vmatprep.subr.bf16.mxu0 0
        %1046 = vmatpush1.bf16.msra.mxu0 %v785
        %1047 = vmatprep.subr.bf16.mxu0 0
        %1048 = vmatpush1.bf16.msra.mxu0 %v788
        %1049 = vmatprep.subr.bf16.mxu0 0
        %1050 = vmatpush1.bf16.msra.mxu0 %v791
        %1051 = vmatprep.subr.bf16.mxu0 0
        %1052 = vmatpush1.bf16.msra.mxu0 %v794
        %1053 = vmatprep.subr.bf16.mxu0 0
        %1054 = vmatpush1.bf16.msra.mxu0 %v797
        %1055 = vmatprep.subr.bf16.mxu0 0
        %1056 = vmatpush1.bf16.msra.mxu0 %v800
        %1057 = vmatprep.subr.bf16.mxu0 0
        %1058 = vmatpush1.bf16.msra.mxu0 %v803
        %1059 = vmatprep.subr.bf16.mxu0 0
        %1060 = vmatpush1.bf16.msra.mxu0 %v806
        %1061 = vmatprep.mubr.bf16.mxu0 %v502
        %1062 = vmatmul.mubr.bf16.gmra.mrb[0].mxu0 %v501
        %v1063 = vpop.f32.mrb[0].mxu0
        %v1064 = vadd.f32 0.0, %v1063
        %v1065 = vpop.f32.mrb[0].mxu0
        %v1066 = vpop.f32.mrb[0].mxu0
        %v1067 = vadd.f32 0.0, %v1066
        %v1068 = vpop.f32.mrb[0].mxu0
        %1069 = vmatprep.mubr.bf16.mxu0 %v505
        %1070 = vmatmul.mubr.bf16.gmra.mrb[0].mxu0 %v504
        %v1071 = vpop.f32.mrb[0].mxu0
        %v1072 = vadd.f32 0.0, %v1071
        %v1073 = vpop.f32.mrb[0].mxu0
        %v1074 = vpop.f32.mrb[0].mxu0
        %v1075 = vadd.f32 0.0, %v1074
        %v1076 = vpop.f32.mrb[0].mxu0
        %1077 = vmatprep.mubr.bf16.mxu0 %v508
        %1078 = vmatmul.mubr.bf16.gmra.mrb[0].mxu0 %v507
        %v1079 = vpop.f32.mrb[0].mxu0
        %v1080 = vadd.f32 0.0, %v1079
        %v1081 = vpop.f32.mrb[0].mxu0
        %v1082 = vpop.f32.mrb[0].mxu0
        %v1083 = vadd.f32 0.0, %v1082
        %v1084 = vpop.f32.mrb[0].mxu0
        %1085 = vdwg.mxu0
        %1086 = vmatprep.subr.bf16.mxu0 0
        %1087 = vmatpush1.bf16.msra.mxu0 %v809
        %1088 = vmatprep.subr.bf16.mxu0 0
        %1089 = vmatpush1.bf16.msra.mxu0 %v812
        %1090 = vmatprep.subr.bf16.mxu0 0
        %1091 = vmatpush1.bf16.msra.mxu0 %v815
        %1092 = vmatprep.subr.bf16.mxu0 0
        %1093 = vmatpush1.bf16.msra.mxu0 %v818
        %1094 = vmatprep.subr.bf16.mxu0 0
        %1095 = vmatpush1.bf16.msra.mxu0 %v821
        %1096 = vmatprep.subr.bf16.mxu0 0
        %1097 = vmatpush1.bf16.msra.mxu0 %v824
        %1098 = vmatprep.subr.bf16.mxu0 0
        %1099 = vmatpush1.bf16.msra.mxu0 %v827
        %1100 = vmatprep.subr.bf16.mxu0 0
        %1101 = vmatpush1.bf16.msra.mxu0 %v830
        %1102 = vmatprep.subr.bf16.mxu0 0
        %1103 = vmatpush1.bf16.msra.mxu0 0
        %1104 = vmatprep.subr.bf16.mxu0 0
        %1105 = vmatpush1.bf16.msra.mxu0 0
        %1106 = vmatprep.subr.bf16.mxu0 0
        %1107 = vmatpush1.bf16.msra.mxu0 0
        %1108 = vmatprep.subr.bf16.mxu0 0
        %1109 = vmatpush1.bf16.msra.mxu0 0
        %1110 = vmatprep.subr.bf16.mxu0 0
        %1111 = vmatpush1.bf16.msra.mxu0 0
        %1112 = vmatprep.subr.bf16.mxu0 0
        %1113 = vmatpush1.bf16.msra.mxu0 0
        %1114 = vmatprep.subr.bf16.mxu0 0
        %1115 = vmatpush1.bf16.msra.mxu0 0
        %1116 = vmatprep.subr.bf16.mxu0 0
        %1117 = vmatpush1.bf16.msra.mxu0 0
        %1118 = vmatprep.mubr.bf16.mxu0 0
        %1119 = vmatmul.mubr.bf16.gmra.mrb[0].mxu0 %v503
        %v1120 = vpop.f32.mrb[0].mxu0
        %v1121 = vadd.f32 %v1064, %v1120
        %v1122 = vpop.f32.mrb[0].mxu0
        %v1123 = vpop.f32.mrb[0].mxu0
        %v1124 = vadd.f32 %v1067, %v1123
        %v1125 = vpop.f32.mrb[0].mxu0
        %1126 = vmatprep.mubr.bf16.mxu0 0
        %1127 = vmatmul.mubr.bf16.gmra.mrb[0].mxu0 %v506
        %v1128 = vpop.f32.mrb[0].mxu0
        %v1129 = vadd.f32 %v1072, %v1128
        %v1130 = vpop.f32.mrb[0].mxu0
        %v1131 = vpop.f32.mrb[0].mxu0
        %v1132 = vadd.f32 %v1075, %v1131
        %v1133 = vpop.f32.mrb[0].mxu0
        %1134 = vmatprep.mubr.bf16.mxu0 0
        %1135 = vmatmul.mubr.bf16.gmra.mrb[0].mxu0 %v509
        %v1136 = vpop.f32.mrb[0].mxu0
        %v1137 = vadd.f32 %v1080, %v1136
        %v1138 = vpop.f32.mrb[0].mxu0
        %v1139 = vpop.f32.mrb[0].mxu0
        %v1140 = vadd.f32 %v1083, %v1139
        %v1141 = vpop.f32.mrb[0].mxu0
        %1142 = vdwg.mxu0
        %v1143 = vadd.f32 %v345, %v1001
        %v1144 = vadd.f32 %v346, %v1003
        %v1145 = vadd.f32 %v347, %v1121
        %v1146 = vadd.f32 %v348, %v1005
        %v1147 = vadd.f32 %v349, %v1007
        %v1148 = vadd.f32 %v350, %v1124
        %v1149 = vadd.f32 %v351, %v1011
        %v1150 = vadd.f32 %v352, %v1013
        %v1151 = vadd.f32 %v353, %v1129
        %v1152 = vadd.f32 %v354, %v1015
        %v1153 = vadd.f32 %v355, %v1017
        %v1154 = vadd.f32 %v356, %v1132
        %v1155 = vadd.f32 %v357, %v1021
        %v1156 = vadd.f32 %v358, %v1023
        %v1157 = vadd.f32 %v359, %v1137
        %v1158 = vadd.f32 %v360, %v1025
        %v1159 = vadd.f32 %v361, %v1027
        %v1160 = vadd.f32 %v362, %v1140
        %1161 = vst [vmem:[#allocation2] sm:$0xff] %v1143
        %1162 = vst [vmem:[#allocation2 + $0x8] sm:$0xff] %v1144
        %1163 = vst [vmem:[#allocation2 + $0x10] sm:$0xff] %v1145
        %1164 = vst [vmem:[#allocation2 + $0x18] sm:$0xff] %v1146
        %1165 = vst [vmem:[#allocation2 + $0x20] sm:$0xff] %v1147
        %1166 = vst [vmem:[#allocation2 + $0x28] sm:$0xff] %v1148
        %1167 = vst [vmem:[#allocation2 + $0x30] sm:$0xff] %v1149
        %1168 = vst [vmem:[#allocation2 + $0x38] sm:$0xff] %v1150
        %1169 = vst [vmem:[#allocation2 + $0x40] sm:$0xff] %v1151
        %1170 = vst [vmem:[#allocation2 + $0x48] sm:$0xff] %v1152
        %1171 = vst [vmem:[#allocation2 + $0x50] sm:$0xff] %v1153
        %1172 = vst [vmem:[#allocation2 + $0x58] sm:$0xff] %v1154
        %1173 = vst [vmem:[#allocation2 + $0x60] sm:$0xff] %v1155
        %1174 = vst [vmem:[#allocation2 + $0x68] sm:$0xff] %v1156
        %1175 = vst [vmem:[#allocation2 + $0x70] sm:$0xff] %v1157
        %1176 = vst [vmem:[#allocation2 + $0x78] sm:$0xff] %v1158
        %1177 = vst [vmem:[#allocation2 + $0x80] sm:$0xff] %v1159
        %1178 = vst [vmem:[#allocation2 + $0x88] sm:$0xff] %v1160
        %p1179 = scmp.eq.s32.totalorder %s21, 5
        // Predicated region
        $region63: #{_lambda_.29} parent=53 // pred_check
          %p1180 = pneg %p1179
        $region64: #{_lambda_.29} parent=53 // pred_check_branch
          %1182 = sbr.rel (%p1180) target = $region66
        $region65: #{_lambda_.29} parent=53 // pred_region
          %v1183 = vld [vmem:[#allocation2] sm:$0xff]
          %v1184 = vld [vmem:[#allocation2 + $0x8] sm:$0xff]
          %v1185 = vld [vmem:[#allocation2 + $0x10] sm:$0xff]
          %v1186 = vld [vmem:[#allocation2 + $0x18] sm:$0xff]
          %v1187 = vld [vmem:[#allocation2 + $0x20] sm:$0xff]
          %v1188 = vld [vmem:[#allocation2 + $0x28] sm:$0xff]
          %v1189 = vld [vmem:[#allocation2 + $0x30] sm:$0xff]
          %v1190 = vld [vmem:[#allocation2 + $0x38] sm:$0xff]
          %v1191 = vld [vmem:[#allocation2 + $0x40] sm:$0xff]
          %v1192 = vld [vmem:[#allocation2 + $0x48] sm:$0xff]
          %v1193 = vld [vmem:[#allocation2 + $0x50] sm:$0xff]
          %v1194 = vld [vmem:[#allocation2 + $0x58] sm:$0xff]
          %v1195 = vld [vmem:[#allocation2 + $0x60] sm:$0xff]
          %v1196 = vld [vmem:[#allocation2 + $0x68] sm:$0xff]
          %v1197 = vld [vmem:[#allocation2 + $0x70] sm:$0xff]
          %v1198 = vld [vmem:[#allocation2 + $0x78] sm:$0xff]
          %v1199 = vld [vmem:[#allocation2 + $0x80] sm:$0xff]
          %v1200 = vld [vmem:[#allocation2 + $0x88] sm:$0xff]
          %v1201 = vld [vmem:[%s308] sm:$0x7]
          %v1203 = vlaneseq
          %v1204 = vshrl.u32 %v1203, 7
          %v1205 = vsub.s32 0, %v1204
          %v1206 = vrot.slane %v1201, %v1205
          %v1207 = vlaneseq
          %v1208 = vshrl.u32 %v1207, 7
          %v1209 = vsub.s32 1, %v1208
          %v1210 = vrot.slane %v1201, %v1209
          %v1211 = vlaneseq
          %v1212 = vshrl.u32 %v1211, 7
          %v1213 = vsub.s32 2, %v1212
          %v1214 = vrot.slane %v1201, %v1213
          %v1218 = vadd.f32 %v1183, %v1206
          %v1219 = vadd.f32 %v1184, %v1210
          %v1220 = vadd.f32 %v1185, %v1214
          %v1221 = vadd.f32 %v1186, %v1206
          %v1222 = vadd.f32 %v1187, %v1210
          %v1223 = vadd.f32 %v1188, %v1214
          %v1224 = vadd.f32 %v1189, %v1206
          %v1225 = vadd.f32 %v1190, %v1210
          %v1226 = vadd.f32 %v1191, %v1214
          %v1227 = vadd.f32 %v1192, %v1206
          %v1228 = vadd.f32 %v1193, %v1210
          %v1229 = vadd.f32 %v1194, %v1214
          %v1230 = vadd.f32 %v1195, %v1206
          %v1231 = vadd.f32 %v1196, %v1210
          %v1232 = vadd.f32 %v1197, %v1214
          %v1233 = vadd.f32 %v1198, %v1206
          %v1234 = vadd.f32 %v1199, %v1210
          %v1235 = vadd.f32 %v1200, %v1214
          %v1236 = vmax.f32 %v1218, 0.0
          %v1237 = vmax.f32 %v1219, 0.0
          %v1238 = vmax.f32 %v1220, 0.0
          %v1239 = vmax.f32 %v1221, 0.0
          %v1240 = vmax.f32 %v1222, 0.0
          %v1241 = vmax.f32 %v1223, 0.0
          %v1242 = vmax.f32 %v1224, 0.0
          %v1243 = vmax.f32 %v1225, 0.0
          %v1244 = vmax.f32 %v1226, 0.0
          %v1245 = vmax.f32 %v1227, 0.0
          %v1246 = vmax.f32 %v1228, 0.0
          %v1247 = vmax.f32 %v1229, 0.0
          %v1248 = vmax.f32 %v1230, 0.0
          %v1249 = vmax.f32 %v1231, 0.0
          %v1250 = vmax.f32 %v1232, 0.0
          %v1251 = vmax.f32 %v1233, 0.0
          %v1252 = vmax.f32 %v1234, 0.0
          %v1253 = vmax.f32 %v1235, 0.0
          %v1254 = vpack.c.bf16 %v1239, %v1236
          %v1255 = vpack.c.bf16 %v1240, %v1237
          %v1256 = vpack.c.bf16 %v1241, %v1238
          %v1257 = vpack.c.bf16 %v1245, %v1242
          %v1258 = vpack.c.bf16 %v1246, %v1243
          %v1259 = vpack.c.bf16 %v1247, %v1244
          %v1260 = vpack.c.bf16 %v1251, %v1248
          %v1261 = vpack.c.bf16 %v1252, %v1249
          %v1262 = vpack.c.bf16 %v1253, %v1250
          %v1272 = vunpack.c.l.b16 %v1254
          %v1273 = vunpack.c.l.b16 %v1255
          %v1274 = vunpack.c.l.b16 %v1256
          %v1275 = vunpack.c.h.b16 %v1254
          %v1276 = vunpack.c.h.b16 %v1255
          %v1277 = vunpack.c.h.b16 %v1256
          %v1278 = vunpack.c.l.b16 %v1257
          %v1279 = vunpack.c.l.b16 %v1258
          %v1280 = vunpack.c.l.b16 %v1259
          %v1281 = vunpack.c.h.b16 %v1257
          %v1282 = vunpack.c.h.b16 %v1258
          %v1283 = vunpack.c.h.b16 %v1259
          %v1284 = vunpack.c.l.b16 %v1260
          %v1285 = vunpack.c.l.b16 %v1261
          %v1286 = vunpack.c.l.b16 %v1262
          %v1287 = vunpack.c.h.b16 %v1260
          %v1288 = vunpack.c.h.b16 %v1261
          %v1289 = vunpack.c.h.b16 %v1262
          %v1290 = vpack.c.b16 %v1273, %v1272
          %v1291 = vpack.c.b16 %v1274, %v1274
          %v1292 = vpack.c.b16 %v1276, %v1275
          %v1293 = vpack.c.b16 %v1277, %v1277
          %v1294 = vpack.c.b16 %v1279, %v1278
          %v1295 = vpack.c.b16 %v1280, %v1280
          %v1296 = vpack.c.b16 %v1282, %v1281
          %v1297 = vpack.c.b16 %v1283, %v1283
          %v1298 = vpack.c.b16 %v1285, %v1284
          %v1299 = vpack.c.b16 %v1286, %v1286
          %v1300 = vpack.c.b16 %v1288, %v1287
          %v1301 = vpack.c.b16 %v1289, %v1289
          %1314 = vst [vmem:[%s319] sm:$0xff] %v1290
          %1315 = vst [vmem:[%s319 + $0x8] sm:$0xf] %v1291
          %1316 = vst [vmem:[%s319 + $0xc] sm:$0xff] %v1292
          %1317 = vst [vmem:[%s319 + $0x14] sm:$0xf] %v1293
          %1318 = vst [vmem:[%s319 + $0x18] sm:$0xff] %v1294
          %1319 = vst [vmem:[%s319 + $0x20] sm:$0xf] %v1295
          %1320 = vst [vmem:[%s319 + $0x24] sm:$0xff] %v1296
          %1321 = vst [vmem:[%s319 + $0x2c] sm:$0xf] %v1297
          %1322 = vst [vmem:[%s319 + $0x30] sm:$0xff] %v1298
          %1323 = vst [vmem:[%s319 + $0x38] sm:$0xf] %v1299
          %1324 = vst [vmem:[%s319 + $0x3c] sm:$0xff] %v1300
          %1325 = vst [vmem:[%s319 + $0x44] sm:$0xf] %v1301
        $region66: #{_lambda_.29} parent=53 // pred_fallthru
          _
        %s1326 = smul.u32 6, %s19
        %s1327 = smul.u32 3, %s20
        %p1328 = scmp.lt.s32.totalorder %s1326, 5
        %s1329 = scalar_select %p1328, %s1326, 5
        %p1330 = scmp.lt.s32.totalorder %s1327, 2
        %s1331 = scalar_select %p1330, %s1327, 2
        %s1332 = smul.addr %s1329, 3
        %s1333 = sadd.s32 %s1331, %s1332
        %s1334 = smul.addr %s1333, 4
        %s1335 = scalar_lea.vmem %s3, %s1334
        // Predicated region
        $region67: #{_lambda_.29} parent=53 // pred_check
          %p1336 = pneg %p135
        $region68: #{_lambda_.29} parent=53 // pred_check_branch
          %1338 = sbr.rel (%p1336) target = $region70
        $region69: #{_lambda_.29} parent=53 // pred_region
          %s1339 = smul.u32 6, %s19
          %s1340 = smul.u32 3, %s20
        $region70: #{_lambda_.29} parent=53 // pred_fallthru
          _
        // Predicated region
        $region71: #{_lambda_.29} parent=53 // pred_check
          %p1341 = pneg %p135
        $region72: #{_lambda_.29} parent=53 // pred_check_branch
          %1343 = sbr.rel (%p1341) target = $region74
        $region73: #{_lambda_.29} parent=53 // pred_region
          %s1344 = smul.u32 6, %s19
          %s1345 = smul.u32 3, %s20
          %p1346 = scmp.lt.s32.totalorder %s1344, 5
          %s1347 = scalar_select %p1346, %s1344, 5
          %p1348 = scmp.lt.s32.totalorder %s1345, 2
          %s1349 = scalar_select %p1348, %s1345, 2
          %s1350 = smul.addr %s1347, 3
          %s1351 = sadd.s32 %s1349, %s1350
          %s1352 = smul.addr %s1351, 4
          %s1353 = scalar_lea.vmem %s3, %s1352
        $region74: #{_lambda_.29} parent=53 // pred_fallthru
          _
      $region54: #{_lambda_.29} parent=5 // pred_fallthru
        _
      %p1354 = scmp.le.s32.totalorder 2, %s9
      // Predicated region
      $region75: #{_lambda_.29} parent=5 // pred_check
        %p1355 = pneg %p1354
      $region76: #{_lambda_.29} parent=5 // pred_check_branch
        %1357 = sbr.rel (%p1355) target = $region78
      $region77: #{_lambda_.29} parent=5 // pred_region
        %s1358 = ssub.s32 %s9, 2
      $region78: #{_lambda_.29} parent=5 // pred_fallthru
        _
    $region6: #{_lambda_.29} parent=1 // loop_footer
      %s13 = sadd.s32 1, %s9
    $region7: #{_lambda_.29} parent=1 // loop_footer_branch
      %8 = sbr.rel target = $region3
    $region8: #{_lambda_.29} parent=1 // loop_exit
      _

// kernel: _lambda_.30
$region0: #{_lambda_.30}
  #allocation0 [shape = 'u32[]', space=smem, size = 0x4, offset = 0x4, fixed_abs, tag = 'smem constant byte address 0x4 - core index']
  #allocation1 [shape = 'u32[144,128]{1,0:T(1,128)}', space=vmem, size = 0x12000, scoped, tag = 'internal scratch']
  #allocation2 [shape = 'f32[48,256]{1,0:T(8,128)}', space=vmem, size = 0xc000, scoped, tag = 'scratch operand']
  %s0 = inlined_call_operand.vmem [shape: bf16[48,3456], index: 0, kind: input, shape index: {}]
  %s1 = inlined_call_operand.vmem [shape: bf16[3456,256], index: 1, kind: input, shape index: {}]
  %s2 = inlined_call_operand.vmem [shape: f32[1,256], index: 2, kind: input, shape index: {}]
  %s3 = inlined_call_operand.vmem [shape: bf16[48,256], index: 3, kind: output, shape index: {}]
  %s4 = sld [smem:[#allocation0]]
  $region79: #{_lambda_.30} parent=0
    _
  %s6 = ssub.s32 1, %s4
  %s7 = scalar_select 0, %s6, %s4
  $region1: #{_lambda_.30} parent=0
    #allocation3 [shape = 'u8[73728]{0}', space=vmem, size = 0x12000, scoped, tag = 'input window, operand 0']
    loop: start=0, step=1, limit=11
    $region2: #{_lambda_.30} parent=1 // loop_pre_header
      _
    $region3: #{_lambda_.30} parent=1 // loop_header
      %s9 = sphi 0, %s13
      %p10 = scmp.ge.s32.totalorder %s9, 11
      %s16 = sphi 0, %s35
      %s17 = sphi 0, %s31
      %s18 = sphi 0, %s27
      %s19 = sphi 0, %s16
      %s20 = sphi 0, %s17
      %s21 = sphi 0, %s18
      %s22 = sphi 0, %s19
      %s23 = sphi 0, %s20
      %s24 = sphi 0, %s21
      %s40 = sphi 0, %s42
      %s43 = sphi 0, %s40
      %s44 = sphi 0, %s43
      %s60 = sphi 0, %s44
      %s68 = sphi 0, %s70
      %s71 = sphi 0, %s68
      %s72 = sphi 0, %s71
      %s88 = sphi 0, %s72
      %s94 = sphi 0, %s96
      %s97 = sphi 0, %s94
      %s98 = sphi 0, %s97
      %s114 = sphi 0, %s98
      %s122 = sphi 0, %s124
      %s125 = sphi 0, %s122
      %s126 = sphi 0, %s125
      %s142 = sphi 0, %s126
    $region4: #{_lambda_.30} parent=1 // loop_header_branch
      %12 = sbr.rel (%p10) target = $region8
    $region5: #{_lambda_.30} parent=1 // loop_body
      %s14 = ssub.s32 %s9, 1
      %s15 = ssub.s32 %s9, 2
      %s25 = sadd.s32 1, %s18
      %p26 = scmp.ge.s32.totalorder %s25, 9
      %s27 = scalar_select %p26, 0, %s25
      %s28 = sadd.s32 1, %s17
      %s29 = scalar_select %p26, %s28, %s17
      %p30 = scmp.ge.s32.totalorder %s29, 1
      %s31 = scalar_select %p30, 0, %s29
      %s32 = sadd.s32 1, %s16
      %s33 = scalar_select %p30, %s32, %s16
      %p34 = scmp.ge.s32.totalorder %s33, 1
      %s35 = scalar_select %p34, 0, %s33
      %s36 = ssub.s32 %s16, %s35
      %s37 = ssub.s32 %s18, %s27
      %s38 = sor.u32 %s36, %s37
      %p39 = scmp.eq.s32.totalorder %s38, 0
      %s41 = sadd.s32 %s40, 1
      %s42 = scalar_select %p39, %s40, %s41
      %p45 = pneg %p39
      %p46 = scmp.eq.s32.totalorder %s9, 8
      %p47 = por %p45, %p46
      %p48 = scmp.ne.s32.totalorder %s40, %s43
      %p49 = scmp.eq.s32.totalorder %s9, 0
      %p50 = por %p48, %p49
      %p51 = scmp.ne.s32.totalorder %s40, %s43
      %p52 = scmp.eq.s32.totalorder %s14, 8
      %p53 = por %p51, %p52
      %p54 = scmp.ne.s32.totalorder %s43, %s44
      %p55 = scmp.eq.s32.totalorder %s14, 0
      %p56 = por %p54, %p55
      %p57 = scmp.ne.s32.totalorder %s43, %s44
      %p58 = scmp.eq.s32.totalorder %s15, 8
      %p59 = por %p57, %p58
      %p61 = scmp.ne.s32.totalorder %s44, %s60
      %p62 = scmp.eq.s32.totalorder %s15, 0
      %p63 = por %p61, %p62
      %s64 = ssub.s32 %s18, %s27
      %s65 = ssub.s32 %s17, %s31
      %s66 = sor.u32 %s64, %s65
      %p67 = scmp.eq.s32.totalorder %s66, 0
      %s69 = sadd.s32 %s68, 1
      %s70 = scalar_select %p67, %s68, %s69
      %p73 = pneg %p67
      %p74 = scmp.eq.s32.totalorder %s9, 8
      %p75 = por %p73, %p74
      %p76 = scmp.ne.s32.totalorder %s68, %s71
      %p77 = scmp.eq.s32.totalorder %s9, 0
      %p78 = por %p76, %p77
      %p79 = scmp.ne.s32.totalorder %s68, %s71
      %p80 = scmp.eq.s32.totalorder %s14, 8
      %p81 = por %p79, %p80
      %p82 = scmp.ne.s32.totalorder %s71, %s72
      %p83 = scmp.eq.s32.totalorder %s14, 0
      %p84 = por %p82, %p83
      %p85 = scmp.ne.s32.totalorder %s71, %s72
      %p86 = scmp.eq.s32.totalorder %s15, 8
      %p87 = por %p85, %p86
      %p89 = scmp.ne.s32.totalorder %s72, %s88
      %p90 = scmp.eq.s32.totalorder %s15, 0
      %p91 = por %p89, %p90
      %s92 = ssub.s32 %s17, %s31
      %p93 = scmp.eq.s32.totalorder %s92, 0
      %s95 = sadd.s32 %s94, 1
      %s96 = scalar_select %p93, %s94, %s95
      %p99 = pneg %p93
      %p100 = scmp.eq.s32.totalorder %s9, 8
      %p101 = por %p99, %p100
      %p102 = scmp.ne.s32.totalorder %s94, %s97
      %p103 = scmp.eq.s32.totalorder %s9, 0
      %p104 = por %p102, %p103
      %p105 = scmp.ne.s32.totalorder %s94, %s97
      %p106 = scmp.eq.s32.totalorder %s14, 8
      %p107 = por %p105, %p106
      %p108 = scmp.ne.s32.totalorder %s97, %s98
      %p109 = scmp.eq.s32.totalorder %s14, 0
      %p110 = por %p108, %p109
      %p111 = scmp.ne.s32.totalorder %s97, %s98
      %p112 = scmp.eq.s32.totalorder %s15, 8
      %p113 = por %p111, %p112
      %p115 = scmp.ne.s32.totalorder %s98, %s114
      %p116 = scmp.eq.s32.totalorder %s15, 0
      %p117 = por %p115, %p116
      %s118 = ssub.s32 %s16, %s35
      %s119 = ssub.s32 %s17, %s31
      %s120 = sor.u32 %s118, %s119
      %p121 = scmp.eq.s32.totalorder %s120, 0
      %s123 = sadd.s32 %s122, 1
      %s124 = scalar_select %p121, %s122, %s123
      %p127 = pneg %p121
      %p128 = scmp.eq.s32.totalorder %s9, 8
      %p129 = por %p127, %p128
      %p130 = scmp.ne.s32.totalorder %s122, %s125
      %p131 = scmp.eq.s32.totalorder %s9, 0
      %p132 = por %p130, %p131
      %p133 = scmp.ne.s32.totalorder %s122, %s125
      %p134 = scmp.eq.s32.totalorder %s14, 8
      %p135 = por %p133, %p134
      %p136 = scmp.ne.s32.totalorder %s125, %s126
      %p137 = scmp.eq.s32.totalorder %s14, 0
      %p138 = por %p136, %p137
      %p139 = scmp.ne.s32.totalorder %s125, %s126
      %p140 = scmp.eq.s32.totalorder %s15, 8
      %p141 = por %p139, %p140
      %p143 = scmp.ne.s32.totalorder %s126, %s142
      %p144 = scmp.eq.s32.totalorder %s15, 0
      %p145 = por %p143, %p144
      %p146 = scmp.le.s32.totalorder 1, %s9
      %p147 = scmp.lt.s32.totalorder %s9, 10
      %p148 = pnand %p146, %p147
      %p149 = pneg %p148
      // Predicated region
      $region9: #{_lambda_.30} parent=5 // pred_check
        _
      $region10: #{_lambda_.30} parent=5 // pred_check_branch
        %151 = sbr.rel (%p148) target = $region12
      $region11: #{_lambda_.30} parent=5 // pred_region
        %s152 = ssub.s32 %s9, 1
        // Predicated region
        $region13: #{_lambda_.30} parent=11 // pred_check
          %p153 = pneg %p110
        $region14: #{_lambda_.30} parent=11 // pred_check_branch
          %155 = sbr.rel (%p153) target = $region16
        $region15: #{_lambda_.30} parent=11 // pred_region
          %s156 = smul.u32 2, %s20
          %p157 = scmp.lt.s32.totalorder %s156, 1
          %s158 = scalar_select %p157, %s156, 1
          %s159 = scalar_lea.vmem %s2, %s158
          %s160 = smul.u32 2, %s20
        $region16: #{_lambda_.30} parent=11 // pred_fallthru
          _
      $region12: #{_lambda_.30} parent=5 // pred_fallthru
        _
      %p161 = scmp.lt.s32.totalorder %s9, 9
      // Predicated region
      $region17: #{_lambda_.30} parent=5 // pred_check
        %p162 = pneg %p161
      $region18: #{_lambda_.30} parent=5 // pred_check_branch
        %164 = sbr.rel (%p162) target = $region20
      $region19: #{_lambda_.30} parent=5 // pred_region
        // Predicated region
        $region21: #{_lambda_.30} parent=19 // pred_check
          %p165 = pneg %p50
        $region22: #{_lambda_.30} parent=19 // pred_check_branch
          %167 = sbr.rel (%p165) target = $region24
        $region23: #{_lambda_.30} parent=19 // pred_region
          %s168 = sand.u32 %s40, 1
          %s169 = sand.u32 %s40, 1
          %s170 = smul.addr %s169, 72
          %s171 = scalar_lea.vmem [#allocation3], %s170
          %s172 = smul.u32 6, %s16
          %s173 = smul.u32 3, %s18
          %s174 = smul.addr %s172, 27
          %s175 = sadd.s32 %s173, %s174
          %s176 = smul.addr %s175, 4
          %s177 = scalar_lea.vmem %s0, %s176
          // Predicated region
          $region25: #{_lambda_.30} parent=23 // pred_check
            _
          $region26: #{_lambda_.30} parent=23 // pred_check_branch
            %179 = sbr.rel (0) target = $region28
          $region27: #{_lambda_.30} parent=23 // pred_region
            // Predicated region
            $region29: #{_lambda_.30} parent=27 // pred_check
              _
            $region30: #{_lambda_.30} parent=27 // pred_check_branch
              %181 = sbr.rel (0) target = $region32
            $region31: #{_lambda_.30} parent=27 // pred_region
              %s182 = scalar_lea.vmem %s177, 8
              %s183 = scalar_lea.vmem %s171, 8 [#allocation3]
              loop: start=0, step=1, limit=1
              $region33: #{_lambda_.30} parent=31 // loop_pre_header
                _
              $region34: #{_lambda_.30} parent=31 // loop_header
                %s185 = sphi 0, %s189
                %p186 = scmp.ge.s32.totalorder %s185, 1
                %s190 = sphi %s177, %s177
                %s191 = sphi %s171, %s171
              $region35: #{_lambda_.30} parent=31 // loop_header_branch
                %188 = sbr.rel (%p186) target = $region39
              $region36: #{_lambda_.30} parent=31 // loop_body
                %v192 = vld [vmem:[%s190] sm:$0xff]
                %193 = vst [vmem:[%s191] sm:$0xff] %v192
                %v194 = vld [vmem:[%s190 + $0x6c] sm:$0xff]
                %195 = vst [vmem:[%s191 + $0xc] sm:$0xff] %v194
                %v196 = vld [vmem:[%s190 + $0xd8] sm:$0xff]
                %197 = vst [vmem:[%s191 + $0x18] sm:$0xff] %v196
                %v198 = vld [vmem:[%s190 + $0x144] sm:$0xff]
                %199 = vst [vmem:[%s191 + $0x24] sm:$0xff] %v198
                %v200 = vld [vmem:[%s190 + $0x1b0] sm:$0xff]
                %201 = vst [vmem:[%s191 + $0x30] sm:$0xff] %v200
                %v202 = vld [vmem:[%s190 + $0x21c] sm:$0xff]
                %203 = vst [vmem:[%s191 + $0x3c] sm:$0xff] %v202
              $region37: #{_lambda_.30} parent=31 // loop_footer
                %s189 = sadd.s32 1, %s185
              $region38: #{_lambda_.30} parent=31 // loop_footer_branch
                %184 = sbr.rel target = $region34
              $region39: #{_lambda_.30} parent=31 // loop_exit
                _
              loop: start=0, step=1, limit=1
              $region40: #{_lambda_.30} parent=31 // loop_pre_header
                _
              $region41: #{_lambda_.30} parent=31 // loop_header
                %s206 = sphi 0, %s210
                %p207 = scmp.ge.s32.totalorder %s206, 1
                %s211 = sphi %s182, %s182
                %s212 = sphi %s183, %s183
              $region42: #{_lambda_.30} parent=31 // loop_header_branch
                %209 = sbr.rel (%p207) target = $region46
              $region43: #{_lambda_.30} parent=31 // loop_body
                %v213 = vld [vmem:[%s211] sm:$0xf]
                %214 = vst [vmem:[%s212] sm:$0xf] %v213
                %v215 = vld [vmem:[%s211 + $0x6c] sm:$0xf]
                %216 = vst [vmem:[%s212 + $0xc] sm:$0xf] %v215
                %v217 = vld [vmem:[%s211 + $0xd8] sm:$0xf]
                %218 = vst [vmem:[%s212 + $0x18] sm:$0xf] %v217
                %v219 = vld [vmem:[%s211 + $0x144] sm:$0xf]
                %220 = vst [vmem:[%s212 + $0x24] sm:$0xf] %v219
                %v221 = vld [vmem:[%s211 + $0x1b0] sm:$0xf]
                %222 = vst [vmem:[%s212 + $0x30] sm:$0xf] %v221
                %v223 = vld [vmem:[%s211 + $0x21c] sm:$0xf]
                %224 = vst [vmem:[%s212 + $0x3c] sm:$0xf] %v223
              $region44: #{_lambda_.30} parent=31 // loop_footer
                %s210 = sadd.s32 1, %s206
              $region45: #{_lambda_.30} parent=31 // loop_footer_branch
                %205 = sbr.rel target = $region41
              $region46: #{_lambda_.30} parent=31 // loop_exit
                _
            $region32: #{_lambda_.30} parent=27 // pred_fallthru
              _
          $region28: #{_lambda_.30} parent=23 // pred_fallthru
            _
          %225 = vnop
        $region24: #{_lambda_.30} parent=19 // pred_fallthru
          _
        // Predicated region
        $region47: #{_lambda_.30} parent=19 // pred_check
          %p226 = pneg %p78
        $region48: #{_lambda_.30} parent=19 // pred_check_branch
          %228 = sbr.rel (%p226) target = $region50
        $region49: #{_lambda_.30} parent=19 // pred_region
          %s229 = smul.u32 48, %s18
          %s230 = smul.u32 2, %s17
          %p231 = scmp.lt.s32.totalorder %s229, 431
          %s232 = scalar_select %p231, %s229, 431
          %p233 = scmp.lt.s32.totalorder %s230, 1
          %s234 = scalar_select %p233, %s230, 1
          %s235 = smul.addr %s232, 2
          %s236 = sadd.s32 %s234, %s235
          %s237 = smul.addr %s236, 4
          %s238 = scalar_lea.vmem %s1, %s237
          %s239 = smul.u32 48, %s18
          %s240 = smul.u32 2, %s17
        $region50: #{_lambda_.30} parent=19 // pred_fallthru
          _
      $region20: #{_lambda_.30} parent=5 // pred_fallthru
        _
      %p241 = scmp.le.s32.totalorder 1, %s9
      %p242 = scmp.lt.s32.totalorder %s9, 10
      %p243 = pnand %p241, %p242
      %p244 = pneg %p243
      // Predicated region
      $region51: #{_lambda_.30} parent=5 // pred_check
        _
      $region52: #{_lambda_.30} parent=5 // pred_check_branch
        %246 = sbr.rel (%p243) target = $region54
      $region53: #{_lambda_.30} parent=5 // pred_region
        %s247 = ssub.s32 %s9, 1
        %s248 = sand.u32 %s43, 1
        %s249 = sand.u32 %s43, 1
        %s250 = smul.addr %s249, 72
        %s251 = scalar_lea.vmem [#allocation3], %s250
        // Predicated region
        $region55: #{_lambda_.30} parent=53 // pred_check
          %p252 = pneg %p56
        $region56: #{_lambda_.30} parent=53 // pred_check_branch
          %254 = sbr.rel (%p252) target = $region58
        $region57: #{_lambda_.30} parent=53 // pred_region
          _
        $region58: #{_lambda_.30} parent=53 // pred_fallthru
          _
        %s255 = sand.u32 %s43, 1
        %s256 = sand.u32 %s43, 1
        %s257 = smul.addr %s256, 72
        %s258 = scalar_lea.vmem [#allocation3], %s257
        %p259 = pneg %p56
        %p260 = pneg %p53
        %s261 = smul.u32 48, %s21
        %s262 = smul.u32 2, %s20
        %p263 = scmp.lt.s32.totalorder %s261, 431
        %s264 = scalar_select %p263, %s261, 431
        %p265 = scmp.lt.s32.totalorder %s262, 1
        %s266 = scalar_select %p265, %s262, 1
        %s267 = smul.addr %s264, 2
        %s268 = sadd.s32 %s266, %s267
        %s269 = smul.addr %s268, 4
        %s270 = scalar_lea.vmem %s1, %s269
        %p271 = pneg %p84
        %p272 = pneg %p81
        %s273 = smul.u32 2, %s20
        %p274 = scmp.lt.s32.totalorder %s273, 1
        %s275 = scalar_select %p274, %s273, 1
        %s276 = scalar_lea.vmem %s2, %s275
        %p277 = pneg %p110
        %p278 = pneg %p107
        %p279 = pneg %p138
        %p280 = pneg %p135
        %s281 = smul.u32 6, %s19
        %s282 = smul.u32 2, %s20
        %p283 = scmp.lt.s32.totalorder %s281, 5
        %s284 = scalar_select %p283, %s281, 5
        %p285 = scmp.lt.s32.totalorder %s282, 1
        %s286 = scalar_select %p285, %s282, 1
        %s287 = smul.addr %s284, 2
        %s288 = sadd.s32 %s286, %s287
        %s289 = smul.addr %s288, 4
        %s290 = scalar_lea.vmem %s3, %s289
        %s291 = smul.u32 6, %s19
        %s292 = smul.u32 3, %s21
        %s293 = smul.u32 48, %s21
        %s294 = smul.u32 2, %s20
        %p295 = scmp.lt.s32.totalorder %s293, 431
        %s296 = scalar_select %p295, %s293, 431
        %p297 = scmp.lt.s32.totalorder %s294, 1
        %s298 = scalar_select %p297, %s294, 1
        %s299 = smul.addr %s296, 2
        %s300 = sadd.s32 %s298, %s299
        %s301 = smul.addr %s300, 4
        %s302 = scalar_lea.vmem %s1, %s301
        %s303 = smul.u32 48, %s21
        %s304 = smul.u32 2, %s20
        %s305 = smul.u32 2, %s20
        %p306 = scmp.lt.s32.totalorder %s305, 1
        %s307 = scalar_select %p306, %s305, 1
        %s308 = scalar_lea.vmem %s2, %s307
        %s309 = smul.u32 2, %s20
        %s310 = smul.u32 6, %s19
        %s311 = smul.u32 2, %s20
        %p312 = scmp.lt.s32.totalorder %s310, 5
        %s313 = scalar_select %p312, %s310, 5
        %p314 = scmp.lt.s32.totalorder %s311, 1
        %s315 = scalar_select %p314, %s311, 1
        %s316 = smul.addr %s313, 2
        %s317 = sadd.s32 %s315, %s316
        %s318 = smul.addr %s317, 4
        %s319 = scalar_lea.vmem %s3, %s318
        %s320 = smul.u32 6, %s19
        %s321 = smul.u32 2, %s20
        %p323 = scmp.eq.s32.totalorder %s21, 0
        // Predicated region
        $region59: #{_lambda_.30} parent=53 // pred_check
          %p324 = pneg %p323
        $region60: #{_lambda_.30} parent=53 // pred_check_branch
          %326 = sbr.rel (%p324) target = $region62
        $region61: #{_lambda_.30} parent=53 // pred_region
          %327 = vst [vmem:[#allocation2] sm:$0xff] 0.0
          %328 = vst [vmem:[#allocation2 + $0x8] sm:$0xff] 0.0
          %329 = vst [vmem:[#allocation2 + $0x10] sm:$0xff] 0.0
          %330 = vst [vmem:[#allocation2 + $0x18] sm:$0xff] 0.0
          %331 = vst [vmem:[#allocation2 + $0x20] sm:$0xff] 0.0
          %332 = vst [vmem:[#allocation2 + $0x28] sm:$0xff] 0.0
          %333 = vst [vmem:[#allocation2 + $0x30] sm:$0xff] 0.0
          %334 = vst [vmem:[#allocation2 + $0x38] sm:$0xff] 0.0
          %335 = vst [vmem:[#allocation2 + $0x40] sm:$0xff] 0.0
          %336 = vst [vmem:[#allocation2 + $0x48] sm:$0xff] 0.0
          %337 = vst [vmem:[#allocation2 + $0x50] sm:$0xff] 0.0
          %338 = vst [vmem:[#allocation2 + $0x58] sm:$0xff] 0.0
        $region62: #{_lambda_.30} parent=53 // pred_fallthru
          _
        %v339 = vld [vmem:[#allocation2] sm:$0xff]
        %v340 = vld [vmem:[#allocation2 + $0x8] sm:$0xff]
        %v341 = vld [vmem:[#allocation2 + $0x10] sm:$0xff]
        %v342 = vld [vmem:[#allocation2 + $0x18] sm:$0xff]
        %v343 = vld [vmem:[#allocation2 + $0x20] sm:$0xff]
        %v344 = vld [vmem:[#allocation2 + $0x28] sm:$0xff]
        %v345 = vld [vmem:[#allocation2 + $0x30] sm:$0xff]
        %v346 = vld [vmem:[#allocation2 + $0x38] sm:$0xff]
        %v347 = vld [vmem:[#allocation2 + $0x40] sm:$0xff]
        %v348 = vld [vmem:[#allocation2 + $0x48] sm:$0xff]
        %v349 = vld [vmem:[#allocation2 + $0x50] sm:$0xff]
        %v350 = vld [vmem:[#allocation2 + $0x58] sm:$0xff]
        %v351 = vld [vmem:[%s251] sm:$0xff]
        %v352 = vld [vmem:[%s251 + $0x8] sm:$0xf]
        %v353 = vld [vmem:[%s251 + $0xc] sm:$0xff]
        %v354 = vld [vmem:[%s251 + $0x14] sm:$0xf]
        %v355 = vld [vmem:[%s251 + $0x18] sm:$0xff]
        %v356 = vld [vmem:[%s251 + $0x20] sm:$0xf]
        %v357 = vld [vmem:[%s251 + $0x24] sm:$0xff]
        %v358 = vld [vmem:[%s251 + $0x2c] sm:$0xf]
        %v359 = vld [vmem:[%s251 + $0x30] sm:$0xff]
        %v360 = vld [vmem:[%s251 + $0x38] sm:$0xf]
        %v361 = vld [vmem:[%s251 + $0x3c] sm:$0xff]
        %v362 = vld [vmem:[%s251 + $0x44] sm:$0xf]
        %v363 = vld [vmem:[%s302] sm:$0xff]
        %v364 = vld [vmem:[%s302 + $0x8] sm:$0xff]
        %v365 = vld [vmem:[%s302 + $0x10] sm:$0xff]
        %v366 = vld [vmem:[%s302 + $0x18] sm:$0xff]
        %v367 = vld [vmem:[%s302 + $0x20] sm:$0xff]
        %v368 = vld [vmem:[%s302 + $0x28] sm:$0xff]
        %v369 = vld [vmem:[%s302 + $0x30] sm:$0xff]
        %v370 = vld [vmem:[%s302 + $0x38] sm:$0xff]
        %v371 = vld [vmem:[%s302 + $0x40] sm:$0xff]
        %v372 = vld [vmem:[%s302 + $0x48] sm:$0xff]
        %v373 = vld [vmem:[%s302 + $0x50] sm:$0xff]
        %v374 = vld [vmem:[%s302 + $0x58] sm:$0xff]
        %v375 = vld [vmem:[%s302 + $0x60] sm:$0xff]
        %v376 = vld [vmem:[%s302 + $0x68] sm:$0xff]
        %v377 = vld [vmem:[%s302 + $0x70] sm:$0xff]
        %v378 = vld [vmem:[%s302 + $0x78] sm:$0xff]
        %v379 = vld [vmem:[%s302 + $0x80] sm:$0xff]
        %v380 = vld [vmem:[%s302 + $0x88] sm:$0xff]
        %v381 = vld [vmem:[%s302 + $0x90] sm:$0xff]
        %v382 = vld [vmem:[%s302 + $0x98] sm:$0xff]
        %v383 = vld [vmem:[%s302 + $0xa0] sm:$0xff]
        %v384 = vld [vmem:[%s302 + $0xa8] sm:$0xff]
        %v385 = vld [vmem:[%s302 + $0xb0] sm:$0xff]
        %v386 = vld [vmem:[%s302 + $0xb8] sm:$0xff]
        %v387 = vld [vmem:[%s302 + $0xc0] sm:$0xff]
        %v388 = vld [vmem:[%s302 + $0xc8] sm:$0xff]
        %v389 = vld [vmem:[%s302 + $0xd0] sm:$0xff]
        %v390 = vld [vmem:[%s302 + $0xd8] sm:$0xff]
        %v391 = vld [vmem:[%s302 + $0xe0] sm:$0xff]
        %v392 = vld [vmem:[%s302 + $0xe8] sm:$0xff]
        %v393 = vld [vmem:[%s302 + $0xf0] sm:$0xff]
        %v394 = vld [vmem:[%s302 + $0xf8] sm:$0xff]
        %v395 = vld [vmem:[%s302 + $0x100] sm:$0xff]
        %v396 = vld [vmem:[%s302 + $0x108] sm:$0xff]
        %v397 = vld [vmem:[%s302 + $0x110] sm:$0xff]
        %v398 = vld [vmem:[%s302 + $0x118] sm:$0xff]
        %v399 = vld [vmem:[%s302 + $0x120] sm:$0xff]
        %v400 = vld [vmem:[%s302 + $0x128] sm:$0xff]
        %v401 = vld [vmem:[%s302 + $0x130] sm:$0xff]
        %v402 = vld [vmem:[%s302 + $0x138] sm:$0xff]
        %v403 = vld [vmem:[%s302 + $0x140] sm:$0xff]
        %v404 = vld [vmem:[%s302 + $0x148] sm:$0xff]
        %v405 = vld [vmem:[%s302 + $0x150] sm:$0xff]
        %v406 = vld [vmem:[%s302 + $0x158] sm:$0xff]
        %v407 = vld [vmem:[%s302 + $0x160] sm:$0xff]
        %v408 = vld [vmem:[%s302 + $0x168] sm:$0xff]
        %v409 = vld [vmem:[%s302 + $0x170] sm:$0xff]
        %v410 = vld [vmem:[%s302 + $0x178] sm:$0xff]
        %v423 = vunpack.c.l.b16 %v351
        %v424 = vunpack.c.h.b16 %v351
        %v425 = vunpack.c.l.b16 %v352
        %v426 = vunpack.c.l.b16 %v353
        %v427 = vunpack.c.h.b16 %v353
        %v428 = vunpack.c.l.b16 %v354
        %v429 = vunpack.c.l.b16 %v355
        %v430 = vunpack.c.h.b16 %v355
        %v431 = vunpack.c.l.b16 %v356
        %v432 = vunpack.c.l.b16 %v357
        %v433 = vunpack.c.h.b16 %v357
        %v434 = vunpack.c.l.b16 %v358
        %v435 = vunpack.c.l.b16 %v359
        %v436 = vunpack.c.h.b16 %v359
        %v437 = vunpack.c.l.b16 %v360
        %v438 = vunpack.c.l.b16 %v361
        %v439 = vunpack.c.h.b16 %v361
        %v440 = vunpack.c.l.b16 %v362
        %v441 = vpack.c.b16 %v426, %v423
        %v442 = vpack.c.b16 %v427, %v424
        %v443 = vpack.c.b16 %v428, %v425
        %v444 = vpack.c.b16 %v432, %v429
        %v445 = vpack.c.b16 %v433, %v430
        %v446 = vpack.c.b16 %v434, %v431
        %v447 = vpack.c.b16 %v438, %v435
        %v448 = vpack.c.b16 %v439, %v436
        %v449 = vpack.c.b16 %v440, %v437
        %v507 = vunpack.c.l.b16 %v363
        %v508 = vunpack.c.h.b16 %v363
        %v509 = vunpack.c.l.b16 %v364
        %v510 = vunpack.c.h.b16 %v364
        %v511 = vunpack.c.l.b16 %v365
        %v512 = vunpack.c.h.b16 %v365
        %v513 = vunpack.c.l.b16 %v366
        %v514 = vunpack.c.h.b16 %v366
        %v515 = vunpack.c.l.b16 %v367
        %v516 = vunpack.c.h.b16 %v367
        %v517 = vunpack.c.l.b16 %v368
        %v518 = vunpack.c.h.b16 %v368
        %v519 = vunpack.c.l.b16 %v369
        %v520 = vunpack.c.h.b16 %v369
        %v521 = vunpack.c.l.b16 %v370
        %v522 = vunpack.c.h.b16 %v370
        %v523 = vunpack.c.l.b16 %v371
        %v524 = vunpack.c.h.b16 %v371
        %v525 = vunpack.c.l.b16 %v372
        %v526 = vunpack.c.h.b16 %v372
        %v527 = vunpack.c.l.b16 %v373
        %v528 = vunpack.c.h.b16 %v373
        %v529 = vunpack.c.l.b16 %v374
        %v530 = vunpack.c.h.b16 %v374
        %v531 = vunpack.c.l.b16 %v375
        %v532 = vunpack.c.h.b16 %v375
        %v533 = vunpack.c.l.b16 %v376
        %v534 = vunpack.c.h.b16 %v376
        %v535 = vunpack.c.l.b16 %v377
        %v536 = vunpack.c.h.b16 %v377
        %v537 = vunpack.c.l.b16 %v378
        %v538 = vunpack.c.h.b16 %v378
        %v539 = vunpack.c.l.b16 %v379
        %v540 = vunpack.c.h.b16 %v379
        %v541 = vunpack.c.l.b16 %v380
        %v542 = vunpack.c.h.b16 %v380
        %v543 = vunpack.c.l.b16 %v381
        %v544 = vunpack.c.h.b16 %v381
        %v545 = vunpack.c.l.b16 %v382
        %v546 = vunpack.c.h.b16 %v382
        %v547 = vunpack.c.l.b16 %v383
        %v548 = vunpack.c.h.b16 %v383
        %v549 = vunpack.c.l.b16 %v384
        %v550 = vunpack.c.h.b16 %v384
        %v551 = vunpack.c.l.b16 %v385
        %v552 = vunpack.c.h.b16 %v385
        %v553 = vunpack.c.l.b16 %v386
        %v554 = vunpack.c.h.b16 %v386
        %v555 = vunpack.c.l.b16 %v387
        %v556 = vunpack.c.h.b16 %v387
        %v557 = vunpack.c.l.b16 %v388
        %v558 = vunpack.c.h.b16 %v388
        %v559 = vunpack.c.l.b16 %v389
        %v560 = vunpack.c.h.b16 %v389
        %v561 = vunpack.c.l.b16 %v390
        %v562 = vunpack.c.h.b16 %v390
        %v563 = vunpack.c.l.b16 %v391
        %v564 = vunpack.c.h.b16 %v391
        %v565 = vunpack.c.l.b16 %v392
        %v566 = vunpack.c.h.b16 %v392
        %v567 = vunpack.c.l.b16 %v393
        %v568 = vunpack.c.h.b16 %v393
        %v569 = vunpack.c.l.b16 %v394
        %v570 = vunpack.c.h.b16 %v394
        %v571 = vunpack.c.l.b16 %v395
        %v572 = vunpack.c.h.b16 %v395
        %v573 = vunpack.c.l.b16 %v396
        %v574 = vunpack.c.h.b16 %v396
        %v575 = vunpack.c.l.b16 %v397
        %v576 = vunpack.c.h.b16 %v397
        %v577 = vunpack.c.l.b16 %v398
        %v578 = vunpack.c.h.b16 %v398
        %v579 = vunpack.c.l.b16 %v399
        %v580 = vunpack.c.h.b16 %v399
        %v581 = vunpack.c.l.b16 %v400
        %v582 = vunpack.c.h.b16 %v400
        %v583 = vunpack.c.l.b16 %v401
        %v584 = vunpack.c.h.b16 %v401
        %v585 = vunpack.c.l.b16 %v402
        %v586 = vunpack.c.h.b16 %v402
        %v587 = vunpack.c.l.b16 %v403
        %v588 = vunpack.c.h.b16 %v403
        %v589 = vunpack.c.l.b16 %v404
        %v590 = vunpack.c.h.b16 %v404
        %v591 = vunpack.c.l.b16 %v405
        %v592 = vunpack.c.h.b16 %v405
        %v593 = vunpack.c.l.b16 %v406
        %v594 = vunpack.c.h.b16 %v406
        %v595 = vunpack.c.l.b16 %v407
        %v596 = vunpack.c.h.b16 %v407
        %v597 = vunpack.c.l.b16 %v408
        %v598 = vunpack.c.h.b16 %v408
        %v599 = vunpack.c.l.b16 %v409
        %v600 = vunpack.c.h.b16 %v409
        %v601 = vunpack.c.l.b16 %v410
        %v602 = vunpack.c.h.b16 %v410
        %v603 = vpack.c.b16 %v509, %v507
        %v604 = vpack.c.b16 %v510, %v508
        %v605 = vpack.c.b16 %v513, %v511
        %v606 = vpack.c.b16 %v514, %v512
        %v607 = vpack.c.b16 %v517, %v515
        %v608 = vpack.c.b16 %v518, %v516
        %v609 = vpack.c.b16 %v521, %v519
        %v610 = vpack.c.b16 %v522, %v520
        %v611 = vpack.c.b16 %v525, %v523
        %v612 = vpack.c.b16 %v526, %v524
        %v613 = vpack.c.b16 %v529, %v527
        %v614 = vpack.c.b16 %v530, %v528
        %v615 = vpack.c.b16 %v533, %v531
        %v616 = vpack.c.b16 %v534, %v532
        %v617 = vpack.c.b16 %v537, %v535
        %v618 = vpack.c.b16 %v538, %v536
        %v619 = vpack.c.b16 %v541, %v539
        %v620 = vpack.c.b16 %v542, %v540
        %v621 = vpack.c.b16 %v545, %v543
        %v622 = vpack.c.b16 %v546, %v544
        %v623 = vpack.c.b16 %v549, %v547
        %v624 = vpack.c.b16 %v550, %v548
        %v625 = vpack.c.b16 %v553, %v551
        %v626 = vpack.c.b16 %v554, %v552
        %v627 = vpack.c.b16 %v557, %v555
        %v628 = vpack.c.b16 %v558, %v556
        %v629 = vpack.c.b16 %v561, %v559
        %v630 = vpack.c.b16 %v562, %v560
        %v631 = vpack.c.b16 %v565, %v563
        %v632 = vpack.c.b16 %v566, %v564
        %v633 = vpack.c.b16 %v569, %v567
        %v634 = vpack.c.b16 %v570, %v568
        %v635 = vpack.c.b16 %v573, %v571
        %v636 = vpack.c.b16 %v574, %v572
        %v637 = vpack.c.b16 %v577, %v575
        %v638 = vpack.c.b16 %v578, %v576
        %v639 = vpack.c.b16 %v581, %v579
        %v640 = vpack.c.b16 %v582, %v580
        %v641 = vpack.c.b16 %v585, %v583
        %v642 = vpack.c.b16 %v586, %v584
        %v643 = vpack.c.b16 %v589, %v587
        %v644 = vpack.c.b16 %v590, %v588
        %v645 = vpack.c.b16 %v593, %v591
        %v646 = vpack.c.b16 %v594, %v592
        %v647 = vpack.c.b16 %v597, %v595
        %v648 = vpack.c.b16 %v598, %v596
        %v649 = vpack.c.b16 %v601, %v599
        %v650 = vpack.c.b16 %v602, %v600
        %699 = vmatprep.subr.bf16.mxu0 %v604
        %700 = vmatpush1.bf16.msra.mxu0 %v603
        %701 = vmatprep.subr.bf16.mxu0 %v606
        %702 = vmatpush1.bf16.msra.mxu0 %v605
        %703 = vmatprep.subr.bf16.mxu0 %v608
        %704 = vmatpush1.bf16.msra.mxu0 %v607
        %705 = vmatprep.subr.bf16.mxu0 %v610
        %706 = vmatpush1.bf16.msra.mxu0 %v609
        %707 = vmatprep.subr.bf16.mxu0 %v612
        %708 = vmatpush1.bf16.msra.mxu0 %v611
        %709 = vmatprep.subr.bf16.mxu0 %v614
        %710 = vmatpush1.bf16.msra.mxu0 %v613
        %711 = vmatprep.subr.bf16.mxu0 %v616
        %712 = vmatpush1.bf16.msra.mxu0 %v615
        %713 = vmatprep.subr.bf16.mxu0 %v618
        %714 = vmatpush1.bf16.msra.mxu0 %v617
        %715 = vmatprep.subr.bf16.mxu0 %v620
        %716 = vmatpush1.bf16.msra.mxu0 %v619
        %717 = vmatprep.subr.bf16.mxu0 %v622
        %718 = vmatpush1.bf16.msra.mxu0 %v621
        %719 = vmatprep.subr.bf16.mxu0 %v624
        %720 = vmatpush1.bf16.msra.mxu0 %v623
        %721 = vmatprep.subr.bf16.mxu0 %v626
        %722 = vmatpush1.bf16.msra.mxu0 %v625
        %723 = vmatprep.subr.bf16.mxu0 %v628
        %724 = vmatpush1.bf16.msra.mxu0 %v627
        %725 = vmatprep.subr.bf16.mxu0 %v630
        %726 = vmatpush1.bf16.msra.mxu0 %v629
        %727 = vmatprep.subr.bf16.mxu0 %v632
        %728 = vmatpush1.bf16.msra.mxu0 %v631
        %729 = vmatprep.subr.bf16.mxu0 %v634
        %730 = vmatpush1.bf16.msra.mxu0 %v633
        %731 = vmatprep.mubr.bf16.mxu0 %v442
        %732 = vmatmul.mubr.bf16.gmra.mrb[0].mxu0 %v441
        %v733 = vpop.f32.mrb[0].mxu0
        %v734 = vadd.f32 0.0, %v733
        %v735 = vpop.f32.mrb[0].mxu0
        %v736 = vadd.f32 0.0, %v735
        %v737 = vpop.f32.mrb[0].mxu0
        %v738 = vadd.f32 0.0, %v737
        %v739 = vpop.f32.mrb[0].mxu0
        %v740 = vadd.f32 0.0, %v739
        %741 = vmatprep.mubr.bf16.mxu0 %v445
        %742 = vmatmul.mubr.bf16.gmra.mrb[0].mxu0 %v444
        %v743 = vpop.f32.mrb[0].mxu0
        %v744 = vadd.f32 0.0, %v743
        %v745 = vpop.f32.mrb[0].mxu0
        %v746 = vadd.f32 0.0, %v745
        %v747 = vpop.f32.mrb[0].mxu0
        %v748 = vadd.f32 0.0, %v747
        %v749 = vpop.f32.mrb[0].mxu0
        %v750 = vadd.f32 0.0, %v749
        %751 = vmatprep.mubr.bf16.mxu0 %v448
        %752 = vmatmul.mubr.bf16.gmra.mrb[0].mxu0 %v447
        %v753 = vpop.f32.mrb[0].mxu0
        %v754 = vadd.f32 0.0, %v753
        %v755 = vpop.f32.mrb[0].mxu0
        %v756 = vadd.f32 0.0, %v755
        %v757 = vpop.f32.mrb[0].mxu0
        %v758 = vadd.f32 0.0, %v757
        %v759 = vpop.f32.mrb[0].mxu0
        %v760 = vadd.f32 0.0, %v759
        %761 = vdwg.mxu0
        %762 = vmatprep.subr.bf16.mxu0 %v636
        %763 = vmatpush1.bf16.msra.mxu0 %v635
        %764 = vmatprep.subr.bf16.mxu0 %v638
        %765 = vmatpush1.bf16.msra.mxu0 %v637
        %766 = vmatprep.subr.bf16.mxu0 %v640
        %767 = vmatpush1.bf16.msra.mxu0 %v639
        %768 = vmatprep.subr.bf16.mxu0 %v642
        %769 = vmatpush1.bf16.msra.mxu0 %v641
        %770 = vmatprep.subr.bf16.mxu0 %v644
        %771 = vmatpush1.bf16.msra.mxu0 %v643
        %772 = vmatprep.subr.bf16.mxu0 %v646
        %773 = vmatpush1.bf16.msra.mxu0 %v645
        %774 = vmatprep.subr.bf16.mxu0 %v648
        %775 = vmatpush1.bf16.msra.mxu0 %v647
        %776 = vmatprep.subr.bf16.mxu0 %v650
        %777 = vmatpush1.bf16.msra.mxu0 %v649
        %778 = vmatprep.subr.bf16.mxu0 0
        %779 = vmatpush1.bf16.msra.mxu0 0
        %780 = vmatprep.subr.bf16.mxu0 0
        %781 = vmatpush1.bf16.msra.mxu0 0
        %782 = vmatprep.subr.bf16.mxu0 0
        %783 = vmatpush1.bf16.msra.mxu0 0
        %784 = vmatprep.subr.bf16.mxu0 0
        %785 = vmatpush1.bf16.msra.mxu0 0
        %786 = vmatprep.subr.bf16.mxu0 0
        %787 = vmatpush1.bf16.msra.mxu0 0
        %788 = vmatprep.subr.bf16.mxu0 0
        %789 = vmatpush1.bf16.msra.mxu0 0
        %790 = vmatprep.subr.bf16.mxu0 0
        %791 = vmatpush1.bf16.msra.mxu0 0
        %792 = vmatprep.subr.bf16.mxu0 0
        %793 = vmatpush1.bf16.msra.mxu0 0
        %794 = vmatprep.mubr.bf16.mxu0 0
        %795 = vmatmul.mubr.bf16.gmra.mrb[0].mxu0 %v443
        %v796 = vpop.f32.mrb[0].mxu0
        %v797 = vadd.f32 %v734, %v796
        %v798 = vpop.f32.mrb[0].mxu0
        %v799 = vadd.f32 %v736, %v798
        %v800 = vpop.f32.mrb[0].mxu0
        %v801 = vadd.f32 %v738, %v800
        %v802 = vpop.f32.mrb[0].mxu0
        %v803 = vadd.f32 %v740, %v802
        %804 = vmatprep.mubr.bf16.mxu0 0
        %805 = vmatmul.mubr.bf16.gmra.mrb[0].mxu0 %v446
        %v806 = vpop.f32.mrb[0].mxu0
        %v807 = vadd.f32 %v744, %v806
        %v808 = vpop.f32.mrb[0].mxu0
        %v809 = vadd.f32 %v746, %v808
        %v810 = vpop.f32.mrb[0].mxu0
        %v811 = vadd.f32 %v748, %v810
        %v812 = vpop.f32.mrb[0].mxu0
        %v813 = vadd.f32 %v750, %v812
        %814 = vmatprep.mubr.bf16.mxu0 0
        %815 = vmatmul.mubr.bf16.gmra.mrb[0].mxu0 %v449
        %v816 = vpop.f32.mrb[0].mxu0
        %v817 = vadd.f32 %v754, %v816
        %v818 = vpop.f32.mrb[0].mxu0
        %v819 = vadd.f32 %v756, %v818
        %v820 = vpop.f32.mrb[0].mxu0
        %v821 = vadd.f32 %v758, %v820
        %v822 = vpop.f32.mrb[0].mxu0
        %v823 = vadd.f32 %v760, %v822
        %824 = vdwg.mxu0
        %v825 = vadd.f32 %v339, %v797
        %v826 = vadd.f32 %v340, %v799
        %v827 = vadd.f32 %v341, %v801
        %v828 = vadd.f32 %v342, %v803
        %v829 = vadd.f32 %v343, %v807
        %v830 = vadd.f32 %v344, %v809
        %v831 = vadd.f32 %v345, %v811
        %v832 = vadd.f32 %v346, %v813
        %v833 = vadd.f32 %v347, %v817
        %v834 = vadd.f32 %v348, %v819
        %v835 = vadd.f32 %v349, %v821
        %v836 = vadd.f32 %v350, %v823
        %837 = vst [vmem:[#allocation2] sm:$0xff] %v825
        %838 = vst [vmem:[#allocation2 + $0x8] sm:$0xff] %v826
        %839 = vst [vmem:[#allocation2 + $0x10] sm:$0xff] %v827
        %840 = vst [vmem:[#allocation2 + $0x18] sm:$0xff] %v828
        %841 = vst [vmem:[#allocation2 + $0x20] sm:$0xff] %v829
        %842 = vst [vmem:[#allocation2 + $0x28] sm:$0xff] %v830
        %843 = vst [vmem:[#allocation2 + $0x30] sm:$0xff] %v831
        %844 = vst [vmem:[#allocation2 + $0x38] sm:$0xff] %v832
        %845 = vst [vmem:[#allocation2 + $0x40] sm:$0xff] %v833
        %846 = vst [vmem:[#allocation2 + $0x48] sm:$0xff] %v834
        %847 = vst [vmem:[#allocation2 + $0x50] sm:$0xff] %v835
        %848 = vst [vmem:[#allocation2 + $0x58] sm:$0xff] %v836
        %p849 = scmp.eq.s32.totalorder %s21, 8
        // Predicated region
        $region63: #{_lambda_.30} parent=53 // pred_check
          %p850 = pneg %p849
        $region64: #{_lambda_.30} parent=53 // pred_check_branch
          %852 = sbr.rel (%p850) target = $region66
        $region65: #{_lambda_.30} parent=53 // pred_region
          %v853 = vld [vmem:[#allocation2] sm:$0xff]
          %v854 = vld [vmem:[#allocation2 + $0x8] sm:$0xff]
          %v855 = vld [vmem:[#allocation2 + $0x10] sm:$0xff]
          %v856 = vld [vmem:[#allocation2 + $0x18] sm:$0xff]
          %v857 = vld [vmem:[#allocation2 + $0x20] sm:$0xff]
          %v858 = vld [vmem:[#allocation2 + $0x28] sm:$0xff]
          %v859 = vld [vmem:[#allocation2 + $0x30] sm:$0xff]
          %v860 = vld [vmem:[#allocation2 + $0x38] sm:$0xff]
          %v861 = vld [vmem:[#allocation2 + $0x40] sm:$0xff]
          %v862 = vld [vmem:[#allocation2 + $0x48] sm:$0xff]
          %v863 = vld [vmem:[#allocation2 + $0x50] sm:$0xff]
          %v864 = vld [vmem:[#allocation2 + $0x58] sm:$0xff]
          %v865 = vld [vmem:[%s308] sm:$0x3]
          %v867 = vlaneseq
          %v868 = vshrl.u32 %v867, 7
          %v869 = vsub.s32 0, %v868
          %v870 = vrot.slane %v865, %v869
          %v871 = vlaneseq
          %v872 = vshrl.u32 %v871, 7
          %v873 = vsub.s32 1, %v872
          %v874 = vrot.slane %v865, %v873
          %v877 = vadd.f32 %v853, %v870
          %v878 = vadd.f32 %v854, %v874
          %v879 = vadd.f32 %v855, %v870
          %v880 = vadd.f32 %v856, %v874
          %v881 = vadd.f32 %v857, %v870
          %v882 = vadd.f32 %v858, %v874
          %v883 = vadd.f32 %v859, %v870
          %v884 = vadd.f32 %v860, %v874
          %v885 = vadd.f32 %v861, %v870
          %v886 = vadd.f32 %v862, %v874
          %v887 = vadd.f32 %v863, %v870
          %v888 = vadd.f32 %v864, %v874
          %v889 = vmax.f32 %v877, 0.0
          %v890 = vmax.f32 %v878, 0.0
          %v891 = vmax.f32 %v879, 0.0
          %v892 = vmax.f32 %v880, 0.0
          %v893 = vmax.f32 %v881, 0.0
          %v894 = vmax.f32 %v882, 0.0
          %v895 = vmax.f32 %v883, 0.0
          %v896 = vmax.f32 %v884, 0.0
          %v897 = vmax.f32 %v885, 0.0
          %v898 = vmax.f32 %v886, 0.0
          %v899 = vmax.f32 %v887, 0.0
          %v900 = vmax.f32 %v888, 0.0
          %v901 = vpack.c.bf16 %v891, %v889
          %v902 = vpack.c.bf16 %v892, %v890
          %v903 = vpack.c.bf16 %v895, %v893
          %v904 = vpack.c.bf16 %v896, %v894
          %v905 = vpack.c.bf16 %v899, %v897
          %v906 = vpack.c.bf16 %v900, %v898
          %v913 = vunpack.c.l.b16 %v901
          %v914 = vunpack.c.l.b16 %v902
          %v915 = vunpack.c.h.b16 %v901
          %v916 = vunpack.c.h.b16 %v902
          %v917 = vunpack.c.l.b16 %v903
          %v918 = vunpack.c.l.b16 %v904
          %v919 = vunpack.c.h.b16 %v903
          %v920 = vunpack.c.h.b16 %v904
          %v921 = vunpack.c.l.b16 %v905
          %v922 = vunpack.c.l.b16 %v906
          %v923 = vunpack.c.h.b16 %v905
          %v924 = vunpack.c.h.b16 %v906
          %v925 = vpack.c.b16 %v914, %v913
          %v926 = vpack.c.b16 %v916, %v915
          %v927 = vpack.c.b16 %v918, %v917
          %v928 = vpack.c.b16 %v920, %v919
          %v929 = vpack.c.b16 %v922, %v921
          %v930 = vpack.c.b16 %v924, %v923
          %937 = vst [vmem:[%s319] sm:$0xff] %v925
          %938 = vst [vmem:[%s319 + $0x8] sm:$0xff] %v926
          %939 = vst [vmem:[%s319 + $0x10] sm:$0xff] %v927
          %940 = vst [vmem:[%s319 + $0x18] sm:$0xff] %v928
          %941 = vst [vmem:[%s319 + $0x20] sm:$0xff] %v929
          %942 = vst [vmem:[%s319 + $0x28] sm:$0xff] %v930
        $region66: #{_lambda_.30} parent=53 // pred_fallthru
          _
        %s943 = smul.u32 6, %s19
        %s944 = smul.u32 2, %s20
        %p945 = scmp.lt.s32.totalorder %s943, 5
        %s946 = scalar_select %p945, %s943, 5
        %p947 = scmp.lt.s32.totalorder %s944, 1
        %s948 = scalar_select %p947, %s944, 1
        %s949 = smul.addr %s946, 2
        %s950 = sadd.s32 %s948, %s949
        %s951 = smul.addr %s950, 4
        %s952 = scalar_lea.vmem %s3, %s951
        // Predicated region
        $region67: #{_lambda_.30} parent=53 // pred_check
          %p953 = pneg %p135
        $region68: #{_lambda_.30} parent=53 // pred_check_branch
          %955 = sbr.rel (%p953) target = $region70
        $region69: #{_lambda_.30} parent=53 // pred_region
          %s956 = smul.u32 6, %s19
          %s957 = smul.u32 2, %s20
        $region70: #{_lambda_.30} parent=53 // pred_fallthru
          _
        // Predicated region
        $region71: #{_lambda_.30} parent=53 // pred_check
          %p958 = pneg %p135
        $region72: #{_lambda_.30} parent=53 // pred_check_branch
          %960 = sbr.rel (%p958) target = $region74
        $region73: #{_lambda_.30} parent=53 // pred_region
          %s961 = smul.u32 6, %s19
          %s962 = smul.u32 2, %s20
          %p963 = scmp.lt.s32.totalorder %s961, 5
          %s964 = scalar_select %p963, %s961, 5
          %p965 = scmp.lt.s32.totalorder %s962, 1
          %s966 = scalar_select %p965, %s962, 1
          %s967 = smul.addr %s964, 2
          %s968 = sadd.s32 %s966, %s967
          %s969 = smul.addr %s968, 4
          %s970 = scalar_lea.vmem %s3, %s969
        $region74: #{_lambda_.30} parent=53 // pred_fallthru
          _
      $region54: #{_lambda_.30} parent=5 // pred_fallthru
        _
      %p971 = scmp.le.s32.totalorder 2, %s9
      // Predicated region
      $region75: #{_lambda_.30} parent=5 // pred_check
        %p972 = pneg %p971
      $region76: #{_lambda_.30} parent=5 // pred_check_branch
        %974 = sbr.rel (%p972) target = $region78
      $region77: #{_lambda_.30} parent=5 // pred_region
        %s975 = ssub.s32 %s9, 2
      $region78: #{_lambda_.30} parent=5 // pred_fallthru
        _
    $region6: #{_lambda_.30} parent=1 // loop_footer
      %s13 = sadd.s32 1, %s9
    $region7: #{_lambda_.30} parent=1 // loop_footer_branch
      %8 = sbr.rel target = $region3
    $region8: #{_lambda_.30} parent=1 // loop_exit
      _

// kernel: _lambda_.31
$region0: #{_lambda_.31}
  #allocation0 [shape = 'u32[]', space=smem, size = 0x4, offset = 0x4, fixed_abs, tag = 'smem constant byte address 0x4 - core index']
  #allocation1 [shape = 'u32[144,128]{1,0:T(1,128)}', space=vmem, size = 0x12000, scoped, tag = 'internal scratch']
  #allocation2 [shape = 'f32[48,256]{1,0:T(8,128)}', space=vmem, size = 0xc000, scoped, tag = 'scratch operand']
  %s0 = inlined_call_operand.vmem [shape: bf16[48,2304], index: 0, kind: input, shape index: {}]
  %s1 = inlined_call_operand.vmem [shape: bf16[2304,256], index: 1, kind: input, shape index: {}]
  %s2 = inlined_call_operand.vmem [shape: f32[1,256], index: 2, kind: input, shape index: {}]
  %s3 = inlined_call_operand.vmem [shape: bf16[48,256], index: 3, kind: output, shape index: {}]
  %s4 = sld [smem:[#allocation0]]
  $region79: #{_lambda_.31} parent=0
    _
  %s6 = ssub.s32 1, %s4
  %s7 = scalar_select 0, %s6, %s4
  $region1: #{_lambda_.31} parent=0
    #allocation3 [shape = 'u8[73728]{0}', space=vmem, size = 0x12000, scoped, tag = 'input window, operand 0']
    loop: start=0, step=1, limit=8
    $region2: #{_lambda_.31} parent=1 // loop_pre_header
      _
    $region3: #{_lambda_.31} parent=1 // loop_header
      %s9 = sphi 0, %s13
      %p10 = scmp.ge.s32.totalorder %s9, 8
      %s16 = sphi 0, %s35
      %s17 = sphi 0, %s31
      %s18 = sphi 0, %s27
      %s19 = sphi 0, %s16
      %s20 = sphi 0, %s17
      %s21 = sphi 0, %s18
      %s22 = sphi 0, %s19
      %s23 = sphi 0, %s20
      %s24 = sphi 0, %s21
      %s40 = sphi 0, %s42
      %s43 = sphi 0, %s40
      %s44 = sphi 0, %s43
      %s60 = sphi 0, %s44
      %s68 = sphi 0, %s70
      %s71 = sphi 0, %s68
      %s72 = sphi 0, %s71
      %s88 = sphi 0, %s72
      %s94 = sphi 0, %s96
      %s97 = sphi 0, %s94
      %s98 = sphi 0, %s97
      %s114 = sphi 0, %s98
      %s122 = sphi 0, %s124
      %s125 = sphi 0, %s122
      %s126 = sphi 0, %s125
      %s142 = sphi 0, %s126
    $region4: #{_lambda_.31} parent=1 // loop_header_branch
      %12 = sbr.rel (%p10) target = $region8
    $region5: #{_lambda_.31} parent=1 // loop_body
      %s14 = ssub.s32 %s9, 1
      %s15 = ssub.s32 %s9, 2
      %s25 = sadd.s32 1, %s18
      %p26 = scmp.ge.s32.totalorder %s25, 6
      %s27 = scalar_select %p26, 0, %s25
      %s28 = sadd.s32 1, %s17
      %s29 = scalar_select %p26, %s28, %s17
      %p30 = scmp.ge.s32.totalorder %s29, 1
      %s31 = scalar_select %p30, 0, %s29
      %s32 = sadd.s32 1, %s16
      %s33 = scalar_select %p30, %s32, %s16
      %p34 = scmp.ge.s32.totalorder %s33, 1
      %s35 = scalar_select %p34, 0, %s33
      %s36 = ssub.s32 %s16, %s35
      %s37 = ssub.s32 %s18, %s27
      %s38 = sor.u32 %s36, %s37
      %p39 = scmp.eq.s32.totalorder %s38, 0
      %s41 = sadd.s32 %s40, 1
      %s42 = scalar_select %p39, %s40, %s41
      %p45 = pneg %p39
      %p46 = scmp.eq.s32.totalorder %s9, 5
      %p47 = por %p45, %p46
      %p48 = scmp.ne.s32.totalorder %s40, %s43
      %p49 = scmp.eq.s32.totalorder %s9, 0
      %p50 = por %p48, %p49
      %p51 = scmp.ne.s32.totalorder %s40, %s43
      %p52 = scmp.eq.s32.totalorder %s14, 5
      %p53 = por %p51, %p52
      %p54 = scmp.ne.s32.totalorder %s43, %s44
      %p55 = scmp.eq.s32.totalorder %s14, 0
      %p56 = por %p54, %p55
      %p57 = scmp.ne.s32.totalorder %s43, %s44
      %p58 = scmp.eq.s32.totalorder %s15, 5
      %p59 = por %p57, %p58
      %p61 = scmp.ne.s32.totalorder %s44, %s60
      %p62 = scmp.eq.s32.totalorder %s15, 0
      %p63 = por %p61, %p62
      %s64 = ssub.s32 %s18, %s27
      %s65 = ssub.s32 %s17, %s31
      %s66 = sor.u32 %s64, %s65
      %p67 = scmp.eq.s32.totalorder %s66, 0
      %s69 = sadd.s32 %s68, 1
      %s70 = scalar_select %p67, %s68, %s69
      %p73 = pneg %p67
      %p74 = scmp.eq.s32.totalorder %s9, 5
      %p75 = por %p73, %p74
      %p76 = scmp.ne.s32.totalorder %s68, %s71
      %p77 = scmp.eq.s32.totalorder %s9, 0
      %p78 = por %p76, %p77
      %p79 = scmp.ne.s32.totalorder %s68, %s71
      %p80 = scmp.eq.s32.totalorder %s14, 5
      %p81 = por %p79, %p80
      %p82 = scmp.ne.s32.totalorder %s71, %s72
      %p83 = scmp.eq.s32.totalorder %s14, 0
      %p84 = por %p82, %p83
      %p85 = scmp.ne.s32.totalorder %s71, %s72
      %p86 = scmp.eq.s32.totalorder %s15, 5
      %p87 = por %p85, %p86
      %p89 = scmp.ne.s32.totalorder %s72, %s88
      %p90 = scmp.eq.s32.totalorder %s15, 0
      %p91 = por %p89, %p90
      %s92 = ssub.s32 %s17, %s31
      %p93 = scmp.eq.s32.totalorder %s92, 0
      %s95 = sadd.s32 %s94, 1
      %s96 = scalar_select %p93, %s94, %s95
      %p99 = pneg %p93
      %p100 = scmp.eq.s32.totalorder %s9, 5
      %p101 = por %p99, %p100
      %p102 = scmp.ne.s32.totalorder %s94, %s97
      %p103 = scmp.eq.s32.totalorder %s9, 0
      %p104 = por %p102, %p103
      %p105 = scmp.ne.s32.totalorder %s94, %s97
      %p106 = scmp.eq.s32.totalorder %s14, 5
      %p107 = por %p105, %p106
      %p108 = scmp.ne.s32.totalorder %s97, %s98
      %p109 = scmp.eq.s32.totalorder %s14, 0
      %p110 = por %p108, %p109
      %p111 = scmp.ne.s32.totalorder %s97, %s98
      %p112 = scmp.eq.s32.totalorder %s15, 5
      %p113 = por %p111, %p112
      %p115 = scmp.ne.s32.totalorder %s98, %s114
      %p116 = scmp.eq.s32.totalorder %s15, 0
      %p117 = por %p115, %p116
      %s118 = ssub.s32 %s16, %s35
      %s119 = ssub.s32 %s17, %s31
      %s120 = sor.u32 %s118, %s119
      %p121 = scmp.eq.s32.totalorder %s120, 0
      %s123 = sadd.s32 %s122, 1
      %s124 = scalar_select %p121, %s122, %s123
      %p127 = pneg %p121
      %p128 = scmp.eq.s32.totalorder %s9, 5
      %p129 = por %p127, %p128
      %p130 = scmp.ne.s32.totalorder %s122, %s125
      %p131 = scmp.eq.s32.totalorder %s9, 0
      %p132 = por %p130, %p131
      %p133 = scmp.ne.s32.totalorder %s122, %s125
      %p134 = scmp.eq.s32.totalorder %s14, 5
      %p135 = por %p133, %p134
      %p136 = scmp.ne.s32.totalorder %s125, %s126
      %p137 = scmp.eq.s32.totalorder %s14, 0
      %p138 = por %p136, %p137
      %p139 = scmp.ne.s32.totalorder %s125, %s126
      %p140 = scmp.eq.s32.totalorder %s15, 5
      %p141 = por %p139, %p140
      %p143 = scmp.ne.s32.totalorder %s126, %s142
      %p144 = scmp.eq.s32.totalorder %s15, 0
      %p145 = por %p143, %p144
      %p146 = scmp.le.s32.totalorder 1, %s9
      %p147 = scmp.lt.s32.totalorder %s9, 7
      %p148 = pnand %p146, %p147
      %p149 = pneg %p148
      // Predicated region
      $region9: #{_lambda_.31} parent=5 // pred_check
        _
      $region10: #{_lambda_.31} parent=5 // pred_check_branch
        %151 = sbr.rel (%p148) target = $region12
      $region11: #{_lambda_.31} parent=5 // pred_region
        %s152 = ssub.s32 %s9, 1
        // Predicated region
        $region13: #{_lambda_.31} parent=11 // pred_check
          %p153 = pneg %p110
        $region14: #{_lambda_.31} parent=11 // pred_check_branch
          %155 = sbr.rel (%p153) target = $region16
        $region15: #{_lambda_.31} parent=11 // pred_region
          %s156 = smul.u32 2, %s20
          %p157 = scmp.lt.s32.totalorder %s156, 1
          %s158 = scalar_select %p157, %s156, 1
          %s159 = scalar_lea.vmem %s2, %s158
          %s160 = smul.u32 2, %s20
        $region16: #{_lambda_.31} parent=11 // pred_fallthru
          _
      $region12: #{_lambda_.31} parent=5 // pred_fallthru
        _
      %p161 = scmp.lt.s32.totalorder %s9, 6
      // Predicated region
      $region17: #{_lambda_.31} parent=5 // pred_check
        %p162 = pneg %p161
      $region18: #{_lambda_.31} parent=5 // pred_check_branch
        %164 = sbr.rel (%p162) target = $region20
      $region19: #{_lambda_.31} parent=5 // pred_region
        // Predicated region
        $region21: #{_lambda_.31} parent=19 // pred_check
          %p165 = pneg %p50
        $region22: #{_lambda_.31} parent=19 // pred_check_branch
          %167 = sbr.rel (%p165) target = $region24
        $region23: #{_lambda_.31} parent=19 // pred_region
          %s168 = sand.u32 %s40, 1
          %s169 = sand.u32 %s40, 1
          %s170 = smul.addr %s169, 72
          %s171 = scalar_lea.vmem [#allocation3], %s170
          %s172 = smul.u32 6, %s16
          %s173 = smul.u32 3, %s18
          %s174 = smul.addr %s172, 18
          %s175 = sadd.s32 %s173, %s174
          %s176 = smul.addr %s175, 4
          %s177 = scalar_lea.vmem %s0, %s176
          // Predicated region
          $region25: #{_lambda_.31} parent=23 // pred_check
            _
          $region26: #{_lambda_.31} parent=23 // pred_check_branch
            %179 = sbr.rel (0) target = $region28
          $region27: #{_lambda_.31} parent=23 // pred_region
            // Predicated region
            $region29: #{_lambda_.31} parent=27 // pred_check
              _
            $region30: #{_lambda_.31} parent=27 // pred_check_branch
              %181 = sbr.rel (0) target = $region32
            $region31: #{_lambda_.31} parent=27 // pred_region
              %s182 = scalar_lea.vmem %s177, 8
              %s183 = scalar_lea.vmem %s171, 8 [#allocation3]
              loop: start=0, step=1, limit=1
              $region33: #{_lambda_.31} parent=31 // loop_pre_header
                _
              $region34: #{_lambda_.31} parent=31 // loop_header
                %s185 = sphi 0, %s189
                %p186 = scmp.ge.s32.totalorder %s185, 1
                %s190 = sphi %s177, %s177
                %s191 = sphi %s171, %s171
              $region35: #{_lambda_.31} parent=31 // loop_header_branch
                %188 = sbr.rel (%p186) target = $region39
              $region36: #{_lambda_.31} parent=31 // loop_body
                %v192 = vld [vmem:[%s190] sm:$0xff]
                %193 = vst [vmem:[%s191] sm:$0xff] %v192
                %v194 = vld [vmem:[%s190 + $0x48] sm:$0xff]
                %195 = vst [vmem:[%s191 + $0xc] sm:$0xff] %v194
                %v196 = vld [vmem:[%s190 + $0x90] sm:$0xff]
                %197 = vst [vmem:[%s191 + $0x18] sm:$0xff] %v196
                %v198 = vld [vmem:[%s190 + $0xd8] sm:$0xff]
                %199 = vst [vmem:[%s191 + $0x24] sm:$0xff] %v198
                %v200 = vld [vmem:[%s190 + $0x120] sm:$0xff]
                %201 = vst [vmem:[%s191 + $0x30] sm:$0xff] %v200
                %v202 = vld [vmem:[%s190 + $0x168] sm:$0xff]
                %203 = vst [vmem:[%s191 + $0x3c] sm:$0xff] %v202
              $region37: #{_lambda_.31} parent=31 // loop_footer
                %s189 = sadd.s32 1, %s185
              $region38: #{_lambda_.31} parent=31 // loop_footer_branch
                %184 = sbr.rel target = $region34
              $region39: #{_lambda_.31} parent=31 // loop_exit
                _
              loop: start=0, step=1, limit=1
              $region40: #{_lambda_.31} parent=31 // loop_pre_header
                _
              $region41: #{_lambda_.31} parent=31 // loop_header
                %s206 = sphi 0, %s210
                %p207 = scmp.ge.s32.totalorder %s206, 1
                %s211 = sphi %s182, %s182
                %s212 = sphi %s183, %s183
              $region42: #{_lambda_.31} parent=31 // loop_header_branch
                %209 = sbr.rel (%p207) target = $region46
              $region43: #{_lambda_.31} parent=31 // loop_body
                %v213 = vld [vmem:[%s211] sm:$0xf]
                %214 = vst [vmem:[%s212] sm:$0xf] %v213
                %v215 = vld [vmem:[%s211 + $0x48] sm:$0xf]
                %216 = vst [vmem:[%s212 + $0xc] sm:$0xf] %v215
                %v217 = vld [vmem:[%s211 + $0x90] sm:$0xf]
                %218 = vst [vmem:[%s212 + $0x18] sm:$0xf] %v217
                %v219 = vld [vmem:[%s211 + $0xd8] sm:$0xf]
                %220 = vst [vmem:[%s212 + $0x24] sm:$0xf] %v219
                %v221 = vld [vmem:[%s211 + $0x120] sm:$0xf]
                %222 = vst [vmem:[%s212 + $0x30] sm:$0xf] %v221
                %v223 = vld [vmem:[%s211 + $0x168] sm:$0xf]
                %224 = vst [vmem:[%s212 + $0x3c] sm:$0xf] %v223
              $region44: #{_lambda_.31} parent=31 // loop_footer
                %s210 = sadd.s32 1, %s206
              $region45: #{_lambda_.31} parent=31 // loop_footer_branch
                %205 = sbr.rel target = $region41
              $region46: #{_lambda_.31} parent=31 // loop_exit
                _
            $region32: #{_lambda_.31} parent=27 // pred_fallthru
              _
          $region28: #{_lambda_.31} parent=23 // pred_fallthru
            _
          %225 = vnop
        $region24: #{_lambda_.31} parent=19 // pred_fallthru
          _
        // Predicated region
        $region47: #{_lambda_.31} parent=19 // pred_check
          %p226 = pneg %p78
        $region48: #{_lambda_.31} parent=19 // pred_check_branch
          %228 = sbr.rel (%p226) target = $region50
        $region49: #{_lambda_.31} parent=19 // pred_region
          %s229 = smul.u32 48, %s18
          %s230 = smul.u32 2, %s17
          %p231 = scmp.lt.s32.totalorder %s229, 287
          %s232 = scalar_select %p231, %s229, 287
          %p233 = scmp.lt.s32.totalorder %s230, 1
          %s234 = scalar_select %p233, %s230, 1
          %s235 = smul.addr %s232, 2
          %s236 = sadd.s32 %s234, %s235
          %s237 = smul.addr %s236, 4
          %s238 = scalar_lea.vmem %s1, %s237
          %s239 = smul.u32 48, %s18
          %s240 = smul.u32 2, %s17
        $region50: #{_lambda_.31} parent=19 // pred_fallthru
          _
      $region20: #{_lambda_.31} parent=5 // pred_fallthru
        _
      %p241 = scmp.le.s32.totalorder 1, %s9
      %p242 = scmp.lt.s32.totalorder %s9, 7
      %p243 = pnand %p241, %p242
      %p244 = pneg %p243
      // Predicated region
      $region51: #{_lambda_.31} parent=5 // pred_check
        _
      $region52: #{_lambda_.31} parent=5 // pred_check_branch
        %246 = sbr.rel (%p243) target = $region54
      $region53: #{_lambda_.31} parent=5 // pred_region
        %s247 = ssub.s32 %s9, 1
        %s248 = sand.u32 %s43, 1
        %s249 = sand.u32 %s43, 1
        %s250 = smul.addr %s249, 72
        %s251 = scalar_lea.vmem [#allocation3], %s250
        // Predicated region
        $region55: #{_lambda_.31} parent=53 // pred_check
          %p252 = pneg %p56
        $region56: #{_lambda_.31} parent=53 // pred_check_branch
          %254 = sbr.rel (%p252) target = $region58
        $region57: #{_lambda_.31} parent=53 // pred_region
          _
        $region58: #{_lambda_.31} parent=53 // pred_fallthru
          _
        %s255 = sand.u32 %s43, 1
        %s256 = sand.u32 %s43, 1
        %s257 = smul.addr %s256, 72
        %s258 = scalar_lea.vmem [#allocation3], %s257
        %p259 = pneg %p56
        %p260 = pneg %p53
        %s261 = smul.u32 48, %s21
        %s262 = smul.u32 2, %s20
        %p263 = scmp.lt.s32.totalorder %s261, 287
        %s264 = scalar_select %p263, %s261, 287
        %p265 = scmp.lt.s32.totalorder %s262, 1
        %s266 = scalar_select %p265, %s262, 1
        %s267 = smul.addr %s264, 2
        %s268 = sadd.s32 %s266, %s267
        %s269 = smul.addr %s268, 4
        %s270 = scalar_lea.vmem %s1, %s269
        %p271 = pneg %p84
        %p272 = pneg %p81
        %s273 = smul.u32 2, %s20
        %p274 = scmp.lt.s32.totalorder %s273, 1
        %s275 = scalar_select %p274, %s273, 1
        %s276 = scalar_lea.vmem %s2, %s275
        %p277 = pneg %p110
        %p278 = pneg %p107
        %p279 = pneg %p138
        %p280 = pneg %p135
        %s281 = smul.u32 6, %s19
        %s282 = smul.u32 2, %s20
        %p283 = scmp.lt.s32.totalorder %s281, 5
        %s284 = scalar_select %p283, %s281, 5
        %p285 = scmp.lt.s32.totalorder %s282, 1
        %s286 = scalar_select %p285, %s282, 1
        %s287 = smul.addr %s284, 2
        %s288 = sadd.s32 %s286, %s287
        %s289 = smul.addr %s288, 4
        %s290 = scalar_lea.vmem %s3, %s289
        %s291 = smul.u32 6, %s19
        %s292 = smul.u32 3, %s21
        %s293 = smul.u32 48, %s21
        %s294 = smul.u32 2, %s20
        %p295 = scmp.lt.s32.totalorder %s293, 287
        %s296 = scalar_select %p295, %s293, 287
        %p297 = scmp.lt.s32.totalorder %s294, 1
        %s298 = scalar_select %p297, %s294, 1
        %s299 = smul.addr %s296, 2
        %s300 = sadd.s32 %s298, %s299
        %s301 = smul.addr %s300, 4
        %s302 = scalar_lea.vmem %s1, %s301
        %s303 = smul.u32 48, %s21
        %s304 = smul.u32 2, %s20
        %s305 = smul.u32 2, %s20
        %p306 = scmp.lt.s32.totalorder %s305, 1
        %s307 = scalar_select %p306, %s305, 1
        %s308 = scalar_lea.vmem %s2, %s307
        %s309 = smul.u32 2, %s20
        %s310 = smul.u32 6, %s19
        %s311 = smul.u32 2, %s20
        %p312 = scmp.lt.s32.totalorder %s310, 5
        %s313 = scalar_select %p312, %s310, 5
        %p314 = scmp.lt.s32.totalorder %s311, 1
        %s315 = scalar_select %p314, %s311, 1
        %s316 = smul.addr %s313, 2
        %s317 = sadd.s32 %s315, %s316
        %s318 = smul.addr %s317, 4
        %s319 = scalar_lea.vmem %s3, %s318
        %s320 = smul.u32 6, %s19
        %s321 = smul.u32 2, %s20
        %p323 = scmp.eq.s32.totalorder %s21, 0
        // Predicated region
        $region59: #{_lambda_.31} parent=53 // pred_check
          %p324 = pneg %p323
        $region60: #{_lambda_.31} parent=53 // pred_check_branch
          %326 = sbr.rel (%p324) target = $region62
        $region61: #{_lambda_.31} parent=53 // pred_region
          %327 = vst [vmem:[#allocation2] sm:$0xff] 0.0
          %328 = vst [vmem:[#allocation2 + $0x8] sm:$0xff] 0.0
          %329 = vst [vmem:[#allocation2 + $0x10] sm:$0xff] 0.0
          %330 = vst [vmem:[#allocation2 + $0x18] sm:$0xff] 0.0
          %331 = vst [vmem:[#allocation2 + $0x20] sm:$0xff] 0.0
          %332 = vst [vmem:[#allocation2 + $0x28] sm:$0xff] 0.0
          %333 = vst [vmem:[#allocation2 + $0x30] sm:$0xff] 0.0
          %334 = vst [vmem:[#allocation2 + $0x38] sm:$0xff] 0.0
          %335 = vst [vmem:[#allocation2 + $0x40] sm:$0xff] 0.0
          %336 = vst [vmem:[#allocation2 + $0x48] sm:$0xff] 0.0
          %337 = vst [vmem:[#allocation2 + $0x50] sm:$0xff] 0.0
          %338 = vst [vmem:[#allocation2 + $0x58] sm:$0xff] 0.0
        $region62: #{_lambda_.31} parent=53 // pred_fallthru
          _
        %v339 = vld [vmem:[#allocation2] sm:$0xff]
        %v340 = vld [vmem:[#allocation2 + $0x8] sm:$0xff]
        %v341 = vld [vmem:[#allocation2 + $0x10] sm:$0xff]
        %v342 = vld [vmem:[#allocation2 + $0x18] sm:$0xff]
        %v343 = vld [vmem:[#allocation2 + $0x20] sm:$0xff]
        %v344 = vld [vmem:[#allocation2 + $0x28] sm:$0xff]
        %v345 = vld [vmem:[#allocation2 + $0x30] sm:$0xff]
        %v346 = vld [vmem:[#allocation2 + $0x38] sm:$0xff]
        %v347 = vld [vmem:[#allocation2 + $0x40] sm:$0xff]
        %v348 = vld [vmem:[#allocation2 + $0x48] sm:$0xff]
        %v349 = vld [vmem:[#allocation2 + $0x50] sm:$0xff]
        %v350 = vld [vmem:[#allocation2 + $0x58] sm:$0xff]
        %v351 = vld [vmem:[%s251] sm:$0xff]
        %v352 = vld [vmem:[%s251 + $0x8] sm:$0xf]
        %v353 = vld [vmem:[%s251 + $0xc] sm:$0xff]
        %v354 = vld [vmem:[%s251 + $0x14] sm:$0xf]
        %v355 = vld [vmem:[%s251 + $0x18] sm:$0xff]
        %v356 = vld [vmem:[%s251 + $0x20] sm:$0xf]
        %v357 = vld [vmem:[%s251 + $0x24] sm:$0xff]
        %v358 = vld [vmem:[%s251 + $0x2c] sm:$0xf]
        %v359 = vld [vmem:[%s251 + $0x30] sm:$0xff]
        %v360 = vld [vmem:[%s251 + $0x38] sm:$0xf]
        %v361 = vld [vmem:[%s251 + $0x3c] sm:$0xff]
        %v362 = vld [vmem:[%s251 + $0x44] sm:$0xf]
        %v363 = vld [vmem:[%s302] sm:$0xff]
        %v364 = vld [vmem:[%s302 + $0x8] sm:$0xff]
        %v365 = vld [vmem:[%s302 + $0x10] sm:$0xff]
        %v366 = vld [vmem:[%s302 + $0x18] sm:$0xff]
        %v367 = vld [vmem:[%s302 + $0x20] sm:$0xff]
        %v368 = vld [vmem:[%s302 + $0x28] sm:$0xff]
        %v369 = vld [vmem:[%s302 + $0x30] sm:$0xff]
        %v370 = vld [vmem:[%s302 + $0x38] sm:$0xff]
        %v371 = vld [vmem:[%s302 + $0x40] sm:$0xff]
        %v372 = vld [vmem:[%s302 + $0x48] sm:$0xff]
        %v373 = vld [vmem:[%s302 + $0x50] sm:$0xff]
        %v374 = vld [vmem:[%s302 + $0x58] sm:$0xff]
        %v375 = vld [vmem:[%s302 + $0x60] sm:$0xff]
        %v376 = vld [vmem:[%s302 + $0x68] sm:$0xff]
        %v377 = vld [vmem:[%s302 + $0x70] sm:$0xff]
        %v378 = vld [vmem:[%s302 + $0x78] sm:$0xff]
        %v379 = vld [vmem:[%s302 + $0x80] sm:$0xff]
        %v380 = vld [vmem:[%s302 + $0x88] sm:$0xff]
        %v381 = vld [vmem:[%s302 + $0x90] sm:$0xff]
        %v382 = vld [vmem:[%s302 + $0x98] sm:$0xff]
        %v383 = vld [vmem:[%s302 + $0xa0] sm:$0xff]
        %v384 = vld [vmem:[%s302 + $0xa8] sm:$0xff]
        %v385 = vld [vmem:[%s302 + $0xb0] sm:$0xff]
        %v386 = vld [vmem:[%s302 + $0xb8] sm:$0xff]
        %v387 = vld [vmem:[%s302 + $0xc0] sm:$0xff]
        %v388 = vld [vmem:[%s302 + $0xc8] sm:$0xff]
        %v389 = vld [vmem:[%s302 + $0xd0] sm:$0xff]
        %v390 = vld [vmem:[%s302 + $0xd8] sm:$0xff]
        %v391 = vld [vmem:[%s302 + $0xe0] sm:$0xff]
        %v392 = vld [vmem:[%s302 + $0xe8] sm:$0xff]
        %v393 = vld [vmem:[%s302 + $0xf0] sm:$0xff]
        %v394 = vld [vmem:[%s302 + $0xf8] sm:$0xff]
        %v395 = vld [vmem:[%s302 + $0x100] sm:$0xff]
        %v396 = vld [vmem:[%s302 + $0x108] sm:$0xff]
        %v397 = vld [vmem:[%s302 + $0x110] sm:$0xff]
        %v398 = vld [vmem:[%s302 + $0x118] sm:$0xff]
        %v399 = vld [vmem:[%s302 + $0x120] sm:$0xff]
        %v400 = vld [vmem:[%s302 + $0x128] sm:$0xff]
        %v401 = vld [vmem:[%s302 + $0x130] sm:$0xff]
        %v402 = vld [vmem:[%s302 + $0x138] sm:$0xff]
        %v403 = vld [vmem:[%s302 + $0x140] sm:$0xff]
        %v404 = vld [vmem:[%s302 + $0x148] sm:$0xff]
        %v405 = vld [vmem:[%s302 + $0x150] sm:$0xff]
        %v406 = vld [vmem:[%s302 + $0x158] sm:$0xff]
        %v407 = vld [vmem:[%s302 + $0x160] sm:$0xff]
        %v408 = vld [vmem:[%s302 + $0x168] sm:$0xff]
        %v409 = vld [vmem:[%s302 + $0x170] sm:$0xff]
        %v410 = vld [vmem:[%s302 + $0x178] sm:$0xff]
        %v423 = vunpack.c.l.b16 %v351
        %v424 = vunpack.c.h.b16 %v351
        %v425 = vunpack.c.l.b16 %v352
        %v426 = vunpack.c.l.b16 %v353
        %v427 = vunpack.c.h.b16 %v353
        %v428 = vunpack.c.l.b16 %v354
        %v429 = vunpack.c.l.b16 %v355
        %v430 = vunpack.c.h.b16 %v355
        %v431 = vunpack.c.l.b16 %v356
        %v432 = vunpack.c.l.b16 %v357
        %v433 = vunpack.c.h.b16 %v357
        %v434 = vunpack.c.l.b16 %v358
        %v435 = vunpack.c.l.b16 %v359
        %v436 = vunpack.c.h.b16 %v359
        %v437 = vunpack.c.l.b16 %v360
        %v438 = vunpack.c.l.b16 %v361
        %v439 = vunpack.c.h.b16 %v361
        %v440 = vunpack.c.l.b16 %v362
        %v441 = vpack.c.b16 %v426, %v423
        %v442 = vpack.c.b16 %v427, %v424
        %v443 = vpack.c.b16 %v428, %v425
        %v444 = vpack.c.b16 %v432, %v429
        %v445 = vpack.c.b16 %v433, %v430
        %v446 = vpack.c.b16 %v434, %v431
        %v447 = vpack.c.b16 %v438, %v435
        %v448 = vpack.c.b16 %v439, %v436
        %v449 = vpack.c.b16 %v440, %v437
        %v507 = vunpack.c.l.b16 %v363
        %v508 = vunpack.c.h.b16 %v363
        %v509 = vunpack.c.l.b16 %v364
        %v510 = vunpack.c.h.b16 %v364
        %v511 = vunpack.c.l.b16 %v365
        %v512 = vunpack.c.h.b16 %v365
        %v513 = vunpack.c.l.b16 %v366
        %v514 = vunpack.c.h.b16 %v366
        %v515 = vunpack.c.l.b16 %v367
        %v516 = vunpack.c.h.b16 %v367
        %v517 = vunpack.c.l.b16 %v368
        %v518 = vunpack.c.h.b16 %v368
        %v519 = vunpack.c.l.b16 %v369
        %v520 = vunpack.c.h.b16 %v369
        %v521 = vunpack.c.l.b16 %v370
        %v522 = vunpack.c.h.b16 %v370
        %v523 = vunpack.c.l.b16 %v371
        %v524 = vunpack.c.h.b16 %v371
        %v525 = vunpack.c.l.b16 %v372
        %v526 = vunpack.c.h.b16 %v372
        %v527 = vunpack.c.l.b16 %v373
        %v528 = vunpack.c.h.b16 %v373
        %v529 = vunpack.c.l.b16 %v374
        %v530 = vunpack.c.h.b16 %v374
        %v531 = vunpack.c.l.b16 %v375
        %v532 = vunpack.c.h.b16 %v375
        %v533 = vunpack.c.l.b16 %v376
        %v534 = vunpack.c.h.b16 %v376
        %v535 = vunpack.c.l.b16 %v377
        %v536 = vunpack.c.h.b16 %v377
        %v537 = vunpack.c.l.b16 %v378
        %v538 = vunpack.c.h.b16 %v378
        %v539 = vunpack.c.l.b16 %v379
        %v540 = vunpack.c.h.b16 %v379
        %v541 = vunpack.c.l.b16 %v380
        %v542 = vunpack.c.h.b16 %v380
        %v543 = vunpack.c.l.b16 %v381
        %v544 = vunpack.c.h.b16 %v381
        %v545 = vunpack.c.l.b16 %v382
        %v546 = vunpack.c.h.b16 %v382
        %v547 = vunpack.c.l.b16 %v383
        %v548 = vunpack.c.h.b16 %v383
        %v549 = vunpack.c.l.b16 %v384
        %v550 = vunpack.c.h.b16 %v384
        %v551 = vunpack.c.l.b16 %v385
        %v552 = vunpack.c.h.b16 %v385
        %v553 = vunpack.c.l.b16 %v386
        %v554 = vunpack.c.h.b16 %v386
        %v555 = vunpack.c.l.b16 %v387
        %v556 = vunpack.c.h.b16 %v387
        %v557 = vunpack.c.l.b16 %v388
        %v558 = vunpack.c.h.b16 %v388
        %v559 = vunpack.c.l.b16 %v389
        %v560 = vunpack.c.h.b16 %v389
        %v561 = vunpack.c.l.b16 %v390
        %v562 = vunpack.c.h.b16 %v390
        %v563 = vunpack.c.l.b16 %v391
        %v564 = vunpack.c.h.b16 %v391
        %v565 = vunpack.c.l.b16 %v392
        %v566 = vunpack.c.h.b16 %v392
        %v567 = vunpack.c.l.b16 %v393
        %v568 = vunpack.c.h.b16 %v393
        %v569 = vunpack.c.l.b16 %v394
        %v570 = vunpack.c.h.b16 %v394
        %v571 = vunpack.c.l.b16 %v395
        %v572 = vunpack.c.h.b16 %v395
        %v573 = vunpack.c.l.b16 %v396
        %v574 = vunpack.c.h.b16 %v396
        %v575 = vunpack.c.l.b16 %v397
        %v576 = vunpack.c.h.b16 %v397
        %v577 = vunpack.c.l.b16 %v398
        %v578 = vunpack.c.h.b16 %v398
        %v579 = vunpack.c.l.b16 %v399
        %v580 = vunpack.c.h.b16 %v399
        %v581 = vunpack.c.l.b16 %v400
        %v582 = vunpack.c.h.b16 %v400
        %v583 = vunpack.c.l.b16 %v401
        %v584 = vunpack.c.h.b16 %v401
        %v585 = vunpack.c.l.b16 %v402
        %v586 = vunpack.c.h.b16 %v402
        %v587 = vunpack.c.l.b16 %v403
        %v588 = vunpack.c.h.b16 %v403
        %v589 = vunpack.c.l.b16 %v404
        %v590 = vunpack.c.h.b16 %v404
        %v591 = vunpack.c.l.b16 %v405
        %v592 = vunpack.c.h.b16 %v405
        %v593 = vunpack.c.l.b16 %v406
        %v594 = vunpack.c.h.b16 %v406
        %v595 = vunpack.c.l.b16 %v407
        %v596 = vunpack.c.h.b16 %v407
        %v597 = vunpack.c.l.b16 %v408
        %v598 = vunpack.c.h.b16 %v408
        %v599 = vunpack.c.l.b16 %v409
        %v600 = vunpack.c.h.b16 %v409
        %v601 = vunpack.c.l.b16 %v410
        %v602 = vunpack.c.h.b16 %v410
        %v603 = vpack.c.b16 %v509, %v507
        %v604 = vpack.c.b16 %v510, %v508
        %v605 = vpack.c.b16 %v513, %v511
        %v606 = vpack.c.b16 %v514, %v512
        %v607 = vpack.c.b16 %v517, %v515
        %v608 = vpack.c.b16 %v518, %v516
        %v609 = vpack.c.b16 %v521, %v519
        %v610 = vpack.c.b16 %v522, %v520
        %v611 = vpack.c.b16 %v525, %v523
        %v612 = vpack.c.b16 %v526, %v524
        %v613 = vpack.c.b16 %v529, %v527
        %v614 = vpack.c.b16 %v530, %v528
        %v615 = vpack.c.b16 %v533, %v531
        %v616 = vpack.c.b16 %v534, %v532
        %v617 = vpack.c.b16 %v537, %v535
        %v618 = vpack.c.b16 %v538, %v536
        %v619 = vpack.c.b16 %v541, %v539
        %v620 = vpack.c.b16 %v542, %v540
        %v621 = vpack.c.b16 %v545, %v543
        %v622 = vpack.c.b16 %v546, %v544
        %v623 = vpack.c.b16 %v549, %v547
        %v624 = vpack.c.b16 %v550, %v548
        %v625 = vpack.c.b16 %v553, %v551
        %v626 = vpack.c.b16 %v554, %v552
        %v627 = vpack.c.b16 %v557, %v555
        %v628 = vpack.c.b16 %v558, %v556
        %v629 = vpack.c.b16 %v561, %v559
        %v630 = vpack.c.b16 %v562, %v560
        %v631 = vpack.c.b16 %v565, %v563
        %v632 = vpack.c.b16 %v566, %v564
        %v633 = vpack.c.b16 %v569, %v567
        %v634 = vpack.c.b16 %v570, %v568
        %v635 = vpack.c.b16 %v573, %v571
        %v636 = vpack.c.b16 %v574, %v572
        %v637 = vpack.c.b16 %v577, %v575
        %v638 = vpack.c.b16 %v578, %v576
        %v639 = vpack.c.b16 %v581, %v579
        %v640 = vpack.c.b16 %v582, %v580
        %v641 = vpack.c.b16 %v585, %v583
        %v642 = vpack.c.b16 %v586, %v584
        %v643 = vpack.c.b16 %v589, %v587
        %v644 = vpack.c.b16 %v590, %v588
        %v645 = vpack.c.b16 %v593, %v591
        %v646 = vpack.c.b16 %v594, %v592
        %v647 = vpack.c.b16 %v597, %v595
        %v648 = vpack.c.b16 %v598, %v596
        %v649 = vpack.c.b16 %v601, %v599
        %v650 = vpack.c.b16 %v602, %v600
        %699 = vmatprep.subr.bf16.mxu0 %v604
        %700 = vmatpush1.bf16.msra.mxu0 %v603
        %701 = vmatprep.subr.bf16.mxu0 %v606
        %702 = vmatpush1.bf16.msra.mxu0 %v605
        %703 = vmatprep.subr.bf16.mxu0 %v608
        %704 = vmatpush1.bf16.msra.mxu0 %v607
        %705 = vmatprep.subr.bf16.mxu0 %v610
        %706 = vmatpush1.bf16.msra.mxu0 %v609
        %707 = vmatprep.subr.bf16.mxu0 %v612
        %708 = vmatpush1.bf16.msra.mxu0 %v611
        %709 = vmatprep.subr.bf16.mxu0 %v614
        %710 = vmatpush1.bf16.msra.mxu0 %v613
        %711 = vmatprep.subr.bf16.mxu0 %v616
        %712 = vmatpush1.bf16.msra.mxu0 %v615
        %713 = vmatprep.subr.bf16.mxu0 %v618
        %714 = vmatpush1.bf16.msra.mxu0 %v617
        %715 = vmatprep.subr.bf16.mxu0 %v620
        %716 = vmatpush1.bf16.msra.mxu0 %v619
        %717 = vmatprep.subr.bf16.mxu0 %v622
        %718 = vmatpush1.bf16.msra.mxu0 %v621
        %719 = vmatprep.subr.bf16.mxu0 %v624
        %720 = vmatpush1.bf16.msra.mxu0 %v623
        %721 = vmatprep.subr.bf16.mxu0 %v626
        %722 = vmatpush1.bf16.msra.mxu0 %v625
        %723 = vmatprep.subr.bf16.mxu0 %v628
        %724 = vmatpush1.bf16.msra.mxu0 %v627
        %725 = vmatprep.subr.bf16.mxu0 %v630
        %726 = vmatpush1.bf16.msra.mxu0 %v629
        %727 = vmatprep.subr.bf16.mxu0 %v632
        %728 = vmatpush1.bf16.msra.mxu0 %v631
        %729 = vmatprep.subr.bf16.mxu0 %v634
        %730 = vmatpush1.bf16.msra.mxu0 %v633
        %731 = vmatprep.mubr.bf16.mxu0 %v442
        %732 = vmatmul.mubr.bf16.gmra.mrb[0].mxu0 %v441
        %v733 = vpop.f32.mrb[0].mxu0
        %v734 = vadd.f32 0.0, %v733
        %v735 = vpop.f32.mrb[0].mxu0
        %v736 = vadd.f32 0.0, %v735
        %v737 = vpop.f32.mrb[0].mxu0
        %v738 = vadd.f32 0.0, %v737
        %v739 = vpop.f32.mrb[0].mxu0
        %v740 = vadd.f32 0.0, %v739
        %741 = vmatprep.mubr.bf16.mxu0 %v445
        %742 = vmatmul.mubr.bf16.gmra.mrb[0].mxu0 %v444
        %v743 = vpop.f32.mrb[0].mxu0
        %v744 = vadd.f32 0.0, %v743
        %v745 = vpop.f32.mrb[0].mxu0
        %v746 = vadd.f32 0.0, %v745
        %v747 = vpop.f32.mrb[0].mxu0
        %v748 = vadd.f32 0.0, %v747
        %v749 = vpop.f32.mrb[0].mxu0
        %v750 = vadd.f32 0.0, %v749
        %751 = vmatprep.mubr.bf16.mxu0 %v448
        %752 = vmatmul.mubr.bf16.gmra.mrb[0].mxu0 %v447
        %v753 = vpop.f32.mrb[0].mxu0
        %v754 = vadd.f32 0.0, %v753
        %v755 = vpop.f32.mrb[0].mxu0
        %v756 = vadd.f32 0.0, %v755
        %v757 = vpop.f32.mrb[0].mxu0
        %v758 = vadd.f32 0.0, %v757
        %v759 = vpop.f32.mrb[0].mxu0
        %v760 = vadd.f32 0.0, %v759
        %761 = vdwg.mxu0
        %762 = vmatprep.subr.bf16.mxu0 %v636
        %763 = vmatpush1.bf16.msra.mxu0 %v635
        %764 = vmatprep.subr.bf16.mxu0 %v638
        %765 = vmatpush1.bf16.msra.mxu0 %v637
        %766 = vmatprep.subr.bf16.mxu0 %v640
        %767 = vmatpush1.bf16.msra.mxu0 %v639
        %768 = vmatprep.subr.bf16.mxu0 %v642
        %769 = vmatpush1.bf16.msra.mxu0 %v641
        %770 = vmatprep.subr.bf16.mxu0 %v644
        %771 = vmatpush1.bf16.msra.mxu0 %v643
        %772 = vmatprep.subr.bf16.mxu0 %v646
        %773 = vmatpush1.bf16.msra.mxu0 %v645
        %774 = vmatprep.subr.bf16.mxu0 %v648
        %775 = vmatpush1.bf16.msra.mxu0 %v647
        %776 = vmatprep.subr.bf16.mxu0 %v650
        %777 = vmatpush1.bf16.msra.mxu0 %v649
        %778 = vmatprep.subr.bf16.mxu0 0
        %779 = vmatpush1.bf16.msra.mxu0 0
        %780 = vmatprep.subr.bf16.mxu0 0
        %781 = vmatpush1.bf16.msra.mxu0 0
        %782 = vmatprep.subr.bf16.mxu0 0
        %783 = vmatpush1.bf16.msra.mxu0 0
        %784 = vmatprep.subr.bf16.mxu0 0
        %785 = vmatpush1.bf16.msra.mxu0 0
        %786 = vmatprep.subr.bf16.mxu0 0
        %787 = vmatpush1.bf16.msra.mxu0 0
        %788 = vmatprep.subr.bf16.mxu0 0
        %789 = vmatpush1.bf16.msra.mxu0 0
        %790 = vmatprep.subr.bf16.mxu0 0
        %791 = vmatpush1.bf16.msra.mxu0 0
        %792 = vmatprep.subr.bf16.mxu0 0
        %793 = vmatpush1.bf16.msra.mxu0 0
        %794 = vmatprep.mubr.bf16.mxu0 0
        %795 = vmatmul.mubr.bf16.gmra.mrb[0].mxu0 %v443
        %v796 = vpop.f32.mrb[0].mxu0
        %v797 = vadd.f32 %v734, %v796
        %v798 = vpop.f32.mrb[0].mxu0
        %v799 = vadd.f32 %v736, %v798
        %v800 = vpop.f32.mrb[0].mxu0
        %v801 = vadd.f32 %v738, %v800
        %v802 = vpop.f32.mrb[0].mxu0
        %v803 = vadd.f32 %v740, %v802
        %804 = vmatprep.mubr.bf16.mxu0 0
        %805 = vmatmul.mubr.bf16.gmra.mrb[0].mxu0 %v446
        %v806 = vpop.f32.mrb[0].mxu0
        %v807 = vadd.f32 %v744, %v806
        %v808 = vpop.f32.mrb[0].mxu0
        %v809 = vadd.f32 %v746, %v808
        %v810 = vpop.f32.mrb[0].mxu0
        %v811 = vadd.f32 %v748, %v810
        %v812 = vpop.f32.mrb[0].mxu0
        %v813 = vadd.f32 %v750, %v812
        %814 = vmatprep.mubr.bf16.mxu0 0
        %815 = vmatmul.mubr.bf16.gmra.mrb[0].mxu0 %v449
        %v816 = vpop.f32.mrb[0].mxu0
        %v817 = vadd.f32 %v754, %v816
        %v818 = vpop.f32.mrb[0].mxu0
        %v819 = vadd.f32 %v756, %v818
        %v820 = vpop.f32.mrb[0].mxu0
        %v821 = vadd.f32 %v758, %v820
        %v822 = vpop.f32.mrb[0].mxu0
        %v823 = vadd.f32 %v760, %v822
        %824 = vdwg.mxu0
        %v825 = vadd.f32 %v339, %v797
        %v826 = vadd.f32 %v340, %v799
        %v827 = vadd.f32 %v341, %v801
        %v828 = vadd.f32 %v342, %v803
        %v829 = vadd.f32 %v343, %v807
        %v830 = vadd.f32 %v344, %v809
        %v831 = vadd.f32 %v345, %v811
        %v832 = vadd.f32 %v346, %v813
        %v833 = vadd.f32 %v347, %v817
        %v834 = vadd.f32 %v348, %v819
        %v835 = vadd.f32 %v349, %v821
        %v836 = vadd.f32 %v350, %v823
        %837 = vst [vmem:[#allocation2] sm:$0xff] %v825
        %838 = vst [vmem:[#allocation2 + $0x8] sm:$0xff] %v826
        %839 = vst [vmem:[#allocation2 + $0x10] sm:$0xff] %v827
        %840 = vst [vmem:[#allocation2 + $0x18] sm:$0xff] %v828
        %841 = vst [vmem:[#allocation2 + $0x20] sm:$0xff] %v829
        %842 = vst [vmem:[#allocation2 + $0x28] sm:$0xff] %v830
        %843 = vst [vmem:[#allocation2 + $0x30] sm:$0xff] %v831
        %844 = vst [vmem:[#allocation2 + $0x38] sm:$0xff] %v832
        %845 = vst [vmem:[#allocation2 + $0x40] sm:$0xff] %v833
        %846 = vst [vmem:[#allocation2 + $0x48] sm:$0xff] %v834
        %847 = vst [vmem:[#allocation2 + $0x50] sm:$0xff] %v835
        %848 = vst [vmem:[#allocation2 + $0x58] sm:$0xff] %v836
        %p849 = scmp.eq.s32.totalorder %s21, 5
        // Predicated region
        $region63: #{_lambda_.31} parent=53 // pred_check
          %p850 = pneg %p849
        $region64: #{_lambda_.31} parent=53 // pred_check_branch
          %852 = sbr.rel (%p850) target = $region66
        $region65: #{_lambda_.31} parent=53 // pred_region
          %v853 = vld [vmem:[#allocation2] sm:$0xff]
          %v854 = vld [vmem:[#allocation2 + $0x8] sm:$0xff]
          %v855 = vld [vmem:[#allocation2 + $0x10] sm:$0xff]
          %v856 = vld [vmem:[#allocation2 + $0x18] sm:$0xff]
          %v857 = vld [vmem:[#allocation2 + $0x20] sm:$0xff]
          %v858 = vld [vmem:[#allocation2 + $0x28] sm:$0xff]
          %v859 = vld [vmem:[#allocation2 + $0x30] sm:$0xff]
          %v860 = vld [vmem:[#allocation2 + $0x38] sm:$0xff]
          %v861 = vld [vmem:[#allocation2 + $0x40] sm:$0xff]
          %v862 = vld [vmem:[#allocation2 + $0x48] sm:$0xff]
          %v863 = vld [vmem:[#allocation2 + $0x50] sm:$0xff]
          %v864 = vld [vmem:[#allocation2 + $0x58] sm:$0xff]
          %v865 = vld [vmem:[%s308] sm:$0x3]
          %v867 = vlaneseq
          %v868 = vshrl.u32 %v867, 7
          %v869 = vsub.s32 0, %v868
          %v870 = vrot.slane %v865, %v869
          %v871 = vlaneseq
          %v872 = vshrl.u32 %v871, 7
          %v873 = vsub.s32 1, %v872
          %v874 = vrot.slane %v865, %v873
          %v877 = vadd.f32 %v853, %v870
          %v878 = vadd.f32 %v854, %v874
          %v879 = vadd.f32 %v855, %v870
          %v880 = vadd.f32 %v856, %v874
          %v881 = vadd.f32 %v857, %v870
          %v882 = vadd.f32 %v858, %v874
          %v883 = vadd.f32 %v859, %v870
          %v884 = vadd.f32 %v860, %v874
          %v885 = vadd.f32 %v861, %v870
          %v886 = vadd.f32 %v862, %v874
          %v887 = vadd.f32 %v863, %v870
          %v888 = vadd.f32 %v864, %v874
          %v889 = vmax.f32 %v877, 0.0
          %v890 = vmax.f32 %v878, 0.0
          %v891 = vmax.f32 %v879, 0.0
          %v892 = vmax.f32 %v880, 0.0
          %v893 = vmax.f32 %v881, 0.0
          %v894 = vmax.f32 %v882, 0.0
          %v895 = vmax.f32 %v883, 0.0
          %v896 = vmax.f32 %v884, 0.0
          %v897 = vmax.f32 %v885, 0.0
          %v898 = vmax.f32 %v886, 0.0
          %v899 = vmax.f32 %v887, 0.0
          %v900 = vmax.f32 %v888, 0.0
          %v901 = vpack.c.bf16 %v891, %v889
          %v902 = vpack.c.bf16 %v892, %v890
          %v903 = vpack.c.bf16 %v895, %v893
          %v904 = vpack.c.bf16 %v896, %v894
          %v905 = vpack.c.bf16 %v899, %v897
          %v906 = vpack.c.bf16 %v900, %v898
          %v913 = vunpack.c.l.b16 %v901
          %v914 = vunpack.c.l.b16 %v902
          %v915 = vunpack.c.h.b16 %v901
          %v916 = vunpack.c.h.b16 %v902
          %v917 = vunpack.c.l.b16 %v903
          %v918 = vunpack.c.l.b16 %v904
          %v919 = vunpack.c.h.b16 %v903
          %v920 = vunpack.c.h.b16 %v904
          %v921 = vunpack.c.l.b16 %v905
          %v922 = vunpack.c.l.b16 %v906
          %v923 = vunpack.c.h.b16 %v905
          %v924 = vunpack.c.h.b16 %v906
          %v925 = vpack.c.b16 %v914, %v913
          %v926 = vpack.c.b16 %v916, %v915
          %v927 = vpack.c.b16 %v918, %v917
          %v928 = vpack.c.b16 %v920, %v919
          %v929 = vpack.c.b16 %v922, %v921
          %v930 = vpack.c.b16 %v924, %v923
          %937 = vst [vmem:[%s319] sm:$0xff] %v925
          %938 = vst [vmem:[%s319 + $0x8] sm:$0xff] %v926
          %939 = vst [vmem:[%s319 + $0x10] sm:$0xff] %v927
          %940 = vst [vmem:[%s319 + $0x18] sm:$0xff] %v928
          %941 = vst [vmem:[%s319 + $0x20] sm:$0xff] %v929
          %942 = vst [vmem:[%s319 + $0x28] sm:$0xff] %v930
        $region66: #{_lambda_.31} parent=53 // pred_fallthru
          _
        %s943 = smul.u32 6, %s19
        %s944 = smul.u32 2, %s20
        %p945 = scmp.lt.s32.totalorder %s943, 5
        %s946 = scalar_select %p945, %s943, 5
        %p947 = scmp.lt.s32.totalorder %s944, 1
        %s948 = scalar_select %p947, %s944, 1
        %s949 = smul.addr %s946, 2
        %s950 = sadd.s32 %s948, %s949
        %s951 = smul.addr %s950, 4
        %s952 = scalar_lea.vmem %s3, %s951
        // Predicated region
        $region67: #{_lambda_.31} parent=53 // pred_check
          %p953 = pneg %p135
        $region68: #{_lambda_.31} parent=53 // pred_check_branch
          %955 = sbr.rel (%p953) target = $region70
        $region69: #{_lambda_.31} parent=53 // pred_region
          %s956 = smul.u32 6, %s19
          %s957 = smul.u32 2, %s20
        $region70: #{_lambda_.31} parent=53 // pred_fallthru
          _
        // Predicated region
        $region71: #{_lambda_.31} parent=53 // pred_check
          %p958 = pneg %p135
        $region72: #{_lambda_.31} parent=53 // pred_check_branch
          %960 = sbr.rel (%p958) target = $region74
        $region73: #{_lambda_.31} parent=53 // pred_region
          %s961 = smul.u32 6, %s19
          %s962 = smul.u32 2, %s20
          %p963 = scmp.lt.s32.totalorder %s961, 5
          %s964 = scalar_select %p963, %s961, 5
          %p965 = scmp.lt.s32.totalorder %s962, 1
          %s966 = scalar_select %p965, %s962, 1
          %s967 = smul.addr %s964, 2
          %s968 = sadd.s32 %s966, %s967
          %s969 = smul.addr %s968, 4
          %s970 = scalar_lea.vmem %s3, %s969
        $region74: #{_lambda_.31} parent=53 // pred_fallthru
          _
      $region54: #{_lambda_.31} parent=5 // pred_fallthru
        _
      %p971 = scmp.le.s32.totalorder 2, %s9
      // Predicated region
      $region75: #{_lambda_.31} parent=5 // pred_check
        %p972 = pneg %p971
      $region76: #{_lambda_.31} parent=5 // pred_check_branch
        %974 = sbr.rel (%p972) target = $region78
      $region77: #{_lambda_.31} parent=5 // pred_region
        %s975 = ssub.s32 %s9, 2
      $region78: #{_lambda_.31} parent=5 // pred_fallthru
        _
    $region6: #{_lambda_.31} parent=1 // loop_footer
      %s13 = sadd.s32 1, %s9
    $region7: #{_lambda_.31} parent=1 // loop_footer_branch
      %8 = sbr.rel target = $region3
    $region8: #{_lambda_.31} parent=1 // loop_exit
      _

// kernel: _lambda_.32
$region0: #{_lambda_.32}
  #allocation0 [shape = 'u32[]', space=smem, size = 0x4, offset = 0x4, fixed_abs, tag = 'smem constant byte address 0x4 - core index']
  #allocation1 [shape = 'u32[144,128]{1,0:T(1,128)}', space=vmem, size = 0x12000, scoped, tag = 'internal scratch']
  %s0 = inlined_call_operand.vmem [shape: bf16[3,3,4,256], index: 0, kind: input, shape index: {}]
  %s1 = inlined_call_operand.vmem [shape: bf16[1,1,4,256], index: 1, kind: output, shape index: {}]
  %s2 = sld [smem:[#allocation0]]
  $region78: #{_lambda_.32} parent=0
    _
  %s4 = ssub.s32 1, %s2
  %s5 = scalar_select 0, %s4, %s2
  $region1: #{_lambda_.32} parent=0
    #allocation2 [shape = 'u8[18432]{0}', space=vmem, size = 0x4800, scoped, tag = 'input window, operand 0']
    loop: start=0, step=1, limit=4
    $region2: #{_lambda_.32} parent=1 // loop_pre_header
      _
    $region3: #{_lambda_.32} parent=1 // loop_header
      %s7 = sphi 0, %s11
      %p8 = scmp.ge.s32.totalorder %s7, 4
      %s17 = sphi 0, %s19
      %s20 = sphi 0, %s17
      %s21 = sphi 0, %s20
      %s37 = sphi 0, %s21
      %s43 = sphi 0, %s45
      %s46 = sphi 0, %s43
      %s47 = sphi 0, %s46
      %s63 = sphi 0, %s47
    $region4: #{_lambda_.32} parent=1 // loop_header_branch
      %10 = sbr.rel (%p8) target = $region8
    $region5: #{_lambda_.32} parent=1 // loop_body
      %s12 = ssub.s32 %s7, 1
      %s13 = ssub.s32 %s7, 2
      %s14 = sadd.s32 %s7, 1
      %s15 = ssub.s32 %s7, %s14
      %p16 = scmp.eq.s32.totalorder %s15, 0
      %s18 = sadd.s32 %s17, 1
      %s19 = scalar_select %p16, %s17, %s18
      %p22 = pneg %p16
      %p23 = scmp.eq.s32.totalorder %s7, 1
      %p24 = por %p22, %p23
      %p25 = scmp.ne.s32.totalorder %s17, %s20
      %p26 = scmp.eq.s32.totalorder %s7, 0
      %p27 = por %p25, %p26
      %p28 = scmp.ne.s32.totalorder %s17, %s20
      %p29 = scmp.eq.s32.totalorder %s12, 1
      %p30 = por %p28, %p29
      %p31 = scmp.ne.s32.totalorder %s20, %s21
      %p32 = scmp.eq.s32.totalorder %s12, 0
      %p33 = por %p31, %p32
      %p34 = scmp.ne.s32.totalorder %s20, %s21
      %p35 = scmp.eq.s32.totalorder %s13, 1
      %p36 = por %p34, %p35
      %p38 = scmp.ne.s32.totalorder %s21, %s37
      %p39 = scmp.eq.s32.totalorder %s13, 0
      %p40 = por %p38, %p39
      %s41 = ssub.s32 %s7, %s14
      %p42 = scmp.eq.s32.totalorder %s41, 0
      %s44 = sadd.s32 %s43, 1
      %s45 = scalar_select %p42, %s43, %s44
      %p48 = pneg %p42
      %p49 = scmp.eq.s32.totalorder %s7, 1
      %p50 = por %p48, %p49
      %p51 = scmp.ne.s32.totalorder %s43, %s46
      %p52 = scmp.eq.s32.totalorder %s7, 0
      %p53 = por %p51, %p52
      %p54 = scmp.ne.s32.totalorder %s43, %s46
      %p55 = scmp.eq.s32.totalorder %s12, 1
      %p56 = por %p54, %p55
      %p57 = scmp.ne.s32.totalorder %s46, %s47
      %p58 = scmp.eq.s32.totalorder %s12, 0
      %p59 = por %p57, %p58
      %p60 = scmp.ne.s32.totalorder %s46, %s47
      %p61 = scmp.eq.s32.totalorder %s13, 1
      %p62 = por %p60, %p61
      %p64 = scmp.ne.s32.totalorder %s47, %s63
      %p65 = scmp.eq.s32.totalorder %s13, 0
      %p66 = por %p64, %p65
      %p67 = scmp.le.s32.totalorder 1, %s7
      %p68 = scmp.lt.s32.totalorder %s7, 3
      %p69 = pnand %p67, %p68
      %p70 = pneg %p69
      // Predicated region
      $region9: #{_lambda_.32} parent=5 // pred_check
        _
      $region10: #{_lambda_.32} parent=5 // pred_check_branch
        %72 = sbr.rel (%p69) target = $region12
      $region11: #{_lambda_.32} parent=5 // pred_region
        %s73 = ssub.s32 %s7, 1
      $region12: #{_lambda_.32} parent=5 // pred_fallthru
        _
      %p74 = scmp.lt.s32.totalorder %s7, 2
      // Predicated region
      $region13: #{_lambda_.32} parent=5 // pred_check
        %p75 = pneg %p74
      $region14: #{_lambda_.32} parent=5 // pred_check_branch
        %77 = sbr.rel (%p75) target = $region16
      $region15: #{_lambda_.32} parent=5 // pred_region
        // Predicated region
        $region17: #{_lambda_.32} parent=15 // pred_check
          %p78 = pneg %p27
        $region18: #{_lambda_.32} parent=15 // pred_check_branch
          %80 = sbr.rel (%p78) target = $region20
        $region19: #{_lambda_.32} parent=15 // pred_region
          %s81 = sand.u32 %s17, 1
          %s82 = sand.u32 %s17, 1
          %s83 = smul.addr %s82, 18
          %s84 = scalar_lea.vmem [#allocation2], %s83
          %s85 = smul.addr %s7, 2
          %s86 = scalar_lea.vmem %s0, %s85
          // Predicated region
          $region21: #{_lambda_.32} parent=19 // pred_check
            _
          $region22: #{_lambda_.32} parent=19 // pred_check_branch
            %88 = sbr.rel (0) target = $region24
          $region23: #{_lambda_.32} parent=19 // pred_region
            // Predicated region
            $region25: #{_lambda_.32} parent=23 // pred_check
              _
            $region26: #{_lambda_.32} parent=23 // pred_check_branch
              %90 = sbr.rel target = $region28
            $region27: #{_lambda_.32} parent=23 // pred_region
              // Predicated region
              $region40: #{_lambda_.32} parent=27 // pred_check
                _
              $region41: #{_lambda_.32} parent=27 // pred_check_branch
                %121 = sbr.rel (0) target = $region43
              $region42: #{_lambda_.32} parent=27 // pred_region
                loop: start=0, step=1, limit=1
                $region44: #{_lambda_.32} parent=42 // loop_pre_header
                  _
                $region45: #{_lambda_.32} parent=42 // loop_header
                  %s123 = sphi 0, %s127
                  %p124 = scmp.ge.s32.totalorder %s123, 1
                  %s128 = sphi %s86, %s86
                  %s129 = sphi %s84, %s84
                $region46: #{_lambda_.32} parent=42 // loop_header_branch
                  %126 = sbr.rel (%p124) target = $region50
                $region47: #{_lambda_.32} parent=42 // loop_body
                  _
                $region48: #{_lambda_.32} parent=42 // loop_footer
                  %s127 = sadd.s32 1, %s123
                $region49: #{_lambda_.32} parent=42 // loop_footer_branch
                  %122 = sbr.rel target = $region45
                $region50: #{_lambda_.32} parent=42 // loop_exit
                  _
                loop: start=0, step=1, limit=1
                $region51: #{_lambda_.32} parent=42 // loop_pre_header
                  _
                $region52: #{_lambda_.32} parent=42 // loop_header
                  %s132 = sphi 0, %s136
                  %p133 = scmp.ge.s32.totalorder %s132, 1
                  %s137 = sphi %s86, %s86
                  %s138 = sphi %s84, %s84
                $region53: #{_lambda_.32} parent=42 // loop_header_branch
                  %135 = sbr.rel (%p133) target = $region57
                $region54: #{_lambda_.32} parent=42 // loop_body
                  %v139 = vld [vmem:[%s137] sm:$0x3]
                  %140 = vst [vmem:[%s138] sm:$0x3] %v139
                  %v141 = vld [vmem:[%s137 + $0x4] sm:$0x3]
                  %142 = vst [vmem:[%s138 + $0x2] sm:$0x3] %v141
                  %v143 = vld [vmem:[%s137 + $0x8] sm:$0x3]
                  %144 = vst [vmem:[%s138 + $0x4] sm:$0x3] %v143
                  %v145 = vld [vmem:[%s137 + $0xc] sm:$0x3]
                  %146 = vst [vmem:[%s138 + $0x6] sm:$0x3] %v145
                  %v147 = vld [vmem:[%s137 + $0x10] sm:$0x3]
                  %148 = vst [vmem:[%s138 + $0x8] sm:$0x3] %v147
                  %v149 = vld [vmem:[%s137 + $0x14] sm:$0x3]
                  %150 = vst [vmem:[%s138 + $0xa] sm:$0x3] %v149
                  %v151 = vld [vmem:[%s137 + $0x18] sm:$0x3]
                  %152 = vst [vmem:[%s138 + $0xc] sm:$0x3] %v151
                  %v153 = vld [vmem:[%s137 + $0x1c] sm:$0x3]
                  %154 = vst [vmem:[%s138 + $0xe] sm:$0x3] %v153
                  %v155 = vld [vmem:[%s137 + $0x20] sm:$0x3]
                  %156 = vst [vmem:[%s138 + $0x10] sm:$0x3] %v155
                $region55: #{_lambda_.32} parent=42 // loop_footer
                  %s136 = sadd.s32 1, %s132
                $region56: #{_lambda_.32} parent=42 // loop_footer_branch
                  %131 = sbr.rel target = $region52
                $region57: #{_lambda_.32} parent=42 // loop_exit
                  _
              $region43: #{_lambda_.32} parent=27 // pred_fallthru
                _
            $region28: #{_lambda_.32} parent=23 // pred_fallthru
              _
            // Predicated region
            $region29: #{_lambda_.32} parent=23 // pred_check
              _
            $region30: #{_lambda_.32} parent=23 // pred_check_branch
              %92 = sbr.rel (0) target = $region32
            $region31: #{_lambda_.32} parent=23 // pred_region
              loop: start=0, step=1, limit=1
              $region33: #{_lambda_.32} parent=31 // loop_pre_header
                _
              $region34: #{_lambda_.32} parent=31 // loop_header
                %s95 = sphi 0, %s99
                %p96 = scmp.ge.s32.totalorder %s95, 1
                %s100 = sphi %s86, %s86
                %s101 = sphi %s84, %s84
              $region35: #{_lambda_.32} parent=31 // loop_header_branch
                %98 = sbr.rel (%p96) target = $region39
              $region36: #{_lambda_.32} parent=31 // loop_body
                %v102 = vld [vmem:[%s100] sm:$0x3]
                %103 = vst [vmem:[%s101] sm:$0x3] %v102
                %v104 = vld [vmem:[%s100 + $0x4] sm:$0x3]
                %105 = vst [vmem:[%s101 + $0x2] sm:$0x3] %v104
                %v106 = vld [vmem:[%s100 + $0x8] sm:$0x3]
                %107 = vst [vmem:[%s101 + $0x4] sm:$0x3] %v106
                %v108 = vld [vmem:[%s100 + $0xc] sm:$0x3]
                %109 = vst [vmem:[%s101 + $0x6] sm:$0x3] %v108
                %v110 = vld [vmem:[%s100 + $0x10] sm:$0x3]
                %111 = vst [vmem:[%s101 + $0x8] sm:$0x3] %v110
                %v112 = vld [vmem:[%s100 + $0x14] sm:$0x3]
                %113 = vst [vmem:[%s101 + $0xa] sm:$0x3] %v112
                %v114 = vld [vmem:[%s100 + $0x18] sm:$0x3]
                %115 = vst [vmem:[%s101 + $0xc] sm:$0x3] %v114
                %v116 = vld [vmem:[%s100 + $0x1c] sm:$0x3]
                %117 = vst [vmem:[%s101 + $0xe] sm:$0x3] %v116
                %v118 = vld [vmem:[%s100 + $0x20] sm:$0x3]
                %119 = vst [vmem:[%s101 + $0x10] sm:$0x3] %v118
              $region37: #{_lambda_.32} parent=31 // loop_footer
                %s99 = sadd.s32 1, %s95
              $region38: #{_lambda_.32} parent=31 // loop_footer_branch
                %94 = sbr.rel target = $region34
              $region39: #{_lambda_.32} parent=31 // loop_exit
                _
            $region32: #{_lambda_.32} parent=23 // pred_fallthru
              _
          $region24: #{_lambda_.32} parent=19 // pred_fallthru
            _
          %157 = vnop
        $region20: #{_lambda_.32} parent=15 // pred_fallthru
          _
      $region16: #{_lambda_.32} parent=5 // pred_fallthru
        _
      %p158 = scmp.le.s32.totalorder 1, %s7
      %p159 = scmp.lt.s32.totalorder %s7, 3
      %p160 = pnand %p158, %p159
      %p161 = pneg %p160
      // Predicated region
      $region58: #{_lambda_.32} parent=5 // pred_check
        _
      $region59: #{_lambda_.32} parent=5 // pred_check_branch
        %163 = sbr.rel (%p160) target = $region61
      $region60: #{_lambda_.32} parent=5 // pred_region
        %s164 = ssub.s32 %s7, 1
        %s165 = sand.u32 %s20, 1
        %s166 = sand.u32 %s20, 1
        %s167 = smul.addr %s166, 18
        %s168 = scalar_lea.vmem [#allocation2], %s167
        // Predicated region
        $region62: #{_lambda_.32} parent=60 // pred_check
          %p169 = pneg %p33
        $region63: #{_lambda_.32} parent=60 // pred_check_branch
          %171 = sbr.rel (%p169) target = $region65
        $region64: #{_lambda_.32} parent=60 // pred_region
          _
        $region65: #{_lambda_.32} parent=60 // pred_fallthru
          _
        %s172 = sand.u32 %s20, 1
        %s173 = sand.u32 %s20, 1
        %s174 = smul.addr %s173, 18
        %s175 = scalar_lea.vmem [#allocation2], %s174
        %p176 = pneg %p33
        %p177 = pneg %p30
        %p178 = pneg %p59
        %p179 = pneg %p56
        %p180 = scmp.lt.s32.totalorder %s12, 1
        %s181 = scalar_select %p180, %s12, 1
        %s182 = smul.addr %s181, 2
        %s183 = scalar_lea.vmem %s1, %s182
        %p184 = scmp.lt.s32.totalorder %s12, 1
        %s185 = scalar_select %p184, %s12, 1
        %s186 = smul.addr %s185, 2
        %s187 = scalar_lea.vmem %s1, %s186
        %v189 = vld [vmem:[%s168] sm:$0x3]
        %v190 = vld [vmem:[%s168 + $0x2] sm:$0x3]
        %v191 = vld [vmem:[%s168 + $0x4] sm:$0x3]
        %v192 = vld [vmem:[%s168 + $0x6] sm:$0x3]
        %v193 = vld [vmem:[%s168 + $0x8] sm:$0x3]
        %v194 = vld [vmem:[%s168 + $0xa] sm:$0x3]
        %v195 = vld [vmem:[%s168 + $0xc] sm:$0x3]
        %v196 = vld [vmem:[%s168 + $0xe] sm:$0x3]
        %v197 = vld [vmem:[%s168 + $0x10] sm:$0x3]
        %v198 = vmax.bf16 %v189, %v192
        %v199 = vmax.bf16 %v190, %v193
        %v200 = vmax.bf16 %v191, %v194
        %v201 = vmax.bf16 %v192, %v195
        %v202 = vmax.bf16 %v193, %v196
        %v203 = vmax.bf16 %v194, %v197
        %vm204 = vcmask 1041408
        %v207 = vsel %vm204, %v198, 4286644096
        %v210 = vsel %vm204, %v201, 4286644096
        %v212 = vmax.bf16 %v207, %v210
        %v214 = vsel %vm204, %v199, 4286644096
        %v217 = vsel %vm204, %v202, 4286644096
        %v219 = vmax.bf16 %v214, %v217
        %v221 = vsel %vm204, %v200, 4286644096
        %v224 = vsel %vm204, %v203, 4286644096
        %v226 = vmax.bf16 %v221, %v224
        %v227 = vmax.bf16 %v212, %v219
        %v228 = vmax.bf16 %v219, %v226
        %v230 = vsel %vm204, %v227, 4286644096
        %v233 = vsel %vm204, %v228, 4286644096
        %v235 = vmax.bf16 %v230, %v233
        %236 = vst [vmem:[%s187] sm:$0x3] %v235
        %p237 = scmp.lt.s32.totalorder %s12, 1
        %s238 = scalar_select %p237, %s12, 1
        %s239 = smul.addr %s238, 2
        %s240 = scalar_lea.vmem %s1, %s239
        // Predicated region
        $region66: #{_lambda_.32} parent=60 // pred_check
          %p241 = pneg %p56
        $region67: #{_lambda_.32} parent=60 // pred_check_branch
          %243 = sbr.rel (%p241) target = $region69
        $region68: #{_lambda_.32} parent=60 // pred_region
          _
        $region69: #{_lambda_.32} parent=60 // pred_fallthru
          _
      $region61: #{_lambda_.32} parent=5 // pred_fallthru
        _
      %p244 = scmp.le.s32.totalorder 2, %s7
      // Predicated region
      $region70: #{_lambda_.32} parent=5 // pred_check
        %p245 = pneg %p244
      $region71: #{_lambda_.32} parent=5 // pred_check_branch
        %247 = sbr.rel (%p245) target = $region73
      $region72: #{_lambda_.32} parent=5 // pred_region
        %s248 = ssub.s32 %s7, 2
        // Predicated region
        $region74: #{_lambda_.32} parent=72 // pred_check
          %p249 = pneg %p62
        $region75: #{_lambda_.32} parent=72 // pred_check_branch
          %251 = sbr.rel (%p249) target = $region77
        $region76: #{_lambda_.32} parent=72 // pred_region
          %p252 = scmp.lt.s32.totalorder %s13, 1
          %s253 = scalar_select %p252, %s13, 1
          %s254 = smul.addr %s253, 2
          %s255 = scalar_lea.vmem %s1, %s254
        $region77: #{_lambda_.32} parent=72 // pred_fallthru
          _
      $region73: #{_lambda_.32} parent=5 // pred_fallthru
        _
    $region6: #{_lambda_.32} parent=1 // loop_footer
      %s11 = sadd.s32 1, %s7
    $region7: #{_lambda_.32} parent=1 // loop_footer_branch
      %6 = sbr.rel target = $region3
    $region8: #{_lambda_.32} parent=1 // loop_exit
      _

// kernel: _lambda_.49
$region0: #{_lambda_.49}
  #allocation0 [shape = 'u32[]', space=smem, size = 0x4, offset = 0x4, fixed_abs, tag = 'smem constant byte address 0x4 - core index']
  #allocation1 [shape = 'u32[144,128]{1,0:T(1,128)}', space=vmem, size = 0x12000, scoped, tag = 'internal scratch']
  %s0 = inlined_call_operand.vmem [shape: bf16[3,2,2,256], index: 0, kind: input, shape index: {}]
  %s1 = inlined_call_operand.vmem [shape: bf16[3,256,256], index: 1, kind: input, shape index: {}]
  %s2 = inlined_call_operand.vmem [shape: f32[3,1,256], index: 2, kind: input, shape index: {}]
  %s3 = inlined_call_operand.vmem [shape: f32[3,1,256], index: 3, kind: input, shape index: {}]
  %s4 = inlined_call_operand.vmem [shape: f32[3,1,256], index: 4, kind: input, shape index: {}]
  %s5 = inlined_call_operand.vmem [shape: f32[3,1,256], index: 5, kind: input, shape index: {}]
  %s6 = inlined_call_operand.vmem [shape: f32[3,1,1], index: 6, kind: input, shape index: {}]
  %s7 = inlined_call_operand.vmem [shape: f32[2,1], index: 7, kind: output, shape index: {}]
  %s8 = sld [smem:[#allocation0]]
  $region38: #{_lambda_.49} parent=0
    _
  %s10 = ssub.s32 1, %s8
  %s11 = scalar_select 0, %s10, %s8
  // Predicated region
  $region2: #{_lambda_.49} parent=0 // pred_check
    _
  $region3: #{_lambda_.49} parent=0 // pred_check_branch
    %13 = sbr.rel (0) target = $region5
  $region4: #{_lambda_.49} parent=0 // pred_region
    _
  $region5: #{_lambda_.49} parent=0 // pred_fallthru
    _
  // Predicated region
  $region6: #{_lambda_.49} parent=0 // pred_check
    _
  $region7: #{_lambda_.49} parent=0 // pred_check_branch
    %15 = sbr.rel (0) target = $region9
  $region8: #{_lambda_.49} parent=0 // pred_region
    _
  $region9: #{_lambda_.49} parent=0 // pred_fallthru
    _
  // Predicated region
  $region10: #{_lambda_.49} parent=0 // pred_check
    _
  $region11: #{_lambda_.49} parent=0 // pred_check_branch
    %17 = sbr.rel (0) target = $region13
  $region12: #{_lambda_.49} parent=0 // pred_region
    _
  $region13: #{_lambda_.49} parent=0 // pred_fallthru
    _
  // Predicated region
  $region14: #{_lambda_.49} parent=0 // pred_check
    _
  $region15: #{_lambda_.49} parent=0 // pred_check_branch
    %19 = sbr.rel (0) target = $region17
  $region16: #{_lambda_.49} parent=0 // pred_region
    _
  $region17: #{_lambda_.49} parent=0 // pred_fallthru
    _
  // Predicated region
  $region18: #{_lambda_.49} parent=0 // pred_check
    _
  $region19: #{_lambda_.49} parent=0 // pred_check_branch
    %21 = sbr.rel (0) target = $region21
  $region20: #{_lambda_.49} parent=0 // pred_region
    _
  $region21: #{_lambda_.49} parent=0 // pred_fallthru
    _
  // Predicated region
  $region22: #{_lambda_.49} parent=0 // pred_check
    _
  $region23: #{_lambda_.49} parent=0 // pred_check_branch
    %23 = sbr.rel (0) target = $region25
  $region24: #{_lambda_.49} parent=0 // pred_region
    _
  $region25: #{_lambda_.49} parent=0 // pred_fallthru
    _
  // Predicated region
  $region26: #{_lambda_.49} parent=0 // pred_check
    _
  $region27: #{_lambda_.49} parent=0 // pred_check_branch
    %25 = sbr.rel (0) target = $region29
  $region28: #{_lambda_.49} parent=0 // pred_region
    _
  $region29: #{_lambda_.49} parent=0 // pred_fallthru
    _
  %v27 = vld [vmem:[%s0] sm:$0x3]
  %v28 = vld [vmem:[%s0 + $0x2] sm:$0x3]
  %v32 = vunpack.c.l.s4 1966171168
  %v33 = vunpack.c.0.s8 %v32
  %v34 = vlaneseq
  %v35 = vshrl.u32 %v34, 7
  %v36 = vsub.s32 %v33, %v35
  %v37 = vrot.slane %v27, %v36
  %v38 = vcombine.high %v37, %v37
  %v40 = vunpack.c.l.s4 1966171168
  %v41 = vunpack.c.0.s8 %v40
  %v42 = vlaneseq
  %v43 = vshrl.u32 %v42, 7
  %v44 = vsub.s32 %v41, %v43
  %v45 = vrot.slane %v37, %v44
  %v47 = vunpack.c.l.s4 1966171168
  %v48 = vunpack.c.0.s8 %v47
  %v49 = vlaneseq
  %v50 = vshrl.u32 %v49, 7
  %v51 = vsub.s32 %v48, %v50
  %v52 = vrot.slane %v38, %v51
  %v54 = vunpack.c.l.s4 1966171168
  %v55 = vunpack.c.0.s8 %v54
  %v56 = vlaneseq
  %v57 = vshrl.u32 %v56, 7
  %v58 = vsub.s32 %v55, %v57
  %v59 = vrot.slane %v28, %v58
  %v60 = vcombine.high %v59, %v59
  %v62 = vunpack.c.l.s4 1966171168
  %v63 = vunpack.c.0.s8 %v62
  %v64 = vlaneseq
  %v65 = vshrl.u32 %v64, 7
  %v66 = vsub.s32 %v63, %v65
  %v67 = vrot.slane %v59, %v66
  %v69 = vunpack.c.l.s4 1966171168
  %v70 = vunpack.c.0.s8 %v69
  %v71 = vlaneseq
  %v72 = vshrl.u32 %v71, 7
  %v73 = vsub.s32 %v70, %v72
  %v74 = vrot.slane %v60, %v73
  %vm75 = vcmask 1040384
  %v78 = vsel %vm75, %v45, 4286644096
  %v80 = vunpack.i.l.bf16 %v78
  %v81 = vunpack.i.h.bf16 %v78
  %v82 = vmax.f32 %v80, %v81
  %v83 = vrot.slane %v82, 4
  %v84 = vmax.f32 %v82, %v83
  %v85 = vrot.slane %v84, 2
  %v86 = vmax.f32 %v84, %v85
  %v87 = vrot.slane %v86, 1
  %v88 = vmax.f32 %v86, %v87
  %v89 = vpack.i.bf16 %v88, %v88
  %v91 = vsel %vm75, %v52, 4286644096
  %v93 = vunpack.i.l.bf16 %v91
  %v94 = vunpack.i.h.bf16 %v91
  %v95 = vmax.f32 %v93, %v94
  %v96 = vrot.slane %v95, 4
  %v97 = vmax.f32 %v95, %v96
  %v98 = vrot.slane %v97, 2
  %v99 = vmax.f32 %v97, %v98
  %v100 = vrot.slane %v99, 1
  %v101 = vmax.f32 %v99, %v100
  %v102 = vpack.i.bf16 %v101, %v101
  %v104 = vsel %vm75, %v67, 4286644096
  %v106 = vunpack.i.l.bf16 %v104
  %v107 = vunpack.i.h.bf16 %v104
  %v108 = vmax.f32 %v106, %v107
  %v109 = vrot.slane %v108, 4
  %v110 = vmax.f32 %v108, %v109
  %v111 = vrot.slane %v110, 2
  %v112 = vmax.f32 %v110, %v111
  %v113 = vrot.slane %v112, 1
  %v114 = vmax.f32 %v112, %v113
  %v115 = vpack.i.bf16 %v114, %v114
  %v117 = vsel %vm75, %v74, 4286644096
  %v119 = vunpack.i.l.bf16 %v117
  %v120 = vunpack.i.h.bf16 %v117
  %v121 = vmax.f32 %v119, %v120
  %v122 = vrot.slane %v121, 4
  %v123 = vmax.f32 %v121, %v122
  %v124 = vrot.slane %v123, 2
  %v125 = vmax.f32 %v123, %v124
  %v126 = vrot.slane %v125, 1
  %v127 = vmax.f32 %v125, %v126
  %v128 = vpack.i.bf16 %v127, %v127
  %v129 = vld [vmem:[%s1] sm:$0xff]
  %v130 = vld [vmem:[%s1 + $0x8] sm:$0xff]
  %v131 = vld [vmem:[%s1 + $0x10] sm:$0xff]
  %v132 = vld [vmem:[%s1 + $0x18] sm:$0xff]
  %v133 = vld [vmem:[%s1 + $0x20] sm:$0xff]
  %v134 = vld [vmem:[%s1 + $0x28] sm:$0xff]
  %v135 = vld [vmem:[%s1 + $0x30] sm:$0xff]
  %v136 = vld [vmem:[%s1 + $0x38] sm:$0xff]
  %v137 = vld [vmem:[%s1 + $0x40] sm:$0xff]
  %v138 = vld [vmem:[%s1 + $0x48] sm:$0xff]
  %v139 = vld [vmem:[%s1 + $0x50] sm:$0xff]
  %v140 = vld [vmem:[%s1 + $0x58] sm:$0xff]
  %v141 = vld [vmem:[%s1 + $0x60] sm:$0xff]
  %v142 = vld [vmem:[%s1 + $0x68] sm:$0xff]
  %v143 = vld [vmem:[%s1 + $0x70] sm:$0xff]
  %v144 = vld [vmem:[%s1 + $0x78] sm:$0xff]
  %v145 = vld [vmem:[%s1 + $0x80] sm:$0xff]
  %v146 = vld [vmem:[%s1 + $0x88] sm:$0xff]
  %v147 = vld [vmem:[%s1 + $0x90] sm:$0xff]
  %v148 = vld [vmem:[%s1 + $0x98] sm:$0xff]
  %v149 = vld [vmem:[%s1 + $0xa0] sm:$0xff]
  %v150 = vld [vmem:[%s1 + $0xa8] sm:$0xff]
  %v151 = vld [vmem:[%s1 + $0xb0] sm:$0xff]
  %v152 = vld [vmem:[%s1 + $0xb8] sm:$0xff]
  %v153 = vld [vmem:[%s1 + $0xc0] sm:$0xff]
  %v154 = vld [vmem:[%s1 + $0xc8] sm:$0xff]
  %v155 = vld [vmem:[%s1 + $0xd0] sm:$0xff]
  %v156 = vld [vmem:[%s1 + $0xd8] sm:$0xff]
  %v157 = vld [vmem:[%s1 + $0xe0] sm:$0xff]
  %v158 = vld [vmem:[%s1 + $0xe8] sm:$0xff]
  %v159 = vld [vmem:[%s1 + $0xf0] sm:$0xff]
  %v160 = vld [vmem:[%s1 + $0xf8] sm:$0xff]
  %v161 = vld [vmem:[%s2] sm:$0x3]
  %v163 = vlaneseq
  %v164 = vshrl.u32 %v163, 7
  %v165 = vsub.s32 0, %v164
  %v166 = vrot.slane %v161, %v165
  %v167 = vlaneseq
  %v168 = vshrl.u32 %v167, 7
  %v169 = vsub.s32 1, %v168
  %v170 = vrot.slane %v161, %v169
  %v177 = vunpack.c.l.b16 %v89
  %v178 = vunpack.c.l.b16 %v102
  %v179 = vunpack.c.l.b16 %v115
  %v180 = vunpack.c.l.b16 %v128
  %vm181 = vcmask 1041409
  %v182 = vsel %vm181, %v179, %v177
  %v183 = vsel %vm181, %v180, %v178
  %v184 = vpack.c.b16 %v182, %v182
  %v185 = vpack.c.b16 %v183, %v183
  %v220 = vunpack.c.l.b16 %v129
  %v221 = vunpack.c.h.b16 %v129
  %v222 = vunpack.c.l.b16 %v130
  %v223 = vunpack.c.h.b16 %v130
  %v224 = vunpack.c.l.b16 %v131
  %v225 = vunpack.c.h.b16 %v131
  %v226 = vunpack.c.l.b16 %v132
  %v227 = vunpack.c.h.b16 %v132
  %v228 = vunpack.c.l.b16 %v133
  %v229 = vunpack.c.h.b16 %v133
  %v230 = vunpack.c.l.b16 %v134
  %v231 = vunpack.c.h.b16 %v134
  %v232 = vunpack.c.l.b16 %v135
  %v233 = vunpack.c.h.b16 %v135
  %v234 = vunpack.c.l.b16 %v136
  %v235 = vunpack.c.h.b16 %v136
  %v236 = vunpack.c.l.b16 %v137
  %v237 = vunpack.c.h.b16 %v137
  %v238 = vunpack.c.l.b16 %v138
  %v239 = vunpack.c.h.b16 %v138
  %v240 = vunpack.c.l.b16 %v139
  %v241 = vunpack.c.h.b16 %v139
  %v242 = vunpack.c.l.b16 %v140
  %v243 = vunpack.c.h.b16 %v140
  %v244 = vunpack.c.l.b16 %v141
  %v245 = vunpack.c.h.b16 %v141
  %v246 = vunpack.c.l.b16 %v142
  %v247 = vunpack.c.h.b16 %v142
  %v248 = vunpack.c.l.b16 %v143
  %v249 = vunpack.c.h.b16 %v143
  %v250 = vunpack.c.l.b16 %v144
  %v251 = vunpack.c.h.b16 %v144
  %v252 = vunpack.c.l.b16 %v145
  %v253 = vunpack.c.h.b16 %v145
  %v254 = vunpack.c.l.b16 %v146
  %v255 = vunpack.c.h.b16 %v146
  %v256 = vunpack.c.l.b16 %v147
  %v257 = vunpack.c.h.b16 %v147
  %v258 = vunpack.c.l.b16 %v148
  %v259 = vunpack.c.h.b16 %v148
  %v260 = vunpack.c.l.b16 %v149
  %v261 = vunpack.c.h.b16 %v149
  %v262 = vunpack.c.l.b16 %v150
  %v263 = vunpack.c.h.b16 %v150
  %v264 = vunpack.c.l.b16 %v151
  %v265 = vunpack.c.h.b16 %v151
  %v266 = vunpack.c.l.b16 %v152
  %v267 = vunpack.c.h.b16 %v152
  %v268 = vunpack.c.l.b16 %v153
  %v269 = vunpack.c.h.b16 %v153
  %v270 = vunpack.c.l.b16 %v154
  %v271 = vunpack.c.h.b16 %v154
  %v272 = vunpack.c.l.b16 %v155
  %v273 = vunpack.c.h.b16 %v155
  %v274 = vunpack.c.l.b16 %v156
  %v275 = vunpack.c.h.b16 %v156
  %v276 = vunpack.c.l.b16 %v157
  %v277 = vunpack.c.h.b16 %v157
  %v278 = vunpack.c.l.b16 %v158
  %v279 = vunpack.c.h.b16 %v158
  %v280 = vunpack.c.l.b16 %v159
  %v281 = vunpack.c.h.b16 %v159
  %v282 = vunpack.c.l.b16 %v160
  %v283 = vunpack.c.h.b16 %v160
  %v284 = vpack.c.b16 %v222, %v220
  %v285 = vpack.c.b16 %v223, %v221
  %v286 = vpack.c.b16 %v226, %v224
  %v287 = vpack.c.b16 %v227, %v225
  %v288 = vpack.c.b16 %v230, %v228
  %v289 = vpack.c.b16 %v231, %v229
  %v290 = vpack.c.b16 %v234, %v232
  %v291 = vpack.c.b16 %v235, %v233
  %v292 = vpack.c.b16 %v238, %v236
  %v293 = vpack.c.b16 %v239, %v237
  %v294 = vpack.c.b16 %v242, %v240
  %v295 = vpack.c.b16 %v243, %v241
  %v296 = vpack.c.b16 %v246, %v244
  %v297 = vpack.c.b16 %v247, %v245
  %v298 = vpack.c.b16 %v250, %v248
  %v299 = vpack.c.b16 %v251, %v249
  %v300 = vpack.c.b16 %v254, %v252
  %v301 = vpack.c.b16 %v255, %v253
  %v302 = vpack.c.b16 %v258, %v256
  %v303 = vpack.c.b16 %v259, %v257
  %v304 = vpack.c.b16 %v262, %v260
  %v305 = vpack.c.b16 %v263, %v261
  %v306 = vpack.c.b16 %v266, %v264
  %v307 = vpack.c.b16 %v267, %v265
  %v308 = vpack.c.b16 %v270, %v268
  %v309 = vpack.c.b16 %v271, %v269
  %v310 = vpack.c.b16 %v274, %v272
  %v311 = vpack.c.b16 %v275, %v273
  %v312 = vpack.c.b16 %v278, %v276
  %v313 = vpack.c.b16 %v279, %v277
  %v314 = vpack.c.b16 %v282, %v280
  %v315 = vpack.c.b16 %v283, %v281
  %348 = vmatprep.subr.bf16.mxu0 %v285
  %349 = vmatpush1.bf16.msra.mxu0 %v284
  %350 = vmatprep.subr.bf16.mxu0 %v287
  %351 = vmatpush1.bf16.msra.mxu0 %v286
  %352 = vmatprep.subr.bf16.mxu0 %v289
  %353 = vmatpush1.bf16.msra.mxu0 %v288
  %354 = vmatprep.subr.bf16.mxu0 %v291
  %355 = vmatpush1.bf16.msra.mxu0 %v290
  %356 = vmatprep.subr.bf16.mxu0 %v293
  %357 = vmatpush1.bf16.msra.mxu0 %v292
  %358 = vmatprep.subr.bf16.mxu0 %v295
  %359 = vmatpush1.bf16.msra.mxu0 %v294
  %360 = vmatprep.subr.bf16.mxu0 %v297
  %361 = vmatpush1.bf16.msra.mxu0 %v296
  %362 = vmatprep.subr.bf16.mxu0 %v299
  %363 = vmatpush1.bf16.msra.mxu0 %v298
  %364 = vmatprep.subr.bf16.mxu0 %v301
  %365 = vmatpush1.bf16.msra.mxu0 %v300
  %366 = vmatprep.subr.bf16.mxu0 %v303
  %367 = vmatpush1.bf16.msra.mxu0 %v302
  %368 = vmatprep.subr.bf16.mxu0 %v305
  %369 = vmatpush1.bf16.msra.mxu0 %v304
  %370 = vmatprep.subr.bf16.mxu0 %v307
  %371 = vmatpush1.bf16.msra.mxu0 %v306
  %372 = vmatprep.subr.bf16.mxu0 %v309
  %373 = vmatpush1.bf16.msra.mxu0 %v308
  %374 = vmatprep.subr.bf16.mxu0 %v311
  %375 = vmatpush1.bf16.msra.mxu0 %v310
  %376 = vmatprep.subr.bf16.mxu0 %v313
  %377 = vmatpush1.bf16.msra.mxu0 %v312
  %378 = vmatprep.subr.bf16.mxu0 %v315
  %379 = vmatpush1.bf16.msra.mxu0 %v314
  %380 = vmatprep.mubr.bf16.mxu0 %v185
  %381 = vmatmul.mubr.bf16.gmra.mrb[0].mxu0 %v184
  %v382 = vpop.f32.mrb[0].mxu0
  %v383 = vadd.f32 %v166, %v382
  %v384 = vpop.f32.mrb[0].mxu0
  %v385 = vadd.f32 %v170, %v384
  %v386 = vpop.f32.mrb[0].mxu0
  %v387 = vpop.f32.mrb[0].mxu0
  %388 = vdwg.mxu0
  %v389 = vld [vmem:[%s3] sm:$0x3]
  %v391 = vlaneseq
  %v392 = vshrl.u32 %v391, 7
  %v393 = vsub.s32 0, %v392
  %v394 = vrot.slane %v389, %v393
  %v395 = vlaneseq
  %v396 = vshrl.u32 %v395, 7
  %v397 = vsub.s32 1, %v396
  %v398 = vrot.slane %v389, %v397
  %v401 = vmul.f32 %v383, %v394
  %v402 = vmul.f32 %v385, %v398
  %v403 = vld [vmem:[%s4] sm:$0x3]
  %v405 = vlaneseq
  %v406 = vshrl.u32 %v405, 7
  %v407 = vsub.s32 0, %v406
  %v408 = vrot.slane %v403, %v407
  %v409 = vlaneseq
  %v410 = vshrl.u32 %v409, 7
  %v411 = vsub.s32 1, %v410
  %v412 = vrot.slane %v403, %v411
  %v415 = vadd.f32 %v401, %v408
  %v416 = vadd.f32 %v402, %v412
  %v417 = vld [vmem:[%s5] sm:$0x3]
  %v419 = vlaneseq
  %v420 = vshrl.u32 %v419, 7
  %v421 = vsub.s32 0, %v420
  %v422 = vrot.slane %v417, %v421
  %v423 = vlaneseq
  %v424 = vshrl.u32 %v423, 7
  %v425 = vsub.s32 1, %v424
  %v426 = vrot.slane %v417, %v425
  %v429 = vmul.f32 %v415, %v422
  %v430 = vmul.f32 %v416, %v426
  %vm431 = vcmask 1041408
  %v432 = vsel %vm431, %v429, 0.0
  %v433 = vsel %vm431, %v430, 0.0
  %v434 = vadd.f32 %v432, %v433
  %435 = vadd.xlane.f32.xlu0 %v434
  %v436 = vpop.xlane.xlu0 %435
  %v437 = vld [vmem:[%s6] sm:$0x1]
  %v439 = vlaneseq
  %v440 = vshrl.u32 %v439, 7
  %v441 = vsub.s32 0, %v440
  %v442 = vrot.slane %v437, %v441
  %v444 = vadd.f32 %v436, %v442
  %v445 = vmul.f32 %v444, 0.5
  %v446 = vtanh.pop %v445
  %v447 = vadd.f32 %v446, 1.0
  %v448 = vmul.f32 %v447, 0.5
  %v449 = vadd.f32 %v448, 0.0
  %s450 = scalar_lea.vmem %s0, 4
  %v451 = vld [vmem:[%s450] sm:$0x3]
  %v452 = vld [vmem:[%s450 + $0x2] sm:$0x3]
  %v456 = vunpack.c.l.s4 1966171168
  %v457 = vunpack.c.0.s8 %v456
  %v458 = vlaneseq
  %v459 = vshrl.u32 %v458, 7
  %v460 = vsub.s32 %v457, %v459
  %v461 = vrot.slane %v451, %v460
  %v462 = vcombine.high %v461, %v461
  %v464 = vunpack.c.l.s4 1966171168
  %v465 = vunpack.c.0.s8 %v464
  %v466 = vlaneseq
  %v467 = vshrl.u32 %v466, 7
  %v468 = vsub.s32 %v465, %v467
  %v469 = vrot.slane %v461, %v468
  %v471 = vunpack.c.l.s4 1966171168
  %v472 = vunpack.c.0.s8 %v471
  %v473 = vlaneseq
  %v474 = vshrl.u32 %v473, 7
  %v475 = vsub.s32 %v472, %v474
  %v476 = vrot.slane %v462, %v475
  %v478 = vunpack.c.l.s4 1966171168
  %v479 = vunpack.c.0.s8 %v478
  %v480 = vlaneseq
  %v481 = vshrl.u32 %v480, 7
  %v482 = vsub.s32 %v479, %v481
  %v483 = vrot.slane %v452, %v482
  %v484 = vcombine.high %v483, %v483
  %v486 = vunpack.c.l.s4 1966171168
  %v487 = vunpack.c.0.s8 %v486
  %v488 = vlaneseq
  %v489 = vshrl.u32 %v488, 7
  %v490 = vsub.s32 %v487, %v489
  %v491 = vrot.slane %v483, %v490
  %v493 = vunpack.c.l.s4 1966171168
  %v494 = vunpack.c.0.s8 %v493
  %v495 = vlaneseq
  %v496 = vshrl.u32 %v495, 7
  %v497 = vsub.s32 %v494, %v496
  %v498 = vrot.slane %v484, %v497
  %v500 = vsel %vm75, %v469, 4286644096
  %v502 = vunpack.i.l.bf16 %v500
  %v503 = vunpack.i.h.bf16 %v500
  %v504 = vmax.f32 %v502, %v503
  %v505 = vrot.slane %v504, 4
  %v506 = vmax.f32 %v504, %v505
  %v507 = vrot.slane %v506, 2
  %v508 = vmax.f32 %v506, %v507
  %v509 = vrot.slane %v508, 1
  %v510 = vmax.f32 %v508, %v509
  %v511 = vpack.i.bf16 %v510, %v510
  %v513 = vsel %vm75, %v476, 4286644096
  %v515 = vunpack.i.l.bf16 %v513
  %v516 = vunpack.i.h.bf16 %v513
  %v517 = vmax.f32 %v515, %v516
  %v518 = vrot.slane %v517, 4
  %v519 = vmax.f32 %v517, %v518
  %v520 = vrot.slane %v519, 2
  %v521 = vmax.f32 %v519, %v520
  %v522 = vrot.slane %v521, 1
  %v523 = vmax.f32 %v521, %v522
  %v524 = vpack.i.bf16 %v523, %v523
  %v526 = vsel %vm75, %v491, 4286644096
  %v528 = vunpack.i.l.bf16 %v526
  %v529 = vunpack.i.h.bf16 %v526
  %v530 = vmax.f32 %v528, %v529
  %v531 = vrot.slane %v530, 4
  %v532 = vmax.f32 %v530, %v531
  %v533 = vrot.slane %v532, 2
  %v534 = vmax.f32 %v532, %v533
  %v535 = vrot.slane %v534, 1
  %v536 = vmax.f32 %v534, %v535
  %v537 = vpack.i.bf16 %v536, %v536
  %v539 = vsel %vm75, %v498, 4286644096
  %v541 = vunpack.i.l.bf16 %v539
  %v542 = vunpack.i.h.bf16 %v539
  %v543 = vmax.f32 %v541, %v542
  %v544 = vrot.slane %v543, 4
  %v545 = vmax.f32 %v543, %v544
  %v546 = vrot.slane %v545, 2
  %v547 = vmax.f32 %v545, %v546
  %v548 = vrot.slane %v547, 1
  %v549 = vmax.f32 %v547, %v548
  %v550 = vpack.i.bf16 %v549, %v549
  %s551 = scalar_lea.vmem %s1, 256
  %v552 = vld [vmem:[%s551] sm:$0xff]
  %v553 = vld [vmem:[%s551 + $0x8] sm:$0xff]
  %v554 = vld [vmem:[%s551 + $0x10] sm:$0xff]
  %v555 = vld [vmem:[%s551 + $0x18] sm:$0xff]
  %v556 = vld [vmem:[%s551 + $0x20] sm:$0xff]
  %v557 = vld [vmem:[%s551 + $0x28] sm:$0xff]
  %v558 = vld [vmem:[%s551 + $0x30] sm:$0xff]
  %v559 = vld [vmem:[%s551 + $0x38] sm:$0xff]
  %v560 = vld [vmem:[%s551 + $0x40] sm:$0xff]
  %v561 = vld [vmem:[%s551 + $0x48] sm:$0xff]
  %v562 = vld [vmem:[%s551 + $0x50] sm:$0xff]
  %v563 = vld [vmem:[%s551 + $0x58] sm:$0xff]
  %v564 = vld [vmem:[%s551 + $0x60] sm:$0xff]
  %v565 = vld [vmem:[%s551 + $0x68] sm:$0xff]
  %v566 = vld [vmem:[%s551 + $0x70] sm:$0xff]
  %v567 = vld [vmem:[%s551 + $0x78] sm:$0xff]
  %v568 = vld [vmem:[%s551 + $0x80] sm:$0xff]
  %v569 = vld [vmem:[%s551 + $0x88] sm:$0xff]
  %v570 = vld [vmem:[%s551 + $0x90] sm:$0xff]
  %v571 = vld [vmem:[%s551 + $0x98] sm:$0xff]
  %v572 = vld [vmem:[%s551 + $0xa0] sm:$0xff]
  %v573 = vld [vmem:[%s551 + $0xa8] sm:$0xff]
  %v574 = vld [vmem:[%s551 + $0xb0] sm:$0xff]
  %v575 = vld [vmem:[%s551 + $0xb8] sm:$0xff]
  %v576 = vld [vmem:[%s551 + $0xc0] sm:$0xff]
  %v577 = vld [vmem:[%s551 + $0xc8] sm:$0xff]
  %v578 = vld [vmem:[%s551 + $0xd0] sm:$0xff]
  %v579 = vld [vmem:[%s551 + $0xd8] sm:$0xff]
  %v580 = vld [vmem:[%s551 + $0xe0] sm:$0xff]
  %v581 = vld [vmem:[%s551 + $0xe8] sm:$0xff]
  %v582 = vld [vmem:[%s551 + $0xf0] sm:$0xff]
  %v583 = vld [vmem:[%s551 + $0xf8] sm:$0xff]
  %s584 = scalar_lea.vmem %s2, 2
  %v585 = vld [vmem:[%s584] sm:$0x3]
  %v587 = vlaneseq
  %v588 = vshrl.u32 %v587, 7
  %v589 = vsub.s32 0, %v588
  %v590 = vrot.slane %v585, %v589
  %v591 = vlaneseq
  %v592 = vshrl.u32 %v591, 7
  %v593 = vsub.s32 1, %v592
  %v594 = vrot.slane %v585, %v593
  %v601 = vunpack.c.l.b16 %v511
  %v602 = vunpack.c.l.b16 %v524
  %v603 = vunpack.c.l.b16 %v537
  %v604 = vunpack.c.l.b16 %v550
  %v605 = vsel %vm181, %v603, %v601
  %v606 = vsel %vm181, %v604, %v602
  %v607 = vpack.c.b16 %v605, %v605
  %v608 = vpack.c.b16 %v606, %v606
  %v643 = vunpack.c.l.b16 %v552
  %v644 = vunpack.c.h.b16 %v552
  %v645 = vunpack.c.l.b16 %v553
  %v646 = vunpack.c.h.b16 %v553
  %v647 = vunpack.c.l.b16 %v554
  %v648 = vunpack.c.h.b16 %v554
  %v649 = vunpack.c.l.b16 %v555
  %v650 = vunpack.c.h.b16 %v555
  %v651 = vunpack.c.l.b16 %v556
  %v652 = vunpack.c.h.b16 %v556
  %v653 = vunpack.c.l.b16 %v557
  %v654 = vunpack.c.h.b16 %v557
  %v655 = vunpack.c.l.b16 %v558
  %v656 = vunpack.c.h.b16 %v558
  %v657 = vunpack.c.l.b16 %v559
  %v658 = vunpack.c.h.b16 %v559
  %v659 = vunpack.c.l.b16 %v560
  %v660 = vunpack.c.h.b16 %v560
  %v661 = vunpack.c.l.b16 %v561
  %v662 = vunpack.c.h.b16 %v561
  %v663 = vunpack.c.l.b16 %v562
  %v664 = vunpack.c.h.b16 %v562
  %v665 = vunpack.c.l.b16 %v563
  %v666 = vunpack.c.h.b16 %v563
  %v667 = vunpack.c.l.b16 %v564
  %v668 = vunpack.c.h.b16 %v564
  %v669 = vunpack.c.l.b16 %v565
  %v670 = vunpack.c.h.b16 %v565
  %v671 = vunpack.c.l.b16 %v566
  %v672 = vunpack.c.h.b16 %v566
  %v673 = vunpack.c.l.b16 %v567
  %v674 = vunpack.c.h.b16 %v567
  %v675 = vunpack.c.l.b16 %v568
  %v676 = vunpack.c.h.b16 %v568
  %v677 = vunpack.c.l.b16 %v569
  %v678 = vunpack.c.h.b16 %v569
  %v679 = vunpack.c.l.b16 %v570
  %v680 = vunpack.c.h.b16 %v570
  %v681 = vunpack.c.l.b16 %v571
  %v682 = vunpack.c.h.b16 %v571
  %v683 = vunpack.c.l.b16 %v572
  %v684 = vunpack.c.h.b16 %v572
  %v685 = vunpack.c.l.b16 %v573
  %v686 = vunpack.c.h.b16 %v573
  %v687 = vunpack.c.l.b16 %v574
  %v688 = vunpack.c.h.b16 %v574
  %v689 = vunpack.c.l.b16 %v575
  %v690 = vunpack.c.h.b16 %v575
  %v691 = vunpack.c.l.b16 %v576
  %v692 = vunpack.c.h.b16 %v576
  %v693 = vunpack.c.l.b16 %v577
  %v694 = vunpack.c.h.b16 %v577
  %v695 = vunpack.c.l.b16 %v578
  %v696 = vunpack.c.h.b16 %v578
  %v697 = vunpack.c.l.b16 %v579
  %v698 = vunpack.c.h.b16 %v579
  %v699 = vunpack.c.l.b16 %v580
  %v700 = vunpack.c.h.b16 %v580
  %v701 = vunpack.c.l.b16 %v581
  %v702 = vunpack.c.h.b16 %v581
  %v703 = vunpack.c.l.b16 %v582
  %v704 = vunpack.c.h.b16 %v582
  %v705 = vunpack.c.l.b16 %v583
  %v706 = vunpack.c.h.b16 %v583
  %v707 = vpack.c.b16 %v645, %v643
  %v708 = vpack.c.b16 %v646, %v644
  %v709 = vpack.c.b16 %v649, %v647
  %v710 = vpack.c.b16 %v650, %v648
  %v711 = vpack.c.b16 %v653, %v651
  %v712 = vpack.c.b16 %v654, %v652
  %v713 = vpack.c.b16 %v657, %v655
  %v714 = vpack.c.b16 %v658, %v656
  %v715 = vpack.c.b16 %v661, %v659
  %v716 = vpack.c.b16 %v662, %v660
  %v717 = vpack.c.b16 %v665, %v663
  %v718 = vpack.c.b16 %v666, %v664
  %v719 = vpack.c.b16 %v669, %v667
  %v720 = vpack.c.b16 %v670, %v668
  %v721 = vpack.c.b16 %v673, %v671
  %v722 = vpack.c.b16 %v674, %v672
  %v723 = vpack.c.b16 %v677, %v675
  %v724 = vpack.c.b16 %v678, %v676
  %v725 = vpack.c.b16 %v681, %v679
  %v726 = vpack.c.b16 %v682, %v680
  %v727 = vpack.c.b16 %v685, %v683
  %v728 = vpack.c.b16 %v686, %v684
  %v729 = vpack.c.b16 %v689, %v687
  %v730 = vpack.c.b16 %v690, %v688
  %v731 = vpack.c.b16 %v693, %v691
  %v732 = vpack.c.b16 %v694, %v692
  %v733 = vpack.c.b16 %v697, %v695
  %v734 = vpack.c.b16 %v698, %v696
  %v735 = vpack.c.b16 %v701, %v699
  %v736 = vpack.c.b16 %v702, %v700
  %v737 = vpack.c.b16 %v705, %v703
  %v738 = vpack.c.b16 %v706, %v704
  %771 = vmatprep.subr.bf16.mxu0 %v708
  %772 = vmatpush1.bf16.msra.mxu0 %v707
  %773 = vmatprep.subr.bf16.mxu0 %v710
  %774 = vmatpush1.bf16.msra.mxu0 %v709
  %775 = vmatprep.subr.bf16.mxu0 %v712
  %776 = vmatpush1.bf16.msra.mxu0 %v711
  %777 = vmatprep.subr.bf16.mxu0 %v714
  %778 = vmatpush1.bf16.msra.mxu0 %v713
  %779 = vmatprep.subr.bf16.mxu0 %v716
  %780 = vmatpush1.bf16.msra.mxu0 %v715
  %781 = vmatprep.subr.bf16.mxu0 %v718
  %782 = vmatpush1.bf16.msra.mxu0 %v717
  %783 = vmatprep.subr.bf16.mxu0 %v720
  %784 = vmatpush1.bf16.msra.mxu0 %v719
  %785 = vmatprep.subr.bf16.mxu0 %v722
  %786 = vmatpush1.bf16.msra.mxu0 %v721
  %787 = vmatprep.subr.bf16.mxu0 %v724
  %788 = vmatpush1.bf16.msra.mxu0 %v723
  %789 = vmatprep.subr.bf16.mxu0 %v726
  %790 = vmatpush1.bf16.msra.mxu0 %v725
  %791 = vmatprep.subr.bf16.mxu0 %v728
  %792 = vmatpush1.bf16.msra.mxu0 %v727
  %793 = vmatprep.subr.bf16.mxu0 %v730
  %794 = vmatpush1.bf16.msra.mxu0 %v729
  %795 = vmatprep.subr.bf16.mxu0 %v732
  %796 = vmatpush1.bf16.msra.mxu0 %v731
  %797 = vmatprep.subr.bf16.mxu0 %v734
  %798 = vmatpush1.bf16.msra.mxu0 %v733
  %799 = vmatprep.subr.bf16.mxu0 %v736
  %800 = vmatpush1.bf16.msra.mxu0 %v735
  %801 = vmatprep.subr.bf16.mxu0 %v738
  %802 = vmatpush1.bf16.msra.mxu0 %v737
  %803 = vmatprep.mubr.bf16.mxu0 %v608
  %804 = vmatmul.mubr.bf16.gmra.mrb[0].mxu0 %v607
  %v805 = vpop.f32.mrb[0].mxu0
  %v806 = vadd.f32 %v590, %v805
  %v807 = vpop.f32.mrb[0].mxu0
  %v808 = vadd.f32 %v594, %v807
  %v809 = vpop.f32.mrb[0].mxu0
  %v810 = vpop.f32.mrb[0].mxu0
  %811 = vdwg.mxu0
  %s812 = scalar_lea.vmem %s3, 2
  %v813 = vld [vmem:[%s812] sm:$0x3]
  %v815 = vlaneseq
  %v816 = vshrl.u32 %v815, 7
  %v817 = vsub.s32 0, %v816
  %v818 = vrot.slane %v813, %v817
  %v819 = vlaneseq
  %v820 = vshrl.u32 %v819, 7
  %v821 = vsub.s32 1, %v820
  %v822 = vrot.slane %v813, %v821
  %v825 = vmul.f32 %v806, %v818
  %v826 = vmul.f32 %v808, %v822
  %s827 = scalar_lea.vmem %s4, 2
  %v828 = vld [vmem:[%s827] sm:$0x3]
  %v830 = vlaneseq
  %v831 = vshrl.u32 %v830, 7
  %v832 = vsub.s32 0, %v831
  %v833 = vrot.slane %v828, %v832
  %v834 = vlaneseq
  %v835 = vshrl.u32 %v834, 7
  %v836 = vsub.s32 1, %v835
  %v837 = vrot.slane %v828, %v836
  %v840 = vadd.f32 %v825, %v833
  %v841 = vadd.f32 %v826, %v837
  %s842 = scalar_lea.vmem %s5, 2
  %v843 = vld [vmem:[%s842] sm:$0x3]
  %v845 = vlaneseq
  %v846 = vshrl.u32 %v845, 7
  %v847 = vsub.s32 0, %v846
  %v848 = vrot.slane %v843, %v847
  %v849 = vlaneseq
  %v850 = vshrl.u32 %v849, 7
  %v851 = vsub.s32 1, %v850
  %v852 = vrot.slane %v843, %v851
  %v855 = vmul.f32 %v840, %v848
  %v856 = vmul.f32 %v841, %v852
  %v857 = vsel %vm431, %v855, 0.0
  %v858 = vsel %vm431, %v856, 0.0
  %v859 = vadd.f32 %v857, %v858
  %860 = vadd.xlane.f32.xlu0 %v859
  %v861 = vpop.xlane.xlu0 %860
  %s862 = scalar_lea.vmem %s6, 1
  %v863 = vld [vmem:[%s862] sm:$0x1]
  %v865 = vlaneseq
  %v866 = vshrl.u32 %v865, 7
  %v867 = vsub.s32 0, %v866
  %v868 = vrot.slane %v863, %v867
  %v870 = vadd.f32 %v861, %v868
  %v871 = vmul.f32 %v870, 0.5
  %v872 = vtanh.pop %v871
  %v873 = vadd.f32 %v872, 1.0
  %v874 = vmul.f32 %v873, 0.5
  %v875 = vadd.f32 %v449, %v874
  %s876 = scalar_lea.vmem %s0, 8
  %v877 = vld [vmem:[%s876] sm:$0x3]
  %v878 = vld [vmem:[%s876 + $0x2] sm:$0x3]
  %v882 = vunpack.c.l.s4 1966171168
  %v883 = vunpack.c.0.s8 %v882
  %v884 = vlaneseq
  %v885 = vshrl.u32 %v884, 7
  %v886 = vsub.s32 %v883, %v885
  %v887 = vrot.slane %v877, %v886
  %v888 = vcombine.high %v887, %v887
  %v890 = vunpack.c.l.s4 1966171168
  %v891 = vunpack.c.0.s8 %v890
  %v892 = vlaneseq
  %v893 = vshrl.u32 %v892, 7
  %v894 = vsub.s32 %v891, %v893
  %v895 = vrot.slane %v887, %v894
  %v897 = vunpack.c.l.s4 1966171168
  %v898 = vunpack.c.0.s8 %v897
  %v899 = vlaneseq
  %v900 = vshrl.u32 %v899, 7
  %v901 = vsub.s32 %v898, %v900
  %v902 = vrot.slane %v888, %v901
  %v904 = vunpack.c.l.s4 1966171168
  %v905 = vunpack.c.0.s8 %v904
  %v906 = vlaneseq
  %v907 = vshrl.u32 %v906, 7
  %v908 = vsub.s32 %v905, %v907
  %v909 = vrot.slane %v878, %v908
  %v910 = vcombine.high %v909, %v909
  %v912 = vunpack.c.l.s4 1966171168
  %v913 = vunpack.c.0.s8 %v912
  %v914 = vlaneseq
  %v915 = vshrl.u32 %v914, 7
  %v916 = vsub.s32 %v913, %v915
  %v917 = vrot.slane %v909, %v916
  %v919 = vunpack.c.l.s4 1966171168
  %v920 = vunpack.c.0.s8 %v919
  %v921 = vlaneseq
  %v922 = vshrl.u32 %v921, 7
  %v923 = vsub.s32 %v920, %v922
  %v924 = vrot.slane %v910, %v923
  %v926 = vsel %vm75, %v895, 4286644096
  %v928 = vunpack.i.l.bf16 %v926
  %v929 = vunpack.i.h.bf16 %v926
  %v930 = vmax.f32 %v928, %v929
  %v931 = vrot.slane %v930, 4
  %v932 = vmax.f32 %v930, %v931
  %v933 = vrot.slane %v932, 2
  %v934 = vmax.f32 %v932, %v933
  %v935 = vrot.slane %v934, 1
  %v936 = vmax.f32 %v934, %v935
  %v937 = vpack.i.bf16 %v936, %v936
  %v939 = vsel %vm75, %v902, 4286644096
  %v941 = vunpack.i.l.bf16 %v939
  %v942 = vunpack.i.h.bf16 %v939
  %v943 = vmax.f32 %v941, %v942
  %v944 = vrot.slane %v943, 4
  %v945 = vmax.f32 %v943, %v944
  %v946 = vrot.slane %v945, 2
  %v947 = vmax.f32 %v945, %v946
  %v948 = vrot.slane %v947, 1
  %v949 = vmax.f32 %v947, %v948
  %v950 = vpack.i.bf16 %v949, %v949
  %v952 = vsel %vm75, %v917, 4286644096
  %v954 = vunpack.i.l.bf16 %v952
  %v955 = vunpack.i.h.bf16 %v952
  %v956 = vmax.f32 %v954, %v955
  %v957 = vrot.slane %v956, 4
  %v958 = vmax.f32 %v956, %v957
  %v959 = vrot.slane %v958, 2
  %v960 = vmax.f32 %v958, %v959
  %v961 = vrot.slane %v960, 1
  %v962 = vmax.f32 %v960, %v961
  %v963 = vpack.i.bf16 %v962, %v962
  %v965 = vsel %vm75, %v924, 4286644096
  %v967 = vunpack.i.l.bf16 %v965
  %v968 = vunpack.i.h.bf16 %v965
  %v969 = vmax.f32 %v967, %v968
  %v970 = vrot.slane %v969, 4
  %v971 = vmax.f32 %v969, %v970
  %v972 = vrot.slane %v971, 2
  %v973 = vmax.f32 %v971, %v972
  %v974 = vrot.slane %v973, 1
  %v975 = vmax.f32 %v973, %v974
  %v976 = vpack.i.bf16 %v975, %v975
  %s977 = scalar_lea.vmem %s1, 512
  %v978 = vld [vmem:[%s977] sm:$0xff]
  %v979 = vld [vmem:[%s977 + $0x8] sm:$0xff]
  %v980 = vld [vmem:[%s977 + $0x10] sm:$0xff]
  %v981 = vld [vmem:[%s977 + $0x18] sm:$0xff]
  %v982 = vld [vmem:[%s977 + $0x20] sm:$0xff]
  %v983 = vld [vmem:[%s977 + $0x28] sm:$0xff]
  %v984 = vld [vmem:[%s977 + $0x30] sm:$0xff]
  %v985 = vld [vmem:[%s977 + $0x38] sm:$0xff]
  %v986 = vld [vmem:[%s977 + $0x40] sm:$0xff]
  %v987 = vld [vmem:[%s977 + $0x48] sm:$0xff]
  %v988 = vld [vmem:[%s977 + $0x50] sm:$0xff]
  %v989 = vld [vmem:[%s977 + $0x58] sm:$0xff]
  %v990 = vld [vmem:[%s977 + $0x60] sm:$0xff]
  %v991 = vld [vmem:[%s977 + $0x68] sm:$0xff]
  %v992 = vld [vmem:[%s977 + $0x70] sm:$0xff]
  %v993 = vld [vmem:[%s977 + $0x78] sm:$0xff]
  %v994 = vld [vmem:[%s977 + $0x80] sm:$0xff]
  %v995 = vld [vmem:[%s977 + $0x88] sm:$0xff]
  %v996 = vld [vmem:[%s977 + $0x90] sm:$0xff]
  %v997 = vld [vmem:[%s977 + $0x98] sm:$0xff]
  %v998 = vld [vmem:[%s977 + $0xa0] sm:$0xff]
  %v999 = vld [vmem:[%s977 + $0xa8] sm:$0xff]
  %v1000 = vld [vmem:[%s977 + $0xb0] sm:$0xff]
  %v1001 = vld [vmem:[%s977 + $0xb8] sm:$0xff]
  %v1002 = vld [vmem:[%s977 + $0xc0] sm:$0xff]
  %v1003 = vld [vmem:[%s977 + $0xc8] sm:$0xff]
  %v1004 = vld [vmem:[%s977 + $0xd0] sm:$0xff]
  %v1005 = vld [vmem:[%s977 + $0xd8] sm:$0xff]
  %v1006 = vld [vmem:[%s977 + $0xe0] sm:$0xff]
  %v1007 = vld [vmem:[%s977 + $0xe8] sm:$0xff]
  %v1008 = vld [vmem:[%s977 + $0xf0] sm:$0xff]
  %v1009 = vld [vmem:[%s977 + $0xf8] sm:$0xff]
  %s1010 = scalar_lea.vmem %s2, 4
  %v1011 = vld [vmem:[%s1010] sm:$0x3]
  %v1013 = vlaneseq
  %v1014 = vshrl.u32 %v1013, 7
  %v1015 = vsub.s32 0, %v1014
  %v1016 = vrot.slane %v1011, %v1015
  %v1017 = vlaneseq
  %v1018 = vshrl.u32 %v1017, 7
  %v1019 = vsub.s32 1, %v1018
  %v1020 = vrot.slane %v1011, %v1019
  %v1027 = vunpack.c.l.b16 %v937
  %v1028 = vunpack.c.l.b16 %v950
  %v1029 = vunpack.c.l.b16 %v963
  %v1030 = vunpack.c.l.b16 %v976
  %v1031 = vsel %vm181, %v1029, %v1027
  %v1032 = vsel %vm181, %v1030, %v1028
  %v1033 = vpack.c.b16 %v1031, %v1031
  %v1034 = vpack.c.b16 %v1032, %v1032
  %v1069 = vunpack.c.l.b16 %v978
  %v1070 = vunpack.c.h.b16 %v978
  %v1071 = vunpack.c.l.b16 %v979
  %v1072 = vunpack.c.h.b16 %v979
  %v1073 = vunpack.c.l.b16 %v980
  %v1074 = vunpack.c.h.b16 %v980
  %v1075 = vunpack.c.l.b16 %v981
  %v1076 = vunpack.c.h.b16 %v981
  %v1077 = vunpack.c.l.b16 %v982
  %v1078 = vunpack.c.h.b16 %v982
  %v1079 = vunpack.c.l.b16 %v983
  %v1080 = vunpack.c.h.b16 %v983
  %v1081 = vunpack.c.l.b16 %v984
  %v1082 = vunpack.c.h.b16 %v984
  %v1083 = vunpack.c.l.b16 %v985
  %v1084 = vunpack.c.h.b16 %v985
  %v1085 = vunpack.c.l.b16 %v986
  %v1086 = vunpack.c.h.b16 %v986
  %v1087 = vunpack.c.l.b16 %v987
  %v1088 = vunpack.c.h.b16 %v987
  %v1089 = vunpack.c.l.b16 %v988
  %v1090 = vunpack.c.h.b16 %v988
  %v1091 = vunpack.c.l.b16 %v989
  %v1092 = vunpack.c.h.b16 %v989
  %v1093 = vunpack.c.l.b16 %v990
  %v1094 = vunpack.c.h.b16 %v990
  %v1095 = vunpack.c.l.b16 %v991
  %v1096 = vunpack.c.h.b16 %v991
  %v1097 = vunpack.c.l.b16 %v992
  %v1098 = vunpack.c.h.b16 %v992
  %v1099 = vunpack.c.l.b16 %v993
  %v1100 = vunpack.c.h.b16 %v993
  %v1101 = vunpack.c.l.b16 %v994
  %v1102 = vunpack.c.h.b16 %v994
  %v1103 = vunpack.c.l.b16 %v995
  %v1104 = vunpack.c.h.b16 %v995
  %v1105 = vunpack.c.l.b16 %v996
  %v1106 = vunpack.c.h.b16 %v996
  %v1107 = vunpack.c.l.b16 %v997
  %v1108 = vunpack.c.h.b16 %v997
  %v1109 = vunpack.c.l.b16 %v998
  %v1110 = vunpack.c.h.b16 %v998
  %v1111 = vunpack.c.l.b16 %v999
  %v1112 = vunpack.c.h.b16 %v999
  %v1113 = vunpack.c.l.b16 %v1000
  %v1114 = vunpack.c.h.b16 %v1000
  %v1115 = vunpack.c.l.b16 %v1001
  %v1116 = vunpack.c.h.b16 %v1001
  %v1117 = vunpack.c.l.b16 %v1002
  %v1118 = vunpack.c.h.b16 %v1002
  %v1119 = vunpack.c.l.b16 %v1003
  %v1120 = vunpack.c.h.b16 %v1003
  %v1121 = vunpack.c.l.b16 %v1004
  %v1122 = vunpack.c.h.b16 %v1004
  %v1123 = vunpack.c.l.b16 %v1005
  %v1124 = vunpack.c.h.b16 %v1005
  %v1125 = vunpack.c.l.b16 %v1006
  %v1126 = vunpack.c.h.b16 %v1006
  %v1127 = vunpack.c.l.b16 %v1007
  %v1128 = vunpack.c.h.b16 %v1007
  %v1129 = vunpack.c.l.b16 %v1008
  %v1130 = vunpack.c.h.b16 %v1008
  %v1131 = vunpack.c.l.b16 %v1009
  %v1132 = vunpack.c.h.b16 %v1009
  %v1133 = vpack.c.b16 %v1071, %v1069
  %v1134 = vpack.c.b16 %v1072, %v1070
  %v1135 = vpack.c.b16 %v1075, %v1073
  %v1136 = vpack.c.b16 %v1076, %v1074
  %v1137 = vpack.c.b16 %v1079, %v1077
  %v1138 = vpack.c.b16 %v1080, %v1078
  %v1139 = vpack.c.b16 %v1083, %v1081
  %v1140 = vpack.c.b16 %v1084, %v1082
  %v1141 = vpack.c.b16 %v1087, %v1085
  %v1142 = vpack.c.b16 %v1088, %v1086
  %v1143 = vpack.c.b16 %v1091, %v1089
  %v1144 = vpack.c.b16 %v1092, %v1090
  %v1145 = vpack.c.b16 %v1095, %v1093
  %v1146 = vpack.c.b16 %v1096, %v1094
  %v1147 = vpack.c.b16 %v1099, %v1097
  %v1148 = vpack.c.b16 %v1100, %v1098
  %v1149 = vpack.c.b16 %v1103, %v1101
  %v1150 = vpack.c.b16 %v1104, %v1102
  %v1151 = vpack.c.b16 %v1107, %v1105
  %v1152 = vpack.c.b16 %v1108, %v1106
  %v1153 = vpack.c.b16 %v1111, %v1109
  %v1154 = vpack.c.b16 %v1112, %v1110
  %v1155 = vpack.c.b16 %v1115, %v1113
  %v1156 = vpack.c.b16 %v1116, %v1114
  %v1157 = vpack.c.b16 %v1119, %v1117
  %v1158 = vpack.c.b16 %v1120, %v1118
  %v1159 = vpack.c.b16 %v1123, %v1121
  %v1160 = vpack.c.b16 %v1124, %v1122
  %v1161 = vpack.c.b16 %v1127, %v1125
  %v1162 = vpack.c.b16 %v1128, %v1126
  %v1163 = vpack.c.b16 %v1131, %v1129
  %v1164 = vpack.c.b16 %v1132, %v1130
  %1197 = vmatprep.subr.bf16.mxu0 %v1134
  %1198 = vmatpush1.bf16.msra.mxu0 %v1133
  %1199 = vmatprep.subr.bf16.mxu0 %v1136
  %1200 = vmatpush1.bf16.msra.mxu0 %v1135
  %1201 = vmatprep.subr.bf16.mxu0 %v1138
  %1202 = vmatpush1.bf16.msra.mxu0 %v1137
  %1203 = vmatprep.subr.bf16.mxu0 %v1140
  %1204 = vmatpush1.bf16.msra.mxu0 %v1139
  %1205 = vmatprep.subr.bf16.mxu0 %v1142
  %1206 = vmatpush1.bf16.msra.mxu0 %v1141
  %1207 = vmatprep.subr.bf16.mxu0 %v1144
  %1208 = vmatpush1.bf16.msra.mxu0 %v1143
  %1209 = vmatprep.subr.bf16.mxu0 %v1146
  %1210 = vmatpush1.bf16.msra.mxu0 %v1145
  %1211 = vmatprep.subr.bf16.mxu0 %v1148
  %1212 = vmatpush1.bf16.msra.mxu0 %v1147
  %1213 = vmatprep.subr.bf16.mxu0 %v1150
  %1214 = vmatpush1.bf16.msra.mxu0 %v1149
  %1215 = vmatprep.subr.bf16.mxu0 %v1152
  %1216 = vmatpush1.bf16.msra.mxu0 %v1151
  %1217 = vmatprep.subr.bf16.mxu0 %v1154
  %1218 = vmatpush1.bf16.msra.mxu0 %v1153
  %1219 = vmatprep.subr.bf16.mxu0 %v1156
  %1220 = vmatpush1.bf16.msra.mxu0 %v1155
  %1221 = vmatprep.subr.bf16.mxu0 %v1158
  %1222 = vmatpush1.bf16.msra.mxu0 %v1157
  %1223 = vmatprep.subr.bf16.mxu0 %v1160
  %1224 = vmatpush1.bf16.msra.mxu0 %v1159
  %1225 = vmatprep.subr.bf16.mxu0 %v1162
  %1226 = vmatpush1.bf16.msra.mxu0 %v1161
  %1227 = vmatprep.subr.bf16.mxu0 %v1164
  %1228 = vmatpush1.bf16.msra.mxu0 %v1163
  %1229 = vmatprep.mubr.bf16.mxu0 %v1034
  %1230 = vmatmul.mubr.bf16.gmra.mrb[0].mxu0 %v1033
  %v1231 = vpop.f32.mrb[0].mxu0
  %v1232 = vadd.f32 %v1016, %v1231
  %v1233 = vpop.f32.mrb[0].mxu0
  %v1234 = vadd.f32 %v1020, %v1233
  %v1235 = vpop.f32.mrb[0].mxu0
  %v1236 = vpop.f32.mrb[0].mxu0
  %1237 = vdwg.mxu0
  %s1238 = scalar_lea.vmem %s3, 4
  %v1239 = vld [vmem:[%s1238] sm:$0x3]
  %v1241 = vlaneseq
  %v1242 = vshrl.u32 %v1241, 7
  %v1243 = vsub.s32 0, %v1242
  %v1244 = vrot.slane %v1239, %v1243
  %v1245 = vlaneseq
  %v1246 = vshrl.u32 %v1245, 7
  %v1247 = vsub.s32 1, %v1246
  %v1248 = vrot.slane %v1239, %v1247
  %v1251 = vmul.f32 %v1232, %v1244
  %v1252 = vmul.f32 %v1234, %v1248
  %s1253 = scalar_lea.vmem %s4, 4
  %v1254 = vld [vmem:[%s1253] sm:$0x3]
  %v1256 = vlaneseq
  %v1257 = vshrl.u32 %v1256, 7
  %v1258 = vsub.s32 0, %v1257
  %v1259 = vrot.slane %v1254, %v1258
  %v1260 = vlaneseq
  %v1261 = vshrl.u32 %v1260, 7
  %v1262 = vsub.s32 1, %v1261
  %v1263 = vrot.slane %v1254, %v1262
  %v1266 = vadd.f32 %v1251, %v1259
  %v1267 = vadd.f32 %v1252, %v1263
  %s1268 = scalar_lea.vmem %s5, 4
  %v1269 = vld [vmem:[%s1268] sm:$0x3]
  %v1271 = vlaneseq
  %v1272 = vshrl.u32 %v1271, 7
  %v1273 = vsub.s32 0, %v1272
  %v1274 = vrot.slane %v1269, %v1273
  %v1275 = vlaneseq
  %v1276 = vshrl.u32 %v1275, 7
  %v1277 = vsub.s32 1, %v1276
  %v1278 = vrot.slane %v1269, %v1277
  %v1281 = vmul.f32 %v1266, %v1274
  %v1282 = vmul.f32 %v1267, %v1278
  %v1283 = vsel %vm431, %v1281, 0.0
  %v1284 = vsel %vm431, %v1282, 0.0
  %v1285 = vadd.f32 %v1283, %v1284
  %1286 = vadd.xlane.f32.xlu0 %v1285
  %v1287 = vpop.xlane.xlu0 %1286
  %s1288 = scalar_lea.vmem %s6, 2
  %v1289 = vld [vmem:[%s1288] sm:$0x1]
  %v1291 = vlaneseq
  %v1292 = vshrl.u32 %v1291, 7
  %v1293 = vsub.s32 0, %v1292
  %v1294 = vrot.slane %v1289, %v1293
  %v1296 = vadd.f32 %v1287, %v1294
  %v1297 = vmul.f32 %v1296, 0.5
  %v1298 = vtanh.pop %v1297
  %v1299 = vadd.f32 %v1298, 1.0
  %v1300 = vmul.f32 %v1299, 0.5
  %v1301 = vadd.f32 %v875, %v1300
  %v1302 = vmul.f32 %v1301, 0.33333334
  %vm1303 = vcmask 1024
  %1304 = vst.msk [vmem:[%s7] sm:$0x3] %vm1303, %v1302
  // Predicated region
  $region30: #{_lambda_.49} parent=0 // pred_check
    _
  $region31: #{_lambda_.49} parent=0 // pred_check_branch
    %1306 = sbr.rel (0) target = $region33
  $region32: #{_lambda_.49} parent=0 // pred_region
    _
  $region33: #{_lambda_.49} parent=0 // pred_fallthru
    _
  // Predicated region
  $region34: #{_lambda_.49} parent=0 // pred_check
    _
  $region35: #{_lambda_.49} parent=0 // pred_check_branch
    %1308 = sbr.rel (0) target = $region37
  $region36: #{_lambda_.49} parent=0 // pred_region
    _
  $region37: #{_lambda_.49} parent=0 // pred_fallthru
    _

</llo_original>
